<compile_context>
chip_gen: v7x
topology: tpu7x:2x2x1
jax: 0.10.0
libtpu: 0.0.40
codegen_flags: <defaults>
</compile_context>

<pallas_src>
import jax
import jax.numpy as jnp
from jax import lax
from jax.experimental import pallas as pl
from jax.experimental.pallas import tpu as pltpu


def _round_up(n, m):
    return ((n + m - 1) // m) * m


# ----------------------------------------------------------------------------
# Kernel
# ----------------------------------------------------------------------------
def _im2col_3x3(patch_ref, x, H, W, C):
    """Scatter the 9 shifted 3x3 taps of x (H, W, C) into patch_ref (H, W, 9C).

    patch_ref is bf16 (MXU operand dtype); x may be f32 (cast once here).
    Only the 1-pixel halo strips are re-zeroed each step (tap interiors are
    fully overwritten), which keeps the kernel correct under megacore grid
    partitioning (scratch is per-core).  Returns the assembled patch as a
    (H*W, 9*C) bf16 value whose channel order matches w.reshape(9*C, Cout)
    for HWIO weights.
    """
    zero_row = jnp.zeros((1, W, 9 * C), jnp.bfloat16)
    zero_col = jnp.zeros((H, 1, 9 * C), jnp.bfloat16)
    patch_ref[0:1, :, :] = zero_row
    patch_ref[H - 1:H, :, :] = zero_row
    patch_ref[:, 0:1, :] = zero_col
    patch_ref[:, W - 1:W, :] = zero_col

    x_bf = x.astype(jnp.bfloat16)
    for ky in range(3):
        for kx in range(3):
            dy, dx = ky - 1, kx - 1
            h_lo, h_hi = max(0, -dy), H - max(0, dy)
            w_lo, w_hi = max(0, -dx), W - max(0, dx)
            k = ky * 3 + kx
            # Channel offset k*C is a multiple of 128 -> lane-aligned store.
            patch_ref[h_lo:h_hi, w_lo:w_hi, k * C:(k + 1) * C] = (
                x_bf[h_lo + dy:h_hi + dy, w_lo + dx:w_hi + dx, :])
    return patch_ref[...].reshape(H * W, 9 * C)


def _make_basic_block_kernel(H, W, Cin_p, Cout_p, has_shortcut):
    """Fused BasicBlock kernel; one batch element per grid step.

    BN scales are pre-folded into the weights by the wrapper, so the kernel
    only adds a per-output-channel bias after each conv.
    """

    def kernel(*refs):
        if has_shortcut:
            (x_ref, w1_ref, b1_ref, w2_ref, b2_ref, wsc_ref,
             out_ref, p1_ref, p2_ref) = refs
        else:
            (x_ref, w1_ref, b1_ref, w2_ref, b2_ref,
             out_ref, p1_ref, p2_ref) = refs

        x = x_ref[0]  # (H, W, Cin_p) f32

        # ---- conv1 (bn1 scale folded into w1): one MXU dot, K = 9*Cin_p ----
        p1 = _im2col_3x3(p1_ref, x, H, W, Cin_p)              # (H*W, 9*Cin_p) bf16
        a1 = jnp.dot(p1, w1_ref[...],
                     preferred_element_type=jnp.float32)      # (H*W, Cout_p) f32
        h1 = jnp.maximum(a1 + b1_ref[...], 0.0)

        # ---- conv2 (bn2 scale folded into w2): one MXU dot, K = 9*Cout_p ---
        p2 = _im2col_3x3(p2_ref, h1.reshape(H, W, Cout_p), H, W, Cout_p)
        acc = jnp.dot(p2, w2_ref[...],
                      preferred_element_type=jnp.float32)     # (H*W, Cout_p)
        acc = acc + b2_ref[...]   # b2 already includes the shortcut-BN bias.

        # ---- shortcut -------------------------------------------------------
        x2d = x.reshape(H * W, Cin_p)
        if has_shortcut:
            # 1x1 projection; BN-scale folded into wsc, bias folded into b2.
            acc = acc + jnp.dot(x2d.astype(jnp.bfloat16), wsc_ref[...],
                                preferred_element_type=jnp.float32)
        else:
            acc = acc + x2d       # identity (Cin_p == Cout_p, pad lanes zero)

        # ---- relu; lane-dense (Cout_p % 128 == 0) store ----------------------
        out_ref[0] = jnp.maximum(acc, 0.0)

    return kernel


# ----------------------------------------------------------------------------
# Wrapper
# ----------------------------------------------------------------------------
def _bn_fold(bn, eps):
    """Return (scale, bias) with y = x*scale + bias  ==  BN_eval(x)."""
    gamma, beta, mean, var = bn
    scale = gamma / jnp.sqrt(var + eps)
    bias = beta - mean * scale
    return scale.astype(jnp.float32), bias.astype(jnp.float32)


def _pad_bias(bias, c_pad):
    return jnp.pad(bias, (0, c_pad - bias.shape[0])).reshape(1, c_pad)


def basic_block_forward(x_nhwc, params, stride=1, eps=1e-5):
    """Fused BasicBlock forward.  x_nhwc: [N, H, W, Cin] float32."""
    if stride != 1:
        # TODO(synk): stride > 1 not implemented in the kernel.
        raise NotImplementedError("stride > 1 not implemented in the kernel")

    N, H, W, Cin = x_nhwc.shape
    Cout = params["w1"].shape[-1]
    has_shortcut = (stride != 1) or (Cin != Cout)

    # Pad channels to the 128-lane width: dense vregs, unmasked stores, aligned
    # channel-block offsets.  (No-op for channel counts already % 128 == 0.)
    Cin_p, Cout_p = _round_up(Cin, 128), _round_up(Cout, 128)
    x_p = jnp.pad(x_nhwc.astype(jnp.float32),
                  ((0, 0), (0, 0), (0, 0), (0, Cin_p - Cin)))

    # Fold BN scales into the conv weights (host-side, one time).
    s1, b1 = _bn_fold(params["bn1"], eps)
    s2, b2 = _bn_fold(params["bn2"], eps)

    w1 = params["w1"] * s1[None, None, None, :]
    w1 = jnp.pad(w1, ((0, 0), (0, 0), (0, Cin_p - Cin), (0, Cout_p - Cout)))
    w1 = w1.reshape(9 * Cin_p, Cout_p).astype(jnp.bfloat16)

    w2 = params["w2"] * s2[None, None, None, :]
    w2 = jnp.pad(w2, ((0, 0), (0, 0), (0, Cout_p - Cout), (0, Cout_p - Cout)))
    w2 = w2.reshape(9 * Cout_p, Cout_p).astype(jnp.bfloat16)

    b1_p = _pad_bias(b1, Cout_p)

    inputs = [x_p, w1, b1_p, w2]
    in_specs = [
        pl.BlockSpec((1, H, W, Cin_p), lambda n: (n, 0, 0, 0)),
        pl.BlockSpec((9 * Cin_p, Cout_p), lambda n: (0, 0)),
        pl.BlockSpec((1, Cout_p), lambda n: (0, 0)),
        pl.BlockSpec((9 * Cout_p, Cout_p), lambda n: (0, 0)),
    ]

    if has_shortcut:
        ssc, bsc = _bn_fold(params["bnsc"], eps)
        wsc = params["wsc"].reshape(Cin, Cout) * ssc[None, :]
        wsc = jnp.pad(wsc, ((0, Cin_p - Cin), (0, Cout_p - Cout)))
        wsc = wsc.astype(jnp.bfloat16)
        b2_total = _pad_bias(b2 + bsc, Cout_p)   # merge bn2 + shortcut-BN bias
        inputs += [b2_total, wsc]
        in_specs += [
            pl.BlockSpec((1, Cout_p), lambda n: (0, 0)),
            pl.BlockSpec((Cin_p, Cout_p), lambda n: (0, 0)),
        ]
    else:
        inputs += [_pad_bias(b2, Cout_p)]
        in_specs += [pl.BlockSpec((1, Cout_p), lambda n: (0, 0))]

    kernel = _make_basic_block_kernel(H, W, Cin_p, Cout_p, has_shortcut)

    out_flat = pl.pallas_call(
        kernel,
        out_shape=jax.ShapeDtypeStruct((N, H * W, Cout_p), jnp.float32),
        grid_spec=pltpu.PrefetchScalarGridSpec(
            num_scalar_prefetch=0,
            grid=(N,),
            in_specs=in_specs,
            # Lane-dense output block: minor dim Cout_p is a 128 multiple.
            out_specs=pl.BlockSpec((1, H * W, Cout_p), lambda n: (n, 0, 0)),
            scratch_shapes=[
                pltpu.VMEM((H, W, 9 * Cin_p), jnp.bfloat16),   # conv1 im2col
                pltpu.VMEM((H, W, 9 * Cout_p), jnp.bfloat16),  # conv2 im2col
            ],
        ),
        compiler_params=pltpu.CompilerParams(
            dimension_semantics=("parallel",),
            vmem_limit_bytes=32 * 1024 * 1024,
        ),
    )(*inputs)

    return out_flat[:, :, :Cout].reshape(N, H, W, Cout)


# ----------------------------------------------------------------------------
# Pure-JAX reference (eval-mode BatchNorm), for verification.
# ----------------------------------------------------------------------------
def basic_block_reference(x_nhwc, params, eps=1e-5):
    def conv(x, w, stride, pad):
        return lax.conv_general_dilated(
            x, w, (stride, stride), [(pad, pad), (pad, pad)],
            dimension_numbers=("NHWC", "HWIO", "NHWC"))

    def bn(x, p):
        gamma, beta, mean, var = p
        return (x - mean) / jnp.sqrt(var + eps) * gamma + beta

    out = jax.nn.relu(bn(conv(x_nhwc, params["w1"], 1, 1), params["bn1"]))
    out = bn(conv(out, params["w2"], 1, 1), params["bn2"])
    Cin = x_nhwc.shape[-1]
    Cout = params["w1"].shape[-1]
    if Cin != Cout:
        sc = bn(conv(x_nhwc, params["wsc"], 1, 0), params["bnsc"])
    else:
        sc = x_nhwc
    return jax.nn.relu(out + sc)


# ----------------------------------------------------------------------------
# Deterministic parameter construction (synthetic; shapes per __init__).
# ----------------------------------------------------------------------------
def make_params(key, in_planes, planes):
    ks = jax.random.split(key, 16)

    def bn_params(k):
        k1, k2, k3, k4 = jax.random.split(k, 4)
        gamma = jax.random.uniform(k1, (planes,), jnp.float32, 0.5, 1.5)
        beta = 0.1 * jax.random.normal(k2, (planes,), jnp.float32)
        mean = 0.1 * jax.random.normal(k3, (planes,), jnp.float32)
        var = jax.random.uniform(k4, (planes,), jnp.float32, 0.5, 1.5)
        return (gamma, beta, mean, var)

    params = {
        # conv weights stored HWIO (kh, kw, Cin, Cout)
        "w1": 0.1 * jax.random.normal(ks[0], (3, 3, in_planes, planes),
                                      jnp.float32),
        "bn1": bn_params(ks[1]),
        "w2": 0.1 * jax.random.normal(ks[2], (3, 3, planes, planes),
                                      jnp.float32),
        "bn2": bn_params(ks[3]),
    }
    if in_planes != planes:
        params["wsc"] = 0.1 * jax.random.normal(
            ks[4], (1, 1, in_planes, planes), jnp.float32)
        params["bnsc"] = bn_params(ks[5])
    return params


if __name__ == "__main__":
    # Small shapes: batch=2, in_planes=4, planes=8, spatial=16x16, stride=1.
    N, Cin, H, W = 2, 4, 16, 16
    planes = 8

    key = jax.random.PRNGKey(0)
    kx, kp = jax.random.split(key)
    x_nchw = jax.random.normal(kx, (N, Cin, H, W), jnp.float32)  # PyTorch NCHW
    x_nhwc = jnp.transpose(x_nchw, (0, 2, 3, 1))                 # kernel NHWC

    params = make_params(kp, Cin, planes)

    out = basic_block_forward(x_nhwc, params, stride=1)
    out = jax.block_until_ready(out)

    ref = basic_block_reference(x_nhwc, params)
    assert out.shape == (N, H, W, planes), out.shape
    # bf16 MXU operands + BN-folded bf16 weights -> loosened tolerance
    # (reference is pure f32).
    assert jnp.allclose(out, ref, rtol=5e-2, atol=5e-2), (
        float(jnp.max(jnp.abs(out - ref))))

    print("KERNEL_OK")
</pallas_src>

<mosaic_0001>
module attributes {stable_mosaic.version = 11 : i64} {
  func.func @kernel(%arg0: i32, %arg1: memref<1x16x16x128xf32, #tpu.memory_space<vmem>>, %arg2: memref<1152x128xbf16, #tpu.memory_space<vmem>>, %arg3: memref<1x128xf32, #tpu.memory_space<vmem>>, %arg4: memref<1152x128xbf16, #tpu.memory_space<vmem>>, %arg5: memref<1x128xf32, #tpu.memory_space<vmem>>, %arg6: memref<128x128xbf16, #tpu.memory_space<vmem>>, %arg7: memref<1x256x128xf32, #tpu.memory_space<vmem>>, %arg8: memref<16x16x1152xbf16, #tpu.memory_space<vmem>>, %arg9: memref<16x16x1152xbf16, #tpu.memory_space<vmem>>) attributes {dimension_semantics = [#tpu.dimension_semantics<parallel>], iteration_bounds = array<i64: 2>, scalar_prefetch = 0 : i64, scratch_operands = 2 : i64, tpu.core_type = #tpu.core_type<tc>, window_params = [{transform_indices = @transform_0, window_bounds = array<i64: 1, 16, 16, 128>}, {pipeline_mode = #tpu.pipeline_mode<synchronous>, transform_indices = @transform_1, window_bounds = array<i64: 1152, 128>}, {pipeline_mode = #tpu.pipeline_mode<synchronous>, transform_indices = @transform_2, window_bounds = array<i64: 1, 128>}, {pipeline_mode = #tpu.pipeline_mode<synchronous>, transform_indices = @transform_3, window_bounds = array<i64: 1152, 128>}, {pipeline_mode = #tpu.pipeline_mode<synchronous>, transform_indices = @transform_4, window_bounds = array<i64: 1, 128>}, {pipeline_mode = #tpu.pipeline_mode<synchronous>, transform_indices = @transform_5, window_bounds = array<i64: 128, 128>}, {transform_indices = @transform_6, window_bounds = array<i64: 1, 256, 128>}]} {
    %c0 = arith.constant 0 : index
    %c0_0 = arith.constant 0 : index
    %c0_1 = arith.constant 0 : index
    %c0_2 = arith.constant 0 : index
    %0 = vector.load %arg1[%c0, %c0_0, %c0_1, %c0_2] : memref<1x16x16x128xf32, #tpu.memory_space<vmem>>, vector<1x16x16x128xf32>
    %1 = vector.shape_cast %0 : vector<1x16x16x128xf32> to vector<16x16x128xf32>
    %cst = arith.constant 0.000000e+00 : bf16
    %2 = vector.broadcast %cst : bf16 to vector<1x16x1152xbf16>
    %cst_3 = arith.constant 0.000000e+00 : bf16
    %3 = vector.broadcast %cst_3 : bf16 to vector<16x1x1152xbf16>
    %c0_4 = arith.constant 0 : index
    %c0_5 = arith.constant 0 : index
    %c0_6 = arith.constant 0 : index
    %4 = vector.load %arg8[%c0_4, %c0_5, %c0_6] : memref<16x16x1152xbf16, #tpu.memory_space<vmem>>, vector<1x16x1152xbf16>
    tpu.vector_store %arg8[%c0_4, %c0_5, %c0_6], %2 {strides = array<i32>} : memref<16x16x1152xbf16, #tpu.memory_space<vmem>>, vector<1x16x1152xbf16>,
    %c15 = arith.constant 15 : index
    %c0_7 = arith.constant 0 : index
    %c0_8 = arith.constant 0 : index
    %5 = vector.load %arg8[%c15, %c0_7, %c0_8] : memref<16x16x1152xbf16, #tpu.memory_space<vmem>>, vector<1x16x1152xbf16>
    tpu.vector_store %arg8[%c15, %c0_7, %c0_8], %2 {strides = array<i32>} : memref<16x16x1152xbf16, #tpu.memory_space<vmem>>, vector<1x16x1152xbf16>,
    %c0_9 = arith.constant 0 : index
    %c0_10 = arith.constant 0 : index
    %c0_11 = arith.constant 0 : index
    %6 = vector.load %arg8[%c0_9, %c0_10, %c0_11] : memref<16x16x1152xbf16, #tpu.memory_space<vmem>>, vector<16x1x1152xbf16>
    tpu.vector_store %arg8[%c0_9, %c0_10, %c0_11], %3 {strides = array<i32>} : memref<16x16x1152xbf16, #tpu.memory_space<vmem>>, vector<16x1x1152xbf16>,
    %c0_12 = arith.constant 0 : index
    %c15_13 = arith.constant 15 : index
    %c0_14 = arith.constant 0 : index
    %7 = vector.load %arg8[%c0_12, %c15_13, %c0_14] : memref<16x16x1152xbf16, #tpu.memory_space<vmem>>, vector<16x1x1152xbf16>
    tpu.vector_store %arg8[%c0_12, %c15_13, %c0_14], %3 {strides = array<i32>} : memref<16x16x1152xbf16, #tpu.memory_space<vmem>>, vector<16x1x1152xbf16>,
    %8 = arith.truncf %1 : vector<16x16x128xf32> to vector<16x16x128xbf16>
    %9 = vector.extract_strided_slice %8 {offsets = [0, 0, 0], sizes = [15, 15, 128], strides = [1, 1, 1]} : vector<16x16x128xbf16> to vector<15x15x128xbf16>
    %c1 = arith.constant 1 : index
    %c1_15 = arith.constant 1 : index
    %c0_16 = arith.constant 0 : index
    %10 = vector.load %arg8[%c1, %c1_15, %c0_16] : memref<16x16x1152xbf16, #tpu.memory_space<vmem>>, vector<15x15x128xbf16>
    tpu.vector_store %arg8[%c1, %c1_15, %c0_16], %9 {strides = array<i32>} : memref<16x16x1152xbf16, #tpu.memory_space<vmem>>, vector<15x15x128xbf16>,
    %11 = vector.extract_strided_slice %8 {offsets = [0, 0, 0], sizes = [15, 16, 128], strides = [1, 1, 1]} : vector<16x16x128xbf16> to vector<15x16x128xbf16>
    %c1_17 = arith.constant 1 : index
    %c0_18 = arith.constant 0 : index
    %c128 = arith.constant 128 : index
    %12 = vector.load %arg8[%c1_17, %c0_18, %c128] : memref<16x16x1152xbf16, #tpu.memory_space<vmem>>, vector<15x16x128xbf16>
    tpu.vector_store %arg8[%c1_17, %c0_18, %c128], %11 {strides = array<i32>} : memref<16x16x1152xbf16, #tpu.memory_space<vmem>>, vector<15x16x128xbf16>,
    %13 = vector.extract_strided_slice %8 {offsets = [0, 1, 0], sizes = [15, 15, 128], strides = [1, 1, 1]} : vector<16x16x128xbf16> to vector<15x15x128xbf16>
    %c1_19 = arith.constant 1 : index
    %c0_20 = arith.constant 0 : index
    %c256 = arith.constant 256 : index
    %14 = vector.load %arg8[%c1_19, %c0_20, %c256] : memref<16x16x1152xbf16, #tpu.memory_space<vmem>>, vector<15x15x128xbf16>
    tpu.vector_store %arg8[%c1_19, %c0_20, %c256], %13 {strides = array<i32>} : memref<16x16x1152xbf16, #tpu.memory_space<vmem>>, vector<15x15x128xbf16>,
    %15 = vector.extract_strided_slice %8 {offsets = [0, 0, 0], sizes = [16, 15, 128], strides = [1, 1, 1]} : vector<16x16x128xbf16> to vector<16x15x128xbf16>
    %c0_21 = arith.constant 0 : index
    %c1_22 = arith.constant 1 : index
    %c384 = arith.constant 384 : index
    %16 = vector.load %arg8[%c0_21, %c1_22, %c384] : memref<16x16x1152xbf16, #tpu.memory_space<vmem>>, vector<16x15x128xbf16>
    tpu.vector_store %arg8[%c0_21, %c1_22, %c384], %15 {strides = array<i32>} : memref<16x16x1152xbf16, #tpu.memory_space<vmem>>, vector<16x15x128xbf16>,
    %c0_23 = arith.constant 0 : index
    %c0_24 = arith.constant 0 : index
    %c512 = arith.constant 512 : index
    %17 = vector.load %arg8[%c0_23, %c0_24, %c512] : memref<16x16x1152xbf16, #tpu.memory_space<vmem>>, vector<16x16x128xbf16>
    tpu.vector_store %arg8[%c0_23, %c0_24, %c512], %8 {strides = array<i32>} : memref<16x16x1152xbf16, #tpu.memory_space<vmem>>, vector<16x16x128xbf16>,
    %18 = vector.extract_strided_slice %8 {offsets = [0, 1, 0], sizes = [16, 15, 128], strides = [1, 1, 1]} : vector<16x16x128xbf16> to vector<16x15x128xbf16>
    %c0_25 = arith.constant 0 : index
    %c0_26 = arith.constant 0 : index
    %c640 = arith.constant 640 : index
    %19 = vector.load %arg8[%c0_25, %c0_26, %c640] : memref<16x16x1152xbf16, #tpu.memory_space<vmem>>, vector<16x15x128xbf16>
    tpu.vector_store %arg8[%c0_25, %c0_26, %c640], %18 {strides = array<i32>} : memref<16x16x1152xbf16, #tpu.memory_space<vmem>>, vector<16x15x128xbf16>,
    %20 = vector.extract_strided_slice %8 {offsets = [1, 0, 0], sizes = [15, 15, 128], strides = [1, 1, 1]} : vector<16x16x128xbf16> to vector<15x15x128xbf16>
    %c0_27 = arith.constant 0 : index
    %c1_28 = arith.constant 1 : index
    %c768 = arith.constant 768 : index
    %21 = vector.load %arg8[%c0_27, %c1_28, %c768] : memref<16x16x1152xbf16, #tpu.memory_space<vmem>>, vector<15x15x128xbf16>
    tpu.vector_store %arg8[%c0_27, %c1_28, %c768], %20 {strides = array<i32>} : memref<16x16x1152xbf16, #tpu.memory_space<vmem>>, vector<15x15x128xbf16>,
    %22 = vector.extract_strided_slice %8 {offsets = [1, 0, 0], sizes = [15, 16, 128], strides = [1, 1, 1]} : vector<16x16x128xbf16> to vector<15x16x128xbf16>
    %c0_29 = arith.constant 0 : index
    %c0_30 = arith.constant 0 : index
    %c896 = arith.constant 896 : index
    %23 = vector.load %arg8[%c0_29, %c0_30, %c896] : memref<16x16x1152xbf16, #tpu.memory_space<vmem>>, vector<15x16x128xbf16>
    tpu.vector_store %arg8[%c0_29, %c0_30, %c896], %22 {strides = array<i32>} : memref<16x16x1152xbf16, #tpu.memory_space<vmem>>, vector<15x16x128xbf16>,
    %24 = vector.extract_strided_slice %8 {offsets = [1, 1, 0], sizes = [15, 15, 128], strides = [1, 1, 1]} : vector<16x16x128xbf16> to vector<15x15x128xbf16>
    %c0_31 = arith.constant 0 : index
    %c0_32 = arith.constant 0 : index
    %c1024 = arith.constant 1024 : index
    %25 = vector.load %arg8[%c0_31, %c0_32, %c1024] : memref<16x16x1152xbf16, #tpu.memory_space<vmem>>, vector<15x15x128xbf16>
    tpu.vector_store %arg8[%c0_31, %c0_32, %c1024], %24 {strides = array<i32>} : memref<16x16x1152xbf16, #tpu.memory_space<vmem>>, vector<15x15x128xbf16>,
    %c0_33 = arith.constant 0 : index
    %c0_34 = arith.constant 0 : index
    %c0_35 = arith.constant 0 : index
    %26 = vector.load %arg8[%c0_33, %c0_34, %c0_35] : memref<16x16x1152xbf16, #tpu.memory_space<vmem>>, vector<16x16x1152xbf16>
    %27 = vector.shape_cast %26 : vector<16x16x1152xbf16> to vector<256x1152xbf16>
    %c0_36 = arith.constant 0 : index
    %c0_37 = arith.constant 0 : index
    %28 = vector.load %arg2[%c0_36, %c0_37] : memref<1152x128xbf16, #tpu.memory_space<vmem>>, vector<1152x128xbf16>
    %cst_38 = arith.constant dense<0.000000e+00> : vector<256x128xf32>
    %29 = tpu.matmul %27, %28, %cst_38 {dimension_numbers = #tpu.dot_dimension_numbers<[1], [0], [0], [1], [0, 0, 1, 1], [], []>} : vector<256x1152xbf16>, vector<1152x128xbf16>, vector<256x128xf32> -> vector<256x128xf32>
    %c0_39 = arith.constant 0 : index
    %c0_40 = arith.constant 0 : index
    %30 = vector.load %arg3[%c0_39, %c0_40] : memref<1x128xf32, #tpu.memory_space<vmem>>, vector<1x128xf32>
    %31 = vector.broadcast %30 : vector<1x128xf32> to vector<256x128xf32>
    %32 = arith.addf %29, %31 : vector<256x128xf32>
    %cst_41 = arith.constant 0.000000e+00 : f32
    %33 = vector.broadcast %cst_41 : f32 to vector<256x128xf32>
    %34 = arith.maximumf %32, %33 : vector<256x128xf32>
    %35 = vector.shape_cast %34 : vector<256x128xf32> to vector<16x16x128xf32>
    %cst_42 = arith.constant 0.000000e+00 : bf16
    %36 = vector.broadcast %cst_42 : bf16 to vector<1x16x1152xbf16>
    %cst_43 = arith.constant 0.000000e+00 : bf16
    %37 = vector.broadcast %cst_43 : bf16 to vector<16x1x1152xbf16>
    %c0_44 = arith.constant 0 : index
    %c0_45 = arith.constant 0 : index
    %c0_46 = arith.constant 0 : index
    %38 = vector.load %arg9[%c0_44, %c0_45, %c0_46] : memref<16x16x1152xbf16, #tpu.memory_space<vmem>>, vector<1x16x1152xbf16>
    tpu.vector_store %arg9[%c0_44, %c0_45, %c0_46], %36 {strides = array<i32>} : memref<16x16x1152xbf16, #tpu.memory_space<vmem>>, vector<1x16x1152xbf16>,
    %c15_47 = arith.constant 15 : index
    %c0_48 = arith.constant 0 : index
    %c0_49 = arith.constant 0 : index
    %39 = vector.load %arg9[%c15_47, %c0_48, %c0_49] : memref<16x16x1152xbf16, #tpu.memory_space<vmem>>, vector<1x16x1152xbf16>
    tpu.vector_store %arg9[%c15_47, %c0_48, %c0_49], %36 {strides = array<i32>} : memref<16x16x1152xbf16, #tpu.memory_space<vmem>>, vector<1x16x1152xbf16>,
    %c0_50 = arith.constant 0 : index
    %c0_51 = arith.constant 0 : index
    %c0_52 = arith.constant 0 : index
    %40 = vector.load %arg9[%c0_50, %c0_51, %c0_52] : memref<16x16x1152xbf16, #tpu.memory_space<vmem>>, vector<16x1x1152xbf16>
    tpu.vector_store %arg9[%c0_50, %c0_51, %c0_52], %37 {strides = array<i32>} : memref<16x16x1152xbf16, #tpu.memory_space<vmem>>, vector<16x1x1152xbf16>,
    %c0_53 = arith.constant 0 : index
    %c15_54 = arith.constant 15 : index
    %c0_55 = arith.constant 0 : index
    %41 = vector.load %arg9[%c0_53, %c15_54, %c0_55] : memref<16x16x1152xbf16, #tpu.memory_space<vmem>>, vector<16x1x1152xbf16>
    tpu.vector_store %arg9[%c0_53, %c15_54, %c0_55], %37 {strides = array<i32>} : memref<16x16x1152xbf16, #tpu.memory_space<vmem>>, vector<16x1x1152xbf16>,
    %42 = arith.truncf %35 : vector<16x16x128xf32> to vector<16x16x128xbf16>
    %43 = vector.extract_strided_slice %42 {offsets = [0, 0, 0], sizes = [15, 15, 128], strides = [1, 1, 1]} : vector<16x16x128xbf16> to vector<15x15x128xbf16>
    %c1_56 = arith.constant 1 : index
    %c1_57 = arith.constant 1 : index
    %c0_58 = arith.constant 0 : index
    %44 = vector.load %arg9[%c1_56, %c1_57, %c0_58] : memref<16x16x1152xbf16, #tpu.memory_space<vmem>>, vector<15x15x128xbf16>
    tpu.vector_store %arg9[%c1_56, %c1_57, %c0_58], %43 {strides = array<i32>} : memref<16x16x1152xbf16, #tpu.memory_space<vmem>>, vector<15x15x128xbf16>,
    %45 = vector.extract_strided_slice %42 {offsets = [0, 0, 0], sizes = [15, 16, 128], strides = [1, 1, 1]} : vector<16x16x128xbf16> to vector<15x16x128xbf16>
    %c1_59 = arith.constant 1 : index
    %c0_60 = arith.constant 0 : index
    %c128_61 = arith.constant 128 : index
    %46 = vector.load %arg9[%c1_59, %c0_60, %c128_61] : memref<16x16x1152xbf16, #tpu.memory_space<vmem>>, vector<15x16x128xbf16>
    tpu.vector_store %arg9[%c1_59, %c0_60, %c128_61], %45 {strides = array<i32>} : memref<16x16x1152xbf16, #tpu.memory_space<vmem>>, vector<15x16x128xbf16>,
    %47 = vector.extract_strided_slice %42 {offsets = [0, 1, 0], sizes = [15, 15, 128], strides = [1, 1, 1]} : vector<16x16x128xbf16> to vector<15x15x128xbf16>
    %c1_62 = arith.constant 1 : index
    %c0_63 = arith.constant 0 : index
    %c256_64 = arith.constant 256 : index
    %48 = vector.load %arg9[%c1_62, %c0_63, %c256_64] : memref<16x16x1152xbf16, #tpu.memory_space<vmem>>, vector<15x15x128xbf16>
    tpu.vector_store %arg9[%c1_62, %c0_63, %c256_64], %47 {strides = array<i32>} : memref<16x16x1152xbf16, #tpu.memory_space<vmem>>, vector<15x15x128xbf16>,
    %49 = vector.extract_strided_slice %42 {offsets = [0, 0, 0], sizes = [16, 15, 128], strides = [1, 1, 1]} : vector<16x16x128xbf16> to vector<16x15x128xbf16>
    %c0_65 = arith.constant 0 : index
    %c1_66 = arith.constant 1 : index
    %c384_67 = arith.constant 384 : index
    %50 = vector.load %arg9[%c0_65, %c1_66, %c384_67] : memref<16x16x1152xbf16, #tpu.memory_space<vmem>>, vector<16x15x128xbf16>
    tpu.vector_store %arg9[%c0_65, %c1_66, %c384_67], %49 {strides = array<i32>} : memref<16x16x1152xbf16, #tpu.memory_space<vmem>>, vector<16x15x128xbf16>,
    %c0_68 = arith.constant 0 : index
    %c0_69 = arith.constant 0 : index
    %c512_70 = arith.constant 512 : index
    %51 = vector.load %arg9[%c0_68, %c0_69, %c512_70] : memref<16x16x1152xbf16, #tpu.memory_space<vmem>>, vector<16x16x128xbf16>
    tpu.vector_store %arg9[%c0_68, %c0_69, %c512_70], %42 {strides = array<i32>} : memref<16x16x1152xbf16, #tpu.memory_space<vmem>>, vector<16x16x128xbf16>,
    %52 = vector.extract_strided_slice %42 {offsets = [0, 1, 0], sizes = [16, 15, 128], strides = [1, 1, 1]} : vector<16x16x128xbf16> to vector<16x15x128xbf16>
    %c0_71 = arith.constant 0 : index
    %c0_72 = arith.constant 0 : index
    %c640_73 = arith.constant 640 : index
    %53 = vector.load %arg9[%c0_71, %c0_72, %c640_73] : memref<16x16x1152xbf16, #tpu.memory_space<vmem>>, vector<16x15x128xbf16>
    tpu.vector_store %arg9[%c0_71, %c0_72, %c640_73], %52 {strides = array<i32>} : memref<16x16x1152xbf16, #tpu.memory_space<vmem>>, vector<16x15x128xbf16>,
    %54 = vector.extract_strided_slice %42 {offsets = [1, 0, 0], sizes = [15, 15, 128], strides = [1, 1, 1]} : vector<16x16x128xbf16> to vector<15x15x128xbf16>
    %c0_74 = arith.constant 0 : index
    %c1_75 = arith.constant 1 : index
    %c768_76 = arith.constant 768 : index
    %55 = vector.load %arg9[%c0_74, %c1_75, %c768_76] : memref<16x16x1152xbf16, #tpu.memory_space<vmem>>, vector<15x15x128xbf16>
    tpu.vector_store %arg9[%c0_74, %c1_75, %c768_76], %54 {strides = array<i32>} : memref<16x16x1152xbf16, #tpu.memory_space<vmem>>, vector<15x15x128xbf16>,
    %56 = vector.extract_strided_slice %42 {offsets = [1, 0, 0], sizes = [15, 16, 128], strides = [1, 1, 1]} : vector<16x16x128xbf16> to vector<15x16x128xbf16>
    %c0_77 = arith.constant 0 : index
    %c0_78 = arith.constant 0 : index
    %c896_79 = arith.constant 896 : index
    %57 = vector.load %arg9[%c0_77, %c0_78, %c896_79] : memref<16x16x1152xbf16, #tpu.memory_space<vmem>>, vector<15x16x128xbf16>
    tpu.vector_store %arg9[%c0_77, %c0_78, %c896_79], %56 {strides = array<i32>} : memref<16x16x1152xbf16, #tpu.memory_space<vmem>>, vector<15x16x128xbf16>,
    %58 = vector.extract_strided_slice %42 {offsets = [1, 1, 0], sizes = [15, 15, 128], strides = [1, 1, 1]} : vector<16x16x128xbf16> to vector<15x15x128xbf16>
    %c0_80 = arith.constant 0 : index
    %c0_81 = arith.constant 0 : index
    %c1024_82 = arith.constant 1024 : index
    %59 = vector.load %arg9[%c0_80, %c0_81, %c1024_82] : memref<16x16x1152xbf16, #tpu.memory_space<vmem>>, vector<15x15x128xbf16>
    tpu.vector_store %arg9[%c0_80, %c0_81, %c1024_82], %58 {strides = array<i32>} : memref<16x16x1152xbf16, #tpu.memory_space<vmem>>, vector<15x15x128xbf16>,
    %c0_83 = arith.constant 0 : index
    %c0_84 = arith.constant 0 : index
    %c0_85 = arith.constant 0 : index
    %60 = vector.load %arg9[%c0_83, %c0_84, %c0_85] : memref<16x16x1152xbf16, #tpu.memory_space<vmem>>, vector<16x16x1152xbf16>
    %61 = vector.shape_cast %60 : vector<16x16x1152xbf16> to vector<256x1152xbf16>
    %c0_86 = arith.constant 0 : index
    %c0_87 = arith.constant 0 : index
    %62 = vector.load %arg4[%c0_86, %c0_87] : memref<1152x128xbf16, #tpu.memory_space<vmem>>, vector<1152x128xbf16>
    %cst_88 = arith.constant dense<0.000000e+00> : vector<256x128xf32>
    %63 = tpu.matmul %61, %62, %cst_88 {dimension_numbers = #tpu.dot_dimension_numbers<[1], [0], [0], [1], [0, 0, 1, 1], [], []>} : vector<256x1152xbf16>, vector<1152x128xbf16>, vector<256x128xf32> -> vector<256x128xf32>
    %c0_89 = arith.constant 0 : index
    %c0_90 = arith.constant 0 : index
    %64 = vector.load %arg5[%c0_89, %c0_90] : memref<1x128xf32, #tpu.memory_space<vmem>>, vector<1x128xf32>
    %65 = vector.broadcast %64 : vector<1x128xf32> to vector<256x128xf32>
    %66 = arith.addf %63, %65 : vector<256x128xf32>
    %67 = vector.shape_cast %1 : vector<16x16x128xf32> to vector<256x128xf32>
    %68 = arith.truncf %67 : vector<256x128xf32> to vector<256x128xbf16>
    %c0_91 = arith.constant 0 : index
    %c0_92 = arith.constant 0 : index
    %69 = vector.load %arg6[%c0_91, %c0_92] : memref<128x128xbf16, #tpu.memory_space<vmem>>, vector<128x128xbf16>
    %cst_93 = arith.constant dense<0.000000e+00> : vector<256x128xf32>
    %70 = tpu.matmul %68, %69, %cst_93 {dimension_numbers = #tpu.dot_dimension_numbers<[1], [0], [0], [1], [0, 0, 1, 1], [], []>} : vector<256x128xbf16>, vector<128x128xbf16>, vector<256x128xf32> -> vector<256x128xf32>
    %71 = arith.addf %66, %70 : vector<256x128xf32>
    %cst_94 = arith.constant 0.000000e+00 : f32
    %72 = vector.broadcast %cst_94 : f32 to vector<256x128xf32>
    %73 = arith.maximumf %71, %72 : vector<256x128xf32>
    %c0_95 = arith.constant 0 : index
    %c0_96 = arith.constant 0 : index
    %c0_97 = arith.constant 0 : index
    %74 = vector.load %arg7[%c0_95, %c0_96, %c0_97] : memref<1x256x128xf32, #tpu.memory_space<vmem>>, vector<1x256x128xf32>
    %75 = vector.shape_cast %74 : vector<1x256x128xf32> to vector<256x128xf32>
    %76 = vector.shape_cast %73 : vector<256x128xf32> to vector<1x256x128xf32>
    tpu.vector_store %arg7[%c0_95, %c0_96, %c0_97], %76 {strides = array<i32>} : memref<1x256x128xf32, #tpu.memory_space<vmem>>, vector<1x256x128xf32>,
    return
  }
  func.func @transform_0(%arg0: i32) -> (i32, i32, i32, i32) {
    %c0_i32 = arith.constant 0 : i32
    %c0_i32_0 = arith.constant 0 : i32
    %c0_i32_1 = arith.constant 0 : i32
    %c0_i32_2 = arith.constant 0 : i32
    return %arg0, %c0_i32, %c0_i32_0, %c0_i32_1 : i32, i32, i32, i32
  }
  func.func @transform_1(%arg0: i32) -> (i32, i32) {
    %c0_i32 = arith.constant 0 : i32
    %c0_i32_0 = arith.constant 0 : i32
    %c0_i32_1 = arith.constant 0 : i32
    return %c0_i32, %c0_i32_0 : i32, i32
  }
  func.func @transform_2(%arg0: i32) -> (i32, i32) {
    %c0_i32 = arith.constant 0 : i32
    %c0_i32_0 = arith.constant 0 : i32
    %c0_i32_1 = arith.constant 0 : i32
    return %c0_i32, %c0_i32_0 : i32, i32
  }
  func.func @transform_3(%arg0: i32) -> (i32, i32) {
    %c0_i32 = arith.constant 0 : i32
    %c0_i32_0 = arith.constant 0 : i32
    %c0_i32_1 = arith.constant 0 : i32
    return %c0_i32, %c0_i32_0 : i32, i32
  }
  func.func @transform_4(%arg0: i32) -> (i32, i32) {
    %c0_i32 = arith.constant 0 : i32
    %c0_i32_0 = arith.constant 0 : i32
    %c0_i32_1 = arith.constant 0 : i32
    return %c0_i32, %c0_i32_0 : i32, i32
  }
  func.func @transform_5(%arg0: i32) -> (i32, i32) {
    %c0_i32 = arith.constant 0 : i32
    %c0_i32_0 = arith.constant 0 : i32
    %c0_i32_1 = arith.constant 0 : i32
    return %c0_i32, %c0_i32_0 : i32, i32
  }
  func.func @transform_6(%arg0: i32) -> (i32, i32, i32) {
    %c0_i32 = arith.constant 0 : i32
    %c0_i32_0 = arith.constant 0 : i32
    %c0_i32_1 = arith.constant 0 : i32
    return %arg0, %c0_i32, %c0_i32_0 : i32, i32, i32
  }
}

</mosaic_0001>

<llo_original>
// kernel: tpu_custom_call.1
$region0: #{tpu_custom_call.1}
  #allocation0 [shape = 'u32[]', space=smem, size = 0x4, offset = 0x4, fixed_abs, tag = 'smem constant byte address 0x4 - core index']
  #allocation1 [shape = 'u32[144,128]{1,0:T(1,128)}', space=vmem, size = 0x12000, scoped, tag = 'internal scratch']
  #allocation2 [shape = 'bf16[16,16,1152]{2,1,0:T(16,128)(2,1)}', space=vmem, size = 0x90000, scoped, tag = 'scratch operand']
  #allocation3 [shape = 'bf16[16,16,1152]{2,1,0:T(16,128)(2,1)}', space=vmem, size = 0x90000, scoped, tag = 'scratch operand']
  %s0 = inlined_call_operand.hbm [shape: f32[2,16,16,128], index: 0, kind: input, shape index: {}]
  %s1 = inlined_call_operand.hbm [shape: bf16[1152,128], index: 1, kind: input, shape index: {}]
  %s2 = inlined_call_operand.vmem [shape: f32[1,128], index: 2, kind: input, shape index: {}]
  %s3 = inlined_call_operand.hbm [shape: bf16[1152,128], index: 3, kind: input, shape index: {}]
  %s4 = inlined_call_operand.vmem [shape: f32[1,128], index: 4, kind: input, shape index: {}]
  %s5 = inlined_call_operand.hbm [shape: bf16[128,128], index: 5, kind: input, shape index: {}]
  %s6 = inlined_call_operand.hbm [shape: f32[2,256,128], index: 6, kind: output, shape index: {}]
  %s7 = sld [smem:[#allocation0]]
  $region73: #{tpu_custom_call.1} parent=0
    _
  %s9 = ssub.s32 1, %s7
  %s10 = scalar_select 0, %s9, %s7
  $region1: #{tpu_custom_call.1} parent=0
    #allocation4 [shape = 'u8[262144]{0}', space=vmem, size = 0x40000, scoped, tag = 'input window, operand 0']
    #allocation5 [shape = 's32[2]{0}', space=sflag, size = 0x8, scoped, tag = 'scoped memory for tpu_custom_call.1']
    #allocation6 [shape = 's32[2]{0}', space=sflag, size = 0x8, scoped, tag = 'scoped memory for tpu_custom_call.1']
    #allocation7 [shape = 'u8[294912]{0}', space=vmem, size = 0x48000, scoped, tag = 'input window, operand 1, single buffered']
    #allocation8 [shape = 's32[1]{0}', space=sflag, size = 0x4, scoped, tag = 'scoped memory for tpu_custom_call.1']
    #allocation9 [shape = 'u8[294912]{0}', space=vmem, size = 0x48000, scoped, tag = 'input window, operand 3, single buffered']
    #allocation10 [shape = 'u8[32768]{0}', space=vmem, size = 0x8000, scoped, tag = 'input window, operand 5, single buffered']
    #allocation11 [shape = 's32[1]{0}', space=sflag, size = 0x4, scoped, tag = 'scoped memory for tpu_custom_call.1']
    #allocation12 [shape = 'u8[262144]{0}', space=vmem, size = 0x40000, scoped, tag = 'output window, operand 0']
    %11 = vsyncpa [#allocation5], 0
    %s12 = scalar_lea.sflag [#allocation5], 1
    %13 = vsyncpa %s12, 0
    %14 = vsyncpa [#allocation8], 0
    %15 = vsyncpa [#allocation11], 0
    %16 = vsyncpa [#allocation6], 0
    %s17 = scalar_lea.sflag [#allocation6], 1
    %18 = vsyncpa %s17, 0
    loop: start=0, step=1, limit=4
    $region2: #{tpu_custom_call.1} parent=1 // loop_pre_header
      _
    $region3: #{tpu_custom_call.1} parent=1 // loop_header
      %s20 = sphi 0, %s24
      %p21 = scmp.ge.s32.totalorder %s20, 4
      %s30 = sphi 0, %s32
      %s33 = sphi 0, %s30
      %s34 = sphi 0, %s33
      %s50 = sphi 0, %s34
      %s54 = sphi 0, %s54
      %s56 = sphi 0, %s54
      %s57 = sphi 0, %s56
      %s71 = sphi 0, %s57
      %s75 = sphi 0, %s75
      %s77 = sphi 0, %s75
      %s78 = sphi 0, %s77
      %s92 = sphi 0, %s78
      %s96 = sphi 0, %s96
      %s98 = sphi 0, %s96
      %s99 = sphi 0, %s98
      %s113 = sphi 0, %s99
      %s117 = sphi 0, %s117
      %s119 = sphi 0, %s117
      %s120 = sphi 0, %s119
      %s134 = sphi 0, %s120
      %s138 = sphi 0, %s138
      %s140 = sphi 0, %s138
      %s141 = sphi 0, %s140
      %s155 = sphi 0, %s141
      %s161 = sphi 0, %s163
      %s164 = sphi 0, %s161
      %s165 = sphi 0, %s164
      %s181 = sphi 0, %s165
    $region4: #{tpu_custom_call.1} parent=1 // loop_header_branch
      %23 = sbr.rel (%p21) target = $region8
    $region5: #{tpu_custom_call.1} parent=1 // loop_body
      %s25 = ssub.s32 %s20, 1
      %s26 = ssub.s32 %s20, 2
      %s27 = sadd.s32 %s20, 1
      %s28 = ssub.s32 %s20, %s27
      %p29 = scmp.eq.s32.totalorder %s28, 0
      %s31 = sadd.s32 %s30, 1
      %s32 = scalar_select %p29, %s30, %s31
      %p35 = pneg %p29
      %p36 = scmp.eq.s32.totalorder %s20, 1
      %p37 = por %p35, %p36
      %p38 = scmp.ne.s32.totalorder %s30, %s33
      %p39 = scmp.eq.s32.totalorder %s20, 0
      %p40 = por %p38, %p39
      %p41 = scmp.ne.s32.totalorder %s30, %s33
      %p42 = scmp.eq.s32.totalorder %s25, 1
      %p43 = por %p41, %p42
      %p44 = scmp.ne.s32.totalorder %s33, %s34
      %p45 = scmp.eq.s32.totalorder %s25, 0
      %p46 = por %p44, %p45
      %p47 = scmp.ne.s32.totalorder %s33, %s34
      %p48 = scmp.eq.s32.totalorder %s26, 1
      %p49 = por %p47, %p48
      %p51 = scmp.ne.s32.totalorder %s34, %s50
      %p52 = scmp.eq.s32.totalorder %s26, 0
      %p53 = por %p51, %p52
      %s55 = sadd.s32 %s54, 1
      %p58 = scmp.eq.s32.totalorder %s20, 1
      %p59 = scmp.ne.s32.totalorder %s54, %s56
      %p60 = scmp.eq.s32.totalorder %s20, 0
      %p61 = por %p59, %p60
      %p62 = scmp.ne.s32.totalorder %s54, %s56
      %p63 = scmp.eq.s32.totalorder %s25, 1
      %p64 = por %p62, %p63
      %p65 = scmp.ne.s32.totalorder %s56, %s57
      %p66 = scmp.eq.s32.totalorder %s25, 0
      %p67 = por %p65, %p66
      %p68 = scmp.ne.s32.totalorder %s56, %s57
      %p69 = scmp.eq.s32.totalorder %s26, 1
      %p70 = por %p68, %p69
      %p72 = scmp.ne.s32.totalorder %s57, %s71
      %p73 = scmp.eq.s32.totalorder %s26, 0
      %p74 = por %p72, %p73
      %s76 = sadd.s32 %s75, 1
      %p79 = scmp.eq.s32.totalorder %s20, 1
      %p80 = scmp.ne.s32.totalorder %s75, %s77
      %p81 = scmp.eq.s32.totalorder %s20, 0
      %p82 = por %p80, %p81
      %p83 = scmp.ne.s32.totalorder %s75, %s77
      %p84 = scmp.eq.s32.totalorder %s25, 1
      %p85 = por %p83, %p84
      %p86 = scmp.ne.s32.totalorder %s77, %s78
      %p87 = scmp.eq.s32.totalorder %s25, 0
      %p88 = por %p86, %p87
      %p89 = scmp.ne.s32.totalorder %s77, %s78
      %p90 = scmp.eq.s32.totalorder %s26, 1
      %p91 = por %p89, %p90
      %p93 = scmp.ne.s32.totalorder %s78, %s92
      %p94 = scmp.eq.s32.totalorder %s26, 0
      %p95 = por %p93, %p94
      %s97 = sadd.s32 %s96, 1
      %p100 = scmp.eq.s32.totalorder %s20, 1
      %p101 = scmp.ne.s32.totalorder %s96, %s98
      %p102 = scmp.eq.s32.totalorder %s20, 0
      %p103 = por %p101, %p102
      %p104 = scmp.ne.s32.totalorder %s96, %s98
      %p105 = scmp.eq.s32.totalorder %s25, 1
      %p106 = por %p104, %p105
      %p107 = scmp.ne.s32.totalorder %s98, %s99
      %p108 = scmp.eq.s32.totalorder %s25, 0
      %p109 = por %p107, %p108
      %p110 = scmp.ne.s32.totalorder %s98, %s99
      %p111 = scmp.eq.s32.totalorder %s26, 1
      %p112 = por %p110, %p111
      %p114 = scmp.ne.s32.totalorder %s99, %s113
      %p115 = scmp.eq.s32.totalorder %s26, 0
      %p116 = por %p114, %p115
      %s118 = sadd.s32 %s117, 1
      %p121 = scmp.eq.s32.totalorder %s20, 1
      %p122 = scmp.ne.s32.totalorder %s117, %s119
      %p123 = scmp.eq.s32.totalorder %s20, 0
      %p124 = por %p122, %p123
      %p125 = scmp.ne.s32.totalorder %s117, %s119
      %p126 = scmp.eq.s32.totalorder %s25, 1
      %p127 = por %p125, %p126
      %p128 = scmp.ne.s32.totalorder %s119, %s120
      %p129 = scmp.eq.s32.totalorder %s25, 0
      %p130 = por %p128, %p129
      %p131 = scmp.ne.s32.totalorder %s119, %s120
      %p132 = scmp.eq.s32.totalorder %s26, 1
      %p133 = por %p131, %p132
      %p135 = scmp.ne.s32.totalorder %s120, %s134
      %p136 = scmp.eq.s32.totalorder %s26, 0
      %p137 = por %p135, %p136
      %s139 = sadd.s32 %s138, 1
      %p142 = scmp.eq.s32.totalorder %s20, 1
      %p143 = scmp.ne.s32.totalorder %s138, %s140
      %p144 = scmp.eq.s32.totalorder %s20, 0
      %p145 = por %p143, %p144
      %p146 = scmp.ne.s32.totalorder %s138, %s140
      %p147 = scmp.eq.s32.totalorder %s25, 1
      %p148 = por %p146, %p147
      %p149 = scmp.ne.s32.totalorder %s140, %s141
      %p150 = scmp.eq.s32.totalorder %s25, 0
      %p151 = por %p149, %p150
      %p152 = scmp.ne.s32.totalorder %s140, %s141
      %p153 = scmp.eq.s32.totalorder %s26, 1
      %p154 = por %p152, %p153
      %p156 = scmp.ne.s32.totalorder %s141, %s155
      %p157 = scmp.eq.s32.totalorder %s26, 0
      %p158 = por %p156, %p157
      %s159 = ssub.s32 %s20, %s27
      %p160 = scmp.eq.s32.totalorder %s159, 0
      %s162 = sadd.s32 %s161, 1
      %s163 = scalar_select %p160, %s161, %s162
      %p166 = pneg %p160
      %p167 = scmp.eq.s32.totalorder %s20, 1
      %p168 = por %p166, %p167
      %p169 = scmp.ne.s32.totalorder %s161, %s164
      %p170 = scmp.eq.s32.totalorder %s20, 0
      %p171 = por %p169, %p170
      %p172 = scmp.ne.s32.totalorder %s161, %s164
      %p173 = scmp.eq.s32.totalorder %s25, 1
      %p174 = por %p172, %p173
      %p175 = scmp.ne.s32.totalorder %s164, %s165
      %p176 = scmp.eq.s32.totalorder %s25, 0
      %p177 = por %p175, %p176
      %p178 = scmp.ne.s32.totalorder %s164, %s165
      %p179 = scmp.eq.s32.totalorder %s26, 1
      %p180 = por %p178, %p179
      %p182 = scmp.ne.s32.totalorder %s165, %s181
      %p183 = scmp.eq.s32.totalorder %s26, 0
      %p184 = por %p182, %p183
      %p185 = scmp.le.s32.totalorder 1, %s20
      %p186 = scmp.lt.s32.totalorder %s20, 3
      %p187 = pnand %p185, %p186
      %p188 = pneg %p187
      // Predicated region
      $region9: #{tpu_custom_call.1} parent=5 // pred_check
        _
      $region10: #{tpu_custom_call.1} parent=5 // pred_check_branch
        %190 = sbr.rel (%p187) target = $region12
      $region11: #{tpu_custom_call.1} parent=5 // pred_region
        %s191 = ssub.s32 %s20, 1
        // Predicated region
        $region13: #{tpu_custom_call.1} parent=11 // pred_check
          %p192 = pneg %p67
        $region14: #{tpu_custom_call.1} parent=11 // pred_check_branch
          %194 = sbr.rel (%p192) target = $region16
        $region15: #{tpu_custom_call.1} parent=11 // pred_region
          %s196 = ssub.s32 9216, 9216
          %197 = vsyncadd [#allocation8], %s196
          %s198 = sshll.u32 [#allocation7], 4
          %s199 = int_to_ptr.vmem [resolvable:$true] %s198
          %204 = dma.hbm_to_vmem [thread:$0]  %s1, 9216, %s199, [#allocation8], 64, 64, 4
        $region16: #{tpu_custom_call.1} parent=11 // pred_fallthru
          _
        // Predicated region
        $region17: #{tpu_custom_call.1} parent=11 // pred_check
          %p205 = pneg %p88
        $region18: #{tpu_custom_call.1} parent=11 // pred_check_branch
          %207 = sbr.rel (%p205) target = $region20
        $region19: #{tpu_custom_call.1} parent=11 // pred_region
          _
        $region20: #{tpu_custom_call.1} parent=11 // pred_fallthru
          _
        // Predicated region
        $region21: #{tpu_custom_call.1} parent=11 // pred_check
          %p208 = pneg %p109
        $region22: #{tpu_custom_call.1} parent=11 // pred_check_branch
          %210 = sbr.rel (%p208) target = $region24
        $region23: #{tpu_custom_call.1} parent=11 // pred_region
          %s212 = ssub.s32 9216, 9216
          %213 = vsyncadd [#allocation8], %s212
          %s214 = sshll.u32 [#allocation9], 4
          %s215 = int_to_ptr.vmem [resolvable:$true] %s214
          %220 = dma.hbm_to_vmem [thread:$0]  %s3, 9216, %s215, [#allocation8], 64, 64, 4
        $region24: #{tpu_custom_call.1} parent=11 // pred_fallthru
          _
        // Predicated region
        $region25: #{tpu_custom_call.1} parent=11 // pred_check
          %p221 = pneg %p130
        $region26: #{tpu_custom_call.1} parent=11 // pred_check_branch
          %223 = sbr.rel (%p221) target = $region28
        $region27: #{tpu_custom_call.1} parent=11 // pred_region
          _
        $region28: #{tpu_custom_call.1} parent=11 // pred_fallthru
          _
        // Predicated region
        $region29: #{tpu_custom_call.1} parent=11 // pred_check
          %p224 = pneg %p151
        $region30: #{tpu_custom_call.1} parent=11 // pred_check_branch
          %226 = sbr.rel (%p224) target = $region32
        $region31: #{tpu_custom_call.1} parent=11 // pred_region
          %s228 = ssub.s32 1024, 1024
          %229 = vsyncadd [#allocation11], %s228
          %s230 = sshll.u32 [#allocation10], 4
          %s231 = int_to_ptr.vmem [resolvable:$true] %s230
          %236 = dma.hbm_to_vmem [thread:$0]  %s5, 1024, %s231, [#allocation11], 64, 64, 4
        $region32: #{tpu_custom_call.1} parent=11 // pred_fallthru
          _
      $region12: #{tpu_custom_call.1} parent=5 // pred_fallthru
        _
      %p237 = scmp.lt.s32.totalorder %s20, 2
      // Predicated region
      $region33: #{tpu_custom_call.1} parent=5 // pred_check
        %p238 = pneg %p237
      $region34: #{tpu_custom_call.1} parent=5 // pred_check_branch
        %240 = sbr.rel (%p238) target = $region36
      $region35: #{tpu_custom_call.1} parent=5 // pred_region
        // Predicated region
        $region37: #{tpu_custom_call.1} parent=35 // pred_check
          %p241 = pneg %p40
        $region38: #{tpu_custom_call.1} parent=35 // pred_check_branch
          %243 = sbr.rel (%p241) target = $region40
        $region39: #{tpu_custom_call.1} parent=35 // pred_region
          %s244 = sand.u32 %s30, 1
          %s245 = scalar_lea.sflag [#allocation5], %s244
          %s246 = sand.u32 %s30, 1
          %s247 = smul.addr %s246, 256
          %s248 = scalar_lea.vmem [#allocation4], %s247
          %s250 = ssub.s32 4096, 4096
          %251 = vsyncadd %s245, %s250
          %s252 = smul.addr %s20, 32
          %s253 = smul.addr %s252, 128
          %s254 = scalar_lea.hbm %s0, %s253
          %s255 = sshll.u32 %s248, 4
          %s256 = int_to_ptr.vmem [resolvable:$true] %s255
          %261 = dma.hbm_to_vmem [thread:$0]  %s254, 4096, %s256, %s245, 128, 128, 8
        $region40: #{tpu_custom_call.1} parent=35 // pred_fallthru
          _
      $region36: #{tpu_custom_call.1} parent=5 // pred_fallthru
        _
      %p262 = scmp.le.s32.totalorder 1, %s20
      %p263 = scmp.lt.s32.totalorder %s20, 3
      %p264 = pnand %p262, %p263
      %p265 = pneg %p264
      // Predicated region
      $region41: #{tpu_custom_call.1} parent=5 // pred_check
        _
      $region42: #{tpu_custom_call.1} parent=5 // pred_check_branch
        %267 = sbr.rel (%p264) target = $region44
      $region43: #{tpu_custom_call.1} parent=5 // pred_region
        %s268 = ssub.s32 %s20, 1
        %s269 = sand.u32 %s33, 1
        %s270 = scalar_lea.sflag [#allocation5], %s269
        %s271 = sand.u32 %s33, 1
        %s272 = smul.addr %s271, 256
        %s273 = scalar_lea.vmem [#allocation4], %s272
        // Predicated region
        $region45: #{tpu_custom_call.1} parent=43 // pred_check
          %p274 = pneg %p46
        $region46: #{tpu_custom_call.1} parent=43 // pred_check_branch
          %276 = sbr.rel (%p274) target = $region48
        $region47: #{tpu_custom_call.1} parent=43 // pred_region
          %277 = dma.done %s270, 4096
        $region48: #{tpu_custom_call.1} parent=43 // pred_fallthru
          _
        // Predicated region
        $region49: #{tpu_custom_call.1} parent=43 // pred_check
          %p278 = pneg %p67
        $region50: #{tpu_custom_call.1} parent=43 // pred_check_branch
          %280 = sbr.rel (%p278) target = $region52
        $region51: #{tpu_custom_call.1} parent=43 // pred_region
          %281 = dma.done [#allocation8], 9216
        $region52: #{tpu_custom_call.1} parent=43 // pred_fallthru
          _
        // Predicated region
        $region53: #{tpu_custom_call.1} parent=43 // pred_check
          %p282 = pneg %p109
        $region54: #{tpu_custom_call.1} parent=43 // pred_check_branch
          %284 = sbr.rel (%p282) target = $region56
        $region55: #{tpu_custom_call.1} parent=43 // pred_region
          %285 = dma.done [#allocation8], 9216
        $region56: #{tpu_custom_call.1} parent=43 // pred_fallthru
          _
        // Predicated region
        $region57: #{tpu_custom_call.1} parent=43 // pred_check
          %p286 = pneg %p151
        $region58: #{tpu_custom_call.1} parent=43 // pred_check_branch
          %288 = sbr.rel (%p286) target = $region60
        $region59: #{tpu_custom_call.1} parent=43 // pred_region
          %289 = dma.done [#allocation11], 1024
        $region60: #{tpu_custom_call.1} parent=43 // pred_fallthru
          _
        %s290 = sand.u32 %s33, 1
        %s291 = scalar_lea.sflag [#allocation5], %s290
        %s292 = sand.u32 %s33, 1
        %s293 = smul.addr %s292, 256
        %s294 = scalar_lea.vmem [#allocation4], %s293
        %p295 = pneg %p46
        %p296 = pneg %p43
        %p297 = pneg %p67
        %p298 = pneg %p64
        %p299 = pneg %p88
        %p300 = pneg %p85
        %p301 = pneg %p109
        %p302 = pneg %p106
        %p303 = pneg %p130
        %p304 = pneg %p127
        %p305 = pneg %p151
        %p306 = pneg %p148
        %p307 = pneg %p177
        %p308 = pneg %p174
        %s309 = sand.u32 %s164, 1
        %s310 = scalar_lea.sflag [#allocation6], %s309
        %s311 = sand.u32 %s164, 1
        %s312 = smul.addr %s311, 256
        %s313 = scalar_lea.vmem [#allocation12], %s312
        %v315 = vld [vmem:[%s273] sm:$0xff]
        %v316 = vld [vmem:[%s273 + $0x8] sm:$0xff]
        %v317 = vld [vmem:[%s273 + $0x10] sm:$0xff]
        %v318 = vld [vmem:[%s273 + $0x18] sm:$0xff]
        %v319 = vld [vmem:[%s273 + $0x20] sm:$0xff]
        %v320 = vld [vmem:[%s273 + $0x28] sm:$0xff]
        %v321 = vld [vmem:[%s273 + $0x30] sm:$0xff]
        %v322 = vld [vmem:[%s273 + $0x38] sm:$0xff]
        %v323 = vld [vmem:[%s273 + $0x40] sm:$0xff]
        %v324 = vld [vmem:[%s273 + $0x48] sm:$0xff]
        %v325 = vld [vmem:[%s273 + $0x50] sm:$0xff]
        %v326 = vld [vmem:[%s273 + $0x58] sm:$0xff]
        %v327 = vld [vmem:[%s273 + $0x60] sm:$0xff]
        %v328 = vld [vmem:[%s273 + $0x68] sm:$0xff]
        %v329 = vld [vmem:[%s273 + $0x70] sm:$0xff]
        %v330 = vld [vmem:[%s273 + $0x78] sm:$0xff]
        %v331 = vld [vmem:[%s273 + $0x80] sm:$0xff]
        %v332 = vld [vmem:[%s273 + $0x88] sm:$0xff]
        %v333 = vld [vmem:[%s273 + $0x90] sm:$0xff]
        %v334 = vld [vmem:[%s273 + $0x98] sm:$0xff]
        %v335 = vld [vmem:[%s273 + $0xa0] sm:$0xff]
        %v336 = vld [vmem:[%s273 + $0xa8] sm:$0xff]
        %v337 = vld [vmem:[%s273 + $0xb0] sm:$0xff]
        %v338 = vld [vmem:[%s273 + $0xb8] sm:$0xff]
        %v339 = vld [vmem:[%s273 + $0xc0] sm:$0xff]
        %v340 = vld [vmem:[%s273 + $0xc8] sm:$0xff]
        %v341 = vld [vmem:[%s273 + $0xd0] sm:$0xff]
        %v342 = vld [vmem:[%s273 + $0xd8] sm:$0xff]
        %v343 = vld [vmem:[%s273 + $0xe0] sm:$0xff]
        %v344 = vld [vmem:[%s273 + $0xe8] sm:$0xff]
        %v345 = vld [vmem:[%s273 + $0xf0] sm:$0xff]
        %v346 = vld [vmem:[%s273 + $0xf8] sm:$0xff]
        %347 = vst [vmem:[#allocation2] sm:$0xff] 0
        %348 = vst [vmem:[#allocation2 + $0x8] sm:$0xff] 0
        %349 = vst [vmem:[#allocation2 + $0x10] sm:$0xff] 0
        %350 = vst [vmem:[#allocation2 + $0x18] sm:$0xff] 0
        %351 = vst [vmem:[#allocation2 + $0x20] sm:$0xff] 0
        %352 = vst [vmem:[#allocation2 + $0x28] sm:$0xff] 0
        %353 = vst [vmem:[#allocation2 + $0x30] sm:$0xff] 0
        %354 = vst [vmem:[#allocation2 + $0x38] sm:$0xff] 0
        %355 = vst [vmem:[#allocation2 + $0x40] sm:$0xff] 0
        %s356 = scalar_lea.vmem [#allocation2], 1080
        %357 = vst [vmem:[%s356] sm:$0xff] 0
        %358 = vst [vmem:[%s356 + $0x8] sm:$0xff] 0
        %359 = vst [vmem:[%s356 + $0x10] sm:$0xff] 0
        %360 = vst [vmem:[%s356 + $0x18] sm:$0xff] 0
        %361 = vst [vmem:[%s356 + $0x20] sm:$0xff] 0
        %362 = vst [vmem:[%s356 + $0x28] sm:$0xff] 0
        %363 = vst [vmem:[%s356 + $0x30] sm:$0xff] 0
        %364 = vst [vmem:[%s356 + $0x38] sm:$0xff] 0
        %365 = vst [vmem:[%s356 + $0x40] sm:$0xff] 0
        %vm366 = vcmask 1040384
        %vm367 = vsmask.f32 256
        %vm368 = vmand %vm366, %vm367
        %v369 = vld [vmem:[#allocation2] sm:$0x1]
        %v370 = vsel %vm368, 0, %v369
        %371 = vst [vmem:[#allocation2] sm:$0x1] %v370
        %v372 = vld [vmem:[#allocation2 + $0x8] sm:$0x1]
        %v373 = vsel %vm368, 0, %v372
        %374 = vst [vmem:[#allocation2 + $0x8] sm:$0x1] %v373
        %v375 = vld [vmem:[#allocation2 + $0x10] sm:$0x1]
        %v376 = vsel %vm368, 0, %v375
        %377 = vst [vmem:[#allocation2 + $0x10] sm:$0x1] %v376
        %v378 = vld [vmem:[#allocation2 + $0x18] sm:$0x1]
        %v379 = vsel %vm368, 0, %v378
        %380 = vst [vmem:[#allocation2 + $0x18] sm:$0x1] %v379
        %v381 = vld [vmem:[#allocation2 + $0x20] sm:$0x1]
        %v382 = vsel %vm368, 0, %v381
        %383 = vst [vmem:[#allocation2 + $0x20] sm:$0x1] %v382
        %v384 = vld [vmem:[#allocation2 + $0x28] sm:$0x1]
        %v385 = vsel %vm368, 0, %v384
        %386 = vst [vmem:[#allocation2 + $0x28] sm:$0x1] %v385
        %v387 = vld [vmem:[#allocation2 + $0x30] sm:$0x1]
        %v388 = vsel %vm368, 0, %v387
        %389 = vst [vmem:[#allocation2 + $0x30] sm:$0x1] %v388
        %v390 = vld [vmem:[#allocation2 + $0x38] sm:$0x1]
        %v391 = vsel %vm368, 0, %v390
        %392 = vst [vmem:[#allocation2 + $0x38] sm:$0x1] %v391
        %v393 = vld [vmem:[#allocation2 + $0x40] sm:$0x1]
        %v394 = vsel %vm368, 0, %v393
        %395 = vst [vmem:[#allocation2 + $0x40] sm:$0x1] %v394
        %v396 = vld [vmem:[#allocation2 + $0x48] sm:$0x1]
        %v397 = vsel %vm368, 0, %v396
        %398 = vst [vmem:[#allocation2 + $0x48] sm:$0x1] %v397
        %v399 = vld [vmem:[#allocation2 + $0x50] sm:$0x1]
        %v400 = vsel %vm368, 0, %v399
        %401 = vst [vmem:[#allocation2 + $0x50] sm:$0x1] %v400
        %v402 = vld [vmem:[#allocation2 + $0x58] sm:$0x1]
        %v403 = vsel %vm368, 0, %v402
        %404 = vst [vmem:[#allocation2 + $0x58] sm:$0x1] %v403
        %v405 = vld [vmem:[#allocation2 + $0x60] sm:$0x1]
        %v406 = vsel %vm368, 0, %v405
        %407 = vst [vmem:[#allocation2 + $0x60] sm:$0x1] %v406
        %v408 = vld [vmem:[#allocation2 + $0x68] sm:$0x1]
        %v409 = vsel %vm368, 0, %v408
        %410 = vst [vmem:[#allocation2 + $0x68] sm:$0x1] %v409
        %v411 = vld [vmem:[#allocation2 + $0x70] sm:$0x1]
        %v412 = vsel %vm368, 0, %v411
        %413 = vst [vmem:[#allocation2 + $0x70] sm:$0x1] %v412
        %v414 = vld [vmem:[#allocation2 + $0x78] sm:$0x1]
        %v415 = vsel %vm368, 0, %v414
        %416 = vst [vmem:[#allocation2 + $0x78] sm:$0x1] %v415
        %v417 = vld [vmem:[#allocation2 + $0x80] sm:$0x1]
        %v418 = vsel %vm368, 0, %v417
        %419 = vst [vmem:[#allocation2 + $0x80] sm:$0x1] %v418
        %v420 = vld [vmem:[#allocation2 + $0x88] sm:$0x1]
        %v421 = vsel %vm368, 0, %v420
        %422 = vst [vmem:[#allocation2 + $0x88] sm:$0x1] %v421
        %v423 = vld [vmem:[#allocation2 + $0x90] sm:$0x1]
        %v424 = vsel %vm368, 0, %v423
        %425 = vst [vmem:[#allocation2 + $0x90] sm:$0x1] %v424
        %v426 = vld [vmem:[#allocation2 + $0x98] sm:$0x1]
        %v427 = vsel %vm368, 0, %v426
        %428 = vst [vmem:[#allocation2 + $0x98] sm:$0x1] %v427
        %v429 = vld [vmem:[#allocation2 + $0xa0] sm:$0x1]
        %v430 = vsel %vm368, 0, %v429
        %431 = vst [vmem:[#allocation2 + $0xa0] sm:$0x1] %v430
        %v432 = vld [vmem:[#allocation2 + $0xa8] sm:$0x1]
        %v433 = vsel %vm368, 0, %v432
        %434 = vst [vmem:[#allocation2 + $0xa8] sm:$0x1] %v433
        %v435 = vld [vmem:[#allocation2 + $0xb0] sm:$0x1]
        %v436 = vsel %vm368, 0, %v435
        %437 = vst [vmem:[#allocation2 + $0xb0] sm:$0x1] %v436
        %v438 = vld [vmem:[#allocation2 + $0xb8] sm:$0x1]
        %v439 = vsel %vm368, 0, %v438
        %440 = vst [vmem:[#allocation2 + $0xb8] sm:$0x1] %v439
        %v441 = vld [vmem:[#allocation2 + $0xc0] sm:$0x1]
        %v442 = vsel %vm368, 0, %v441
        %443 = vst [vmem:[#allocation2 + $0xc0] sm:$0x1] %v442
        %v444 = vld [vmem:[#allocation2 + $0xc8] sm:$0x1]
        %v445 = vsel %vm368, 0, %v444
        %446 = vst [vmem:[#allocation2 + $0xc8] sm:$0x1] %v445
        %v447 = vld [vmem:[#allocation2 + $0xd0] sm:$0x1]
        %v448 = vsel %vm368, 0, %v447
        %449 = vst [vmem:[#allocation2 + $0xd0] sm:$0x1] %v448
        %v450 = vld [vmem:[#allocation2 + $0xd8] sm:$0x1]
        %v451 = vsel %vm368, 0, %v450
        %452 = vst [vmem:[#allocation2 + $0xd8] sm:$0x1] %v451
        %v453 = vld [vmem:[#allocation2 + $0xe0] sm:$0x1]
        %v454 = vsel %vm368, 0, %v453
        %455 = vst [vmem:[#allocation2 + $0xe0] sm:$0x1] %v454
        %v456 = vld [vmem:[#allocation2 + $0xe8] sm:$0x1]
        %v457 = vsel %vm368, 0, %v456
        %458 = vst [vmem:[#allocation2 + $0xe8] sm:$0x1] %v457
        %v459 = vld [vmem:[#allocation2 + $0xf0] sm:$0x1]
        %v460 = vsel %vm368, 0, %v459
        %461 = vst [vmem:[#allocation2 + $0xf0] sm:$0x1] %v460
        %v462 = vld [vmem:[#allocation2 + $0xf8] sm:$0x1]
        %v463 = vsel %vm368, 0, %v462
        %464 = vst [vmem:[#allocation2 + $0xf8] sm:$0x1] %v463
        %v465 = vld [vmem:[#allocation2 + $0x100] sm:$0x1]
        %v466 = vsel %vm368, 0, %v465
        %467 = vst [vmem:[#allocation2 + $0x100] sm:$0x1] %v466
        %v468 = vld [vmem:[#allocation2 + $0x108] sm:$0x1]
        %v469 = vsel %vm368, 0, %v468
        %470 = vst [vmem:[#allocation2 + $0x108] sm:$0x1] %v469
        %v471 = vld [vmem:[#allocation2 + $0x110] sm:$0x1]
        %v472 = vsel %vm368, 0, %v471
        %473 = vst [vmem:[#allocation2 + $0x110] sm:$0x1] %v472
        %v474 = vld [vmem:[#allocation2 + $0x118] sm:$0x1]
        %v475 = vsel %vm368, 0, %v474
        %476 = vst [vmem:[#allocation2 + $0x118] sm:$0x1] %v475
        %v477 = vld [vmem:[#allocation2 + $0x120] sm:$0x1]
        %v478 = vsel %vm368, 0, %v477
        %479 = vst [vmem:[#allocation2 + $0x120] sm:$0x1] %v478
        %v480 = vld [vmem:[#allocation2 + $0x128] sm:$0x1]
        %v481 = vsel %vm368, 0, %v480
        %482 = vst [vmem:[#allocation2 + $0x128] sm:$0x1] %v481
        %v483 = vld [vmem:[#allocation2 + $0x130] sm:$0x1]
        %v484 = vsel %vm368, 0, %v483
        %485 = vst [vmem:[#allocation2 + $0x130] sm:$0x1] %v484
        %v486 = vld [vmem:[#allocation2 + $0x138] sm:$0x1]
        %v487 = vsel %vm368, 0, %v486
        %488 = vst [vmem:[#allocation2 + $0x138] sm:$0x1] %v487
        %v489 = vld [vmem:[#allocation2 + $0x140] sm:$0x1]
        %v490 = vsel %vm368, 0, %v489
        %491 = vst [vmem:[#allocation2 + $0x140] sm:$0x1] %v490
        %v492 = vld [vmem:[#allocation2 + $0x148] sm:$0x1]
        %v493 = vsel %vm368, 0, %v492
        %494 = vst [vmem:[#allocation2 + $0x148] sm:$0x1] %v493
        %v495 = vld [vmem:[#allocation2 + $0x150] sm:$0x1]
        %v496 = vsel %vm368, 0, %v495
        %497 = vst [vmem:[#allocation2 + $0x150] sm:$0x1] %v496
        %v498 = vld [vmem:[#allocation2 + $0x158] sm:$0x1]
        %v499 = vsel %vm368, 0, %v498
        %500 = vst [vmem:[#allocation2 + $0x158] sm:$0x1] %v499
        %v501 = vld [vmem:[#allocation2 + $0x160] sm:$0x1]
        %v502 = vsel %vm368, 0, %v501
        %503 = vst [vmem:[#allocation2 + $0x160] sm:$0x1] %v502
        %v504 = vld [vmem:[#allocation2 + $0x168] sm:$0x1]
        %v505 = vsel %vm368, 0, %v504
        %506 = vst [vmem:[#allocation2 + $0x168] sm:$0x1] %v505
        %v507 = vld [vmem:[#allocation2 + $0x170] sm:$0x1]
        %v508 = vsel %vm368, 0, %v507
        %509 = vst [vmem:[#allocation2 + $0x170] sm:$0x1] %v508
        %v510 = vld [vmem:[#allocation2 + $0x178] sm:$0x1]
        %v511 = vsel %vm368, 0, %v510
        %512 = vst [vmem:[#allocation2 + $0x178] sm:$0x1] %v511
        %v513 = vld [vmem:[#allocation2 + $0x180] sm:$0x1]
        %v514 = vsel %vm368, 0, %v513
        %515 = vst [vmem:[#allocation2 + $0x180] sm:$0x1] %v514
        %v516 = vld [vmem:[#allocation2 + $0x188] sm:$0x1]
        %v517 = vsel %vm368, 0, %v516
        %518 = vst [vmem:[#allocation2 + $0x188] sm:$0x1] %v517
        %v519 = vld [vmem:[#allocation2 + $0x190] sm:$0x1]
        %v520 = vsel %vm368, 0, %v519
        %521 = vst [vmem:[#allocation2 + $0x190] sm:$0x1] %v520
        %v522 = vld [vmem:[#allocation2 + $0x198] sm:$0x1]
        %v523 = vsel %vm368, 0, %v522
        %524 = vst [vmem:[#allocation2 + $0x198] sm:$0x1] %v523
        %v525 = vld [vmem:[#allocation2 + $0x1a0] sm:$0x1]
        %v526 = vsel %vm368, 0, %v525
        %527 = vst [vmem:[#allocation2 + $0x1a0] sm:$0x1] %v526
        %v528 = vld [vmem:[#allocation2 + $0x1a8] sm:$0x1]
        %v529 = vsel %vm368, 0, %v528
        %530 = vst [vmem:[#allocation2 + $0x1a8] sm:$0x1] %v529
        %v531 = vld [vmem:[#allocation2 + $0x1b0] sm:$0x1]
        %v532 = vsel %vm368, 0, %v531
        %533 = vst [vmem:[#allocation2 + $0x1b0] sm:$0x1] %v532
        %v534 = vld [vmem:[#allocation2 + $0x1b8] sm:$0x1]
        %v535 = vsel %vm368, 0, %v534
        %536 = vst [vmem:[#allocation2 + $0x1b8] sm:$0x1] %v535
        %v537 = vld [vmem:[#allocation2 + $0x1c0] sm:$0x1]
        %v538 = vsel %vm368, 0, %v537
        %539 = vst [vmem:[#allocation2 + $0x1c0] sm:$0x1] %v538
        %v540 = vld [vmem:[#allocation2 + $0x1c8] sm:$0x1]
        %v541 = vsel %vm368, 0, %v540
        %542 = vst [vmem:[#allocation2 + $0x1c8] sm:$0x1] %v541
        %v543 = vld [vmem:[#allocation2 + $0x1d0] sm:$0x1]
        %v544 = vsel %vm368, 0, %v543
        %545 = vst [vmem:[#allocation2 + $0x1d0] sm:$0x1] %v544
        %v546 = vld [vmem:[#allocation2 + $0x1d8] sm:$0x1]
        %v547 = vsel %vm368, 0, %v546
        %548 = vst [vmem:[#allocation2 + $0x1d8] sm:$0x1] %v547
        %v549 = vld [vmem:[#allocation2 + $0x1e0] sm:$0x1]
        %v550 = vsel %vm368, 0, %v549
        %551 = vst [vmem:[#allocation2 + $0x1e0] sm:$0x1] %v550
        %v552 = vld [vmem:[#allocation2 + $0x1e8] sm:$0x1]
        %v553 = vsel %vm368, 0, %v552
        %554 = vst [vmem:[#allocation2 + $0x1e8] sm:$0x1] %v553
        %v555 = vld [vmem:[#allocation2 + $0x1f0] sm:$0x1]
        %v556 = vsel %vm368, 0, %v555
        %557 = vst [vmem:[#allocation2 + $0x1f0] sm:$0x1] %v556
        %v558 = vld [vmem:[#allocation2 + $0x1f8] sm:$0x1]
        %v559 = vsel %vm368, 0, %v558
        %560 = vst [vmem:[#allocation2 + $0x1f8] sm:$0x1] %v559
        %v561 = vld [vmem:[#allocation2 + $0x200] sm:$0x1]
        %v562 = vsel %vm368, 0, %v561
        %563 = vst [vmem:[#allocation2 + $0x200] sm:$0x1] %v562
        %v564 = vld [vmem:[#allocation2 + $0x208] sm:$0x1]
        %v565 = vsel %vm368, 0, %v564
        %566 = vst [vmem:[#allocation2 + $0x208] sm:$0x1] %v565
        %v567 = vld [vmem:[#allocation2 + $0x210] sm:$0x1]
        %v568 = vsel %vm368, 0, %v567
        %569 = vst [vmem:[#allocation2 + $0x210] sm:$0x1] %v568
        %v570 = vld [vmem:[#allocation2 + $0x218] sm:$0x1]
        %v571 = vsel %vm368, 0, %v570
        %572 = vst [vmem:[#allocation2 + $0x218] sm:$0x1] %v571
        %v573 = vld [vmem:[#allocation2 + $0x220] sm:$0x1]
        %v574 = vsel %vm368, 0, %v573
        %575 = vst [vmem:[#allocation2 + $0x220] sm:$0x1] %v574
        %v576 = vld [vmem:[#allocation2 + $0x228] sm:$0x1]
        %v577 = vsel %vm368, 0, %v576
        %578 = vst [vmem:[#allocation2 + $0x228] sm:$0x1] %v577
        %v579 = vld [vmem:[#allocation2 + $0x230] sm:$0x1]
        %v580 = vsel %vm368, 0, %v579
        %581 = vst [vmem:[#allocation2 + $0x230] sm:$0x1] %v580
        %v582 = vld [vmem:[#allocation2 + $0x238] sm:$0x1]
        %v583 = vsel %vm368, 0, %v582
        %584 = vst [vmem:[#allocation2 + $0x238] sm:$0x1] %v583
        %v585 = vld [vmem:[#allocation2 + $0x240] sm:$0x1]
        %v586 = vsel %vm368, 0, %v585
        %587 = vst [vmem:[#allocation2 + $0x240] sm:$0x1] %v586
        %v588 = vld [vmem:[#allocation2 + $0x248] sm:$0x1]
        %v589 = vsel %vm368, 0, %v588
        %590 = vst [vmem:[#allocation2 + $0x248] sm:$0x1] %v589
        %v591 = vld [vmem:[#allocation2 + $0x250] sm:$0x1]
        %v592 = vsel %vm368, 0, %v591
        %593 = vst [vmem:[#allocation2 + $0x250] sm:$0x1] %v592
        %v594 = vld [vmem:[#allocation2 + $0x258] sm:$0x1]
        %v595 = vsel %vm368, 0, %v594
        %596 = vst [vmem:[#allocation2 + $0x258] sm:$0x1] %v595
        %v597 = vld [vmem:[#allocation2 + $0x260] sm:$0x1]
        %v598 = vsel %vm368, 0, %v597
        %599 = vst [vmem:[#allocation2 + $0x260] sm:$0x1] %v598
        %v600 = vld [vmem:[#allocation2 + $0x268] sm:$0x1]
        %v601 = vsel %vm368, 0, %v600
        %602 = vst [vmem:[#allocation2 + $0x268] sm:$0x1] %v601
        %v603 = vld [vmem:[#allocation2 + $0x270] sm:$0x1]
        %v604 = vsel %vm368, 0, %v603
        %605 = vst [vmem:[#allocation2 + $0x270] sm:$0x1] %v604
        %v606 = vld [vmem:[#allocation2 + $0x278] sm:$0x1]
        %v607 = vsel %vm368, 0, %v606
        %608 = vst [vmem:[#allocation2 + $0x278] sm:$0x1] %v607
        %v609 = vld [vmem:[#allocation2 + $0x280] sm:$0x1]
        %v610 = vsel %vm368, 0, %v609
        %611 = vst [vmem:[#allocation2 + $0x280] sm:$0x1] %v610
        %v612 = vld [vmem:[#allocation2 + $0x288] sm:$0x1]
        %v613 = vsel %vm368, 0, %v612
        %614 = vst [vmem:[#allocation2 + $0x288] sm:$0x1] %v613
        %v615 = vld [vmem:[#allocation2 + $0x290] sm:$0x1]
        %v616 = vsel %vm368, 0, %v615
        %617 = vst [vmem:[#allocation2 + $0x290] sm:$0x1] %v616
        %v618 = vld [vmem:[#allocation2 + $0x298] sm:$0x1]
        %v619 = vsel %vm368, 0, %v618
        %620 = vst [vmem:[#allocation2 + $0x298] sm:$0x1] %v619
        %v621 = vld [vmem:[#allocation2 + $0x2a0] sm:$0x1]
        %v622 = vsel %vm368, 0, %v621
        %623 = vst [vmem:[#allocation2 + $0x2a0] sm:$0x1] %v622
        %v624 = vld [vmem:[#allocation2 + $0x2a8] sm:$0x1]
        %v625 = vsel %vm368, 0, %v624
        %626 = vst [vmem:[#allocation2 + $0x2a8] sm:$0x1] %v625
        %v627 = vld [vmem:[#allocation2 + $0x2b0] sm:$0x1]
        %v628 = vsel %vm368, 0, %v627
        %629 = vst [vmem:[#allocation2 + $0x2b0] sm:$0x1] %v628
        %v630 = vld [vmem:[#allocation2 + $0x2b8] sm:$0x1]
        %v631 = vsel %vm368, 0, %v630
        %632 = vst [vmem:[#allocation2 + $0x2b8] sm:$0x1] %v631
        %v633 = vld [vmem:[#allocation2 + $0x2c0] sm:$0x1]
        %v634 = vsel %vm368, 0, %v633
        %635 = vst [vmem:[#allocation2 + $0x2c0] sm:$0x1] %v634
        %v636 = vld [vmem:[#allocation2 + $0x2c8] sm:$0x1]
        %v637 = vsel %vm368, 0, %v636
        %638 = vst [vmem:[#allocation2 + $0x2c8] sm:$0x1] %v637
        %v639 = vld [vmem:[#allocation2 + $0x2d0] sm:$0x1]
        %v640 = vsel %vm368, 0, %v639
        %641 = vst [vmem:[#allocation2 + $0x2d0] sm:$0x1] %v640
        %v642 = vld [vmem:[#allocation2 + $0x2d8] sm:$0x1]
        %v643 = vsel %vm368, 0, %v642
        %644 = vst [vmem:[#allocation2 + $0x2d8] sm:$0x1] %v643
        %v645 = vld [vmem:[#allocation2 + $0x2e0] sm:$0x1]
        %v646 = vsel %vm368, 0, %v645
        %647 = vst [vmem:[#allocation2 + $0x2e0] sm:$0x1] %v646
        %v648 = vld [vmem:[#allocation2 + $0x2e8] sm:$0x1]
        %v649 = vsel %vm368, 0, %v648
        %650 = vst [vmem:[#allocation2 + $0x2e8] sm:$0x1] %v649
        %v651 = vld [vmem:[#allocation2 + $0x2f0] sm:$0x1]
        %v652 = vsel %vm368, 0, %v651
        %653 = vst [vmem:[#allocation2 + $0x2f0] sm:$0x1] %v652
        %v654 = vld [vmem:[#allocation2 + $0x2f8] sm:$0x1]
        %v655 = vsel %vm368, 0, %v654
        %656 = vst [vmem:[#allocation2 + $0x2f8] sm:$0x1] %v655
        %v657 = vld [vmem:[#allocation2 + $0x300] sm:$0x1]
        %v658 = vsel %vm368, 0, %v657
        %659 = vst [vmem:[#allocation2 + $0x300] sm:$0x1] %v658
        %v660 = vld [vmem:[#allocation2 + $0x308] sm:$0x1]
        %v661 = vsel %vm368, 0, %v660
        %662 = vst [vmem:[#allocation2 + $0x308] sm:$0x1] %v661
        %v663 = vld [vmem:[#allocation2 + $0x310] sm:$0x1]
        %v664 = vsel %vm368, 0, %v663
        %665 = vst [vmem:[#allocation2 + $0x310] sm:$0x1] %v664
        %v666 = vld [vmem:[#allocation2 + $0x318] sm:$0x1]
        %v667 = vsel %vm368, 0, %v666
        %668 = vst [vmem:[#allocation2 + $0x318] sm:$0x1] %v667
        %v669 = vld [vmem:[#allocation2 + $0x320] sm:$0x1]
        %v670 = vsel %vm368, 0, %v669
        %671 = vst [vmem:[#allocation2 + $0x320] sm:$0x1] %v670
        %v672 = vld [vmem:[#allocation2 + $0x328] sm:$0x1]
        %v673 = vsel %vm368, 0, %v672
        %674 = vst [vmem:[#allocation2 + $0x328] sm:$0x1] %v673
        %v675 = vld [vmem:[#allocation2 + $0x330] sm:$0x1]
        %v676 = vsel %vm368, 0, %v675
        %677 = vst [vmem:[#allocation2 + $0x330] sm:$0x1] %v676
        %v678 = vld [vmem:[#allocation2 + $0x338] sm:$0x1]
        %v679 = vsel %vm368, 0, %v678
        %680 = vst [vmem:[#allocation2 + $0x338] sm:$0x1] %v679
        %v681 = vld [vmem:[#allocation2 + $0x340] sm:$0x1]
        %v682 = vsel %vm368, 0, %v681
        %683 = vst [vmem:[#allocation2 + $0x340] sm:$0x1] %v682
        %v684 = vld [vmem:[#allocation2 + $0x348] sm:$0x1]
        %v685 = vsel %vm368, 0, %v684
        %686 = vst [vmem:[#allocation2 + $0x348] sm:$0x1] %v685
        %v687 = vld [vmem:[#allocation2 + $0x350] sm:$0x1]
        %v688 = vsel %vm368, 0, %v687
        %689 = vst [vmem:[#allocation2 + $0x350] sm:$0x1] %v688
        %v690 = vld [vmem:[#allocation2 + $0x358] sm:$0x1]
        %v691 = vsel %vm368, 0, %v690
        %692 = vst [vmem:[#allocation2 + $0x358] sm:$0x1] %v691
        %v693 = vld [vmem:[#allocation2 + $0x360] sm:$0x1]
        %v694 = vsel %vm368, 0, %v693
        %695 = vst [vmem:[#allocation2 + $0x360] sm:$0x1] %v694
        %v696 = vld [vmem:[#allocation2 + $0x368] sm:$0x1]
        %v697 = vsel %vm368, 0, %v696
        %698 = vst [vmem:[#allocation2 + $0x368] sm:$0x1] %v697
        %v699 = vld [vmem:[#allocation2 + $0x370] sm:$0x1]
        %v700 = vsel %vm368, 0, %v699
        %701 = vst [vmem:[#allocation2 + $0x370] sm:$0x1] %v700
        %v702 = vld [vmem:[#allocation2 + $0x378] sm:$0x1]
        %v703 = vsel %vm368, 0, %v702
        %704 = vst [vmem:[#allocation2 + $0x378] sm:$0x1] %v703
        %v705 = vld [vmem:[#allocation2 + $0x380] sm:$0x1]
        %v706 = vsel %vm368, 0, %v705
        %707 = vst [vmem:[#allocation2 + $0x380] sm:$0x1] %v706
        %v708 = vld [vmem:[#allocation2 + $0x388] sm:$0x1]
        %v709 = vsel %vm368, 0, %v708
        %710 = vst [vmem:[#allocation2 + $0x388] sm:$0x1] %v709
        %v711 = vld [vmem:[#allocation2 + $0x390] sm:$0x1]
        %v712 = vsel %vm368, 0, %v711
        %713 = vst [vmem:[#allocation2 + $0x390] sm:$0x1] %v712
        %v714 = vld [vmem:[#allocation2 + $0x398] sm:$0x1]
        %v715 = vsel %vm368, 0, %v714
        %716 = vst [vmem:[#allocation2 + $0x398] sm:$0x1] %v715
        %v717 = vld [vmem:[#allocation2 + $0x3a0] sm:$0x1]
        %v718 = vsel %vm368, 0, %v717
        %719 = vst [vmem:[#allocation2 + $0x3a0] sm:$0x1] %v718
        %v720 = vld [vmem:[#allocation2 + $0x3a8] sm:$0x1]
        %v721 = vsel %vm368, 0, %v720
        %722 = vst [vmem:[#allocation2 + $0x3a8] sm:$0x1] %v721
        %v723 = vld [vmem:[#allocation2 + $0x3b0] sm:$0x1]
        %v724 = vsel %vm368, 0, %v723
        %725 = vst [vmem:[#allocation2 + $0x3b0] sm:$0x1] %v724
        %v726 = vld [vmem:[#allocation2 + $0x3b8] sm:$0x1]
        %v727 = vsel %vm368, 0, %v726
        %728 = vst [vmem:[#allocation2 + $0x3b8] sm:$0x1] %v727
        %v729 = vld [vmem:[#allocation2 + $0x3c0] sm:$0x1]
        %v730 = vsel %vm368, 0, %v729
        %731 = vst [vmem:[#allocation2 + $0x3c0] sm:$0x1] %v730
        %v732 = vld [vmem:[#allocation2 + $0x3c8] sm:$0x1]
        %v733 = vsel %vm368, 0, %v732
        %734 = vst [vmem:[#allocation2 + $0x3c8] sm:$0x1] %v733
        %v735 = vld [vmem:[#allocation2 + $0x3d0] sm:$0x1]
        %v736 = vsel %vm368, 0, %v735
        %737 = vst [vmem:[#allocation2 + $0x3d0] sm:$0x1] %v736
        %v738 = vld [vmem:[#allocation2 + $0x3d8] sm:$0x1]
        %v739 = vsel %vm368, 0, %v738
        %740 = vst [vmem:[#allocation2 + $0x3d8] sm:$0x1] %v739
        %v741 = vld [vmem:[#allocation2 + $0x3e0] sm:$0x1]
        %v742 = vsel %vm368, 0, %v741
        %743 = vst [vmem:[#allocation2 + $0x3e0] sm:$0x1] %v742
        %v744 = vld [vmem:[#allocation2 + $0x3e8] sm:$0x1]
        %v745 = vsel %vm368, 0, %v744
        %746 = vst [vmem:[#allocation2 + $0x3e8] sm:$0x1] %v745
        %v747 = vld [vmem:[#allocation2 + $0x3f0] sm:$0x1]
        %v748 = vsel %vm368, 0, %v747
        %749 = vst [vmem:[#allocation2 + $0x3f0] sm:$0x1] %v748
        %v750 = vld [vmem:[#allocation2 + $0x3f8] sm:$0x1]
        %v751 = vsel %vm368, 0, %v750
        %752 = vst [vmem:[#allocation2 + $0x3f8] sm:$0x1] %v751
        %v753 = vld [vmem:[#allocation2 + $0x400] sm:$0x1]
        %v754 = vsel %vm368, 0, %v753
        %755 = vst [vmem:[#allocation2 + $0x400] sm:$0x1] %v754
        %v756 = vld [vmem:[#allocation2 + $0x408] sm:$0x1]
        %v757 = vsel %vm368, 0, %v756
        %758 = vst [vmem:[#allocation2 + $0x408] sm:$0x1] %v757
        %v759 = vld [vmem:[#allocation2 + $0x410] sm:$0x1]
        %v760 = vsel %vm368, 0, %v759
        %761 = vst [vmem:[#allocation2 + $0x410] sm:$0x1] %v760
        %v762 = vld [vmem:[#allocation2 + $0x418] sm:$0x1]
        %v763 = vsel %vm368, 0, %v762
        %764 = vst [vmem:[#allocation2 + $0x418] sm:$0x1] %v763
        %v765 = vld [vmem:[#allocation2 + $0x420] sm:$0x1]
        %v766 = vsel %vm368, 0, %v765
        %767 = vst [vmem:[#allocation2 + $0x420] sm:$0x1] %v766
        %v768 = vld [vmem:[#allocation2 + $0x428] sm:$0x1]
        %v769 = vsel %vm368, 0, %v768
        %770 = vst [vmem:[#allocation2 + $0x428] sm:$0x1] %v769
        %v771 = vld [vmem:[#allocation2 + $0x430] sm:$0x1]
        %v772 = vsel %vm368, 0, %v771
        %773 = vst [vmem:[#allocation2 + $0x430] sm:$0x1] %v772
        %v774 = vld [vmem:[#allocation2 + $0x438] sm:$0x1]
        %v775 = vsel %vm368, 0, %v774
        %776 = vst [vmem:[#allocation2 + $0x438] sm:$0x1] %v775
        %v777 = vld [vmem:[#allocation2 + $0x440] sm:$0x1]
        %v778 = vsel %vm368, 0, %v777
        %779 = vst [vmem:[#allocation2 + $0x440] sm:$0x1] %v778
        %v780 = vld [vmem:[#allocation2 + $0x448] sm:$0x1]
        %v781 = vsel %vm368, 0, %v780
        %782 = vst [vmem:[#allocation2 + $0x448] sm:$0x1] %v781
        %v783 = vld [vmem:[#allocation2 + $0x450] sm:$0x1]
        %v784 = vsel %vm368, 0, %v783
        %785 = vst [vmem:[#allocation2 + $0x450] sm:$0x1] %v784
        %v786 = vld [vmem:[#allocation2 + $0x458] sm:$0x1]
        %v787 = vsel %vm368, 0, %v786
        %788 = vst [vmem:[#allocation2 + $0x458] sm:$0x1] %v787
        %v789 = vld [vmem:[#allocation2 + $0x460] sm:$0x1]
        %v790 = vsel %vm368, 0, %v789
        %791 = vst [vmem:[#allocation2 + $0x460] sm:$0x1] %v790
        %v792 = vld [vmem:[#allocation2 + $0x468] sm:$0x1]
        %v793 = vsel %vm368, 0, %v792
        %794 = vst [vmem:[#allocation2 + $0x468] sm:$0x1] %v793
        %v795 = vld [vmem:[#allocation2 + $0x470] sm:$0x1]
        %v796 = vsel %vm368, 0, %v795
        %797 = vst [vmem:[#allocation2 + $0x470] sm:$0x1] %v796
        %v798 = vld [vmem:[#allocation2 + $0x478] sm:$0x1]
        %v799 = vsel %vm368, 0, %v798
        %800 = vst [vmem:[#allocation2 + $0x478] sm:$0x1] %v799
        %vm801 = vcmask 1047559
        %vm802 = vsmask.f32 7966
        %vm803 = vmand %vm801, %vm802
        %v804 = vld [vmem:[#allocation2] sm:$0x80]
        %v805 = vsel %vm803, 0, %v804
        %806 = vst [vmem:[#allocation2] sm:$0x80] %v805
        %v807 = vld [vmem:[#allocation2 + $0x8] sm:$0x80]
        %v808 = vsel %vm803, 0, %v807
        %809 = vst [vmem:[#allocation2 + $0x8] sm:$0x80] %v808
        %v810 = vld [vmem:[#allocation2 + $0x10] sm:$0x80]
        %v811 = vsel %vm803, 0, %v810
        %812 = vst [vmem:[#allocation2 + $0x10] sm:$0x80] %v811
        %v813 = vld [vmem:[#allocation2 + $0x18] sm:$0x80]
        %v814 = vsel %vm803, 0, %v813
        %815 = vst [vmem:[#allocation2 + $0x18] sm:$0x80] %v814
        %v816 = vld [vmem:[#allocation2 + $0x20] sm:$0x80]
        %v817 = vsel %vm803, 0, %v816
        %818 = vst [vmem:[#allocation2 + $0x20] sm:$0x80] %v817
        %v819 = vld [vmem:[#allocation2 + $0x28] sm:$0x80]
        %v820 = vsel %vm803, 0, %v819
        %821 = vst [vmem:[#allocation2 + $0x28] sm:$0x80] %v820
        %v822 = vld [vmem:[#allocation2 + $0x30] sm:$0x80]
        %v823 = vsel %vm803, 0, %v822
        %824 = vst [vmem:[#allocation2 + $0x30] sm:$0x80] %v823
        %v825 = vld [vmem:[#allocation2 + $0x38] sm:$0x80]
        %v826 = vsel %vm803, 0, %v825
        %827 = vst [vmem:[#allocation2 + $0x38] sm:$0x80] %v826
        %v828 = vld [vmem:[#allocation2 + $0x40] sm:$0x80]
        %v829 = vsel %vm803, 0, %v828
        %830 = vst [vmem:[#allocation2 + $0x40] sm:$0x80] %v829
        %v831 = vld [vmem:[#allocation2 + $0x48] sm:$0x80]
        %v832 = vsel %vm803, 0, %v831
        %833 = vst [vmem:[#allocation2 + $0x48] sm:$0x80] %v832
        %v834 = vld [vmem:[#allocation2 + $0x50] sm:$0x80]
        %v835 = vsel %vm803, 0, %v834
        %836 = vst [vmem:[#allocation2 + $0x50] sm:$0x80] %v835
        %v837 = vld [vmem:[#allocation2 + $0x58] sm:$0x80]
        %v838 = vsel %vm803, 0, %v837
        %839 = vst [vmem:[#allocation2 + $0x58] sm:$0x80] %v838
        %v840 = vld [vmem:[#allocation2 + $0x60] sm:$0x80]
        %v841 = vsel %vm803, 0, %v840
        %842 = vst [vmem:[#allocation2 + $0x60] sm:$0x80] %v841
        %v843 = vld [vmem:[#allocation2 + $0x68] sm:$0x80]
        %v844 = vsel %vm803, 0, %v843
        %845 = vst [vmem:[#allocation2 + $0x68] sm:$0x80] %v844
        %v846 = vld [vmem:[#allocation2 + $0x70] sm:$0x80]
        %v847 = vsel %vm803, 0, %v846
        %848 = vst [vmem:[#allocation2 + $0x70] sm:$0x80] %v847
        %v849 = vld [vmem:[#allocation2 + $0x78] sm:$0x80]
        %v850 = vsel %vm803, 0, %v849
        %851 = vst [vmem:[#allocation2 + $0x78] sm:$0x80] %v850
        %v852 = vld [vmem:[#allocation2 + $0x80] sm:$0x80]
        %v853 = vsel %vm803, 0, %v852
        %854 = vst [vmem:[#allocation2 + $0x80] sm:$0x80] %v853
        %v855 = vld [vmem:[#allocation2 + $0x88] sm:$0x80]
        %v856 = vsel %vm803, 0, %v855
        %857 = vst [vmem:[#allocation2 + $0x88] sm:$0x80] %v856
        %v858 = vld [vmem:[#allocation2 + $0x90] sm:$0x80]
        %v859 = vsel %vm803, 0, %v858
        %860 = vst [vmem:[#allocation2 + $0x90] sm:$0x80] %v859
        %v861 = vld [vmem:[#allocation2 + $0x98] sm:$0x80]
        %v862 = vsel %vm803, 0, %v861
        %863 = vst [vmem:[#allocation2 + $0x98] sm:$0x80] %v862
        %v864 = vld [vmem:[#allocation2 + $0xa0] sm:$0x80]
        %v865 = vsel %vm803, 0, %v864
        %866 = vst [vmem:[#allocation2 + $0xa0] sm:$0x80] %v865
        %v867 = vld [vmem:[#allocation2 + $0xa8] sm:$0x80]
        %v868 = vsel %vm803, 0, %v867
        %869 = vst [vmem:[#allocation2 + $0xa8] sm:$0x80] %v868
        %v870 = vld [vmem:[#allocation2 + $0xb0] sm:$0x80]
        %v871 = vsel %vm803, 0, %v870
        %872 = vst [vmem:[#allocation2 + $0xb0] sm:$0x80] %v871
        %v873 = vld [vmem:[#allocation2 + $0xb8] sm:$0x80]
        %v874 = vsel %vm803, 0, %v873
        %875 = vst [vmem:[#allocation2 + $0xb8] sm:$0x80] %v874
        %v876 = vld [vmem:[#allocation2 + $0xc0] sm:$0x80]
        %v877 = vsel %vm803, 0, %v876
        %878 = vst [vmem:[#allocation2 + $0xc0] sm:$0x80] %v877
        %v879 = vld [vmem:[#allocation2 + $0xc8] sm:$0x80]
        %v880 = vsel %vm803, 0, %v879
        %881 = vst [vmem:[#allocation2 + $0xc8] sm:$0x80] %v880
        %v882 = vld [vmem:[#allocation2 + $0xd0] sm:$0x80]
        %v883 = vsel %vm803, 0, %v882
        %884 = vst [vmem:[#allocation2 + $0xd0] sm:$0x80] %v883
        %v885 = vld [vmem:[#allocation2 + $0xd8] sm:$0x80]
        %v886 = vsel %vm803, 0, %v885
        %887 = vst [vmem:[#allocation2 + $0xd8] sm:$0x80] %v886
        %v888 = vld [vmem:[#allocation2 + $0xe0] sm:$0x80]
        %v889 = vsel %vm803, 0, %v888
        %890 = vst [vmem:[#allocation2 + $0xe0] sm:$0x80] %v889
        %v891 = vld [vmem:[#allocation2 + $0xe8] sm:$0x80]
        %v892 = vsel %vm803, 0, %v891
        %893 = vst [vmem:[#allocation2 + $0xe8] sm:$0x80] %v892
        %v894 = vld [vmem:[#allocation2 + $0xf0] sm:$0x80]
        %v895 = vsel %vm803, 0, %v894
        %896 = vst [vmem:[#allocation2 + $0xf0] sm:$0x80] %v895
        %v897 = vld [vmem:[#allocation2 + $0xf8] sm:$0x80]
        %v898 = vsel %vm803, 0, %v897
        %899 = vst [vmem:[#allocation2 + $0xf8] sm:$0x80] %v898
        %v900 = vld [vmem:[#allocation2 + $0x100] sm:$0x80]
        %v901 = vsel %vm803, 0, %v900
        %902 = vst [vmem:[#allocation2 + $0x100] sm:$0x80] %v901
        %v903 = vld [vmem:[#allocation2 + $0x108] sm:$0x80]
        %v904 = vsel %vm803, 0, %v903
        %905 = vst [vmem:[#allocation2 + $0x108] sm:$0x80] %v904
        %v906 = vld [vmem:[#allocation2 + $0x110] sm:$0x80]
        %v907 = vsel %vm803, 0, %v906
        %908 = vst [vmem:[#allocation2 + $0x110] sm:$0x80] %v907
        %v909 = vld [vmem:[#allocation2 + $0x118] sm:$0x80]
        %v910 = vsel %vm803, 0, %v909
        %911 = vst [vmem:[#allocation2 + $0x118] sm:$0x80] %v910
        %v912 = vld [vmem:[#allocation2 + $0x120] sm:$0x80]
        %v913 = vsel %vm803, 0, %v912
        %914 = vst [vmem:[#allocation2 + $0x120] sm:$0x80] %v913
        %v915 = vld [vmem:[#allocation2 + $0x128] sm:$0x80]
        %v916 = vsel %vm803, 0, %v915
        %917 = vst [vmem:[#allocation2 + $0x128] sm:$0x80] %v916
        %v918 = vld [vmem:[#allocation2 + $0x130] sm:$0x80]
        %v919 = vsel %vm803, 0, %v918
        %920 = vst [vmem:[#allocation2 + $0x130] sm:$0x80] %v919
        %v921 = vld [vmem:[#allocation2 + $0x138] sm:$0x80]
        %v922 = vsel %vm803, 0, %v921
        %923 = vst [vmem:[#allocation2 + $0x138] sm:$0x80] %v922
        %v924 = vld [vmem:[#allocation2 + $0x140] sm:$0x80]
        %v925 = vsel %vm803, 0, %v924
        %926 = vst [vmem:[#allocation2 + $0x140] sm:$0x80] %v925
        %v927 = vld [vmem:[#allocation2 + $0x148] sm:$0x80]
        %v928 = vsel %vm803, 0, %v927
        %929 = vst [vmem:[#allocation2 + $0x148] sm:$0x80] %v928
        %v930 = vld [vmem:[#allocation2 + $0x150] sm:$0x80]
        %v931 = vsel %vm803, 0, %v930
        %932 = vst [vmem:[#allocation2 + $0x150] sm:$0x80] %v931
        %v933 = vld [vmem:[#allocation2 + $0x158] sm:$0x80]
        %v934 = vsel %vm803, 0, %v933
        %935 = vst [vmem:[#allocation2 + $0x158] sm:$0x80] %v934
        %v936 = vld [vmem:[#allocation2 + $0x160] sm:$0x80]
        %v937 = vsel %vm803, 0, %v936
        %938 = vst [vmem:[#allocation2 + $0x160] sm:$0x80] %v937
        %v939 = vld [vmem:[#allocation2 + $0x168] sm:$0x80]
        %v940 = vsel %vm803, 0, %v939
        %941 = vst [vmem:[#allocation2 + $0x168] sm:$0x80] %v940
        %v942 = vld [vmem:[#allocation2 + $0x170] sm:$0x80]
        %v943 = vsel %vm803, 0, %v942
        %944 = vst [vmem:[#allocation2 + $0x170] sm:$0x80] %v943
        %v945 = vld [vmem:[#allocation2 + $0x178] sm:$0x80]
        %v946 = vsel %vm803, 0, %v945
        %947 = vst [vmem:[#allocation2 + $0x178] sm:$0x80] %v946
        %v948 = vld [vmem:[#allocation2 + $0x180] sm:$0x80]
        %v949 = vsel %vm803, 0, %v948
        %950 = vst [vmem:[#allocation2 + $0x180] sm:$0x80] %v949
        %v951 = vld [vmem:[#allocation2 + $0x188] sm:$0x80]
        %v952 = vsel %vm803, 0, %v951
        %953 = vst [vmem:[#allocation2 + $0x188] sm:$0x80] %v952
        %v954 = vld [vmem:[#allocation2 + $0x190] sm:$0x80]
        %v955 = vsel %vm803, 0, %v954
        %956 = vst [vmem:[#allocation2 + $0x190] sm:$0x80] %v955
        %v957 = vld [vmem:[#allocation2 + $0x198] sm:$0x80]
        %v958 = vsel %vm803, 0, %v957
        %959 = vst [vmem:[#allocation2 + $0x198] sm:$0x80] %v958
        %v960 = vld [vmem:[#allocation2 + $0x1a0] sm:$0x80]
        %v961 = vsel %vm803, 0, %v960
        %962 = vst [vmem:[#allocation2 + $0x1a0] sm:$0x80] %v961
        %v963 = vld [vmem:[#allocation2 + $0x1a8] sm:$0x80]
        %v964 = vsel %vm803, 0, %v963
        %965 = vst [vmem:[#allocation2 + $0x1a8] sm:$0x80] %v964
        %v966 = vld [vmem:[#allocation2 + $0x1b0] sm:$0x80]
        %v967 = vsel %vm803, 0, %v966
        %968 = vst [vmem:[#allocation2 + $0x1b0] sm:$0x80] %v967
        %v969 = vld [vmem:[#allocation2 + $0x1b8] sm:$0x80]
        %v970 = vsel %vm803, 0, %v969
        %971 = vst [vmem:[#allocation2 + $0x1b8] sm:$0x80] %v970
        %v972 = vld [vmem:[#allocation2 + $0x1c0] sm:$0x80]
        %v973 = vsel %vm803, 0, %v972
        %974 = vst [vmem:[#allocation2 + $0x1c0] sm:$0x80] %v973
        %v975 = vld [vmem:[#allocation2 + $0x1c8] sm:$0x80]
        %v976 = vsel %vm803, 0, %v975
        %977 = vst [vmem:[#allocation2 + $0x1c8] sm:$0x80] %v976
        %v978 = vld [vmem:[#allocation2 + $0x1d0] sm:$0x80]
        %v979 = vsel %vm803, 0, %v978
        %980 = vst [vmem:[#allocation2 + $0x1d0] sm:$0x80] %v979
        %v981 = vld [vmem:[#allocation2 + $0x1d8] sm:$0x80]
        %v982 = vsel %vm803, 0, %v981
        %983 = vst [vmem:[#allocation2 + $0x1d8] sm:$0x80] %v982
        %v984 = vld [vmem:[#allocation2 + $0x1e0] sm:$0x80]
        %v985 = vsel %vm803, 0, %v984
        %986 = vst [vmem:[#allocation2 + $0x1e0] sm:$0x80] %v985
        %v987 = vld [vmem:[#allocation2 + $0x1e8] sm:$0x80]
        %v988 = vsel %vm803, 0, %v987
        %989 = vst [vmem:[#allocation2 + $0x1e8] sm:$0x80] %v988
        %v990 = vld [vmem:[#allocation2 + $0x1f0] sm:$0x80]
        %v991 = vsel %vm803, 0, %v990
        %992 = vst [vmem:[#allocation2 + $0x1f0] sm:$0x80] %v991
        %v993 = vld [vmem:[#allocation2 + $0x1f8] sm:$0x80]
        %v994 = vsel %vm803, 0, %v993
        %995 = vst [vmem:[#allocation2 + $0x1f8] sm:$0x80] %v994
        %v996 = vld [vmem:[#allocation2 + $0x200] sm:$0x80]
        %v997 = vsel %vm803, 0, %v996
        %998 = vst [vmem:[#allocation2 + $0x200] sm:$0x80] %v997
        %v999 = vld [vmem:[#allocation2 + $0x208] sm:$0x80]
        %v1000 = vsel %vm803, 0, %v999
        %1001 = vst [vmem:[#allocation2 + $0x208] sm:$0x80] %v1000
        %v1002 = vld [vmem:[#allocation2 + $0x210] sm:$0x80]
        %v1003 = vsel %vm803, 0, %v1002
        %1004 = vst [vmem:[#allocation2 + $0x210] sm:$0x80] %v1003
        %v1005 = vld [vmem:[#allocation2 + $0x218] sm:$0x80]
        %v1006 = vsel %vm803, 0, %v1005
        %1007 = vst [vmem:[#allocation2 + $0x218] sm:$0x80] %v1006
        %v1008 = vld [vmem:[#allocation2 + $0x220] sm:$0x80]
        %v1009 = vsel %vm803, 0, %v1008
        %1010 = vst [vmem:[#allocation2 + $0x220] sm:$0x80] %v1009
        %v1011 = vld [vmem:[#allocation2 + $0x228] sm:$0x80]
        %v1012 = vsel %vm803, 0, %v1011
        %1013 = vst [vmem:[#allocation2 + $0x228] sm:$0x80] %v1012
        %v1014 = vld [vmem:[#allocation2 + $0x230] sm:$0x80]
        %v1015 = vsel %vm803, 0, %v1014
        %1016 = vst [vmem:[#allocation2 + $0x230] sm:$0x80] %v1015
        %v1017 = vld [vmem:[#allocation2 + $0x238] sm:$0x80]
        %v1018 = vsel %vm803, 0, %v1017
        %1019 = vst [vmem:[#allocation2 + $0x238] sm:$0x80] %v1018
        %v1020 = vld [vmem:[#allocation2 + $0x240] sm:$0x80]
        %v1021 = vsel %vm803, 0, %v1020
        %1022 = vst [vmem:[#allocation2 + $0x240] sm:$0x80] %v1021
        %v1023 = vld [vmem:[#allocation2 + $0x248] sm:$0x80]
        %v1024 = vsel %vm803, 0, %v1023
        %1025 = vst [vmem:[#allocation2 + $0x248] sm:$0x80] %v1024
        %v1026 = vld [vmem:[#allocation2 + $0x250] sm:$0x80]
        %v1027 = vsel %vm803, 0, %v1026
        %1028 = vst [vmem:[#allocation2 + $0x250] sm:$0x80] %v1027
        %v1029 = vld [vmem:[#allocation2 + $0x258] sm:$0x80]
        %v1030 = vsel %vm803, 0, %v1029
        %1031 = vst [vmem:[#allocation2 + $0x258] sm:$0x80] %v1030
        %v1032 = vld [vmem:[#allocation2 + $0x260] sm:$0x80]
        %v1033 = vsel %vm803, 0, %v1032
        %1034 = vst [vmem:[#allocation2 + $0x260] sm:$0x80] %v1033
        %v1035 = vld [vmem:[#allocation2 + $0x268] sm:$0x80]
        %v1036 = vsel %vm803, 0, %v1035
        %1037 = vst [vmem:[#allocation2 + $0x268] sm:$0x80] %v1036
        %v1038 = vld [vmem:[#allocation2 + $0x270] sm:$0x80]
        %v1039 = vsel %vm803, 0, %v1038
        %1040 = vst [vmem:[#allocation2 + $0x270] sm:$0x80] %v1039
        %v1041 = vld [vmem:[#allocation2 + $0x278] sm:$0x80]
        %v1042 = vsel %vm803, 0, %v1041
        %1043 = vst [vmem:[#allocation2 + $0x278] sm:$0x80] %v1042
        %v1044 = vld [vmem:[#allocation2 + $0x280] sm:$0x80]
        %v1045 = vsel %vm803, 0, %v1044
        %1046 = vst [vmem:[#allocation2 + $0x280] sm:$0x80] %v1045
        %v1047 = vld [vmem:[#allocation2 + $0x288] sm:$0x80]
        %v1048 = vsel %vm803, 0, %v1047
        %1049 = vst [vmem:[#allocation2 + $0x288] sm:$0x80] %v1048
        %v1050 = vld [vmem:[#allocation2 + $0x290] sm:$0x80]
        %v1051 = vsel %vm803, 0, %v1050
        %1052 = vst [vmem:[#allocation2 + $0x290] sm:$0x80] %v1051
        %v1053 = vld [vmem:[#allocation2 + $0x298] sm:$0x80]
        %v1054 = vsel %vm803, 0, %v1053
        %1055 = vst [vmem:[#allocation2 + $0x298] sm:$0x80] %v1054
        %v1056 = vld [vmem:[#allocation2 + $0x2a0] sm:$0x80]
        %v1057 = vsel %vm803, 0, %v1056
        %1058 = vst [vmem:[#allocation2 + $0x2a0] sm:$0x80] %v1057
        %v1059 = vld [vmem:[#allocation2 + $0x2a8] sm:$0x80]
        %v1060 = vsel %vm803, 0, %v1059
        %1061 = vst [vmem:[#allocation2 + $0x2a8] sm:$0x80] %v1060
        %v1062 = vld [vmem:[#allocation2 + $0x2b0] sm:$0x80]
        %v1063 = vsel %vm803, 0, %v1062
        %1064 = vst [vmem:[#allocation2 + $0x2b0] sm:$0x80] %v1063
        %v1065 = vld [vmem:[#allocation2 + $0x2b8] sm:$0x80]
        %v1066 = vsel %vm803, 0, %v1065
        %1067 = vst [vmem:[#allocation2 + $0x2b8] sm:$0x80] %v1066
        %v1068 = vld [vmem:[#allocation2 + $0x2c0] sm:$0x80]
        %v1069 = vsel %vm803, 0, %v1068
        %1070 = vst [vmem:[#allocation2 + $0x2c0] sm:$0x80] %v1069
        %v1071 = vld [vmem:[#allocation2 + $0x2c8] sm:$0x80]
        %v1072 = vsel %vm803, 0, %v1071
        %1073 = vst [vmem:[#allocation2 + $0x2c8] sm:$0x80] %v1072
        %v1074 = vld [vmem:[#allocation2 + $0x2d0] sm:$0x80]
        %v1075 = vsel %vm803, 0, %v1074
        %1076 = vst [vmem:[#allocation2 + $0x2d0] sm:$0x80] %v1075
        %v1077 = vld [vmem:[#allocation2 + $0x2d8] sm:$0x80]
        %v1078 = vsel %vm803, 0, %v1077
        %1079 = vst [vmem:[#allocation2 + $0x2d8] sm:$0x80] %v1078
        %v1080 = vld [vmem:[#allocation2 + $0x2e0] sm:$0x80]
        %v1081 = vsel %vm803, 0, %v1080
        %1082 = vst [vmem:[#allocation2 + $0x2e0] sm:$0x80] %v1081
        %v1083 = vld [vmem:[#allocation2 + $0x2e8] sm:$0x80]
        %v1084 = vsel %vm803, 0, %v1083
        %1085 = vst [vmem:[#allocation2 + $0x2e8] sm:$0x80] %v1084
        %v1086 = vld [vmem:[#allocation2 + $0x2f0] sm:$0x80]
        %v1087 = vsel %vm803, 0, %v1086
        %1088 = vst [vmem:[#allocation2 + $0x2f0] sm:$0x80] %v1087
        %v1089 = vld [vmem:[#allocation2 + $0x2f8] sm:$0x80]
        %v1090 = vsel %vm803, 0, %v1089
        %1091 = vst [vmem:[#allocation2 + $0x2f8] sm:$0x80] %v1090
        %v1092 = vld [vmem:[#allocation2 + $0x300] sm:$0x80]
        %v1093 = vsel %vm803, 0, %v1092
        %1094 = vst [vmem:[#allocation2 + $0x300] sm:$0x80] %v1093
        %v1095 = vld [vmem:[#allocation2 + $0x308] sm:$0x80]
        %v1096 = vsel %vm803, 0, %v1095
        %1097 = vst [vmem:[#allocation2 + $0x308] sm:$0x80] %v1096
        %v1098 = vld [vmem:[#allocation2 + $0x310] sm:$0x80]
        %v1099 = vsel %vm803, 0, %v1098
        %1100 = vst [vmem:[#allocation2 + $0x310] sm:$0x80] %v1099
        %v1101 = vld [vmem:[#allocation2 + $0x318] sm:$0x80]
        %v1102 = vsel %vm803, 0, %v1101
        %1103 = vst [vmem:[#allocation2 + $0x318] sm:$0x80] %v1102
        %v1104 = vld [vmem:[#allocation2 + $0x320] sm:$0x80]
        %v1105 = vsel %vm803, 0, %v1104
        %1106 = vst [vmem:[#allocation2 + $0x320] sm:$0x80] %v1105
        %v1107 = vld [vmem:[#allocation2 + $0x328] sm:$0x80]
        %v1108 = vsel %vm803, 0, %v1107
        %1109 = vst [vmem:[#allocation2 + $0x328] sm:$0x80] %v1108
        %v1110 = vld [vmem:[#allocation2 + $0x330] sm:$0x80]
        %v1111 = vsel %vm803, 0, %v1110
        %1112 = vst [vmem:[#allocation2 + $0x330] sm:$0x80] %v1111
        %v1113 = vld [vmem:[#allocation2 + $0x338] sm:$0x80]
        %v1114 = vsel %vm803, 0, %v1113
        %1115 = vst [vmem:[#allocation2 + $0x338] sm:$0x80] %v1114
        %v1116 = vld [vmem:[#allocation2 + $0x340] sm:$0x80]
        %v1117 = vsel %vm803, 0, %v1116
        %1118 = vst [vmem:[#allocation2 + $0x340] sm:$0x80] %v1117
        %v1119 = vld [vmem:[#allocation2 + $0x348] sm:$0x80]
        %v1120 = vsel %vm803, 0, %v1119
        %1121 = vst [vmem:[#allocation2 + $0x348] sm:$0x80] %v1120
        %v1122 = vld [vmem:[#allocation2 + $0x350] sm:$0x80]
        %v1123 = vsel %vm803, 0, %v1122
        %1124 = vst [vmem:[#allocation2 + $0x350] sm:$0x80] %v1123
        %v1125 = vld [vmem:[#allocation2 + $0x358] sm:$0x80]
        %v1126 = vsel %vm803, 0, %v1125
        %1127 = vst [vmem:[#allocation2 + $0x358] sm:$0x80] %v1126
        %v1128 = vld [vmem:[#allocation2 + $0x360] sm:$0x80]
        %v1129 = vsel %vm803, 0, %v1128
        %1130 = vst [vmem:[#allocation2 + $0x360] sm:$0x80] %v1129
        %v1131 = vld [vmem:[#allocation2 + $0x368] sm:$0x80]
        %v1132 = vsel %vm803, 0, %v1131
        %1133 = vst [vmem:[#allocation2 + $0x368] sm:$0x80] %v1132
        %v1134 = vld [vmem:[#allocation2 + $0x370] sm:$0x80]
        %v1135 = vsel %vm803, 0, %v1134
        %1136 = vst [vmem:[#allocation2 + $0x370] sm:$0x80] %v1135
        %v1137 = vld [vmem:[#allocation2 + $0x378] sm:$0x80]
        %v1138 = vsel %vm803, 0, %v1137
        %1139 = vst [vmem:[#allocation2 + $0x378] sm:$0x80] %v1138
        %v1140 = vld [vmem:[#allocation2 + $0x380] sm:$0x80]
        %v1141 = vsel %vm803, 0, %v1140
        %1142 = vst [vmem:[#allocation2 + $0x380] sm:$0x80] %v1141
        %v1143 = vld [vmem:[#allocation2 + $0x388] sm:$0x80]
        %v1144 = vsel %vm803, 0, %v1143
        %1145 = vst [vmem:[#allocation2 + $0x388] sm:$0x80] %v1144
        %v1146 = vld [vmem:[#allocation2 + $0x390] sm:$0x80]
        %v1147 = vsel %vm803, 0, %v1146
        %1148 = vst [vmem:[#allocation2 + $0x390] sm:$0x80] %v1147
        %v1149 = vld [vmem:[#allocation2 + $0x398] sm:$0x80]
        %v1150 = vsel %vm803, 0, %v1149
        %1151 = vst [vmem:[#allocation2 + $0x398] sm:$0x80] %v1150
        %v1152 = vld [vmem:[#allocation2 + $0x3a0] sm:$0x80]
        %v1153 = vsel %vm803, 0, %v1152
        %1154 = vst [vmem:[#allocation2 + $0x3a0] sm:$0x80] %v1153
        %v1155 = vld [vmem:[#allocation2 + $0x3a8] sm:$0x80]
        %v1156 = vsel %vm803, 0, %v1155
        %1157 = vst [vmem:[#allocation2 + $0x3a8] sm:$0x80] %v1156
        %v1158 = vld [vmem:[#allocation2 + $0x3b0] sm:$0x80]
        %v1159 = vsel %vm803, 0, %v1158
        %1160 = vst [vmem:[#allocation2 + $0x3b0] sm:$0x80] %v1159
        %v1161 = vld [vmem:[#allocation2 + $0x3b8] sm:$0x80]
        %v1162 = vsel %vm803, 0, %v1161
        %1163 = vst [vmem:[#allocation2 + $0x3b8] sm:$0x80] %v1162
        %v1164 = vld [vmem:[#allocation2 + $0x3c0] sm:$0x80]
        %v1165 = vsel %vm803, 0, %v1164
        %1166 = vst [vmem:[#allocation2 + $0x3c0] sm:$0x80] %v1165
        %v1167 = vld [vmem:[#allocation2 + $0x3c8] sm:$0x80]
        %v1168 = vsel %vm803, 0, %v1167
        %1169 = vst [vmem:[#allocation2 + $0x3c8] sm:$0x80] %v1168
        %v1170 = vld [vmem:[#allocation2 + $0x3d0] sm:$0x80]
        %v1171 = vsel %vm803, 0, %v1170
        %1172 = vst [vmem:[#allocation2 + $0x3d0] sm:$0x80] %v1171
        %v1173 = vld [vmem:[#allocation2 + $0x3d8] sm:$0x80]
        %v1174 = vsel %vm803, 0, %v1173
        %1175 = vst [vmem:[#allocation2 + $0x3d8] sm:$0x80] %v1174
        %v1176 = vld [vmem:[#allocation2 + $0x3e0] sm:$0x80]
        %v1177 = vsel %vm803, 0, %v1176
        %1178 = vst [vmem:[#allocation2 + $0x3e0] sm:$0x80] %v1177
        %v1179 = vld [vmem:[#allocation2 + $0x3e8] sm:$0x80]
        %v1180 = vsel %vm803, 0, %v1179
        %1181 = vst [vmem:[#allocation2 + $0x3e8] sm:$0x80] %v1180
        %v1182 = vld [vmem:[#allocation2 + $0x3f0] sm:$0x80]
        %v1183 = vsel %vm803, 0, %v1182
        %1184 = vst [vmem:[#allocation2 + $0x3f0] sm:$0x80] %v1183
        %v1185 = vld [vmem:[#allocation2 + $0x3f8] sm:$0x80]
        %v1186 = vsel %vm803, 0, %v1185
        %1187 = vst [vmem:[#allocation2 + $0x3f8] sm:$0x80] %v1186
        %v1188 = vld [vmem:[#allocation2 + $0x400] sm:$0x80]
        %v1189 = vsel %vm803, 0, %v1188
        %1190 = vst [vmem:[#allocation2 + $0x400] sm:$0x80] %v1189
        %v1191 = vld [vmem:[#allocation2 + $0x408] sm:$0x80]
        %v1192 = vsel %vm803, 0, %v1191
        %1193 = vst [vmem:[#allocation2 + $0x408] sm:$0x80] %v1192
        %v1194 = vld [vmem:[#allocation2 + $0x410] sm:$0x80]
        %v1195 = vsel %vm803, 0, %v1194
        %1196 = vst [vmem:[#allocation2 + $0x410] sm:$0x80] %v1195
        %v1197 = vld [vmem:[#allocation2 + $0x418] sm:$0x80]
        %v1198 = vsel %vm803, 0, %v1197
        %1199 = vst [vmem:[#allocation2 + $0x418] sm:$0x80] %v1198
        %v1200 = vld [vmem:[#allocation2 + $0x420] sm:$0x80]
        %v1201 = vsel %vm803, 0, %v1200
        %1202 = vst [vmem:[#allocation2 + $0x420] sm:$0x80] %v1201
        %v1203 = vld [vmem:[#allocation2 + $0x428] sm:$0x80]
        %v1204 = vsel %vm803, 0, %v1203
        %1205 = vst [vmem:[#allocation2 + $0x428] sm:$0x80] %v1204
        %v1206 = vld [vmem:[#allocation2 + $0x430] sm:$0x80]
        %v1207 = vsel %vm803, 0, %v1206
        %1208 = vst [vmem:[#allocation2 + $0x430] sm:$0x80] %v1207
        %v1209 = vld [vmem:[#allocation2 + $0x438] sm:$0x80]
        %v1210 = vsel %vm803, 0, %v1209
        %1211 = vst [vmem:[#allocation2 + $0x438] sm:$0x80] %v1210
        %v1212 = vld [vmem:[#allocation2 + $0x440] sm:$0x80]
        %v1213 = vsel %vm803, 0, %v1212
        %1214 = vst [vmem:[#allocation2 + $0x440] sm:$0x80] %v1213
        %v1215 = vld [vmem:[#allocation2 + $0x448] sm:$0x80]
        %v1216 = vsel %vm803, 0, %v1215
        %1217 = vst [vmem:[#allocation2 + $0x448] sm:$0x80] %v1216
        %v1218 = vld [vmem:[#allocation2 + $0x450] sm:$0x80]
        %v1219 = vsel %vm803, 0, %v1218
        %1220 = vst [vmem:[#allocation2 + $0x450] sm:$0x80] %v1219
        %v1221 = vld [vmem:[#allocation2 + $0x458] sm:$0x80]
        %v1222 = vsel %vm803, 0, %v1221
        %1223 = vst [vmem:[#allocation2 + $0x458] sm:$0x80] %v1222
        %v1224 = vld [vmem:[#allocation2 + $0x460] sm:$0x80]
        %v1225 = vsel %vm803, 0, %v1224
        %1226 = vst [vmem:[#allocation2 + $0x460] sm:$0x80] %v1225
        %v1227 = vld [vmem:[#allocation2 + $0x468] sm:$0x80]
        %v1228 = vsel %vm803, 0, %v1227
        %1229 = vst [vmem:[#allocation2 + $0x468] sm:$0x80] %v1228
        %v1230 = vld [vmem:[#allocation2 + $0x470] sm:$0x80]
        %v1231 = vsel %vm803, 0, %v1230
        %1232 = vst [vmem:[#allocation2 + $0x470] sm:$0x80] %v1231
        %v1233 = vld [vmem:[#allocation2 + $0x478] sm:$0x80]
        %v1234 = vsel %vm803, 0, %v1233
        %1235 = vst [vmem:[#allocation2 + $0x478] sm:$0x80] %v1234
        %v1236 = vpack.c.bf16 %v316, %v315
        %v1237 = vpack.c.bf16 %v318, %v317
        %v1238 = vpack.c.bf16 %v320, %v319
        %v1239 = vpack.c.bf16 %v322, %v321
        %v1240 = vpack.c.bf16 %v324, %v323
        %v1241 = vpack.c.bf16 %v326, %v325
        %v1242 = vpack.c.bf16 %v328, %v327
        %v1243 = vpack.c.bf16 %v330, %v329
        %v1244 = vpack.c.bf16 %v332, %v331
        %v1245 = vpack.c.bf16 %v334, %v333
        %v1246 = vpack.c.bf16 %v336, %v335
        %v1247 = vpack.c.bf16 %v338, %v337
        %v1248 = vpack.c.bf16 %v340, %v339
        %v1249 = vpack.c.bf16 %v342, %v341
        %v1250 = vpack.c.bf16 %v344, %v343
        %v1251 = vpack.c.bf16 %v346, %v345
        %v1253 = vshrl.u32 %v1236, 16
        %v1255 = vrot.slane %v1253, 7
        %v1256 = vshll.u32 %v1236, 16
        %v1258 = vor.u32 %v1255, %v1256
        %v1260 = vshrl.u32 %v1237, 16
        %v1262 = vrot.slane %v1260, 7
        %v1263 = vshll.u32 %v1237, 16
        %v1265 = vor.u32 %v1262, %v1263
        %v1267 = vshrl.u32 %v1238, 16
        %v1269 = vrot.slane %v1267, 7
        %v1270 = vshll.u32 %v1238, 16
        %v1272 = vor.u32 %v1269, %v1270
        %v1274 = vshrl.u32 %v1239, 16
        %v1276 = vrot.slane %v1274, 7
        %v1277 = vshll.u32 %v1239, 16
        %v1279 = vor.u32 %v1276, %v1277
        %v1281 = vshrl.u32 %v1240, 16
        %v1283 = vrot.slane %v1281, 7
        %v1284 = vshll.u32 %v1240, 16
        %v1286 = vor.u32 %v1283, %v1284
        %v1288 = vshrl.u32 %v1241, 16
        %v1290 = vrot.slane %v1288, 7
        %v1291 = vshll.u32 %v1241, 16
        %v1293 = vor.u32 %v1290, %v1291
        %v1295 = vshrl.u32 %v1242, 16
        %v1297 = vrot.slane %v1295, 7
        %v1298 = vshll.u32 %v1242, 16
        %v1300 = vor.u32 %v1297, %v1298
        %v1302 = vshrl.u32 %v1243, 16
        %v1304 = vrot.slane %v1302, 7
        %v1305 = vshll.u32 %v1243, 16
        %v1307 = vor.u32 %v1304, %v1305
        %v1309 = vshrl.u32 %v1244, 16
        %v1311 = vrot.slane %v1309, 7
        %v1312 = vshll.u32 %v1244, 16
        %v1314 = vor.u32 %v1311, %v1312
        %v1316 = vshrl.u32 %v1245, 16
        %v1318 = vrot.slane %v1316, 7
        %v1319 = vshll.u32 %v1245, 16
        %v1321 = vor.u32 %v1318, %v1319
        %v1323 = vshrl.u32 %v1246, 16
        %v1325 = vrot.slane %v1323, 7
        %v1326 = vshll.u32 %v1246, 16
        %v1328 = vor.u32 %v1325, %v1326
        %v1330 = vshrl.u32 %v1247, 16
        %v1332 = vrot.slane %v1330, 7
        %v1333 = vshll.u32 %v1247, 16
        %v1335 = vor.u32 %v1332, %v1333
        %v1337 = vshrl.u32 %v1248, 16
        %v1339 = vrot.slane %v1337, 7
        %v1340 = vshll.u32 %v1248, 16
        %v1342 = vor.u32 %v1339, %v1340
        %v1344 = vshrl.u32 %v1249, 16
        %v1346 = vrot.slane %v1344, 7
        %v1347 = vshll.u32 %v1249, 16
        %v1349 = vor.u32 %v1346, %v1347
        %v1351 = vshrl.u32 %v1250, 16
        %v1353 = vrot.slane %v1351, 7
        %v1354 = vshll.u32 %v1250, 16
        %v1356 = vor.u32 %v1353, %v1354
        %s1372 = scalar_lea.vmem [#allocation2], 72
        %vm1373 = vcmask 1047552
        %vm1374 = vsmask.f32 7938
        %vm1375 = vmand %vm1373, %vm1374
        %v1376 = vld [vmem:[%s1372] sm:$0xff]
        %v1377 = vsel %vm1375, %v1258, %v1376
        %1378 = vst [vmem:[%s1372] sm:$0xff] %v1377
        %v1379 = vld [vmem:[%s1372 + $0x48] sm:$0xff]
        %v1380 = vsel %vm1375, %v1265, %v1379
        %1381 = vst [vmem:[%s1372 + $0x48] sm:$0xff] %v1380
        %v1382 = vld [vmem:[%s1372 + $0x90] sm:$0xff]
        %v1383 = vsel %vm1375, %v1272, %v1382
        %1384 = vst [vmem:[%s1372 + $0x90] sm:$0xff] %v1383
        %v1385 = vld [vmem:[%s1372 + $0xd8] sm:$0xff]
        %v1386 = vsel %vm1375, %v1279, %v1385
        %1387 = vst [vmem:[%s1372 + $0xd8] sm:$0xff] %v1386
        %v1388 = vld [vmem:[%s1372 + $0x120] sm:$0xff]
        %v1389 = vsel %vm1375, %v1286, %v1388
        %1390 = vst [vmem:[%s1372 + $0x120] sm:$0xff] %v1389
        %v1391 = vld [vmem:[%s1372 + $0x168] sm:$0xff]
        %v1392 = vsel %vm1375, %v1293, %v1391
        %1393 = vst [vmem:[%s1372 + $0x168] sm:$0xff] %v1392
        %v1394 = vld [vmem:[%s1372 + $0x1b0] sm:$0xff]
        %v1395 = vsel %vm1375, %v1300, %v1394
        %1396 = vst [vmem:[%s1372 + $0x1b0] sm:$0xff] %v1395
        %v1397 = vld [vmem:[%s1372 + $0x1f8] sm:$0xff]
        %v1398 = vsel %vm1375, %v1307, %v1397
        %1399 = vst [vmem:[%s1372 + $0x1f8] sm:$0xff] %v1398
        %v1400 = vld [vmem:[%s1372 + $0x240] sm:$0xff]
        %v1401 = vsel %vm1375, %v1314, %v1400
        %1402 = vst [vmem:[%s1372 + $0x240] sm:$0xff] %v1401
        %v1403 = vld [vmem:[%s1372 + $0x288] sm:$0xff]
        %v1404 = vsel %vm1375, %v1321, %v1403
        %1405 = vst [vmem:[%s1372 + $0x288] sm:$0xff] %v1404
        %v1406 = vld [vmem:[%s1372 + $0x2d0] sm:$0xff]
        %v1407 = vsel %vm1375, %v1328, %v1406
        %1408 = vst [vmem:[%s1372 + $0x2d0] sm:$0xff] %v1407
        %v1409 = vld [vmem:[%s1372 + $0x318] sm:$0xff]
        %v1410 = vsel %vm1375, %v1335, %v1409
        %1411 = vst [vmem:[%s1372 + $0x318] sm:$0xff] %v1410
        %v1412 = vld [vmem:[%s1372 + $0x360] sm:$0xff]
        %v1413 = vsel %vm1375, %v1342, %v1412
        %1414 = vst [vmem:[%s1372 + $0x360] sm:$0xff] %v1413
        %v1415 = vld [vmem:[%s1372 + $0x3a8] sm:$0xff]
        %v1416 = vsel %vm1375, %v1349, %v1415
        %1417 = vst [vmem:[%s1372 + $0x3a8] sm:$0xff] %v1416
        %v1418 = vld [vmem:[%s1372 + $0x3f0] sm:$0xff]
        %v1419 = vsel %vm1375, %v1356, %v1418
        %1420 = vst [vmem:[%s1372 + $0x3f0] sm:$0xff] %v1419
        %1421 = vst [vmem:[%s1372 + $0x8] sm:$0xff] %v1236
        %1422 = vst [vmem:[%s1372 + $0x50] sm:$0xff] %v1237
        %1423 = vst [vmem:[%s1372 + $0x98] sm:$0xff] %v1238
        %1424 = vst [vmem:[%s1372 + $0xe0] sm:$0xff] %v1239
        %1425 = vst [vmem:[%s1372 + $0x128] sm:$0xff] %v1240
        %1426 = vst [vmem:[%s1372 + $0x170] sm:$0xff] %v1241
        %1427 = vst [vmem:[%s1372 + $0x1b8] sm:$0xff] %v1242
        %1428 = vst [vmem:[%s1372 + $0x200] sm:$0xff] %v1243
        %1429 = vst [vmem:[%s1372 + $0x248] sm:$0xff] %v1244
        %1430 = vst [vmem:[%s1372 + $0x290] sm:$0xff] %v1245
        %1431 = vst [vmem:[%s1372 + $0x2d8] sm:$0xff] %v1246
        %1432 = vst [vmem:[%s1372 + $0x320] sm:$0xff] %v1247
        %1433 = vst [vmem:[%s1372 + $0x368] sm:$0xff] %v1248
        %1434 = vst [vmem:[%s1372 + $0x3b0] sm:$0xff] %v1249
        %1435 = vst [vmem:[%s1372 + $0x3f8] sm:$0xff] %v1250
        %v1436 = vrot.slane %v1256, 1
        %v1437 = vor.u32 %v1253, %v1436
        %v1438 = vrot.slane %v1263, 1
        %v1439 = vor.u32 %v1260, %v1438
        %v1440 = vrot.slane %v1270, 1
        %v1441 = vor.u32 %v1267, %v1440
        %v1442 = vrot.slane %v1277, 1
        %v1443 = vor.u32 %v1274, %v1442
        %v1444 = vrot.slane %v1284, 1
        %v1445 = vor.u32 %v1281, %v1444
        %v1446 = vrot.slane %v1291, 1
        %v1447 = vor.u32 %v1288, %v1446
        %v1448 = vrot.slane %v1298, 1
        %v1449 = vor.u32 %v1295, %v1448
        %v1450 = vrot.slane %v1305, 1
        %v1451 = vor.u32 %v1302, %v1450
        %v1452 = vrot.slane %v1312, 1
        %v1453 = vor.u32 %v1309, %v1452
        %v1454 = vrot.slane %v1319, 1
        %v1455 = vor.u32 %v1316, %v1454
        %v1456 = vrot.slane %v1326, 1
        %v1457 = vor.u32 %v1323, %v1456
        %v1458 = vrot.slane %v1333, 1
        %v1459 = vor.u32 %v1330, %v1458
        %v1460 = vrot.slane %v1340, 1
        %v1461 = vor.u32 %v1337, %v1460
        %v1462 = vrot.slane %v1347, 1
        %v1463 = vor.u32 %v1344, %v1462
        %v1464 = vrot.slane %v1354, 1
        %v1465 = vor.u32 %v1351, %v1464
        %vm1481 = vsmask.f32 7424
        %vm1482 = vmand %vm1373, %vm1481
        %v1483 = vld [vmem:[%s1372 + $0x10] sm:$0xff]
        %v1484 = vsel %vm1482, %v1437, %v1483
        %1485 = vst [vmem:[%s1372 + $0x10] sm:$0xff] %v1484
        %v1486 = vld [vmem:[%s1372 + $0x58] sm:$0xff]
        %v1487 = vsel %vm1482, %v1439, %v1486
        %1488 = vst [vmem:[%s1372 + $0x58] sm:$0xff] %v1487
        %v1489 = vld [vmem:[%s1372 + $0xa0] sm:$0xff]
        %v1490 = vsel %vm1482, %v1441, %v1489
        %1491 = vst [vmem:[%s1372 + $0xa0] sm:$0xff] %v1490
        %v1492 = vld [vmem:[%s1372 + $0xe8] sm:$0xff]
        %v1493 = vsel %vm1482, %v1443, %v1492
        %1494 = vst [vmem:[%s1372 + $0xe8] sm:$0xff] %v1493
        %v1495 = vld [vmem:[%s1372 + $0x130] sm:$0xff]
        %v1496 = vsel %vm1482, %v1445, %v1495
        %1497 = vst [vmem:[%s1372 + $0x130] sm:$0xff] %v1496
        %v1498 = vld [vmem:[%s1372 + $0x178] sm:$0xff]
        %v1499 = vsel %vm1482, %v1447, %v1498
        %1500 = vst [vmem:[%s1372 + $0x178] sm:$0xff] %v1499
        %v1501 = vld [vmem:[%s1372 + $0x1c0] sm:$0xff]
        %v1502 = vsel %vm1482, %v1449, %v1501
        %1503 = vst [vmem:[%s1372 + $0x1c0] sm:$0xff] %v1502
        %v1504 = vld [vmem:[%s1372 + $0x208] sm:$0xff]
        %v1505 = vsel %vm1482, %v1451, %v1504
        %1506 = vst [vmem:[%s1372 + $0x208] sm:$0xff] %v1505
        %v1507 = vld [vmem:[%s1372 + $0x250] sm:$0xff]
        %v1508 = vsel %vm1482, %v1453, %v1507
        %1509 = vst [vmem:[%s1372 + $0x250] sm:$0xff] %v1508
        %v1510 = vld [vmem:[%s1372 + $0x298] sm:$0xff]
        %v1511 = vsel %vm1482, %v1455, %v1510
        %1512 = vst [vmem:[%s1372 + $0x298] sm:$0xff] %v1511
        %v1513 = vld [vmem:[%s1372 + $0x2e0] sm:$0xff]
        %v1514 = vsel %vm1482, %v1457, %v1513
        %1515 = vst [vmem:[%s1372 + $0x2e0] sm:$0xff] %v1514
        %v1516 = vld [vmem:[%s1372 + $0x328] sm:$0xff]
        %v1517 = vsel %vm1482, %v1459, %v1516
        %1518 = vst [vmem:[%s1372 + $0x328] sm:$0xff] %v1517
        %v1519 = vld [vmem:[%s1372 + $0x370] sm:$0xff]
        %v1520 = vsel %vm1482, %v1461, %v1519
        %1521 = vst [vmem:[%s1372 + $0x370] sm:$0xff] %v1520
        %v1522 = vld [vmem:[%s1372 + $0x3b8] sm:$0xff]
        %v1523 = vsel %vm1482, %v1463, %v1522
        %1524 = vst [vmem:[%s1372 + $0x3b8] sm:$0xff] %v1523
        %v1525 = vld [vmem:[%s1372 + $0x400] sm:$0xff]
        %v1526 = vsel %vm1482, %v1465, %v1525
        %1527 = vst [vmem:[%s1372 + $0x400] sm:$0xff] %v1526
        %v1529 = vshrl.u32 %v1251, 16
        %v1531 = vrot.slane %v1529, 7
        %v1532 = vshll.u32 %v1251, 16
        %v1534 = vor.u32 %v1531, %v1532
        %v1536 = vld [vmem:[#allocation2 + $0x18] sm:$0xff]
        %v1537 = vsel %vm1375, %v1258, %v1536
        %1538 = vst [vmem:[#allocation2 + $0x18] sm:$0xff] %v1537
        %v1539 = vld [vmem:[#allocation2 + $0x60] sm:$0xff]
        %v1540 = vsel %vm1375, %v1265, %v1539
        %1541 = vst [vmem:[#allocation2 + $0x60] sm:$0xff] %v1540
        %v1542 = vld [vmem:[#allocation2 + $0xa8] sm:$0xff]
        %v1543 = vsel %vm1375, %v1272, %v1542
        %1544 = vst [vmem:[#allocation2 + $0xa8] sm:$0xff] %v1543
        %v1545 = vld [vmem:[#allocation2 + $0xf0] sm:$0xff]
        %v1546 = vsel %vm1375, %v1279, %v1545
        %1547 = vst [vmem:[#allocation2 + $0xf0] sm:$0xff] %v1546
        %v1548 = vld [vmem:[#allocation2 + $0x138] sm:$0xff]
        %v1549 = vsel %vm1375, %v1286, %v1548
        %1550 = vst [vmem:[#allocation2 + $0x138] sm:$0xff] %v1549
        %v1551 = vld [vmem:[#allocation2 + $0x180] sm:$0xff]
        %v1552 = vsel %vm1375, %v1293, %v1551
        %1553 = vst [vmem:[#allocation2 + $0x180] sm:$0xff] %v1552
        %v1554 = vld [vmem:[#allocation2 + $0x1c8] sm:$0xff]
        %v1555 = vsel %vm1375, %v1300, %v1554
        %1556 = vst [vmem:[#allocation2 + $0x1c8] sm:$0xff] %v1555
        %v1557 = vld [vmem:[#allocation2 + $0x210] sm:$0xff]
        %v1558 = vsel %vm1375, %v1307, %v1557
        %1559 = vst [vmem:[#allocation2 + $0x210] sm:$0xff] %v1558
        %v1560 = vld [vmem:[#allocation2 + $0x258] sm:$0xff]
        %v1561 = vsel %vm1375, %v1314, %v1560
        %1562 = vst [vmem:[#allocation2 + $0x258] sm:$0xff] %v1561
        %v1563 = vld [vmem:[#allocation2 + $0x2a0] sm:$0xff]
        %v1564 = vsel %vm1375, %v1321, %v1563
        %1565 = vst [vmem:[#allocation2 + $0x2a0] sm:$0xff] %v1564
        %v1566 = vld [vmem:[#allocation2 + $0x2e8] sm:$0xff]
        %v1567 = vsel %vm1375, %v1328, %v1566
        %1568 = vst [vmem:[#allocation2 + $0x2e8] sm:$0xff] %v1567
        %v1569 = vld [vmem:[#allocation2 + $0x330] sm:$0xff]
        %v1570 = vsel %vm1375, %v1335, %v1569
        %1571 = vst [vmem:[#allocation2 + $0x330] sm:$0xff] %v1570
        %v1572 = vld [vmem:[#allocation2 + $0x378] sm:$0xff]
        %v1573 = vsel %vm1375, %v1342, %v1572
        %1574 = vst [vmem:[#allocation2 + $0x378] sm:$0xff] %v1573
        %v1575 = vld [vmem:[#allocation2 + $0x3c0] sm:$0xff]
        %v1576 = vsel %vm1375, %v1349, %v1575
        %1577 = vst [vmem:[#allocation2 + $0x3c0] sm:$0xff] %v1576
        %v1578 = vld [vmem:[#allocation2 + $0x408] sm:$0xff]
        %v1579 = vsel %vm1375, %v1356, %v1578
        %1580 = vst [vmem:[#allocation2 + $0x408] sm:$0xff] %v1579
        %v1581 = vld [vmem:[#allocation2 + $0x450] sm:$0xff]
        %v1582 = vsel %vm1375, %v1534, %v1581
        %1583 = vst [vmem:[#allocation2 + $0x450] sm:$0xff] %v1582
        %1584 = vst [vmem:[#allocation2 + $0x20] sm:$0xff] %v1236
        %1585 = vst [vmem:[#allocation2 + $0x68] sm:$0xff] %v1237
        %1586 = vst [vmem:[#allocation2 + $0xb0] sm:$0xff] %v1238
        %1587 = vst [vmem:[#allocation2 + $0xf8] sm:$0xff] %v1239
        %1588 = vst [vmem:[#allocation2 + $0x140] sm:$0xff] %v1240
        %1589 = vst [vmem:[#allocation2 + $0x188] sm:$0xff] %v1241
        %1590 = vst [vmem:[#allocation2 + $0x1d0] sm:$0xff] %v1242
        %1591 = vst [vmem:[#allocation2 + $0x218] sm:$0xff] %v1243
        %1592 = vst [vmem:[#allocation2 + $0x260] sm:$0xff] %v1244
        %1593 = vst [vmem:[#allocation2 + $0x2a8] sm:$0xff] %v1245
        %1594 = vst [vmem:[#allocation2 + $0x2f0] sm:$0xff] %v1246
        %1595 = vst [vmem:[#allocation2 + $0x338] sm:$0xff] %v1247
        %1596 = vst [vmem:[#allocation2 + $0x380] sm:$0xff] %v1248
        %1597 = vst [vmem:[#allocation2 + $0x3c8] sm:$0xff] %v1249
        %1598 = vst [vmem:[#allocation2 + $0x410] sm:$0xff] %v1250
        %1599 = vst [vmem:[#allocation2 + $0x458] sm:$0xff] %v1251
        %v1600 = vrot.slane %v1532, 1
        %v1601 = vor.u32 %v1529, %v1600
        %v1603 = vld [vmem:[#allocation2 + $0x28] sm:$0xff]
        %v1604 = vsel %vm1482, %v1437, %v1603
        %1605 = vst [vmem:[#allocation2 + $0x28] sm:$0xff] %v1604
        %v1606 = vld [vmem:[#allocation2 + $0x70] sm:$0xff]
        %v1607 = vsel %vm1482, %v1439, %v1606
        %1608 = vst [vmem:[#allocation2 + $0x70] sm:$0xff] %v1607
        %v1609 = vld [vmem:[#allocation2 + $0xb8] sm:$0xff]
        %v1610 = vsel %vm1482, %v1441, %v1609
        %1611 = vst [vmem:[#allocation2 + $0xb8] sm:$0xff] %v1610
        %v1612 = vld [vmem:[#allocation2 + $0x100] sm:$0xff]
        %v1613 = vsel %vm1482, %v1443, %v1612
        %1614 = vst [vmem:[#allocation2 + $0x100] sm:$0xff] %v1613
        %v1615 = vld [vmem:[#allocation2 + $0x148] sm:$0xff]
        %v1616 = vsel %vm1482, %v1445, %v1615
        %1617 = vst [vmem:[#allocation2 + $0x148] sm:$0xff] %v1616
        %v1618 = vld [vmem:[#allocation2 + $0x190] sm:$0xff]
        %v1619 = vsel %vm1482, %v1447, %v1618
        %1620 = vst [vmem:[#allocation2 + $0x190] sm:$0xff] %v1619
        %v1621 = vld [vmem:[#allocation2 + $0x1d8] sm:$0xff]
        %v1622 = vsel %vm1482, %v1449, %v1621
        %1623 = vst [vmem:[#allocation2 + $0x1d8] sm:$0xff] %v1622
        %v1624 = vld [vmem:[#allocation2 + $0x220] sm:$0xff]
        %v1625 = vsel %vm1482, %v1451, %v1624
        %1626 = vst [vmem:[#allocation2 + $0x220] sm:$0xff] %v1625
        %v1627 = vld [vmem:[#allocation2 + $0x268] sm:$0xff]
        %v1628 = vsel %vm1482, %v1453, %v1627
        %1629 = vst [vmem:[#allocation2 + $0x268] sm:$0xff] %v1628
        %v1630 = vld [vmem:[#allocation2 + $0x2b0] sm:$0xff]
        %v1631 = vsel %vm1482, %v1455, %v1630
        %1632 = vst [vmem:[#allocation2 + $0x2b0] sm:$0xff] %v1631
        %v1633 = vld [vmem:[#allocation2 + $0x2f8] sm:$0xff]
        %v1634 = vsel %vm1482, %v1457, %v1633
        %1635 = vst [vmem:[#allocation2 + $0x2f8] sm:$0xff] %v1634
        %v1636 = vld [vmem:[#allocation2 + $0x340] sm:$0xff]
        %v1637 = vsel %vm1482, %v1459, %v1636
        %1638 = vst [vmem:[#allocation2 + $0x340] sm:$0xff] %v1637
        %v1639 = vld [vmem:[#allocation2 + $0x388] sm:$0xff]
        %v1640 = vsel %vm1482, %v1461, %v1639
        %1641 = vst [vmem:[#allocation2 + $0x388] sm:$0xff] %v1640
        %v1642 = vld [vmem:[#allocation2 + $0x3d0] sm:$0xff]
        %v1643 = vsel %vm1482, %v1463, %v1642
        %1644 = vst [vmem:[#allocation2 + $0x3d0] sm:$0xff] %v1643
        %v1645 = vld [vmem:[#allocation2 + $0x418] sm:$0xff]
        %v1646 = vsel %vm1482, %v1465, %v1645
        %1647 = vst [vmem:[#allocation2 + $0x418] sm:$0xff] %v1646
        %v1648 = vld [vmem:[#allocation2 + $0x460] sm:$0xff]
        %v1649 = vsel %vm1482, %v1601, %v1648
        %1650 = vst [vmem:[#allocation2 + $0x460] sm:$0xff] %v1649
        %v1651 = vld [vmem:[#allocation2 + $0x30] sm:$0xff]
        %v1652 = vsel %vm1375, %v1265, %v1651
        %1653 = vst [vmem:[#allocation2 + $0x30] sm:$0xff] %v1652
        %v1654 = vld [vmem:[#allocation2 + $0x78] sm:$0xff]
        %v1655 = vsel %vm1375, %v1272, %v1654
        %1656 = vst [vmem:[#allocation2 + $0x78] sm:$0xff] %v1655
        %v1657 = vld [vmem:[#allocation2 + $0xc0] sm:$0xff]
        %v1658 = vsel %vm1375, %v1279, %v1657
        %1659 = vst [vmem:[#allocation2 + $0xc0] sm:$0xff] %v1658
        %v1660 = vld [vmem:[#allocation2 + $0x108] sm:$0xff]
        %v1661 = vsel %vm1375, %v1286, %v1660
        %1662 = vst [vmem:[#allocation2 + $0x108] sm:$0xff] %v1661
        %v1663 = vld [vmem:[#allocation2 + $0x150] sm:$0xff]
        %v1664 = vsel %vm1375, %v1293, %v1663
        %1665 = vst [vmem:[#allocation2 + $0x150] sm:$0xff] %v1664
        %v1666 = vld [vmem:[#allocation2 + $0x198] sm:$0xff]
        %v1667 = vsel %vm1375, %v1300, %v1666
        %1668 = vst [vmem:[#allocation2 + $0x198] sm:$0xff] %v1667
        %v1669 = vld [vmem:[#allocation2 + $0x1e0] sm:$0xff]
        %v1670 = vsel %vm1375, %v1307, %v1669
        %1671 = vst [vmem:[#allocation2 + $0x1e0] sm:$0xff] %v1670
        %v1672 = vld [vmem:[#allocation2 + $0x228] sm:$0xff]
        %v1673 = vsel %vm1375, %v1314, %v1672
        %1674 = vst [vmem:[#allocation2 + $0x228] sm:$0xff] %v1673
        %v1675 = vld [vmem:[#allocation2 + $0x270] sm:$0xff]
        %v1676 = vsel %vm1375, %v1321, %v1675
        %1677 = vst [vmem:[#allocation2 + $0x270] sm:$0xff] %v1676
        %v1678 = vld [vmem:[#allocation2 + $0x2b8] sm:$0xff]
        %v1679 = vsel %vm1375, %v1328, %v1678
        %1680 = vst [vmem:[#allocation2 + $0x2b8] sm:$0xff] %v1679
        %v1681 = vld [vmem:[#allocation2 + $0x300] sm:$0xff]
        %v1682 = vsel %vm1375, %v1335, %v1681
        %1683 = vst [vmem:[#allocation2 + $0x300] sm:$0xff] %v1682
        %v1684 = vld [vmem:[#allocation2 + $0x348] sm:$0xff]
        %v1685 = vsel %vm1375, %v1342, %v1684
        %1686 = vst [vmem:[#allocation2 + $0x348] sm:$0xff] %v1685
        %v1687 = vld [vmem:[#allocation2 + $0x390] sm:$0xff]
        %v1688 = vsel %vm1375, %v1349, %v1687
        %1689 = vst [vmem:[#allocation2 + $0x390] sm:$0xff] %v1688
        %v1690 = vld [vmem:[#allocation2 + $0x3d8] sm:$0xff]
        %v1691 = vsel %vm1375, %v1356, %v1690
        %1692 = vst [vmem:[#allocation2 + $0x3d8] sm:$0xff] %v1691
        %v1693 = vld [vmem:[#allocation2 + $0x420] sm:$0xff]
        %v1694 = vsel %vm1375, %v1534, %v1693
        %1695 = vst [vmem:[#allocation2 + $0x420] sm:$0xff] %v1694
        %1696 = vst [vmem:[#allocation2 + $0x38] sm:$0xff] %v1237
        %1697 = vst [vmem:[#allocation2 + $0x80] sm:$0xff] %v1238
        %1698 = vst [vmem:[#allocation2 + $0xc8] sm:$0xff] %v1239
        %1699 = vst [vmem:[#allocation2 + $0x110] sm:$0xff] %v1240
        %1700 = vst [vmem:[#allocation2 + $0x158] sm:$0xff] %v1241
        %1701 = vst [vmem:[#allocation2 + $0x1a0] sm:$0xff] %v1242
        %1702 = vst [vmem:[#allocation2 + $0x1e8] sm:$0xff] %v1243
        %1703 = vst [vmem:[#allocation2 + $0x230] sm:$0xff] %v1244
        %1704 = vst [vmem:[#allocation2 + $0x278] sm:$0xff] %v1245
        %1705 = vst [vmem:[#allocation2 + $0x2c0] sm:$0xff] %v1246
        %1706 = vst [vmem:[#allocation2 + $0x308] sm:$0xff] %v1247
        %1707 = vst [vmem:[#allocation2 + $0x350] sm:$0xff] %v1248
        %1708 = vst [vmem:[#allocation2 + $0x398] sm:$0xff] %v1249
        %1709 = vst [vmem:[#allocation2 + $0x3e0] sm:$0xff] %v1250
        %1710 = vst [vmem:[#allocation2 + $0x428] sm:$0xff] %v1251
        %v1711 = vld [vmem:[#allocation2 + $0x40] sm:$0xff]
        %v1712 = vsel %vm1482, %v1439, %v1711
        %1713 = vst [vmem:[#allocation2 + $0x40] sm:$0xff] %v1712
        %v1714 = vld [vmem:[#allocation2 + $0x88] sm:$0xff]
        %v1715 = vsel %vm1482, %v1441, %v1714
        %1716 = vst [vmem:[#allocation2 + $0x88] sm:$0xff] %v1715
        %v1717 = vld [vmem:[#allocation2 + $0xd0] sm:$0xff]
        %v1718 = vsel %vm1482, %v1443, %v1717
        %1719 = vst [vmem:[#allocation2 + $0xd0] sm:$0xff] %v1718
        %v1720 = vld [vmem:[#allocation2 + $0x118] sm:$0xff]
        %v1721 = vsel %vm1482, %v1445, %v1720
        %1722 = vst [vmem:[#allocation2 + $0x118] sm:$0xff] %v1721
        %v1723 = vld [vmem:[#allocation2 + $0x160] sm:$0xff]
        %v1724 = vsel %vm1482, %v1447, %v1723
        %1725 = vst [vmem:[#allocation2 + $0x160] sm:$0xff] %v1724
        %v1726 = vld [vmem:[#allocation2 + $0x1a8] sm:$0xff]
        %v1727 = vsel %vm1482, %v1449, %v1726
        %1728 = vst [vmem:[#allocation2 + $0x1a8] sm:$0xff] %v1727
        %v1729 = vld [vmem:[#allocation2 + $0x1f0] sm:$0xff]
        %v1730 = vsel %vm1482, %v1451, %v1729
        %1731 = vst [vmem:[#allocation2 + $0x1f0] sm:$0xff] %v1730
        %v1732 = vld [vmem:[#allocation2 + $0x238] sm:$0xff]
        %v1733 = vsel %vm1482, %v1453, %v1732
        %1734 = vst [vmem:[#allocation2 + $0x238] sm:$0xff] %v1733
        %v1735 = vld [vmem:[#allocation2 + $0x280] sm:$0xff]
        %v1736 = vsel %vm1482, %v1455, %v1735
        %1737 = vst [vmem:[#allocation2 + $0x280] sm:$0xff] %v1736
        %v1738 = vld [vmem:[#allocation2 + $0x2c8] sm:$0xff]
        %v1739 = vsel %vm1482, %v1457, %v1738
        %1740 = vst [vmem:[#allocation2 + $0x2c8] sm:$0xff] %v1739
        %v1741 = vld [vmem:[#allocation2 + $0x310] sm:$0xff]
        %v1742 = vsel %vm1482, %v1459, %v1741
        %1743 = vst [vmem:[#allocation2 + $0x310] sm:$0xff] %v1742
        %v1744 = vld [vmem:[#allocation2 + $0x358] sm:$0xff]
        %v1745 = vsel %vm1482, %v1461, %v1744
        %1746 = vst [vmem:[#allocation2 + $0x358] sm:$0xff] %v1745
        %v1747 = vld [vmem:[#allocation2 + $0x3a0] sm:$0xff]
        %v1748 = vsel %vm1482, %v1463, %v1747
        %1749 = vst [vmem:[#allocation2 + $0x3a0] sm:$0xff] %v1748
        %v1750 = vld [vmem:[#allocation2 + $0x3e8] sm:$0xff]
        %v1751 = vsel %vm1482, %v1465, %v1750
        %1752 = vst [vmem:[#allocation2 + $0x3e8] sm:$0xff] %v1751
        %v1753 = vld [vmem:[#allocation2 + $0x430] sm:$0xff]
        %v1754 = vsel %vm1482, %v1601, %v1753
        %1755 = vst [vmem:[#allocation2 + $0x430] sm:$0xff] %v1754
        %v1756 = vld [vmem:[#allocation2] sm:$0xff]
        %v1757 = vld [vmem:[#allocation2 + $0x8] sm:$0xff]
        %v1758 = vld [vmem:[#allocation2 + $0x10] sm:$0xff]
        %v1759 = vld [vmem:[#allocation2 + $0x18] sm:$0xff]
        %v1760 = vld [vmem:[#allocation2 + $0x20] sm:$0xff]
        %v1761 = vld [vmem:[#allocation2 + $0x28] sm:$0xff]
        %v1762 = vld [vmem:[#allocation2 + $0x30] sm:$0xff]
        %v1763 = vld [vmem:[#allocation2 + $0x38] sm:$0xff]
        %v1764 = vld [vmem:[#allocation2 + $0x40] sm:$0xff]
        %v1765 = vld [vmem:[#allocation2 + $0x48] sm:$0xff]
        %v1766 = vld [vmem:[#allocation2 + $0x50] sm:$0xff]
        %v1767 = vld [vmem:[#allocation2 + $0x58] sm:$0xff]
        %v1768 = vld [vmem:[#allocation2 + $0x60] sm:$0xff]
        %v1769 = vld [vmem:[#allocation2 + $0x68] sm:$0xff]
        %v1770 = vld [vmem:[#allocation2 + $0x70] sm:$0xff]
        %v1771 = vld [vmem:[#allocation2 + $0x78] sm:$0xff]
        %v1772 = vld [vmem:[#allocation2 + $0x80] sm:$0xff]
        %v1773 = vld [vmem:[#allocation2 + $0x88] sm:$0xff]
        %v1774 = vld [vmem:[#allocation2 + $0x90] sm:$0xff]
        %v1775 = vld [vmem:[#allocation2 + $0x98] sm:$0xff]
        %v1776 = vld [vmem:[#allocation2 + $0xa0] sm:$0xff]
        %v1777 = vld [vmem:[#allocation2 + $0xa8] sm:$0xff]
        %v1778 = vld [vmem:[#allocation2 + $0xb0] sm:$0xff]
        %v1779 = vld [vmem:[#allocation2 + $0xb8] sm:$0xff]
        %v1780 = vld [vmem:[#allocation2 + $0xc0] sm:$0xff]
        %v1781 = vld [vmem:[#allocation2 + $0xc8] sm:$0xff]
        %v1782 = vld [vmem:[#allocation2 + $0xd0] sm:$0xff]
        %v1783 = vld [vmem:[#allocation2 + $0xd8] sm:$0xff]
        %v1784 = vld [vmem:[#allocation2 + $0xe0] sm:$0xff]
        %v1785 = vld [vmem:[#allocation2 + $0xe8] sm:$0xff]
        %v1786 = vld [vmem:[#allocation2 + $0xf0] sm:$0xff]
        %v1787 = vld [vmem:[#allocation2 + $0xf8] sm:$0xff]
        %v1788 = vld [vmem:[#allocation2 + $0x100] sm:$0xff]
        %v1789 = vld [vmem:[#allocation2 + $0x108] sm:$0xff]
        %v1790 = vld [vmem:[#allocation2 + $0x110] sm:$0xff]
        %v1791 = vld [vmem:[#allocation2 + $0x118] sm:$0xff]
        %v1792 = vld [vmem:[#allocation2 + $0x120] sm:$0xff]
        %v1793 = vld [vmem:[#allocation2 + $0x128] sm:$0xff]
        %v1794 = vld [vmem:[#allocation2 + $0x130] sm:$0xff]
        %v1795 = vld [vmem:[#allocation2 + $0x138] sm:$0xff]
        %v1796 = vld [vmem:[#allocation2 + $0x140] sm:$0xff]
        %v1797 = vld [vmem:[#allocation2 + $0x148] sm:$0xff]
        %v1798 = vld [vmem:[#allocation2 + $0x150] sm:$0xff]
        %v1799 = vld [vmem:[#allocation2 + $0x158] sm:$0xff]
        %v1800 = vld [vmem:[#allocation2 + $0x160] sm:$0xff]
        %v1801 = vld [vmem:[#allocation2 + $0x168] sm:$0xff]
        %v1802 = vld [vmem:[#allocation2 + $0x170] sm:$0xff]
        %v1803 = vld [vmem:[#allocation2 + $0x178] sm:$0xff]
        %v1804 = vld [vmem:[#allocation2 + $0x180] sm:$0xff]
        %v1805 = vld [vmem:[#allocation2 + $0x188] sm:$0xff]
        %v1806 = vld [vmem:[#allocation2 + $0x190] sm:$0xff]
        %v1807 = vld [vmem:[#allocation2 + $0x198] sm:$0xff]
        %v1808 = vld [vmem:[#allocation2 + $0x1a0] sm:$0xff]
        %v1809 = vld [vmem:[#allocation2 + $0x1a8] sm:$0xff]
        %v1810 = vld [vmem:[#allocation2 + $0x1b0] sm:$0xff]
        %v1811 = vld [vmem:[#allocation2 + $0x1b8] sm:$0xff]
        %v1812 = vld [vmem:[#allocation2 + $0x1c0] sm:$0xff]
        %v1813 = vld [vmem:[#allocation2 + $0x1c8] sm:$0xff]
        %v1814 = vld [vmem:[#allocation2 + $0x1d0] sm:$0xff]
        %v1815 = vld [vmem:[#allocation2 + $0x1d8] sm:$0xff]
        %v1816 = vld [vmem:[#allocation2 + $0x1e0] sm:$0xff]
        %v1817 = vld [vmem:[#allocation2 + $0x1e8] sm:$0xff]
        %v1818 = vld [vmem:[#allocation2 + $0x1f0] sm:$0xff]
        %v1819 = vld [vmem:[#allocation2 + $0x1f8] sm:$0xff]
        %v1820 = vld [vmem:[#allocation2 + $0x200] sm:$0xff]
        %v1821 = vld [vmem:[#allocation2 + $0x208] sm:$0xff]
        %v1822 = vld [vmem:[#allocation2 + $0x210] sm:$0xff]
        %v1823 = vld [vmem:[#allocation2 + $0x218] sm:$0xff]
        %v1824 = vld [vmem:[#allocation2 + $0x220] sm:$0xff]
        %v1825 = vld [vmem:[#allocation2 + $0x228] sm:$0xff]
        %v1826 = vld [vmem:[#allocation2 + $0x230] sm:$0xff]
        %v1827 = vld [vmem:[#allocation2 + $0x238] sm:$0xff]
        %v1828 = vld [vmem:[#allocation2 + $0x240] sm:$0xff]
        %v1829 = vld [vmem:[#allocation2 + $0x248] sm:$0xff]
        %v1830 = vld [vmem:[#allocation2 + $0x250] sm:$0xff]
        %v1831 = vld [vmem:[#allocation2 + $0x258] sm:$0xff]
        %v1832 = vld [vmem:[#allocation2 + $0x260] sm:$0xff]
        %v1833 = vld [vmem:[#allocation2 + $0x268] sm:$0xff]
        %v1834 = vld [vmem:[#allocation2 + $0x270] sm:$0xff]
        %v1835 = vld [vmem:[#allocation2 + $0x278] sm:$0xff]
        %v1836 = vld [vmem:[#allocation2 + $0x280] sm:$0xff]
        %v1837 = vld [vmem:[#allocation2 + $0x288] sm:$0xff]
        %v1838 = vld [vmem:[#allocation2 + $0x290] sm:$0xff]
        %v1839 = vld [vmem:[#allocation2 + $0x298] sm:$0xff]
        %v1840 = vld [vmem:[#allocation2 + $0x2a0] sm:$0xff]
        %v1841 = vld [vmem:[#allocation2 + $0x2a8] sm:$0xff]
        %v1842 = vld [vmem:[#allocation2 + $0x2b0] sm:$0xff]
        %v1843 = vld [vmem:[#allocation2 + $0x2b8] sm:$0xff]
        %v1844 = vld [vmem:[#allocation2 + $0x2c0] sm:$0xff]
        %v1845 = vld [vmem:[#allocation2 + $0x2c8] sm:$0xff]
        %v1846 = vld [vmem:[#allocation2 + $0x2d0] sm:$0xff]
        %v1847 = vld [vmem:[#allocation2 + $0x2d8] sm:$0xff]
        %v1848 = vld [vmem:[#allocation2 + $0x2e0] sm:$0xff]
        %v1849 = vld [vmem:[#allocation2 + $0x2e8] sm:$0xff]
        %v1850 = vld [vmem:[#allocation2 + $0x2f0] sm:$0xff]
        %v1851 = vld [vmem:[#allocation2 + $0x2f8] sm:$0xff]
        %v1852 = vld [vmem:[#allocation2 + $0x300] sm:$0xff]
        %v1853 = vld [vmem:[#allocation2 + $0x308] sm:$0xff]
        %v1854 = vld [vmem:[#allocation2 + $0x310] sm:$0xff]
        %v1855 = vld [vmem:[#allocation2 + $0x318] sm:$0xff]
        %v1856 = vld [vmem:[#allocation2 + $0x320] sm:$0xff]
        %v1857 = vld [vmem:[#allocation2 + $0x328] sm:$0xff]
        %v1858 = vld [vmem:[#allocation2 + $0x330] sm:$0xff]
        %v1859 = vld [vmem:[#allocation2 + $0x338] sm:$0xff]
        %v1860 = vld [vmem:[#allocation2 + $0x340] sm:$0xff]
        %v1861 = vld [vmem:[#allocation2 + $0x348] sm:$0xff]
        %v1862 = vld [vmem:[#allocation2 + $0x350] sm:$0xff]
        %v1863 = vld [vmem:[#allocation2 + $0x358] sm:$0xff]
        %v1864 = vld [vmem:[#allocation2 + $0x360] sm:$0xff]
        %v1865 = vld [vmem:[#allocation2 + $0x368] sm:$0xff]
        %v1866 = vld [vmem:[#allocation2 + $0x370] sm:$0xff]
        %v1867 = vld [vmem:[#allocation2 + $0x378] sm:$0xff]
        %v1868 = vld [vmem:[#allocation2 + $0x380] sm:$0xff]
        %v1869 = vld [vmem:[#allocation2 + $0x388] sm:$0xff]
        %v1870 = vld [vmem:[#allocation2 + $0x390] sm:$0xff]
        %v1871 = vld [vmem:[#allocation2 + $0x398] sm:$0xff]
        %v1872 = vld [vmem:[#allocation2 + $0x3a0] sm:$0xff]
        %v1873 = vld [vmem:[#allocation2 + $0x3a8] sm:$0xff]
        %v1874 = vld [vmem:[#allocation2 + $0x3b0] sm:$0xff]
        %v1875 = vld [vmem:[#allocation2 + $0x3b8] sm:$0xff]
        %v1876 = vld [vmem:[#allocation2 + $0x3c0] sm:$0xff]
        %v1877 = vld [vmem:[#allocation2 + $0x3c8] sm:$0xff]
        %v1878 = vld [vmem:[#allocation2 + $0x3d0] sm:$0xff]
        %v1879 = vld [vmem:[#allocation2 + $0x3d8] sm:$0xff]
        %v1880 = vld [vmem:[#allocation2 + $0x3e0] sm:$0xff]
        %v1881 = vld [vmem:[#allocation2 + $0x3e8] sm:$0xff]
        %v1882 = vld [vmem:[#allocation2 + $0x3f0] sm:$0xff]
        %v1883 = vld [vmem:[#allocation2 + $0x3f8] sm:$0xff]
        %v1884 = vld [vmem:[#allocation2 + $0x400] sm:$0xff]
        %v1885 = vld [vmem:[#allocation2 + $0x408] sm:$0xff]
        %v1886 = vld [vmem:[#allocation2 + $0x410] sm:$0xff]
        %v1887 = vld [vmem:[#allocation2 + $0x418] sm:$0xff]
        %v1888 = vld [vmem:[#allocation2 + $0x420] sm:$0xff]
        %v1889 = vld [vmem:[#allocation2 + $0x428] sm:$0xff]
        %v1890 = vld [vmem:[#allocation2 + $0x430] sm:$0xff]
        %v1891 = vld [vmem:[#allocation2 + $0x438] sm:$0xff]
        %v1892 = vld [vmem:[#allocation2 + $0x440] sm:$0xff]
        %v1893 = vld [vmem:[#allocation2 + $0x448] sm:$0xff]
        %v1894 = vld [vmem:[#allocation2 + $0x450] sm:$0xff]
        %v1895 = vld [vmem:[#allocation2 + $0x458] sm:$0xff]
        %v1896 = vld [vmem:[#allocation2 + $0x460] sm:$0xff]
        %v1897 = vld [vmem:[#allocation2 + $0x468] sm:$0xff]
        %v1898 = vld [vmem:[#allocation2 + $0x470] sm:$0xff]
        %v1899 = vld [vmem:[#allocation2 + $0x478] sm:$0xff]
        %v1900 = vld [vmem:[#allocation7] sm:$0xf]
        %v1901 = vld [vmem:[#allocation7 + $0x4] sm:$0xf]
        %v1902 = vld [vmem:[#allocation7 + $0x8] sm:$0xf]
        %v1903 = vld [vmem:[#allocation7 + $0xc] sm:$0xf]
        %v1904 = vld [vmem:[#allocation7 + $0x10] sm:$0xf]
        %v1905 = vld [vmem:[#allocation7 + $0x14] sm:$0xf]
        %v1906 = vld [vmem:[#allocation7 + $0x18] sm:$0xf]
        %v1907 = vld [vmem:[#allocation7 + $0x1c] sm:$0xf]
        %v1908 = vld [vmem:[#allocation7 + $0x20] sm:$0xf]
        %v1909 = vld [vmem:[#allocation7 + $0x24] sm:$0xf]
        %v1910 = vld [vmem:[#allocation7 + $0x28] sm:$0xf]
        %v1911 = vld [vmem:[#allocation7 + $0x2c] sm:$0xf]
        %v1912 = vld [vmem:[#allocation7 + $0x30] sm:$0xf]
        %v1913 = vld [vmem:[#allocation7 + $0x34] sm:$0xf]
        %v1914 = vld [vmem:[#allocation7 + $0x38] sm:$0xf]
        %v1915 = vld [vmem:[#allocation7 + $0x3c] sm:$0xf]
        %v1916 = vld [vmem:[#allocation7 + $0x40] sm:$0xf]
        %v1917 = vld [vmem:[#allocation7 + $0x44] sm:$0xf]
        %v1918 = vld [vmem:[#allocation7 + $0x48] sm:$0xf]
        %v1919 = vld [vmem:[#allocation7 + $0x4c] sm:$0xf]
        %v1920 = vld [vmem:[#allocation7 + $0x50] sm:$0xf]
        %v1921 = vld [vmem:[#allocation7 + $0x54] sm:$0xf]
        %v1922 = vld [vmem:[#allocation7 + $0x58] sm:$0xf]
        %v1923 = vld [vmem:[#allocation7 + $0x5c] sm:$0xf]
        %v1924 = vld [vmem:[#allocation7 + $0x60] sm:$0xf]
        %v1925 = vld [vmem:[#allocation7 + $0x64] sm:$0xf]
        %v1926 = vld [vmem:[#allocation7 + $0x68] sm:$0xf]
        %v1927 = vld [vmem:[#allocation7 + $0x6c] sm:$0xf]
        %v1928 = vld [vmem:[#allocation7 + $0x70] sm:$0xf]
        %v1929 = vld [vmem:[#allocation7 + $0x74] sm:$0xf]
        %v1930 = vld [vmem:[#allocation7 + $0x78] sm:$0xf]
        %v1931 = vld [vmem:[#allocation7 + $0x7c] sm:$0xf]
        %v1932 = vld [vmem:[#allocation7 + $0x80] sm:$0xf]
        %v1933 = vld [vmem:[#allocation7 + $0x84] sm:$0xf]
        %v1934 = vld [vmem:[#allocation7 + $0x88] sm:$0xf]
        %v1935 = vld [vmem:[#allocation7 + $0x8c] sm:$0xf]
        %v1936 = vld [vmem:[#allocation7 + $0x90] sm:$0xf]
        %v1937 = vld [vmem:[#allocation7 + $0x94] sm:$0xf]
        %v1938 = vld [vmem:[#allocation7 + $0x98] sm:$0xf]
        %v1939 = vld [vmem:[#allocation7 + $0x9c] sm:$0xf]
        %v1940 = vld [vmem:[#allocation7 + $0xa0] sm:$0xf]
        %v1941 = vld [vmem:[#allocation7 + $0xa4] sm:$0xf]
        %v1942 = vld [vmem:[#allocation7 + $0xa8] sm:$0xf]
        %v1943 = vld [vmem:[#allocation7 + $0xac] sm:$0xf]
        %v1944 = vld [vmem:[#allocation7 + $0xb0] sm:$0xf]
        %v1945 = vld [vmem:[#allocation7 + $0xb4] sm:$0xf]
        %v1946 = vld [vmem:[#allocation7 + $0xb8] sm:$0xf]
        %v1947 = vld [vmem:[#allocation7 + $0xbc] sm:$0xf]
        %v1948 = vld [vmem:[#allocation7 + $0xc0] sm:$0xf]
        %v1949 = vld [vmem:[#allocation7 + $0xc4] sm:$0xf]
        %v1950 = vld [vmem:[#allocation7 + $0xc8] sm:$0xf]
        %v1951 = vld [vmem:[#allocation7 + $0xcc] sm:$0xf]
        %v1952 = vld [vmem:[#allocation7 + $0xd0] sm:$0xf]
        %v1953 = vld [vmem:[#allocation7 + $0xd4] sm:$0xf]
        %v1954 = vld [vmem:[#allocation7 + $0xd8] sm:$0xf]
        %v1955 = vld [vmem:[#allocation7 + $0xdc] sm:$0xf]
        %v1956 = vld [vmem:[#allocation7 + $0xe0] sm:$0xf]
        %v1957 = vld [vmem:[#allocation7 + $0xe4] sm:$0xf]
        %v1958 = vld [vmem:[#allocation7 + $0xe8] sm:$0xf]
        %v1959 = vld [vmem:[#allocation7 + $0xec] sm:$0xf]
        %v1960 = vld [vmem:[#allocation7 + $0xf0] sm:$0xf]
        %v1961 = vld [vmem:[#allocation7 + $0xf4] sm:$0xf]
        %v1962 = vld [vmem:[#allocation7 + $0xf8] sm:$0xf]
        %v1963 = vld [vmem:[#allocation7 + $0xfc] sm:$0xf]
        %v1964 = vld [vmem:[#allocation7 + $0x100] sm:$0xf]
        %v1965 = vld [vmem:[#allocation7 + $0x104] sm:$0xf]
        %v1966 = vld [vmem:[#allocation7 + $0x108] sm:$0xf]
        %v1967 = vld [vmem:[#allocation7 + $0x10c] sm:$0xf]
        %v1968 = vld [vmem:[#allocation7 + $0x110] sm:$0xf]
        %v1969 = vld [vmem:[#allocation7 + $0x114] sm:$0xf]
        %v1970 = vld [vmem:[#allocation7 + $0x118] sm:$0xf]
        %v1971 = vld [vmem:[#allocation7 + $0x11c] sm:$0xf]
        %v1972 = vld [vmem:[#allocation7 + $0x120] sm:$0xf]
        %v1973 = vld [vmem:[#allocation7 + $0x124] sm:$0xf]
        %v1974 = vld [vmem:[#allocation7 + $0x128] sm:$0xf]
        %v1975 = vld [vmem:[#allocation7 + $0x12c] sm:$0xf]
        %v1976 = vld [vmem:[#allocation7 + $0x130] sm:$0xf]
        %v1977 = vld [vmem:[#allocation7 + $0x134] sm:$0xf]
        %v1978 = vld [vmem:[#allocation7 + $0x138] sm:$0xf]
        %v1979 = vld [vmem:[#allocation7 + $0x13c] sm:$0xf]
        %v1980 = vld [vmem:[#allocation7 + $0x140] sm:$0xf]
        %v1981 = vld [vmem:[#allocation7 + $0x144] sm:$0xf]
        %v1982 = vld [vmem:[#allocation7 + $0x148] sm:$0xf]
        %v1983 = vld [vmem:[#allocation7 + $0x14c] sm:$0xf]
        %v1984 = vld [vmem:[#allocation7 + $0x150] sm:$0xf]
        %v1985 = vld [vmem:[#allocation7 + $0x154] sm:$0xf]
        %v1986 = vld [vmem:[#allocation7 + $0x158] sm:$0xf]
        %v1987 = vld [vmem:[#allocation7 + $0x15c] sm:$0xf]
        %v1988 = vld [vmem:[#allocation7 + $0x160] sm:$0xf]
        %v1989 = vld [vmem:[#allocation7 + $0x164] sm:$0xf]
        %v1990 = vld [vmem:[#allocation7 + $0x168] sm:$0xf]
        %v1991 = vld [vmem:[#allocation7 + $0x16c] sm:$0xf]
        %v1992 = vld [vmem:[#allocation7 + $0x170] sm:$0xf]
        %v1993 = vld [vmem:[#allocation7 + $0x174] sm:$0xf]
        %v1994 = vld [vmem:[#allocation7 + $0x178] sm:$0xf]
        %v1995 = vld [vmem:[#allocation7 + $0x17c] sm:$0xf]
        %v1996 = vld [vmem:[#allocation7 + $0x180] sm:$0xf]
        %v1997 = vld [vmem:[#allocation7 + $0x184] sm:$0xf]
        %v1998 = vld [vmem:[#allocation7 + $0x188] sm:$0xf]
        %v1999 = vld [vmem:[#allocation7 + $0x18c] sm:$0xf]
        %v2000 = vld [vmem:[#allocation7 + $0x190] sm:$0xf]
        %v2001 = vld [vmem:[#allocation7 + $0x194] sm:$0xf]
        %v2002 = vld [vmem:[#allocation7 + $0x198] sm:$0xf]
        %v2003 = vld [vmem:[#allocation7 + $0x19c] sm:$0xf]
        %v2004 = vld [vmem:[#allocation7 + $0x1a0] sm:$0xf]
        %v2005 = vld [vmem:[#allocation7 + $0x1a4] sm:$0xf]
        %v2006 = vld [vmem:[#allocation7 + $0x1a8] sm:$0xf]
        %v2007 = vld [vmem:[#allocation7 + $0x1ac] sm:$0xf]
        %v2008 = vld [vmem:[#allocation7 + $0x1b0] sm:$0xf]
        %v2009 = vld [vmem:[#allocation7 + $0x1b4] sm:$0xf]
        %v2010 = vld [vmem:[#allocation7 + $0x1b8] sm:$0xf]
        %v2011 = vld [vmem:[#allocation7 + $0x1bc] sm:$0xf]
        %v2012 = vld [vmem:[#allocation7 + $0x1c0] sm:$0xf]
        %v2013 = vld [vmem:[#allocation7 + $0x1c4] sm:$0xf]
        %v2014 = vld [vmem:[#allocation7 + $0x1c8] sm:$0xf]
        %v2015 = vld [vmem:[#allocation7 + $0x1cc] sm:$0xf]
        %v2016 = vld [vmem:[#allocation7 + $0x1d0] sm:$0xf]
        %v2017 = vld [vmem:[#allocation7 + $0x1d4] sm:$0xf]
        %v2018 = vld [vmem:[#allocation7 + $0x1d8] sm:$0xf]
        %v2019 = vld [vmem:[#allocation7 + $0x1dc] sm:$0xf]
        %v2020 = vld [vmem:[#allocation7 + $0x1e0] sm:$0xf]
        %v2021 = vld [vmem:[#allocation7 + $0x1e4] sm:$0xf]
        %v2022 = vld [vmem:[#allocation7 + $0x1e8] sm:$0xf]
        %v2023 = vld [vmem:[#allocation7 + $0x1ec] sm:$0xf]
        %v2024 = vld [vmem:[#allocation7 + $0x1f0] sm:$0xf]
        %v2025 = vld [vmem:[#allocation7 + $0x1f4] sm:$0xf]
        %v2026 = vld [vmem:[#allocation7 + $0x1f8] sm:$0xf]
        %v2027 = vld [vmem:[#allocation7 + $0x1fc] sm:$0xf]
        %v2028 = vld [vmem:[#allocation7 + $0x200] sm:$0xf]
        %v2029 = vld [vmem:[#allocation7 + $0x204] sm:$0xf]
        %v2030 = vld [vmem:[#allocation7 + $0x208] sm:$0xf]
        %v2031 = vld [vmem:[#allocation7 + $0x20c] sm:$0xf]
        %v2032 = vld [vmem:[#allocation7 + $0x210] sm:$0xf]
        %v2033 = vld [vmem:[#allocation7 + $0x214] sm:$0xf]
        %v2034 = vld [vmem:[#allocation7 + $0x218] sm:$0xf]
        %v2035 = vld [vmem:[#allocation7 + $0x21c] sm:$0xf]
        %v2036 = vld [vmem:[#allocation7 + $0x220] sm:$0xf]
        %v2037 = vld [vmem:[#allocation7 + $0x224] sm:$0xf]
        %v2038 = vld [vmem:[#allocation7 + $0x228] sm:$0xf]
        %v2039 = vld [vmem:[#allocation7 + $0x22c] sm:$0xf]
        %v2040 = vld [vmem:[#allocation7 + $0x230] sm:$0xf]
        %v2041 = vld [vmem:[#allocation7 + $0x234] sm:$0xf]
        %v2042 = vld [vmem:[#allocation7 + $0x238] sm:$0xf]
        %v2043 = vld [vmem:[#allocation7 + $0x23c] sm:$0xf]
        %v2044 = vld [vmem:[%s2] sm:$0x1]
        %v2046 = vlaneseq
        %v2047 = vshrl.u32 %v2046, 7
        %v2048 = vsub.s32 0, %v2047
        %v2049 = vrot.slane %v2044, %v2048
        %v2195 = vunpack.c.l.b16 %v1900
        %v2196 = vunpack.c.l.b16 %v1901
        %v2197 = vunpack.c.l.b16 %v1902
        %v2198 = vunpack.c.l.b16 %v1903
        %v2199 = vunpack.c.l.b16 %v1904
        %v2200 = vunpack.c.l.b16 %v1905
        %v2201 = vunpack.c.l.b16 %v1906
        %v2202 = vunpack.c.l.b16 %v1907
        %v2203 = vunpack.c.l.b16 %v1908
        %v2204 = vunpack.c.l.b16 %v1909
        %v2205 = vunpack.c.l.b16 %v1910
        %v2206 = vunpack.c.l.b16 %v1911
        %v2207 = vunpack.c.l.b16 %v1912
        %v2208 = vunpack.c.l.b16 %v1913
        %v2209 = vunpack.c.l.b16 %v1914
        %v2210 = vunpack.c.l.b16 %v1915
        %v2211 = vunpack.c.l.b16 %v1916
        %v2212 = vunpack.c.l.b16 %v1917
        %v2213 = vunpack.c.l.b16 %v1918
        %v2214 = vunpack.c.l.b16 %v1919
        %v2215 = vunpack.c.l.b16 %v1920
        %v2216 = vunpack.c.l.b16 %v1921
        %v2217 = vunpack.c.l.b16 %v1922
        %v2218 = vunpack.c.l.b16 %v1923
        %v2219 = vunpack.c.l.b16 %v1924
        %v2220 = vunpack.c.l.b16 %v1925
        %v2221 = vunpack.c.l.b16 %v1926
        %v2222 = vunpack.c.l.b16 %v1927
        %v2223 = vunpack.c.l.b16 %v1928
        %v2224 = vunpack.c.l.b16 %v1929
        %v2225 = vunpack.c.l.b16 %v1930
        %v2226 = vunpack.c.l.b16 %v1931
        %v2227 = vunpack.c.l.b16 %v1932
        %v2228 = vunpack.c.l.b16 %v1933
        %v2229 = vunpack.c.l.b16 %v1934
        %v2230 = vunpack.c.l.b16 %v1935
        %v2231 = vunpack.c.l.b16 %v1936
        %v2232 = vunpack.c.l.b16 %v1937
        %v2233 = vunpack.c.l.b16 %v1938
        %v2234 = vunpack.c.l.b16 %v1939
        %v2235 = vunpack.c.l.b16 %v1940
        %v2236 = vunpack.c.l.b16 %v1941
        %v2237 = vunpack.c.l.b16 %v1942
        %v2238 = vunpack.c.l.b16 %v1943
        %v2239 = vunpack.c.l.b16 %v1944
        %v2240 = vunpack.c.l.b16 %v1945
        %v2241 = vunpack.c.l.b16 %v1946
        %v2242 = vunpack.c.l.b16 %v1947
        %v2243 = vunpack.c.l.b16 %v1948
        %v2244 = vunpack.c.l.b16 %v1949
        %v2245 = vunpack.c.l.b16 %v1950
        %v2246 = vunpack.c.l.b16 %v1951
        %v2247 = vunpack.c.l.b16 %v1952
        %v2248 = vunpack.c.l.b16 %v1953
        %v2249 = vunpack.c.l.b16 %v1954
        %v2250 = vunpack.c.l.b16 %v1955
        %v2251 = vunpack.c.l.b16 %v1956
        %v2252 = vunpack.c.l.b16 %v1957
        %v2253 = vunpack.c.l.b16 %v1958
        %v2254 = vunpack.c.l.b16 %v1959
        %v2255 = vunpack.c.l.b16 %v1960
        %v2256 = vunpack.c.l.b16 %v1961
        %v2257 = vunpack.c.l.b16 %v1962
        %v2258 = vunpack.c.l.b16 %v1963
        %v2259 = vunpack.c.l.b16 %v1964
        %v2260 = vunpack.c.l.b16 %v1965
        %v2261 = vunpack.c.l.b16 %v1966
        %v2262 = vunpack.c.l.b16 %v1967
        %v2263 = vunpack.c.l.b16 %v1968
        %v2264 = vunpack.c.l.b16 %v1969
        %v2265 = vunpack.c.l.b16 %v1970
        %v2266 = vunpack.c.l.b16 %v1971
        %v2267 = vunpack.c.l.b16 %v1972
        %v2268 = vunpack.c.l.b16 %v1973
        %v2269 = vunpack.c.l.b16 %v1974
        %v2270 = vunpack.c.l.b16 %v1975
        %v2271 = vunpack.c.l.b16 %v1976
        %v2272 = vunpack.c.l.b16 %v1977
        %v2273 = vunpack.c.l.b16 %v1978
        %v2274 = vunpack.c.l.b16 %v1979
        %v2275 = vunpack.c.l.b16 %v1980
        %v2276 = vunpack.c.l.b16 %v1981
        %v2277 = vunpack.c.l.b16 %v1982
        %v2278 = vunpack.c.l.b16 %v1983
        %v2279 = vunpack.c.l.b16 %v1984
        %v2280 = vunpack.c.l.b16 %v1985
        %v2281 = vunpack.c.l.b16 %v1986
        %v2282 = vunpack.c.l.b16 %v1987
        %v2283 = vunpack.c.l.b16 %v1988
        %v2284 = vunpack.c.l.b16 %v1989
        %v2285 = vunpack.c.l.b16 %v1990
        %v2286 = vunpack.c.l.b16 %v1991
        %v2287 = vunpack.c.l.b16 %v1992
        %v2288 = vunpack.c.l.b16 %v1993
        %v2289 = vunpack.c.l.b16 %v1994
        %v2290 = vunpack.c.l.b16 %v1995
        %v2291 = vunpack.c.l.b16 %v1996
        %v2292 = vunpack.c.l.b16 %v1997
        %v2293 = vunpack.c.l.b16 %v1998
        %v2294 = vunpack.c.l.b16 %v1999
        %v2295 = vunpack.c.l.b16 %v2000
        %v2296 = vunpack.c.l.b16 %v2001
        %v2297 = vunpack.c.l.b16 %v2002
        %v2298 = vunpack.c.l.b16 %v2003
        %v2299 = vunpack.c.l.b16 %v2004
        %v2300 = vunpack.c.l.b16 %v2005
        %v2301 = vunpack.c.l.b16 %v2006
        %v2302 = vunpack.c.l.b16 %v2007
        %v2303 = vunpack.c.l.b16 %v2008
        %v2304 = vunpack.c.l.b16 %v2009
        %v2305 = vunpack.c.l.b16 %v2010
        %v2306 = vunpack.c.l.b16 %v2011
        %v2307 = vunpack.c.l.b16 %v2012
        %v2308 = vunpack.c.l.b16 %v2013
        %v2309 = vunpack.c.l.b16 %v2014
        %v2310 = vunpack.c.l.b16 %v2015
        %v2311 = vunpack.c.l.b16 %v2016
        %v2312 = vunpack.c.l.b16 %v2017
        %v2313 = vunpack.c.l.b16 %v2018
        %v2314 = vunpack.c.l.b16 %v2019
        %v2315 = vunpack.c.l.b16 %v2020
        %v2316 = vunpack.c.l.b16 %v2021
        %v2317 = vunpack.c.l.b16 %v2022
        %v2318 = vunpack.c.l.b16 %v2023
        %v2319 = vunpack.c.l.b16 %v2024
        %v2320 = vunpack.c.l.b16 %v2025
        %v2321 = vunpack.c.l.b16 %v2026
        %v2322 = vunpack.c.l.b16 %v2027
        %v2323 = vunpack.c.l.b16 %v2028
        %v2324 = vunpack.c.l.b16 %v2029
        %v2325 = vunpack.c.l.b16 %v2030
        %v2326 = vunpack.c.l.b16 %v2031
        %v2327 = vunpack.c.l.b16 %v2032
        %v2328 = vunpack.c.l.b16 %v2033
        %v2329 = vunpack.c.l.b16 %v2034
        %v2330 = vunpack.c.l.b16 %v2035
        %v2331 = vunpack.c.l.b16 %v2036
        %v2332 = vunpack.c.l.b16 %v2037
        %v2333 = vunpack.c.l.b16 %v2038
        %v2334 = vunpack.c.l.b16 %v2039
        %v2335 = vunpack.c.l.b16 %v2040
        %v2336 = vunpack.c.l.b16 %v2041
        %v2337 = vunpack.c.l.b16 %v2042
        %v2338 = vunpack.c.l.b16 %v2043
        %v2339 = vpack.c.b16 %v2196, %v2195
        %v2340 = vpack.c.b16 %v2198, %v2197
        %v2341 = vpack.c.b16 %v2200, %v2199
        %v2342 = vpack.c.b16 %v2202, %v2201
        %v2343 = vpack.c.b16 %v2204, %v2203
        %v2344 = vpack.c.b16 %v2206, %v2205
        %v2345 = vpack.c.b16 %v2208, %v2207
        %v2346 = vpack.c.b16 %v2210, %v2209
        %v2347 = vpack.c.b16 %v2212, %v2211
        %v2348 = vpack.c.b16 %v2214, %v2213
        %v2349 = vpack.c.b16 %v2216, %v2215
        %v2350 = vpack.c.b16 %v2218, %v2217
        %v2351 = vpack.c.b16 %v2220, %v2219
        %v2352 = vpack.c.b16 %v2222, %v2221
        %v2353 = vpack.c.b16 %v2224, %v2223
        %v2354 = vpack.c.b16 %v2226, %v2225
        %v2355 = vpack.c.b16 %v2228, %v2227
        %v2356 = vpack.c.b16 %v2230, %v2229
        %v2357 = vpack.c.b16 %v2232, %v2231
        %v2358 = vpack.c.b16 %v2234, %v2233
        %v2359 = vpack.c.b16 %v2236, %v2235
        %v2360 = vpack.c.b16 %v2238, %v2237
        %v2361 = vpack.c.b16 %v2240, %v2239
        %v2362 = vpack.c.b16 %v2242, %v2241
        %v2363 = vpack.c.b16 %v2244, %v2243
        %v2364 = vpack.c.b16 %v2246, %v2245
        %v2365 = vpack.c.b16 %v2248, %v2247
        %v2366 = vpack.c.b16 %v2250, %v2249
        %v2367 = vpack.c.b16 %v2252, %v2251
        %v2368 = vpack.c.b16 %v2254, %v2253
        %v2369 = vpack.c.b16 %v2256, %v2255
        %v2370 = vpack.c.b16 %v2258, %v2257
        %v2371 = vpack.c.b16 %v2260, %v2259
        %v2372 = vpack.c.b16 %v2262, %v2261
        %v2373 = vpack.c.b16 %v2264, %v2263
        %v2374 = vpack.c.b16 %v2266, %v2265
        %v2375 = vpack.c.b16 %v2268, %v2267
        %v2376 = vpack.c.b16 %v2270, %v2269
        %v2377 = vpack.c.b16 %v2272, %v2271
        %v2378 = vpack.c.b16 %v2274, %v2273
        %v2379 = vpack.c.b16 %v2276, %v2275
        %v2380 = vpack.c.b16 %v2278, %v2277
        %v2381 = vpack.c.b16 %v2280, %v2279
        %v2382 = vpack.c.b16 %v2282, %v2281
        %v2383 = vpack.c.b16 %v2284, %v2283
        %v2384 = vpack.c.b16 %v2286, %v2285
        %v2385 = vpack.c.b16 %v2288, %v2287
        %v2386 = vpack.c.b16 %v2290, %v2289
        %v2387 = vpack.c.b16 %v2292, %v2291
        %v2388 = vpack.c.b16 %v2294, %v2293
        %v2389 = vpack.c.b16 %v2296, %v2295
        %v2390 = vpack.c.b16 %v2298, %v2297
        %v2391 = vpack.c.b16 %v2300, %v2299
        %v2392 = vpack.c.b16 %v2302, %v2301
        %v2393 = vpack.c.b16 %v2304, %v2303
        %v2394 = vpack.c.b16 %v2306, %v2305
        %v2395 = vpack.c.b16 %v2308, %v2307
        %v2396 = vpack.c.b16 %v2310, %v2309
        %v2397 = vpack.c.b16 %v2312, %v2311
        %v2398 = vpack.c.b16 %v2314, %v2313
        %v2399 = vpack.c.b16 %v2316, %v2315
        %v2400 = vpack.c.b16 %v2318, %v2317
        %v2401 = vpack.c.b16 %v2320, %v2319
        %v2402 = vpack.c.b16 %v2322, %v2321
        %v2403 = vpack.c.b16 %v2324, %v2323
        %v2404 = vpack.c.b16 %v2326, %v2325
        %v2405 = vpack.c.b16 %v2328, %v2327
        %v2406 = vpack.c.b16 %v2330, %v2329
        %v2407 = vpack.c.b16 %v2332, %v2331
        %v2408 = vpack.c.b16 %v2334, %v2333
        %v2409 = vpack.c.b16 %v2336, %v2335
        %v2410 = vpack.c.b16 %v2338, %v2337
        %2483 = vmatprep.subr.bf16.mxu0 0
        %2484 = vmatpush1.bf16.msra.mxu0 %v2339
        %2485 = vmatprep.subr.bf16.mxu0 0
        %2486 = vmatpush1.bf16.msra.mxu0 %v2340
        %2487 = vmatprep.subr.bf16.mxu0 0
        %2488 = vmatpush1.bf16.msra.mxu0 %v2341
        %2489 = vmatprep.subr.bf16.mxu0 0
        %2490 = vmatpush1.bf16.msra.mxu0 %v2342
        %2491 = vmatprep.subr.bf16.mxu0 0
        %2492 = vmatpush1.bf16.msra.mxu0 %v2343
        %2493 = vmatprep.subr.bf16.mxu0 0
        %2494 = vmatpush1.bf16.msra.mxu0 %v2344
        %2495 = vmatprep.subr.bf16.mxu0 0
        %2496 = vmatpush1.bf16.msra.mxu0 %v2345
        %2497 = vmatprep.subr.bf16.mxu0 0
        %2498 = vmatpush1.bf16.msra.mxu0 %v2346
        %2499 = vmatprep.subr.bf16.mxu0 0
        %2500 = vmatpush1.bf16.msra.mxu0 %v2347
        %2501 = vmatprep.subr.bf16.mxu0 0
        %2502 = vmatpush1.bf16.msra.mxu0 %v2348
        %2503 = vmatprep.subr.bf16.mxu0 0
        %2504 = vmatpush1.bf16.msra.mxu0 %v2349
        %2505 = vmatprep.subr.bf16.mxu0 0
        %2506 = vmatpush1.bf16.msra.mxu0 %v2350
        %2507 = vmatprep.subr.bf16.mxu0 0
        %2508 = vmatpush1.bf16.msra.mxu0 %v2351
        %2509 = vmatprep.subr.bf16.mxu0 0
        %2510 = vmatpush1.bf16.msra.mxu0 %v2352
        %2511 = vmatprep.subr.bf16.mxu0 0
        %2512 = vmatpush1.bf16.msra.mxu0 %v2353
        %2513 = vmatprep.subr.bf16.mxu0 0
        %2514 = vmatpush1.bf16.msra.mxu0 %v2354
        %2515 = vmatprep.mubr.bf16.mxu0 %v1757
        %2516 = vmatmul.mubr.bf16.gmra.mrb[0].mxu0 %v1756
        %v2517 = vpop.f32.mrb[0].mxu0
        %v2518 = vadd.f32 %v2049, %v2517
        %v2519 = vpop.f32.mrb[0].mxu0
        %v2520 = vpop.f32.mrb[0].mxu0
        %v2521 = vadd.f32 %v2049, %v2520
        %v2522 = vpop.f32.mrb[0].mxu0
        %2523 = vmatprep.mubr.bf16.mxu0 %v1766
        %2524 = vmatmul.mubr.bf16.gmra.mrb[0].mxu0 %v1765
        %v2525 = vpop.f32.mrb[0].mxu0
        %v2526 = vadd.f32 %v2049, %v2525
        %v2527 = vpop.f32.mrb[0].mxu0
        %v2528 = vpop.f32.mrb[0].mxu0
        %v2529 = vadd.f32 %v2049, %v2528
        %v2530 = vpop.f32.mrb[0].mxu0
        %2531 = vmatprep.mubr.bf16.mxu0 %v1775
        %2532 = vmatmul.mubr.bf16.gmra.mrb[0].mxu0 %v1774
        %v2533 = vpop.f32.mrb[0].mxu0
        %v2534 = vadd.f32 %v2049, %v2533
        %v2535 = vpop.f32.mrb[0].mxu0
        %v2536 = vpop.f32.mrb[0].mxu0
        %v2537 = vadd.f32 %v2049, %v2536
        %v2538 = vpop.f32.mrb[0].mxu0
        %2539 = vmatprep.mubr.bf16.mxu0 %v1784
        %2540 = vmatmul.mubr.bf16.gmra.mrb[0].mxu0 %v1783
        %v2541 = vpop.f32.mrb[0].mxu0
        %v2542 = vadd.f32 %v2049, %v2541
        %v2543 = vpop.f32.mrb[0].mxu0
        %v2544 = vpop.f32.mrb[0].mxu0
        %v2545 = vadd.f32 %v2049, %v2544
        %v2546 = vpop.f32.mrb[0].mxu0
        %2547 = vmatprep.mubr.bf16.mxu0 %v1793
        %2548 = vmatmul.mubr.bf16.gmra.mrb[0].mxu0 %v1792
        %v2549 = vpop.f32.mrb[0].mxu0
        %v2550 = vadd.f32 %v2049, %v2549
        %v2551 = vpop.f32.mrb[0].mxu0
        %v2552 = vpop.f32.mrb[0].mxu0
        %v2553 = vadd.f32 %v2049, %v2552
        %v2554 = vpop.f32.mrb[0].mxu0
        %2555 = vmatprep.mubr.bf16.mxu0 %v1802
        %2556 = vmatmul.mubr.bf16.gmra.mrb[0].mxu0 %v1801
        %v2557 = vpop.f32.mrb[0].mxu0
        %v2558 = vadd.f32 %v2049, %v2557
        %v2559 = vpop.f32.mrb[0].mxu0
        %v2560 = vpop.f32.mrb[0].mxu0
        %v2561 = vadd.f32 %v2049, %v2560
        %v2562 = vpop.f32.mrb[0].mxu0
        %2563 = vmatprep.mubr.bf16.mxu0 %v1811
        %2564 = vmatmul.mubr.bf16.gmra.mrb[0].mxu0 %v1810
        %v2565 = vpop.f32.mrb[0].mxu0
        %v2566 = vadd.f32 %v2049, %v2565
        %v2567 = vpop.f32.mrb[0].mxu0
        %v2568 = vpop.f32.mrb[0].mxu0
        %v2569 = vadd.f32 %v2049, %v2568
        %v2570 = vpop.f32.mrb[0].mxu0
        %2571 = vmatprep.mubr.bf16.mxu0 %v1820
        %2572 = vmatmul.mubr.bf16.gmra.mrb[0].mxu0 %v1819
        %v2573 = vpop.f32.mrb[0].mxu0
        %v2574 = vadd.f32 %v2049, %v2573
        %v2575 = vpop.f32.mrb[0].mxu0
        %v2576 = vpop.f32.mrb[0].mxu0
        %v2577 = vadd.f32 %v2049, %v2576
        %v2578 = vpop.f32.mrb[0].mxu0
        %2579 = vmatprep.mubr.bf16.mxu0 %v1829
        %2580 = vmatmul.mubr.bf16.gmra.mrb[0].mxu0 %v1828
        %v2581 = vpop.f32.mrb[0].mxu0
        %v2582 = vadd.f32 %v2049, %v2581
        %v2583 = vpop.f32.mrb[0].mxu0
        %v2584 = vpop.f32.mrb[0].mxu0
        %v2585 = vadd.f32 %v2049, %v2584
        %v2586 = vpop.f32.mrb[0].mxu0
        %2587 = vmatprep.mubr.bf16.mxu0 %v1838
        %2588 = vmatmul.mubr.bf16.gmra.mrb[0].mxu0 %v1837
        %v2589 = vpop.f32.mrb[0].mxu0
        %v2590 = vadd.f32 %v2049, %v2589
        %v2591 = vpop.f32.mrb[0].mxu0
        %v2592 = vpop.f32.mrb[0].mxu0
        %v2593 = vadd.f32 %v2049, %v2592
        %v2594 = vpop.f32.mrb[0].mxu0
        %2595 = vmatprep.mubr.bf16.mxu0 %v1847
        %2596 = vmatmul.mubr.bf16.gmra.mrb[0].mxu0 %v1846
        %v2597 = vpop.f32.mrb[0].mxu0
        %v2598 = vadd.f32 %v2049, %v2597
        %v2599 = vpop.f32.mrb[0].mxu0
        %v2600 = vpop.f32.mrb[0].mxu0
        %v2601 = vadd.f32 %v2049, %v2600
        %v2602 = vpop.f32.mrb[0].mxu0
        %2603 = vmatprep.mubr.bf16.mxu0 %v1856
        %2604 = vmatmul.mubr.bf16.gmra.mrb[0].mxu0 %v1855
        %v2605 = vpop.f32.mrb[0].mxu0
        %v2606 = vadd.f32 %v2049, %v2605
        %v2607 = vpop.f32.mrb[0].mxu0
        %v2608 = vpop.f32.mrb[0].mxu0
        %v2609 = vadd.f32 %v2049, %v2608
        %v2610 = vpop.f32.mrb[0].mxu0
        %2611 = vmatprep.mubr.bf16.mxu0 %v1865
        %2612 = vmatmul.mubr.bf16.gmra.mrb[0].mxu0 %v1864
        %v2613 = vpop.f32.mrb[0].mxu0
        %v2614 = vadd.f32 %v2049, %v2613
        %v2615 = vpop.f32.mrb[0].mxu0
        %v2616 = vpop.f32.mrb[0].mxu0
        %v2617 = vadd.f32 %v2049, %v2616
        %v2618 = vpop.f32.mrb[0].mxu0
        %2619 = vmatprep.mubr.bf16.mxu0 %v1874
        %2620 = vmatmul.mubr.bf16.gmra.mrb[0].mxu0 %v1873
        %v2621 = vpop.f32.mrb[0].mxu0
        %v2622 = vadd.f32 %v2049, %v2621
        %v2623 = vpop.f32.mrb[0].mxu0
        %v2624 = vpop.f32.mrb[0].mxu0
        %v2625 = vadd.f32 %v2049, %v2624
        %v2626 = vpop.f32.mrb[0].mxu0
        %2627 = vmatprep.mubr.bf16.mxu0 %v1883
        %2628 = vmatmul.mubr.bf16.gmra.mrb[0].mxu0 %v1882
        %v2629 = vpop.f32.mrb[0].mxu0
        %v2630 = vadd.f32 %v2049, %v2629
        %v2631 = vpop.f32.mrb[0].mxu0
        %v2632 = vpop.f32.mrb[0].mxu0
        %v2633 = vadd.f32 %v2049, %v2632
        %v2634 = vpop.f32.mrb[0].mxu0
        %2635 = vmatprep.mubr.bf16.mxu0 %v1892
        %2636 = vmatmul.mubr.bf16.gmra.mrb[0].mxu0 %v1891
        %v2637 = vpop.f32.mrb[0].mxu0
        %v2638 = vadd.f32 %v2049, %v2637
        %v2639 = vpop.f32.mrb[0].mxu0
        %v2640 = vpop.f32.mrb[0].mxu0
        %v2641 = vadd.f32 %v2049, %v2640
        %v2642 = vpop.f32.mrb[0].mxu0
        %2643 = vdwg.mxu0
        %2644 = vmatprep.subr.bf16.mxu0 0
        %2645 = vmatpush1.bf16.msra.mxu0 %v2355
        %2646 = vmatprep.subr.bf16.mxu0 0
        %2647 = vmatpush1.bf16.msra.mxu0 %v2356
        %2648 = vmatprep.subr.bf16.mxu0 0
        %2649 = vmatpush1.bf16.msra.mxu0 %v2357
        %2650 = vmatprep.subr.bf16.mxu0 0
        %2651 = vmatpush1.bf16.msra.mxu0 %v2358
        %2652 = vmatprep.subr.bf16.mxu0 0
        %2653 = vmatpush1.bf16.msra.mxu0 %v2359
        %2654 = vmatprep.subr.bf16.mxu0 0
        %2655 = vmatpush1.bf16.msra.mxu0 %v2360
        %2656 = vmatprep.subr.bf16.mxu0 0
        %2657 = vmatpush1.bf16.msra.mxu0 %v2361
        %2658 = vmatprep.subr.bf16.mxu0 0
        %2659 = vmatpush1.bf16.msra.mxu0 %v2362
        %2660 = vmatprep.subr.bf16.mxu0 0
        %2661 = vmatpush1.bf16.msra.mxu0 %v2363
        %2662 = vmatprep.subr.bf16.mxu0 0
        %2663 = vmatpush1.bf16.msra.mxu0 %v2364
        %2664 = vmatprep.subr.bf16.mxu0 0
        %2665 = vmatpush1.bf16.msra.mxu0 %v2365
        %2666 = vmatprep.subr.bf16.mxu0 0
        %2667 = vmatpush1.bf16.msra.mxu0 %v2366
        %2668 = vmatprep.subr.bf16.mxu0 0
        %2669 = vmatpush1.bf16.msra.mxu0 %v2367
        %2670 = vmatprep.subr.bf16.mxu0 0
        %2671 = vmatpush1.bf16.msra.mxu0 %v2368
        %2672 = vmatprep.subr.bf16.mxu0 0
        %2673 = vmatpush1.bf16.msra.mxu0 %v2369
        %2674 = vmatprep.subr.bf16.mxu0 0
        %2675 = vmatpush1.bf16.msra.mxu0 %v2370
        %2676 = vmatprep.mubr.bf16.mxu0 %v1759
        %2677 = vmatmul.mubr.bf16.gmra.mrb[0].mxu0 %v1758
        %v2678 = vpop.f32.mrb[0].mxu0
        %v2679 = vadd.f32 %v2518, %v2678
        %v2680 = vpop.f32.mrb[0].mxu0
        %v2681 = vpop.f32.mrb[0].mxu0
        %v2682 = vadd.f32 %v2521, %v2681
        %v2683 = vpop.f32.mrb[0].mxu0
        %2684 = vmatprep.mubr.bf16.mxu0 %v1768
        %2685 = vmatmul.mubr.bf16.gmra.mrb[0].mxu0 %v1767
        %v2686 = vpop.f32.mrb[0].mxu0
        %v2687 = vadd.f32 %v2526, %v2686
        %v2688 = vpop.f32.mrb[0].mxu0
        %v2689 = vpop.f32.mrb[0].mxu0
        %v2690 = vadd.f32 %v2529, %v2689
        %v2691 = vpop.f32.mrb[0].mxu0
        %2692 = vmatprep.mubr.bf16.mxu0 %v1777
        %2693 = vmatmul.mubr.bf16.gmra.mrb[0].mxu0 %v1776
        %v2694 = vpop.f32.mrb[0].mxu0
        %v2695 = vadd.f32 %v2534, %v2694
        %v2696 = vpop.f32.mrb[0].mxu0
        %v2697 = vpop.f32.mrb[0].mxu0
        %v2698 = vadd.f32 %v2537, %v2697
        %v2699 = vpop.f32.mrb[0].mxu0
        %2700 = vmatprep.mubr.bf16.mxu0 %v1786
        %2701 = vmatmul.mubr.bf16.gmra.mrb[0].mxu0 %v1785
        %v2702 = vpop.f32.mrb[0].mxu0
        %v2703 = vadd.f32 %v2542, %v2702
        %v2704 = vpop.f32.mrb[0].mxu0
        %v2705 = vpop.f32.mrb[0].mxu0
        %v2706 = vadd.f32 %v2545, %v2705
        %v2707 = vpop.f32.mrb[0].mxu0
        %2708 = vmatprep.mubr.bf16.mxu0 %v1795
        %2709 = vmatmul.mubr.bf16.gmra.mrb[0].mxu0 %v1794
        %v2710 = vpop.f32.mrb[0].mxu0
        %v2711 = vadd.f32 %v2550, %v2710
        %v2712 = vpop.f32.mrb[0].mxu0
        %v2713 = vpop.f32.mrb[0].mxu0
        %v2714 = vadd.f32 %v2553, %v2713
        %v2715 = vpop.f32.mrb[0].mxu0
        %2716 = vmatprep.mubr.bf16.mxu0 %v1804
        %2717 = vmatmul.mubr.bf16.gmra.mrb[0].mxu0 %v1803
        %v2718 = vpop.f32.mrb[0].mxu0
        %v2719 = vadd.f32 %v2558, %v2718
        %v2720 = vpop.f32.mrb[0].mxu0
        %v2721 = vpop.f32.mrb[0].mxu0
        %v2722 = vadd.f32 %v2561, %v2721
        %v2723 = vpop.f32.mrb[0].mxu0
        %2724 = vmatprep.mubr.bf16.mxu0 %v1813
        %2725 = vmatmul.mubr.bf16.gmra.mrb[0].mxu0 %v1812
        %v2726 = vpop.f32.mrb[0].mxu0
        %v2727 = vadd.f32 %v2566, %v2726
        %v2728 = vpop.f32.mrb[0].mxu0
        %v2729 = vpop.f32.mrb[0].mxu0
        %v2730 = vadd.f32 %v2569, %v2729
        %v2731 = vpop.f32.mrb[0].mxu0
        %2732 = vmatprep.mubr.bf16.mxu0 %v1822
        %2733 = vmatmul.mubr.bf16.gmra.mrb[0].mxu0 %v1821
        %v2734 = vpop.f32.mrb[0].mxu0
        %v2735 = vadd.f32 %v2574, %v2734
        %v2736 = vpop.f32.mrb[0].mxu0
        %v2737 = vpop.f32.mrb[0].mxu0
        %v2738 = vadd.f32 %v2577, %v2737
        %v2739 = vpop.f32.mrb[0].mxu0
        %2740 = vmatprep.mubr.bf16.mxu0 %v1831
        %2741 = vmatmul.mubr.bf16.gmra.mrb[0].mxu0 %v1830
        %v2742 = vpop.f32.mrb[0].mxu0
        %v2743 = vadd.f32 %v2582, %v2742
        %v2744 = vpop.f32.mrb[0].mxu0
        %v2745 = vpop.f32.mrb[0].mxu0
        %v2746 = vadd.f32 %v2585, %v2745
        %v2747 = vpop.f32.mrb[0].mxu0
        %2748 = vmatprep.mubr.bf16.mxu0 %v1840
        %2749 = vmatmul.mubr.bf16.gmra.mrb[0].mxu0 %v1839
        %v2750 = vpop.f32.mrb[0].mxu0
        %v2751 = vadd.f32 %v2590, %v2750
        %v2752 = vpop.f32.mrb[0].mxu0
        %v2753 = vpop.f32.mrb[0].mxu0
        %v2754 = vadd.f32 %v2593, %v2753
        %v2755 = vpop.f32.mrb[0].mxu0
        %2756 = vmatprep.mubr.bf16.mxu0 %v1849
        %2757 = vmatmul.mubr.bf16.gmra.mrb[0].mxu0 %v1848
        %v2758 = vpop.f32.mrb[0].mxu0
        %v2759 = vadd.f32 %v2598, %v2758
        %v2760 = vpop.f32.mrb[0].mxu0
        %v2761 = vpop.f32.mrb[0].mxu0
        %v2762 = vadd.f32 %v2601, %v2761
        %v2763 = vpop.f32.mrb[0].mxu0
        %2764 = vmatprep.mubr.bf16.mxu0 %v1858
        %2765 = vmatmul.mubr.bf16.gmra.mrb[0].mxu0 %v1857
        %v2766 = vpop.f32.mrb[0].mxu0
        %v2767 = vadd.f32 %v2606, %v2766
        %v2768 = vpop.f32.mrb[0].mxu0
        %v2769 = vpop.f32.mrb[0].mxu0
        %v2770 = vadd.f32 %v2609, %v2769
        %v2771 = vpop.f32.mrb[0].mxu0
        %2772 = vmatprep.mubr.bf16.mxu0 %v1867
        %2773 = vmatmul.mubr.bf16.gmra.mrb[0].mxu0 %v1866
        %v2774 = vpop.f32.mrb[0].mxu0
        %v2775 = vadd.f32 %v2614, %v2774
        %v2776 = vpop.f32.mrb[0].mxu0
        %v2777 = vpop.f32.mrb[0].mxu0
        %v2778 = vadd.f32 %v2617, %v2777
        %v2779 = vpop.f32.mrb[0].mxu0
        %2780 = vmatprep.mubr.bf16.mxu0 %v1876
        %2781 = vmatmul.mubr.bf16.gmra.mrb[0].mxu0 %v1875
        %v2782 = vpop.f32.mrb[0].mxu0
        %v2783 = vadd.f32 %v2622, %v2782
        %v2784 = vpop.f32.mrb[0].mxu0
        %v2785 = vpop.f32.mrb[0].mxu0
        %v2786 = vadd.f32 %v2625, %v2785
        %v2787 = vpop.f32.mrb[0].mxu0
        %2788 = vmatprep.mubr.bf16.mxu0 %v1885
        %2789 = vmatmul.mubr.bf16.gmra.mrb[0].mxu0 %v1884
        %v2790 = vpop.f32.mrb[0].mxu0
        %v2791 = vadd.f32 %v2630, %v2790
        %v2792 = vpop.f32.mrb[0].mxu0
        %v2793 = vpop.f32.mrb[0].mxu0
        %v2794 = vadd.f32 %v2633, %v2793
        %v2795 = vpop.f32.mrb[0].mxu0
        %2796 = vmatprep.mubr.bf16.mxu0 %v1894
        %2797 = vmatmul.mubr.bf16.gmra.mrb[0].mxu0 %v1893
        %v2798 = vpop.f32.mrb[0].mxu0
        %v2799 = vadd.f32 %v2638, %v2798
        %v2800 = vpop.f32.mrb[0].mxu0
        %v2801 = vpop.f32.mrb[0].mxu0
        %v2802 = vadd.f32 %v2641, %v2801
        %v2803 = vpop.f32.mrb[0].mxu0
        %2804 = vdwg.mxu0
        %2805 = vmatprep.subr.bf16.mxu0 0
        %2806 = vmatpush1.bf16.msra.mxu0 %v2371
        %2807 = vmatprep.subr.bf16.mxu0 0
        %2808 = vmatpush1.bf16.msra.mxu0 %v2372
        %2809 = vmatprep.subr.bf16.mxu0 0
        %2810 = vmatpush1.bf16.msra.mxu0 %v2373
        %2811 = vmatprep.subr.bf16.mxu0 0
        %2812 = vmatpush1.bf16.msra.mxu0 %v2374
        %2813 = vmatprep.subr.bf16.mxu0 0
        %2814 = vmatpush1.bf16.msra.mxu0 %v2375
        %2815 = vmatprep.subr.bf16.mxu0 0
        %2816 = vmatpush1.bf16.msra.mxu0 %v2376
        %2817 = vmatprep.subr.bf16.mxu0 0
        %2818 = vmatpush1.bf16.msra.mxu0 %v2377
        %2819 = vmatprep.subr.bf16.mxu0 0
        %2820 = vmatpush1.bf16.msra.mxu0 %v2378
        %2821 = vmatprep.subr.bf16.mxu0 0
        %2822 = vmatpush1.bf16.msra.mxu0 %v2379
        %2823 = vmatprep.subr.bf16.mxu0 0
        %2824 = vmatpush1.bf16.msra.mxu0 %v2380
        %2825 = vmatprep.subr.bf16.mxu0 0
        %2826 = vmatpush1.bf16.msra.mxu0 %v2381
        %2827 = vmatprep.subr.bf16.mxu0 0
        %2828 = vmatpush1.bf16.msra.mxu0 %v2382
        %2829 = vmatprep.subr.bf16.mxu0 0
        %2830 = vmatpush1.bf16.msra.mxu0 %v2383
        %2831 = vmatprep.subr.bf16.mxu0 0
        %2832 = vmatpush1.bf16.msra.mxu0 %v2384
        %2833 = vmatprep.subr.bf16.mxu0 0
        %2834 = vmatpush1.bf16.msra.mxu0 %v2385
        %2835 = vmatprep.subr.bf16.mxu0 0
        %2836 = vmatpush1.bf16.msra.mxu0 %v2386
        %2837 = vmatprep.mubr.bf16.mxu0 %v1761
        %2838 = vmatmul.mubr.bf16.gmra.mrb[0].mxu0 %v1760
        %v2839 = vpop.f32.mrb[0].mxu0
        %v2840 = vadd.f32 %v2679, %v2839
        %v2841 = vpop.f32.mrb[0].mxu0
        %v2842 = vpop.f32.mrb[0].mxu0
        %v2843 = vadd.f32 %v2682, %v2842
        %v2844 = vpop.f32.mrb[0].mxu0
        %2845 = vmatprep.mubr.bf16.mxu0 %v1770
        %2846 = vmatmul.mubr.bf16.gmra.mrb[0].mxu0 %v1769
        %v2847 = vpop.f32.mrb[0].mxu0
        %v2848 = vadd.f32 %v2687, %v2847
        %v2849 = vpop.f32.mrb[0].mxu0
        %v2850 = vpop.f32.mrb[0].mxu0
        %v2851 = vadd.f32 %v2690, %v2850
        %v2852 = vpop.f32.mrb[0].mxu0
        %2853 = vmatprep.mubr.bf16.mxu0 %v1779
        %2854 = vmatmul.mubr.bf16.gmra.mrb[0].mxu0 %v1778
        %v2855 = vpop.f32.mrb[0].mxu0
        %v2856 = vadd.f32 %v2695, %v2855
        %v2857 = vpop.f32.mrb[0].mxu0
        %v2858 = vpop.f32.mrb[0].mxu0
        %v2859 = vadd.f32 %v2698, %v2858
        %v2860 = vpop.f32.mrb[0].mxu0
        %2861 = vmatprep.mubr.bf16.mxu0 %v1788
        %2862 = vmatmul.mubr.bf16.gmra.mrb[0].mxu0 %v1787
        %v2863 = vpop.f32.mrb[0].mxu0
        %v2864 = vadd.f32 %v2703, %v2863
        %v2865 = vpop.f32.mrb[0].mxu0
        %v2866 = vpop.f32.mrb[0].mxu0
        %v2867 = vadd.f32 %v2706, %v2866
        %v2868 = vpop.f32.mrb[0].mxu0
        %2869 = vmatprep.mubr.bf16.mxu0 %v1797
        %2870 = vmatmul.mubr.bf16.gmra.mrb[0].mxu0 %v1796
        %v2871 = vpop.f32.mrb[0].mxu0
        %v2872 = vadd.f32 %v2711, %v2871
        %v2873 = vpop.f32.mrb[0].mxu0
        %v2874 = vpop.f32.mrb[0].mxu0
        %v2875 = vadd.f32 %v2714, %v2874
        %v2876 = vpop.f32.mrb[0].mxu0
        %2877 = vmatprep.mubr.bf16.mxu0 %v1806
        %2878 = vmatmul.mubr.bf16.gmra.mrb[0].mxu0 %v1805
        %v2879 = vpop.f32.mrb[0].mxu0
        %v2880 = vadd.f32 %v2719, %v2879
        %v2881 = vpop.f32.mrb[0].mxu0
        %v2882 = vpop.f32.mrb[0].mxu0
        %v2883 = vadd.f32 %v2722, %v2882
        %v2884 = vpop.f32.mrb[0].mxu0
        %2885 = vmatprep.mubr.bf16.mxu0 %v1815
        %2886 = vmatmul.mubr.bf16.gmra.mrb[0].mxu0 %v1814
        %v2887 = vpop.f32.mrb[0].mxu0
        %v2888 = vadd.f32 %v2727, %v2887
        %v2889 = vpop.f32.mrb[0].mxu0
        %v2890 = vpop.f32.mrb[0].mxu0
        %v2891 = vadd.f32 %v2730, %v2890
        %v2892 = vpop.f32.mrb[0].mxu0
        %2893 = vmatprep.mubr.bf16.mxu0 %v1824
        %2894 = vmatmul.mubr.bf16.gmra.mrb[0].mxu0 %v1823
        %v2895 = vpop.f32.mrb[0].mxu0
        %v2896 = vadd.f32 %v2735, %v2895
        %v2897 = vpop.f32.mrb[0].mxu0
        %v2898 = vpop.f32.mrb[0].mxu0
        %v2899 = vadd.f32 %v2738, %v2898
        %v2900 = vpop.f32.mrb[0].mxu0
        %2901 = vmatprep.mubr.bf16.mxu0 %v1833
        %2902 = vmatmul.mubr.bf16.gmra.mrb[0].mxu0 %v1832
        %v2903 = vpop.f32.mrb[0].mxu0
        %v2904 = vadd.f32 %v2743, %v2903
        %v2905 = vpop.f32.mrb[0].mxu0
        %v2906 = vpop.f32.mrb[0].mxu0
        %v2907 = vadd.f32 %v2746, %v2906
        %v2908 = vpop.f32.mrb[0].mxu0
        %2909 = vmatprep.mubr.bf16.mxu0 %v1842
        %2910 = vmatmul.mubr.bf16.gmra.mrb[0].mxu0 %v1841
        %v2911 = vpop.f32.mrb[0].mxu0
        %v2912 = vadd.f32 %v2751, %v2911
        %v2913 = vpop.f32.mrb[0].mxu0
        %v2914 = vpop.f32.mrb[0].mxu0
        %v2915 = vadd.f32 %v2754, %v2914
        %v2916 = vpop.f32.mrb[0].mxu0
        %2917 = vmatprep.mubr.bf16.mxu0 %v1851
        %2918 = vmatmul.mubr.bf16.gmra.mrb[0].mxu0 %v1850
        %v2919 = vpop.f32.mrb[0].mxu0
        %v2920 = vadd.f32 %v2759, %v2919
        %v2921 = vpop.f32.mrb[0].mxu0
        %v2922 = vpop.f32.mrb[0].mxu0
        %v2923 = vadd.f32 %v2762, %v2922
        %v2924 = vpop.f32.mrb[0].mxu0
        %2925 = vmatprep.mubr.bf16.mxu0 %v1860
        %2926 = vmatmul.mubr.bf16.gmra.mrb[0].mxu0 %v1859
        %v2927 = vpop.f32.mrb[0].mxu0
        %v2928 = vadd.f32 %v2767, %v2927
        %v2929 = vpop.f32.mrb[0].mxu0
        %v2930 = vpop.f32.mrb[0].mxu0
        %v2931 = vadd.f32 %v2770, %v2930
        %v2932 = vpop.f32.mrb[0].mxu0
        %2933 = vmatprep.mubr.bf16.mxu0 %v1869
        %2934 = vmatmul.mubr.bf16.gmra.mrb[0].mxu0 %v1868
        %v2935 = vpop.f32.mrb[0].mxu0
        %v2936 = vadd.f32 %v2775, %v2935
        %v2937 = vpop.f32.mrb[0].mxu0
        %v2938 = vpop.f32.mrb[0].mxu0
        %v2939 = vadd.f32 %v2778, %v2938
        %v2940 = vpop.f32.mrb[0].mxu0
        %2941 = vmatprep.mubr.bf16.mxu0 %v1878
        %2942 = vmatmul.mubr.bf16.gmra.mrb[0].mxu0 %v1877
        %v2943 = vpop.f32.mrb[0].mxu0
        %v2944 = vadd.f32 %v2783, %v2943
        %v2945 = vpop.f32.mrb[0].mxu0
        %v2946 = vpop.f32.mrb[0].mxu0
        %v2947 = vadd.f32 %v2786, %v2946
        %v2948 = vpop.f32.mrb[0].mxu0
        %2949 = vmatprep.mubr.bf16.mxu0 %v1887
        %2950 = vmatmul.mubr.bf16.gmra.mrb[0].mxu0 %v1886
        %v2951 = vpop.f32.mrb[0].mxu0
        %v2952 = vadd.f32 %v2791, %v2951
        %v2953 = vpop.f32.mrb[0].mxu0
        %v2954 = vpop.f32.mrb[0].mxu0
        %v2955 = vadd.f32 %v2794, %v2954
        %v2956 = vpop.f32.mrb[0].mxu0
        %2957 = vmatprep.mubr.bf16.mxu0 %v1896
        %2958 = vmatmul.mubr.bf16.gmra.mrb[0].mxu0 %v1895
        %v2959 = vpop.f32.mrb[0].mxu0
        %v2960 = vadd.f32 %v2799, %v2959
        %v2961 = vpop.f32.mrb[0].mxu0
        %v2962 = vpop.f32.mrb[0].mxu0
        %v2963 = vadd.f32 %v2802, %v2962
        %v2964 = vpop.f32.mrb[0].mxu0
        %2965 = vdwg.mxu0
        %2966 = vmatprep.subr.bf16.mxu0 0
        %2967 = vmatpush1.bf16.msra.mxu0 %v2387
        %2968 = vmatprep.subr.bf16.mxu0 0
        %2969 = vmatpush1.bf16.msra.mxu0 %v2388
        %2970 = vmatprep.subr.bf16.mxu0 0
        %2971 = vmatpush1.bf16.msra.mxu0 %v2389
        %2972 = vmatprep.subr.bf16.mxu0 0
        %2973 = vmatpush1.bf16.msra.mxu0 %v2390
        %2974 = vmatprep.subr.bf16.mxu0 0
        %2975 = vmatpush1.bf16.msra.mxu0 %v2391
        %2976 = vmatprep.subr.bf16.mxu0 0
        %2977 = vmatpush1.bf16.msra.mxu0 %v2392
        %2978 = vmatprep.subr.bf16.mxu0 0
        %2979 = vmatpush1.bf16.msra.mxu0 %v2393
        %2980 = vmatprep.subr.bf16.mxu0 0
        %2981 = vmatpush1.bf16.msra.mxu0 %v2394
        %2982 = vmatprep.subr.bf16.mxu0 0
        %2983 = vmatpush1.bf16.msra.mxu0 %v2395
        %2984 = vmatprep.subr.bf16.mxu0 0
        %2985 = vmatpush1.bf16.msra.mxu0 %v2396
        %2986 = vmatprep.subr.bf16.mxu0 0
        %2987 = vmatpush1.bf16.msra.mxu0 %v2397
        %2988 = vmatprep.subr.bf16.mxu0 0
        %2989 = vmatpush1.bf16.msra.mxu0 %v2398
        %2990 = vmatprep.subr.bf16.mxu0 0
        %2991 = vmatpush1.bf16.msra.mxu0 %v2399
        %2992 = vmatprep.subr.bf16.mxu0 0
        %2993 = vmatpush1.bf16.msra.mxu0 %v2400
        %2994 = vmatprep.subr.bf16.mxu0 0
        %2995 = vmatpush1.bf16.msra.mxu0 %v2401
        %2996 = vmatprep.subr.bf16.mxu0 0
        %2997 = vmatpush1.bf16.msra.mxu0 %v2402
        %2998 = vmatprep.mubr.bf16.mxu0 %v1763
        %2999 = vmatmul.mubr.bf16.gmra.mrb[0].mxu0 %v1762
        %v3000 = vpop.f32.mrb[0].mxu0
        %v3001 = vadd.f32 %v2840, %v3000
        %v3002 = vpop.f32.mrb[0].mxu0
        %v3003 = vpop.f32.mrb[0].mxu0
        %v3004 = vadd.f32 %v2843, %v3003
        %v3005 = vpop.f32.mrb[0].mxu0
        %3006 = vmatprep.mubr.bf16.mxu0 %v1772
        %3007 = vmatmul.mubr.bf16.gmra.mrb[0].mxu0 %v1771
        %v3008 = vpop.f32.mrb[0].mxu0
        %v3009 = vadd.f32 %v2848, %v3008
        %v3010 = vpop.f32.mrb[0].mxu0
        %v3011 = vpop.f32.mrb[0].mxu0
        %v3012 = vadd.f32 %v2851, %v3011
        %v3013 = vpop.f32.mrb[0].mxu0
        %3014 = vmatprep.mubr.bf16.mxu0 %v1781
        %3015 = vmatmul.mubr.bf16.gmra.mrb[0].mxu0 %v1780
        %v3016 = vpop.f32.mrb[0].mxu0
        %v3017 = vadd.f32 %v2856, %v3016
        %v3018 = vpop.f32.mrb[0].mxu0
        %v3019 = vpop.f32.mrb[0].mxu0
        %v3020 = vadd.f32 %v2859, %v3019
        %v3021 = vpop.f32.mrb[0].mxu0
        %3022 = vmatprep.mubr.bf16.mxu0 %v1790
        %3023 = vmatmul.mubr.bf16.gmra.mrb[0].mxu0 %v1789
        %v3024 = vpop.f32.mrb[0].mxu0
        %v3025 = vadd.f32 %v2864, %v3024
        %v3026 = vpop.f32.mrb[0].mxu0
        %v3027 = vpop.f32.mrb[0].mxu0
        %v3028 = vadd.f32 %v2867, %v3027
        %v3029 = vpop.f32.mrb[0].mxu0
        %3030 = vmatprep.mubr.bf16.mxu0 %v1799
        %3031 = vmatmul.mubr.bf16.gmra.mrb[0].mxu0 %v1798
        %v3032 = vpop.f32.mrb[0].mxu0
        %v3033 = vadd.f32 %v2872, %v3032
        %v3034 = vpop.f32.mrb[0].mxu0
        %v3035 = vpop.f32.mrb[0].mxu0
        %v3036 = vadd.f32 %v2875, %v3035
        %v3037 = vpop.f32.mrb[0].mxu0
        %3038 = vmatprep.mubr.bf16.mxu0 %v1808
        %3039 = vmatmul.mubr.bf16.gmra.mrb[0].mxu0 %v1807
        %v3040 = vpop.f32.mrb[0].mxu0
        %v3041 = vadd.f32 %v2880, %v3040
        %v3042 = vpop.f32.mrb[0].mxu0
        %v3043 = vpop.f32.mrb[0].mxu0
        %v3044 = vadd.f32 %v2883, %v3043
        %v3045 = vpop.f32.mrb[0].mxu0
        %3046 = vmatprep.mubr.bf16.mxu0 %v1817
        %3047 = vmatmul.mubr.bf16.gmra.mrb[0].mxu0 %v1816
        %v3048 = vpop.f32.mrb[0].mxu0
        %v3049 = vadd.f32 %v2888, %v3048
        %v3050 = vpop.f32.mrb[0].mxu0
        %v3051 = vpop.f32.mrb[0].mxu0
        %v3052 = vadd.f32 %v2891, %v3051
        %v3053 = vpop.f32.mrb[0].mxu0
        %3054 = vmatprep.mubr.bf16.mxu0 %v1826
        %3055 = vmatmul.mubr.bf16.gmra.mrb[0].mxu0 %v1825
        %v3056 = vpop.f32.mrb[0].mxu0
        %v3057 = vadd.f32 %v2896, %v3056
        %v3058 = vpop.f32.mrb[0].mxu0
        %v3059 = vpop.f32.mrb[0].mxu0
        %v3060 = vadd.f32 %v2899, %v3059
        %v3061 = vpop.f32.mrb[0].mxu0
        %3062 = vmatprep.mubr.bf16.mxu0 %v1835
        %3063 = vmatmul.mubr.bf16.gmra.mrb[0].mxu0 %v1834
        %v3064 = vpop.f32.mrb[0].mxu0
        %v3065 = vadd.f32 %v2904, %v3064
        %v3066 = vpop.f32.mrb[0].mxu0
        %v3067 = vpop.f32.mrb[0].mxu0
        %v3068 = vadd.f32 %v2907, %v3067
        %v3069 = vpop.f32.mrb[0].mxu0
        %3070 = vmatprep.mubr.bf16.mxu0 %v1844
        %3071 = vmatmul.mubr.bf16.gmra.mrb[0].mxu0 %v1843
        %v3072 = vpop.f32.mrb[0].mxu0
        %v3073 = vadd.f32 %v2912, %v3072
        %v3074 = vpop.f32.mrb[0].mxu0
        %v3075 = vpop.f32.mrb[0].mxu0
        %v3076 = vadd.f32 %v2915, %v3075
        %v3077 = vpop.f32.mrb[0].mxu0
        %3078 = vmatprep.mubr.bf16.mxu0 %v1853
        %3079 = vmatmul.mubr.bf16.gmra.mrb[0].mxu0 %v1852
        %v3080 = vpop.f32.mrb[0].mxu0
        %v3081 = vadd.f32 %v2920, %v3080
        %v3082 = vpop.f32.mrb[0].mxu0
        %v3083 = vpop.f32.mrb[0].mxu0
        %v3084 = vadd.f32 %v2923, %v3083
        %v3085 = vpop.f32.mrb[0].mxu0
        %3086 = vmatprep.mubr.bf16.mxu0 %v1862
        %3087 = vmatmul.mubr.bf16.gmra.mrb[0].mxu0 %v1861
        %v3088 = vpop.f32.mrb[0].mxu0
        %v3089 = vadd.f32 %v2928, %v3088
        %v3090 = vpop.f32.mrb[0].mxu0
        %v3091 = vpop.f32.mrb[0].mxu0
        %v3092 = vadd.f32 %v2931, %v3091
        %v3093 = vpop.f32.mrb[0].mxu0
        %3094 = vmatprep.mubr.bf16.mxu0 %v1871
        %3095 = vmatmul.mubr.bf16.gmra.mrb[0].mxu0 %v1870
        %v3096 = vpop.f32.mrb[0].mxu0
        %v3097 = vadd.f32 %v2936, %v3096
        %v3098 = vpop.f32.mrb[0].mxu0
        %v3099 = vpop.f32.mrb[0].mxu0
        %v3100 = vadd.f32 %v2939, %v3099
        %v3101 = vpop.f32.mrb[0].mxu0
        %3102 = vmatprep.mubr.bf16.mxu0 %v1880
        %3103 = vmatmul.mubr.bf16.gmra.mrb[0].mxu0 %v1879
        %v3104 = vpop.f32.mrb[0].mxu0
        %v3105 = vadd.f32 %v2944, %v3104
        %v3106 = vpop.f32.mrb[0].mxu0
        %v3107 = vpop.f32.mrb[0].mxu0
        %v3108 = vadd.f32 %v2947, %v3107
        %v3109 = vpop.f32.mrb[0].mxu0
        %3110 = vmatprep.mubr.bf16.mxu0 %v1889
        %3111 = vmatmul.mubr.bf16.gmra.mrb[0].mxu0 %v1888
        %v3112 = vpop.f32.mrb[0].mxu0
        %v3113 = vadd.f32 %v2952, %v3112
        %v3114 = vpop.f32.mrb[0].mxu0
        %v3115 = vpop.f32.mrb[0].mxu0
        %v3116 = vadd.f32 %v2955, %v3115
        %v3117 = vpop.f32.mrb[0].mxu0
        %3118 = vmatprep.mubr.bf16.mxu0 %v1898
        %3119 = vmatmul.mubr.bf16.gmra.mrb[0].mxu0 %v1897
        %v3120 = vpop.f32.mrb[0].mxu0
        %v3121 = vadd.f32 %v2960, %v3120
        %v3122 = vpop.f32.mrb[0].mxu0
        %v3123 = vpop.f32.mrb[0].mxu0
        %v3124 = vadd.f32 %v2963, %v3123
        %v3125 = vpop.f32.mrb[0].mxu0
        %3126 = vdwg.mxu0
        %3127 = vmatprep.subr.bf16.mxu0 0
        %3128 = vmatpush1.bf16.msra.mxu0 %v2403
        %3129 = vmatprep.subr.bf16.mxu0 0
        %3130 = vmatpush1.bf16.msra.mxu0 %v2404
        %3131 = vmatprep.subr.bf16.mxu0 0
        %3132 = vmatpush1.bf16.msra.mxu0 %v2405
        %3133 = vmatprep.subr.bf16.mxu0 0
        %3134 = vmatpush1.bf16.msra.mxu0 %v2406
        %3135 = vmatprep.subr.bf16.mxu0 0
        %3136 = vmatpush1.bf16.msra.mxu0 %v2407
        %3137 = vmatprep.subr.bf16.mxu0 0
        %3138 = vmatpush1.bf16.msra.mxu0 %v2408
        %3139 = vmatprep.subr.bf16.mxu0 0
        %3140 = vmatpush1.bf16.msra.mxu0 %v2409
        %3141 = vmatprep.subr.bf16.mxu0 0
        %3142 = vmatpush1.bf16.msra.mxu0 %v2410
        %3143 = vmatprep.subr.bf16.mxu0 0
        %3144 = vmatpush1.bf16.msra.mxu0 0
        %3145 = vmatprep.subr.bf16.mxu0 0
        %3146 = vmatpush1.bf16.msra.mxu0 0
        %3147 = vmatprep.subr.bf16.mxu0 0
        %3148 = vmatpush1.bf16.msra.mxu0 0
        %3149 = vmatprep.subr.bf16.mxu0 0
        %3150 = vmatpush1.bf16.msra.mxu0 0
        %3151 = vmatprep.subr.bf16.mxu0 0
        %3152 = vmatpush1.bf16.msra.mxu0 0
        %3153 = vmatprep.subr.bf16.mxu0 0
        %3154 = vmatpush1.bf16.msra.mxu0 0
        %3155 = vmatprep.subr.bf16.mxu0 0
        %3156 = vmatpush1.bf16.msra.mxu0 0
        %3157 = vmatprep.subr.bf16.mxu0 0
        %3158 = vmatpush1.bf16.msra.mxu0 0
        %3159 = vmatprep.mubr.bf16.mxu0 0
        %3160 = vmatmul.mubr.bf16.gmra.mrb[0].mxu0 %v1764
        %v3161 = vpop.f32.mrb[0].mxu0
        %v3162 = vadd.f32 %v3001, %v3161
        %v3163 = vpop.f32.mrb[0].mxu0
        %v3164 = vpop.f32.mrb[0].mxu0
        %v3165 = vadd.f32 %v3004, %v3164
        %v3166 = vpop.f32.mrb[0].mxu0
        %3167 = vmatprep.mubr.bf16.mxu0 0
        %3168 = vmatmul.mubr.bf16.gmra.mrb[0].mxu0 %v1773
        %v3169 = vpop.f32.mrb[0].mxu0
        %v3170 = vadd.f32 %v3009, %v3169
        %v3171 = vpop.f32.mrb[0].mxu0
        %v3172 = vpop.f32.mrb[0].mxu0
        %v3173 = vadd.f32 %v3012, %v3172
        %v3174 = vpop.f32.mrb[0].mxu0
        %3175 = vmatprep.mubr.bf16.mxu0 0
        %3176 = vmatmul.mubr.bf16.gmra.mrb[0].mxu0 %v1782
        %v3177 = vpop.f32.mrb[0].mxu0
        %v3178 = vadd.f32 %v3017, %v3177
        %v3179 = vpop.f32.mrb[0].mxu0
        %v3180 = vpop.f32.mrb[0].mxu0
        %v3181 = vadd.f32 %v3020, %v3180
        %v3182 = vpop.f32.mrb[0].mxu0
        %3183 = vmatprep.mubr.bf16.mxu0 0
        %3184 = vmatmul.mubr.bf16.gmra.mrb[0].mxu0 %v1791
        %v3185 = vpop.f32.mrb[0].mxu0
        %v3186 = vadd.f32 %v3025, %v3185
        %v3187 = vpop.f32.mrb[0].mxu0
        %v3188 = vpop.f32.mrb[0].mxu0
        %v3189 = vadd.f32 %v3028, %v3188
        %v3190 = vpop.f32.mrb[0].mxu0
        %3191 = vmatprep.mubr.bf16.mxu0 0
        %3192 = vmatmul.mubr.bf16.gmra.mrb[0].mxu0 %v1800
        %v3193 = vpop.f32.mrb[0].mxu0
        %v3194 = vadd.f32 %v3033, %v3193
        %v3195 = vpop.f32.mrb[0].mxu0
        %v3196 = vpop.f32.mrb[0].mxu0
        %v3197 = vadd.f32 %v3036, %v3196
        %v3198 = vpop.f32.mrb[0].mxu0
        %3199 = vmatprep.mubr.bf16.mxu0 0
        %3200 = vmatmul.mubr.bf16.gmra.mrb[0].mxu0 %v1809
        %v3201 = vpop.f32.mrb[0].mxu0
        %v3202 = vadd.f32 %v3041, %v3201
        %v3203 = vpop.f32.mrb[0].mxu0
        %v3204 = vpop.f32.mrb[0].mxu0
        %v3205 = vadd.f32 %v3044, %v3204
        %v3206 = vpop.f32.mrb[0].mxu0
        %3207 = vmatprep.mubr.bf16.mxu0 0
        %3208 = vmatmul.mubr.bf16.gmra.mrb[0].mxu0 %v1818
        %v3209 = vpop.f32.mrb[0].mxu0
        %v3210 = vadd.f32 %v3049, %v3209
        %v3211 = vpop.f32.mrb[0].mxu0
        %v3212 = vpop.f32.mrb[0].mxu0
        %v3213 = vadd.f32 %v3052, %v3212
        %v3214 = vpop.f32.mrb[0].mxu0
        %3215 = vmatprep.mubr.bf16.mxu0 0
        %3216 = vmatmul.mubr.bf16.gmra.mrb[0].mxu0 %v1827
        %v3217 = vpop.f32.mrb[0].mxu0
        %v3218 = vadd.f32 %v3057, %v3217
        %v3219 = vpop.f32.mrb[0].mxu0
        %v3220 = vpop.f32.mrb[0].mxu0
        %v3221 = vadd.f32 %v3060, %v3220
        %v3222 = vpop.f32.mrb[0].mxu0
        %3223 = vmatprep.mubr.bf16.mxu0 0
        %3224 = vmatmul.mubr.bf16.gmra.mrb[0].mxu0 %v1836
        %v3225 = vpop.f32.mrb[0].mxu0
        %v3226 = vadd.f32 %v3065, %v3225
        %v3227 = vpop.f32.mrb[0].mxu0
        %v3228 = vpop.f32.mrb[0].mxu0
        %v3229 = vadd.f32 %v3068, %v3228
        %v3230 = vpop.f32.mrb[0].mxu0
        %3231 = vmatprep.mubr.bf16.mxu0 0
        %3232 = vmatmul.mubr.bf16.gmra.mrb[0].mxu0 %v1845
        %v3233 = vpop.f32.mrb[0].mxu0
        %v3234 = vadd.f32 %v3073, %v3233
        %v3235 = vpop.f32.mrb[0].mxu0
        %v3236 = vpop.f32.mrb[0].mxu0
        %v3237 = vadd.f32 %v3076, %v3236
        %v3238 = vpop.f32.mrb[0].mxu0
        %3239 = vmatprep.mubr.bf16.mxu0 0
        %3240 = vmatmul.mubr.bf16.gmra.mrb[0].mxu0 %v1854
        %v3241 = vpop.f32.mrb[0].mxu0
        %v3242 = vadd.f32 %v3081, %v3241
        %v3243 = vpop.f32.mrb[0].mxu0
        %v3244 = vpop.f32.mrb[0].mxu0
        %v3245 = vadd.f32 %v3084, %v3244
        %v3246 = vpop.f32.mrb[0].mxu0
        %3247 = vmatprep.mubr.bf16.mxu0 0
        %3248 = vmatmul.mubr.bf16.gmra.mrb[0].mxu0 %v1863
        %v3249 = vpop.f32.mrb[0].mxu0
        %v3250 = vadd.f32 %v3089, %v3249
        %v3251 = vpop.f32.mrb[0].mxu0
        %v3252 = vpop.f32.mrb[0].mxu0
        %v3253 = vadd.f32 %v3092, %v3252
        %v3254 = vpop.f32.mrb[0].mxu0
        %3255 = vmatprep.mubr.bf16.mxu0 0
        %3256 = vmatmul.mubr.bf16.gmra.mrb[0].mxu0 %v1872
        %v3257 = vpop.f32.mrb[0].mxu0
        %v3258 = vadd.f32 %v3097, %v3257
        %v3259 = vpop.f32.mrb[0].mxu0
        %v3260 = vpop.f32.mrb[0].mxu0
        %v3261 = vadd.f32 %v3100, %v3260
        %v3262 = vpop.f32.mrb[0].mxu0
        %3263 = vmatprep.mubr.bf16.mxu0 0
        %3264 = vmatmul.mubr.bf16.gmra.mrb[0].mxu0 %v1881
        %v3265 = vpop.f32.mrb[0].mxu0
        %v3266 = vadd.f32 %v3105, %v3265
        %v3267 = vpop.f32.mrb[0].mxu0
        %v3268 = vpop.f32.mrb[0].mxu0
        %v3269 = vadd.f32 %v3108, %v3268
        %v3270 = vpop.f32.mrb[0].mxu0
        %3271 = vmatprep.mubr.bf16.mxu0 0
        %3272 = vmatmul.mubr.bf16.gmra.mrb[0].mxu0 %v1890
        %v3273 = vpop.f32.mrb[0].mxu0
        %v3274 = vadd.f32 %v3113, %v3273
        %v3275 = vpop.f32.mrb[0].mxu0
        %v3276 = vpop.f32.mrb[0].mxu0
        %v3277 = vadd.f32 %v3116, %v3276
        %v3278 = vpop.f32.mrb[0].mxu0
        %3279 = vmatprep.mubr.bf16.mxu0 0
        %3280 = vmatmul.mubr.bf16.gmra.mrb[0].mxu0 %v1899
        %v3281 = vpop.f32.mrb[0].mxu0
        %v3282 = vadd.f32 %v3121, %v3281
        %v3283 = vpop.f32.mrb[0].mxu0
        %v3284 = vpop.f32.mrb[0].mxu0
        %v3285 = vadd.f32 %v3124, %v3284
        %v3286 = vpop.f32.mrb[0].mxu0
        %3287 = vdwg.mxu0
        %v3288 = vmax.f32 %v3162, 0.0
        %v3289 = vmax.f32 %v3165, 0.0
        %v3290 = vmax.f32 %v3170, 0.0
        %v3291 = vmax.f32 %v3173, 0.0
        %v3292 = vmax.f32 %v3178, 0.0
        %v3293 = vmax.f32 %v3181, 0.0
        %v3294 = vmax.f32 %v3186, 0.0
        %v3295 = vmax.f32 %v3189, 0.0
        %v3296 = vmax.f32 %v3194, 0.0
        %v3297 = vmax.f32 %v3197, 0.0
        %v3298 = vmax.f32 %v3202, 0.0
        %v3299 = vmax.f32 %v3205, 0.0
        %v3300 = vmax.f32 %v3210, 0.0
        %v3301 = vmax.f32 %v3213, 0.0
        %v3302 = vmax.f32 %v3218, 0.0
        %v3303 = vmax.f32 %v3221, 0.0
        %v3304 = vmax.f32 %v3226, 0.0
        %v3305 = vmax.f32 %v3229, 0.0
        %v3306 = vmax.f32 %v3234, 0.0
        %v3307 = vmax.f32 %v3237, 0.0
        %v3308 = vmax.f32 %v3242, 0.0
        %v3309 = vmax.f32 %v3245, 0.0
        %v3310 = vmax.f32 %v3250, 0.0
        %v3311 = vmax.f32 %v3253, 0.0
        %v3312 = vmax.f32 %v3258, 0.0
        %v3313 = vmax.f32 %v3261, 0.0
        %v3314 = vmax.f32 %v3266, 0.0
        %v3315 = vmax.f32 %v3269, 0.0
        %v3316 = vmax.f32 %v3274, 0.0
        %v3317 = vmax.f32 %v3277, 0.0
        %v3318 = vmax.f32 %v3282, 0.0
        %v3319 = vmax.f32 %v3285, 0.0
        %3320 = vst [vmem:[#allocation3] sm:$0xff] 0
        %3321 = vst [vmem:[#allocation3 + $0x8] sm:$0xff] 0
        %3322 = vst [vmem:[#allocation3 + $0x10] sm:$0xff] 0
        %3323 = vst [vmem:[#allocation3 + $0x18] sm:$0xff] 0
        %3324 = vst [vmem:[#allocation3 + $0x20] sm:$0xff] 0
        %3325 = vst [vmem:[#allocation3 + $0x28] sm:$0xff] 0
        %3326 = vst [vmem:[#allocation3 + $0x30] sm:$0xff] 0
        %3327 = vst [vmem:[#allocation3 + $0x38] sm:$0xff] 0
        %3328 = vst [vmem:[#allocation3 + $0x40] sm:$0xff] 0
        %s3329 = scalar_lea.vmem [#allocation3], 1080
        %3330 = vst [vmem:[%s3329] sm:$0xff] 0
        %3331 = vst [vmem:[%s3329 + $0x8] sm:$0xff] 0
        %3332 = vst [vmem:[%s3329 + $0x10] sm:$0xff] 0
        %3333 = vst [vmem:[%s3329 + $0x18] sm:$0xff] 0
        %3334 = vst [vmem:[%s3329 + $0x20] sm:$0xff] 0
        %3335 = vst [vmem:[%s3329 + $0x28] sm:$0xff] 0
        %3336 = vst [vmem:[%s3329 + $0x30] sm:$0xff] 0
        %3337 = vst [vmem:[%s3329 + $0x38] sm:$0xff] 0
        %3338 = vst [vmem:[%s3329 + $0x40] sm:$0xff] 0
        %v3339 = vld [vmem:[#allocation3] sm:$0x1]
        %v3340 = vsel %vm368, 0, %v3339
        %3341 = vst [vmem:[#allocation3] sm:$0x1] %v3340
        %v3342 = vld [vmem:[#allocation3 + $0x8] sm:$0x1]
        %v3343 = vsel %vm368, 0, %v3342
        %3344 = vst [vmem:[#allocation3 + $0x8] sm:$0x1] %v3343
        %v3345 = vld [vmem:[#allocation3 + $0x10] sm:$0x1]
        %v3346 = vsel %vm368, 0, %v3345
        %3347 = vst [vmem:[#allocation3 + $0x10] sm:$0x1] %v3346
        %v3348 = vld [vmem:[#allocation3 + $0x18] sm:$0x1]
        %v3349 = vsel %vm368, 0, %v3348
        %3350 = vst [vmem:[#allocation3 + $0x18] sm:$0x1] %v3349
        %v3351 = vld [vmem:[#allocation3 + $0x20] sm:$0x1]
        %v3352 = vsel %vm368, 0, %v3351
        %3353 = vst [vmem:[#allocation3 + $0x20] sm:$0x1] %v3352
        %v3354 = vld [vmem:[#allocation3 + $0x28] sm:$0x1]
        %v3355 = vsel %vm368, 0, %v3354
        %3356 = vst [vmem:[#allocation3 + $0x28] sm:$0x1] %v3355
        %v3357 = vld [vmem:[#allocation3 + $0x30] sm:$0x1]
        %v3358 = vsel %vm368, 0, %v3357
        %3359 = vst [vmem:[#allocation3 + $0x30] sm:$0x1] %v3358
        %v3360 = vld [vmem:[#allocation3 + $0x38] sm:$0x1]
        %v3361 = vsel %vm368, 0, %v3360
        %3362 = vst [vmem:[#allocation3 + $0x38] sm:$0x1] %v3361
        %v3363 = vld [vmem:[#allocation3 + $0x40] sm:$0x1]
        %v3364 = vsel %vm368, 0, %v3363
        %3365 = vst [vmem:[#allocation3 + $0x40] sm:$0x1] %v3364
        %v3366 = vld [vmem:[#allocation3 + $0x48] sm:$0x1]
        %v3367 = vsel %vm368, 0, %v3366
        %3368 = vst [vmem:[#allocation3 + $0x48] sm:$0x1] %v3367
        %v3369 = vld [vmem:[#allocation3 + $0x50] sm:$0x1]
        %v3370 = vsel %vm368, 0, %v3369
        %3371 = vst [vmem:[#allocation3 + $0x50] sm:$0x1] %v3370
        %v3372 = vld [vmem:[#allocation3 + $0x58] sm:$0x1]
        %v3373 = vsel %vm368, 0, %v3372
        %3374 = vst [vmem:[#allocation3 + $0x58] sm:$0x1] %v3373
        %v3375 = vld [vmem:[#allocation3 + $0x60] sm:$0x1]
        %v3376 = vsel %vm368, 0, %v3375
        %3377 = vst [vmem:[#allocation3 + $0x60] sm:$0x1] %v3376
        %v3378 = vld [vmem:[#allocation3 + $0x68] sm:$0x1]
        %v3379 = vsel %vm368, 0, %v3378
        %3380 = vst [vmem:[#allocation3 + $0x68] sm:$0x1] %v3379
        %v3381 = vld [vmem:[#allocation3 + $0x70] sm:$0x1]
        %v3382 = vsel %vm368, 0, %v3381
        %3383 = vst [vmem:[#allocation3 + $0x70] sm:$0x1] %v3382
        %v3384 = vld [vmem:[#allocation3 + $0x78] sm:$0x1]
        %v3385 = vsel %vm368, 0, %v3384
        %3386 = vst [vmem:[#allocation3 + $0x78] sm:$0x1] %v3385
        %v3387 = vld [vmem:[#allocation3 + $0x80] sm:$0x1]
        %v3388 = vsel %vm368, 0, %v3387
        %3389 = vst [vmem:[#allocation3 + $0x80] sm:$0x1] %v3388
        %v3390 = vld [vmem:[#allocation3 + $0x88] sm:$0x1]
        %v3391 = vsel %vm368, 0, %v3390
        %3392 = vst [vmem:[#allocation3 + $0x88] sm:$0x1] %v3391
        %v3393 = vld [vmem:[#allocation3 + $0x90] sm:$0x1]
        %v3394 = vsel %vm368, 0, %v3393
        %3395 = vst [vmem:[#allocation3 + $0x90] sm:$0x1] %v3394
        %v3396 = vld [vmem:[#allocation3 + $0x98] sm:$0x1]
        %v3397 = vsel %vm368, 0, %v3396
        %3398 = vst [vmem:[#allocation3 + $0x98] sm:$0x1] %v3397
        %v3399 = vld [vmem:[#allocation3 + $0xa0] sm:$0x1]
        %v3400 = vsel %vm368, 0, %v3399
        %3401 = vst [vmem:[#allocation3 + $0xa0] sm:$0x1] %v3400
        %v3402 = vld [vmem:[#allocation3 + $0xa8] sm:$0x1]
        %v3403 = vsel %vm368, 0, %v3402
        %3404 = vst [vmem:[#allocation3 + $0xa8] sm:$0x1] %v3403
        %v3405 = vld [vmem:[#allocation3 + $0xb0] sm:$0x1]
        %v3406 = vsel %vm368, 0, %v3405
        %3407 = vst [vmem:[#allocation3 + $0xb0] sm:$0x1] %v3406
        %v3408 = vld [vmem:[#allocation3 + $0xb8] sm:$0x1]
        %v3409 = vsel %vm368, 0, %v3408
        %3410 = vst [vmem:[#allocation3 + $0xb8] sm:$0x1] %v3409
        %v3411 = vld [vmem:[#allocation3 + $0xc0] sm:$0x1]
        %v3412 = vsel %vm368, 0, %v3411
        %3413 = vst [vmem:[#allocation3 + $0xc0] sm:$0x1] %v3412
        %v3414 = vld [vmem:[#allocation3 + $0xc8] sm:$0x1]
        %v3415 = vsel %vm368, 0, %v3414
        %3416 = vst [vmem:[#allocation3 + $0xc8] sm:$0x1] %v3415
        %v3417 = vld [vmem:[#allocation3 + $0xd0] sm:$0x1]
        %v3418 = vsel %vm368, 0, %v3417
        %3419 = vst [vmem:[#allocation3 + $0xd0] sm:$0x1] %v3418
        %v3420 = vld [vmem:[#allocation3 + $0xd8] sm:$0x1]
        %v3421 = vsel %vm368, 0, %v3420
        %3422 = vst [vmem:[#allocation3 + $0xd8] sm:$0x1] %v3421
        %v3423 = vld [vmem:[#allocation3 + $0xe0] sm:$0x1]
        %v3424 = vsel %vm368, 0, %v3423
        %3425 = vst [vmem:[#allocation3 + $0xe0] sm:$0x1] %v3424
        %v3426 = vld [vmem:[#allocation3 + $0xe8] sm:$0x1]
        %v3427 = vsel %vm368, 0, %v3426
        %3428 = vst [vmem:[#allocation3 + $0xe8] sm:$0x1] %v3427
        %v3429 = vld [vmem:[#allocation3 + $0xf0] sm:$0x1]
        %v3430 = vsel %vm368, 0, %v3429
        %3431 = vst [vmem:[#allocation3 + $0xf0] sm:$0x1] %v3430
        %v3432 = vld [vmem:[#allocation3 + $0xf8] sm:$0x1]
        %v3433 = vsel %vm368, 0, %v3432
        %3434 = vst [vmem:[#allocation3 + $0xf8] sm:$0x1] %v3433
        %v3435 = vld [vmem:[#allocation3 + $0x100] sm:$0x1]
        %v3436 = vsel %vm368, 0, %v3435
        %3437 = vst [vmem:[#allocation3 + $0x100] sm:$0x1] %v3436
        %v3438 = vld [vmem:[#allocation3 + $0x108] sm:$0x1]
        %v3439 = vsel %vm368, 0, %v3438
        %3440 = vst [vmem:[#allocation3 + $0x108] sm:$0x1] %v3439
        %v3441 = vld [vmem:[#allocation3 + $0x110] sm:$0x1]
        %v3442 = vsel %vm368, 0, %v3441
        %3443 = vst [vmem:[#allocation3 + $0x110] sm:$0x1] %v3442
        %v3444 = vld [vmem:[#allocation3 + $0x118] sm:$0x1]
        %v3445 = vsel %vm368, 0, %v3444
        %3446 = vst [vmem:[#allocation3 + $0x118] sm:$0x1] %v3445
        %v3447 = vld [vmem:[#allocation3 + $0x120] sm:$0x1]
        %v3448 = vsel %vm368, 0, %v3447
        %3449 = vst [vmem:[#allocation3 + $0x120] sm:$0x1] %v3448
        %v3450 = vld [vmem:[#allocation3 + $0x128] sm:$0x1]
        %v3451 = vsel %vm368, 0, %v3450
        %3452 = vst [vmem:[#allocation3 + $0x128] sm:$0x1] %v3451
        %v3453 = vld [vmem:[#allocation3 + $0x130] sm:$0x1]
        %v3454 = vsel %vm368, 0, %v3453
        %3455 = vst [vmem:[#allocation3 + $0x130] sm:$0x1] %v3454
        %v3456 = vld [vmem:[#allocation3 + $0x138] sm:$0x1]
        %v3457 = vsel %vm368, 0, %v3456
        %3458 = vst [vmem:[#allocation3 + $0x138] sm:$0x1] %v3457
        %v3459 = vld [vmem:[#allocation3 + $0x140] sm:$0x1]
        %v3460 = vsel %vm368, 0, %v3459
        %3461 = vst [vmem:[#allocation3 + $0x140] sm:$0x1] %v3460
        %v3462 = vld [vmem:[#allocation3 + $0x148] sm:$0x1]
        %v3463 = vsel %vm368, 0, %v3462
        %3464 = vst [vmem:[#allocation3 + $0x148] sm:$0x1] %v3463
        %v3465 = vld [vmem:[#allocation3 + $0x150] sm:$0x1]
        %v3466 = vsel %vm368, 0, %v3465
        %3467 = vst [vmem:[#allocation3 + $0x150] sm:$0x1] %v3466
        %v3468 = vld [vmem:[#allocation3 + $0x158] sm:$0x1]
        %v3469 = vsel %vm368, 0, %v3468
        %3470 = vst [vmem:[#allocation3 + $0x158] sm:$0x1] %v3469
        %v3471 = vld [vmem:[#allocation3 + $0x160] sm:$0x1]
        %v3472 = vsel %vm368, 0, %v3471
        %3473 = vst [vmem:[#allocation3 + $0x160] sm:$0x1] %v3472
        %v3474 = vld [vmem:[#allocation3 + $0x168] sm:$0x1]
        %v3475 = vsel %vm368, 0, %v3474
        %3476 = vst [vmem:[#allocation3 + $0x168] sm:$0x1] %v3475
        %v3477 = vld [vmem:[#allocation3 + $0x170] sm:$0x1]
        %v3478 = vsel %vm368, 0, %v3477
        %3479 = vst [vmem:[#allocation3 + $0x170] sm:$0x1] %v3478
        %v3480 = vld [vmem:[#allocation3 + $0x178] sm:$0x1]
        %v3481 = vsel %vm368, 0, %v3480
        %3482 = vst [vmem:[#allocation3 + $0x178] sm:$0x1] %v3481
        %v3483 = vld [vmem:[#allocation3 + $0x180] sm:$0x1]
        %v3484 = vsel %vm368, 0, %v3483
        %3485 = vst [vmem:[#allocation3 + $0x180] sm:$0x1] %v3484
        %v3486 = vld [vmem:[#allocation3 + $0x188] sm:$0x1]
        %v3487 = vsel %vm368, 0, %v3486
        %3488 = vst [vmem:[#allocation3 + $0x188] sm:$0x1] %v3487
        %v3489 = vld [vmem:[#allocation3 + $0x190] sm:$0x1]
        %v3490 = vsel %vm368, 0, %v3489
        %3491 = vst [vmem:[#allocation3 + $0x190] sm:$0x1] %v3490
        %v3492 = vld [vmem:[#allocation3 + $0x198] sm:$0x1]
        %v3493 = vsel %vm368, 0, %v3492
        %3494 = vst [vmem:[#allocation3 + $0x198] sm:$0x1] %v3493
        %v3495 = vld [vmem:[#allocation3 + $0x1a0] sm:$0x1]
        %v3496 = vsel %vm368, 0, %v3495
        %3497 = vst [vmem:[#allocation3 + $0x1a0] sm:$0x1] %v3496
        %v3498 = vld [vmem:[#allocation3 + $0x1a8] sm:$0x1]
        %v3499 = vsel %vm368, 0, %v3498
        %3500 = vst [vmem:[#allocation3 + $0x1a8] sm:$0x1] %v3499
        %v3501 = vld [vmem:[#allocation3 + $0x1b0] sm:$0x1]
        %v3502 = vsel %vm368, 0, %v3501
        %3503 = vst [vmem:[#allocation3 + $0x1b0] sm:$0x1] %v3502
        %v3504 = vld [vmem:[#allocation3 + $0x1b8] sm:$0x1]
        %v3505 = vsel %vm368, 0, %v3504
        %3506 = vst [vmem:[#allocation3 + $0x1b8] sm:$0x1] %v3505
        %v3507 = vld [vmem:[#allocation3 + $0x1c0] sm:$0x1]
        %v3508 = vsel %vm368, 0, %v3507
        %3509 = vst [vmem:[#allocation3 + $0x1c0] sm:$0x1] %v3508
        %v3510 = vld [vmem:[#allocation3 + $0x1c8] sm:$0x1]
        %v3511 = vsel %vm368, 0, %v3510
        %3512 = vst [vmem:[#allocation3 + $0x1c8] sm:$0x1] %v3511
        %v3513 = vld [vmem:[#allocation3 + $0x1d0] sm:$0x1]
        %v3514 = vsel %vm368, 0, %v3513
        %3515 = vst [vmem:[#allocation3 + $0x1d0] sm:$0x1] %v3514
        %v3516 = vld [vmem:[#allocation3 + $0x1d8] sm:$0x1]
        %v3517 = vsel %vm368, 0, %v3516
        %3518 = vst [vmem:[#allocation3 + $0x1d8] sm:$0x1] %v3517
        %v3519 = vld [vmem:[#allocation3 + $0x1e0] sm:$0x1]
        %v3520 = vsel %vm368, 0, %v3519
        %3521 = vst [vmem:[#allocation3 + $0x1e0] sm:$0x1] %v3520
        %v3522 = vld [vmem:[#allocation3 + $0x1e8] sm:$0x1]
        %v3523 = vsel %vm368, 0, %v3522
        %3524 = vst [vmem:[#allocation3 + $0x1e8] sm:$0x1] %v3523
        %v3525 = vld [vmem:[#allocation3 + $0x1f0] sm:$0x1]
        %v3526 = vsel %vm368, 0, %v3525
        %3527 = vst [vmem:[#allocation3 + $0x1f0] sm:$0x1] %v3526
        %v3528 = vld [vmem:[#allocation3 + $0x1f8] sm:$0x1]
        %v3529 = vsel %vm368, 0, %v3528
        %3530 = vst [vmem:[#allocation3 + $0x1f8] sm:$0x1] %v3529
        %v3531 = vld [vmem:[#allocation3 + $0x200] sm:$0x1]
        %v3532 = vsel %vm368, 0, %v3531
        %3533 = vst [vmem:[#allocation3 + $0x200] sm:$0x1] %v3532
        %v3534 = vld [vmem:[#allocation3 + $0x208] sm:$0x1]
        %v3535 = vsel %vm368, 0, %v3534
        %3536 = vst [vmem:[#allocation3 + $0x208] sm:$0x1] %v3535
        %v3537 = vld [vmem:[#allocation3 + $0x210] sm:$0x1]
        %v3538 = vsel %vm368, 0, %v3537
        %3539 = vst [vmem:[#allocation3 + $0x210] sm:$0x1] %v3538
        %v3540 = vld [vmem:[#allocation3 + $0x218] sm:$0x1]
        %v3541 = vsel %vm368, 0, %v3540
        %3542 = vst [vmem:[#allocation3 + $0x218] sm:$0x1] %v3541
        %v3543 = vld [vmem:[#allocation3 + $0x220] sm:$0x1]
        %v3544 = vsel %vm368, 0, %v3543
        %3545 = vst [vmem:[#allocation3 + $0x220] sm:$0x1] %v3544
        %v3546 = vld [vmem:[#allocation3 + $0x228] sm:$0x1]
        %v3547 = vsel %vm368, 0, %v3546
        %3548 = vst [vmem:[#allocation3 + $0x228] sm:$0x1] %v3547
        %v3549 = vld [vmem:[#allocation3 + $0x230] sm:$0x1]
        %v3550 = vsel %vm368, 0, %v3549
        %3551 = vst [vmem:[#allocation3 + $0x230] sm:$0x1] %v3550
        %v3552 = vld [vmem:[#allocation3 + $0x238] sm:$0x1]
        %v3553 = vsel %vm368, 0, %v3552
        %3554 = vst [vmem:[#allocation3 + $0x238] sm:$0x1] %v3553
        %v3555 = vld [vmem:[#allocation3 + $0x240] sm:$0x1]
        %v3556 = vsel %vm368, 0, %v3555
        %3557 = vst [vmem:[#allocation3 + $0x240] sm:$0x1] %v3556
        %v3558 = vld [vmem:[#allocation3 + $0x248] sm:$0x1]
        %v3559 = vsel %vm368, 0, %v3558
        %3560 = vst [vmem:[#allocation3 + $0x248] sm:$0x1] %v3559
        %v3561 = vld [vmem:[#allocation3 + $0x250] sm:$0x1]
        %v3562 = vsel %vm368, 0, %v3561
        %3563 = vst [vmem:[#allocation3 + $0x250] sm:$0x1] %v3562
        %v3564 = vld [vmem:[#allocation3 + $0x258] sm:$0x1]
        %v3565 = vsel %vm368, 0, %v3564
        %3566 = vst [vmem:[#allocation3 + $0x258] sm:$0x1] %v3565
        %v3567 = vld [vmem:[#allocation3 + $0x260] sm:$0x1]
        %v3568 = vsel %vm368, 0, %v3567
        %3569 = vst [vmem:[#allocation3 + $0x260] sm:$0x1] %v3568
        %v3570 = vld [vmem:[#allocation3 + $0x268] sm:$0x1]
        %v3571 = vsel %vm368, 0, %v3570
        %3572 = vst [vmem:[#allocation3 + $0x268] sm:$0x1] %v3571
        %v3573 = vld [vmem:[#allocation3 + $0x270] sm:$0x1]
        %v3574 = vsel %vm368, 0, %v3573
        %3575 = vst [vmem:[#allocation3 + $0x270] sm:$0x1] %v3574
        %v3576 = vld [vmem:[#allocation3 + $0x278] sm:$0x1]
        %v3577 = vsel %vm368, 0, %v3576
        %3578 = vst [vmem:[#allocation3 + $0x278] sm:$0x1] %v3577
        %v3579 = vld [vmem:[#allocation3 + $0x280] sm:$0x1]
        %v3580 = vsel %vm368, 0, %v3579
        %3581 = vst [vmem:[#allocation3 + $0x280] sm:$0x1] %v3580
        %v3582 = vld [vmem:[#allocation3 + $0x288] sm:$0x1]
        %v3583 = vsel %vm368, 0, %v3582
        %3584 = vst [vmem:[#allocation3 + $0x288] sm:$0x1] %v3583
        %v3585 = vld [vmem:[#allocation3 + $0x290] sm:$0x1]
        %v3586 = vsel %vm368, 0, %v3585
        %3587 = vst [vmem:[#allocation3 + $0x290] sm:$0x1] %v3586
        %v3588 = vld [vmem:[#allocation3 + $0x298] sm:$0x1]
        %v3589 = vsel %vm368, 0, %v3588
        %3590 = vst [vmem:[#allocation3 + $0x298] sm:$0x1] %v3589
        %v3591 = vld [vmem:[#allocation3 + $0x2a0] sm:$0x1]
        %v3592 = vsel %vm368, 0, %v3591
        %3593 = vst [vmem:[#allocation3 + $0x2a0] sm:$0x1] %v3592
        %v3594 = vld [vmem:[#allocation3 + $0x2a8] sm:$0x1]
        %v3595 = vsel %vm368, 0, %v3594
        %3596 = vst [vmem:[#allocation3 + $0x2a8] sm:$0x1] %v3595
        %v3597 = vld [vmem:[#allocation3 + $0x2b0] sm:$0x1]
        %v3598 = vsel %vm368, 0, %v3597
        %3599 = vst [vmem:[#allocation3 + $0x2b0] sm:$0x1] %v3598
        %v3600 = vld [vmem:[#allocation3 + $0x2b8] sm:$0x1]
        %v3601 = vsel %vm368, 0, %v3600
        %3602 = vst [vmem:[#allocation3 + $0x2b8] sm:$0x1] %v3601
        %v3603 = vld [vmem:[#allocation3 + $0x2c0] sm:$0x1]
        %v3604 = vsel %vm368, 0, %v3603
        %3605 = vst [vmem:[#allocation3 + $0x2c0] sm:$0x1] %v3604
        %v3606 = vld [vmem:[#allocation3 + $0x2c8] sm:$0x1]
        %v3607 = vsel %vm368, 0, %v3606
        %3608 = vst [vmem:[#allocation3 + $0x2c8] sm:$0x1] %v3607
        %v3609 = vld [vmem:[#allocation3 + $0x2d0] sm:$0x1]
        %v3610 = vsel %vm368, 0, %v3609
        %3611 = vst [vmem:[#allocation3 + $0x2d0] sm:$0x1] %v3610
        %v3612 = vld [vmem:[#allocation3 + $0x2d8] sm:$0x1]
        %v3613 = vsel %vm368, 0, %v3612
        %3614 = vst [vmem:[#allocation3 + $0x2d8] sm:$0x1] %v3613
        %v3615 = vld [vmem:[#allocation3 + $0x2e0] sm:$0x1]
        %v3616 = vsel %vm368, 0, %v3615
        %3617 = vst [vmem:[#allocation3 + $0x2e0] sm:$0x1] %v3616
        %v3618 = vld [vmem:[#allocation3 + $0x2e8] sm:$0x1]
        %v3619 = vsel %vm368, 0, %v3618
        %3620 = vst [vmem:[#allocation3 + $0x2e8] sm:$0x1] %v3619
        %v3621 = vld [vmem:[#allocation3 + $0x2f0] sm:$0x1]
        %v3622 = vsel %vm368, 0, %v3621
        %3623 = vst [vmem:[#allocation3 + $0x2f0] sm:$0x1] %v3622
        %v3624 = vld [vmem:[#allocation3 + $0x2f8] sm:$0x1]
        %v3625 = vsel %vm368, 0, %v3624
        %3626 = vst [vmem:[#allocation3 + $0x2f8] sm:$0x1] %v3625
        %v3627 = vld [vmem:[#allocation3 + $0x300] sm:$0x1]
        %v3628 = vsel %vm368, 0, %v3627
        %3629 = vst [vmem:[#allocation3 + $0x300] sm:$0x1] %v3628
        %v3630 = vld [vmem:[#allocation3 + $0x308] sm:$0x1]
        %v3631 = vsel %vm368, 0, %v3630
        %3632 = vst [vmem:[#allocation3 + $0x308] sm:$0x1] %v3631
        %v3633 = vld [vmem:[#allocation3 + $0x310] sm:$0x1]
        %v3634 = vsel %vm368, 0, %v3633
        %3635 = vst [vmem:[#allocation3 + $0x310] sm:$0x1] %v3634
        %v3636 = vld [vmem:[#allocation3 + $0x318] sm:$0x1]
        %v3637 = vsel %vm368, 0, %v3636
        %3638 = vst [vmem:[#allocation3 + $0x318] sm:$0x1] %v3637
        %v3639 = vld [vmem:[#allocation3 + $0x320] sm:$0x1]
        %v3640 = vsel %vm368, 0, %v3639
        %3641 = vst [vmem:[#allocation3 + $0x320] sm:$0x1] %v3640
        %v3642 = vld [vmem:[#allocation3 + $0x328] sm:$0x1]
        %v3643 = vsel %vm368, 0, %v3642
        %3644 = vst [vmem:[#allocation3 + $0x328] sm:$0x1] %v3643
        %v3645 = vld [vmem:[#allocation3 + $0x330] sm:$0x1]
        %v3646 = vsel %vm368, 0, %v3645
        %3647 = vst [vmem:[#allocation3 + $0x330] sm:$0x1] %v3646
        %v3648 = vld [vmem:[#allocation3 + $0x338] sm:$0x1]
        %v3649 = vsel %vm368, 0, %v3648
        %3650 = vst [vmem:[#allocation3 + $0x338] sm:$0x1] %v3649
        %v3651 = vld [vmem:[#allocation3 + $0x340] sm:$0x1]
        %v3652 = vsel %vm368, 0, %v3651
        %3653 = vst [vmem:[#allocation3 + $0x340] sm:$0x1] %v3652
        %v3654 = vld [vmem:[#allocation3 + $0x348] sm:$0x1]
        %v3655 = vsel %vm368, 0, %v3654
        %3656 = vst [vmem:[#allocation3 + $0x348] sm:$0x1] %v3655
        %v3657 = vld [vmem:[#allocation3 + $0x350] sm:$0x1]
        %v3658 = vsel %vm368, 0, %v3657
        %3659 = vst [vmem:[#allocation3 + $0x350] sm:$0x1] %v3658
        %v3660 = vld [vmem:[#allocation3 + $0x358] sm:$0x1]
        %v3661 = vsel %vm368, 0, %v3660
        %3662 = vst [vmem:[#allocation3 + $0x358] sm:$0x1] %v3661
        %v3663 = vld [vmem:[#allocation3 + $0x360] sm:$0x1]
        %v3664 = vsel %vm368, 0, %v3663
        %3665 = vst [vmem:[#allocation3 + $0x360] sm:$0x1] %v3664
        %v3666 = vld [vmem:[#allocation3 + $0x368] sm:$0x1]
        %v3667 = vsel %vm368, 0, %v3666
        %3668 = vst [vmem:[#allocation3 + $0x368] sm:$0x1] %v3667
        %v3669 = vld [vmem:[#allocation3 + $0x370] sm:$0x1]
        %v3670 = vsel %vm368, 0, %v3669
        %3671 = vst [vmem:[#allocation3 + $0x370] sm:$0x1] %v3670
        %v3672 = vld [vmem:[#allocation3 + $0x378] sm:$0x1]
        %v3673 = vsel %vm368, 0, %v3672
        %3674 = vst [vmem:[#allocation3 + $0x378] sm:$0x1] %v3673
        %v3675 = vld [vmem:[#allocation3 + $0x380] sm:$0x1]
        %v3676 = vsel %vm368, 0, %v3675
        %3677 = vst [vmem:[#allocation3 + $0x380] sm:$0x1] %v3676
        %v3678 = vld [vmem:[#allocation3 + $0x388] sm:$0x1]
        %v3679 = vsel %vm368, 0, %v3678
        %3680 = vst [vmem:[#allocation3 + $0x388] sm:$0x1] %v3679
        %v3681 = vld [vmem:[#allocation3 + $0x390] sm:$0x1]
        %v3682 = vsel %vm368, 0, %v3681
        %3683 = vst [vmem:[#allocation3 + $0x390] sm:$0x1] %v3682
        %v3684 = vld [vmem:[#allocation3 + $0x398] sm:$0x1]
        %v3685 = vsel %vm368, 0, %v3684
        %3686 = vst [vmem:[#allocation3 + $0x398] sm:$0x1] %v3685
        %v3687 = vld [vmem:[#allocation3 + $0x3a0] sm:$0x1]
        %v3688 = vsel %vm368, 0, %v3687
        %3689 = vst [vmem:[#allocation3 + $0x3a0] sm:$0x1] %v3688
        %v3690 = vld [vmem:[#allocation3 + $0x3a8] sm:$0x1]
        %v3691 = vsel %vm368, 0, %v3690
        %3692 = vst [vmem:[#allocation3 + $0x3a8] sm:$0x1] %v3691
        %v3693 = vld [vmem:[#allocation3 + $0x3b0] sm:$0x1]
        %v3694 = vsel %vm368, 0, %v3693
        %3695 = vst [vmem:[#allocation3 + $0x3b0] sm:$0x1] %v3694
        %v3696 = vld [vmem:[#allocation3 + $0x3b8] sm:$0x1]
        %v3697 = vsel %vm368, 0, %v3696
        %3698 = vst [vmem:[#allocation3 + $0x3b8] sm:$0x1] %v3697
        %v3699 = vld [vmem:[#allocation3 + $0x3c0] sm:$0x1]
        %v3700 = vsel %vm368, 0, %v3699
        %3701 = vst [vmem:[#allocation3 + $0x3c0] sm:$0x1] %v3700
        %v3702 = vld [vmem:[#allocation3 + $0x3c8] sm:$0x1]
        %v3703 = vsel %vm368, 0, %v3702
        %3704 = vst [vmem:[#allocation3 + $0x3c8] sm:$0x1] %v3703
        %v3705 = vld [vmem:[#allocation3 + $0x3d0] sm:$0x1]
        %v3706 = vsel %vm368, 0, %v3705
        %3707 = vst [vmem:[#allocation3 + $0x3d0] sm:$0x1] %v3706
        %v3708 = vld [vmem:[#allocation3 + $0x3d8] sm:$0x1]
        %v3709 = vsel %vm368, 0, %v3708
        %3710 = vst [vmem:[#allocation3 + $0x3d8] sm:$0x1] %v3709
        %v3711 = vld [vmem:[#allocation3 + $0x3e0] sm:$0x1]
        %v3712 = vsel %vm368, 0, %v3711
        %3713 = vst [vmem:[#allocation3 + $0x3e0] sm:$0x1] %v3712
        %v3714 = vld [vmem:[#allocation3 + $0x3e8] sm:$0x1]
        %v3715 = vsel %vm368, 0, %v3714
        %3716 = vst [vmem:[#allocation3 + $0x3e8] sm:$0x1] %v3715
        %v3717 = vld [vmem:[#allocation3 + $0x3f0] sm:$0x1]
        %v3718 = vsel %vm368, 0, %v3717
        %3719 = vst [vmem:[#allocation3 + $0x3f0] sm:$0x1] %v3718
        %v3720 = vld [vmem:[#allocation3 + $0x3f8] sm:$0x1]
        %v3721 = vsel %vm368, 0, %v3720
        %3722 = vst [vmem:[#allocation3 + $0x3f8] sm:$0x1] %v3721
        %v3723 = vld [vmem:[#allocation3 + $0x400] sm:$0x1]
        %v3724 = vsel %vm368, 0, %v3723
        %3725 = vst [vmem:[#allocation3 + $0x400] sm:$0x1] %v3724
        %v3726 = vld [vmem:[#allocation3 + $0x408] sm:$0x1]
        %v3727 = vsel %vm368, 0, %v3726
        %3728 = vst [vmem:[#allocation3 + $0x408] sm:$0x1] %v3727
        %v3729 = vld [vmem:[#allocation3 + $0x410] sm:$0x1]
        %v3730 = vsel %vm368, 0, %v3729
        %3731 = vst [vmem:[#allocation3 + $0x410] sm:$0x1] %v3730
        %v3732 = vld [vmem:[#allocation3 + $0x418] sm:$0x1]
        %v3733 = vsel %vm368, 0, %v3732
        %3734 = vst [vmem:[#allocation3 + $0x418] sm:$0x1] %v3733
        %v3735 = vld [vmem:[#allocation3 + $0x420] sm:$0x1]
        %v3736 = vsel %vm368, 0, %v3735
        %3737 = vst [vmem:[#allocation3 + $0x420] sm:$0x1] %v3736
        %v3738 = vld [vmem:[#allocation3 + $0x428] sm:$0x1]
        %v3739 = vsel %vm368, 0, %v3738
        %3740 = vst [vmem:[#allocation3 + $0x428] sm:$0x1] %v3739
        %v3741 = vld [vmem:[#allocation3 + $0x430] sm:$0x1]
        %v3742 = vsel %vm368, 0, %v3741
        %3743 = vst [vmem:[#allocation3 + $0x430] sm:$0x1] %v3742
        %v3744 = vld [vmem:[#allocation3 + $0x438] sm:$0x1]
        %v3745 = vsel %vm368, 0, %v3744
        %3746 = vst [vmem:[#allocation3 + $0x438] sm:$0x1] %v3745
        %v3747 = vld [vmem:[#allocation3 + $0x440] sm:$0x1]
        %v3748 = vsel %vm368, 0, %v3747
        %3749 = vst [vmem:[#allocation3 + $0x440] sm:$0x1] %v3748
        %v3750 = vld [vmem:[#allocation3 + $0x448] sm:$0x1]
        %v3751 = vsel %vm368, 0, %v3750
        %3752 = vst [vmem:[#allocation3 + $0x448] sm:$0x1] %v3751
        %v3753 = vld [vmem:[#allocation3 + $0x450] sm:$0x1]
        %v3754 = vsel %vm368, 0, %v3753
        %3755 = vst [vmem:[#allocation3 + $0x450] sm:$0x1] %v3754
        %v3756 = vld [vmem:[#allocation3 + $0x458] sm:$0x1]
        %v3757 = vsel %vm368, 0, %v3756
        %3758 = vst [vmem:[#allocation3 + $0x458] sm:$0x1] %v3757
        %v3759 = vld [vmem:[#allocation3 + $0x460] sm:$0x1]
        %v3760 = vsel %vm368, 0, %v3759
        %3761 = vst [vmem:[#allocation3 + $0x460] sm:$0x1] %v3760
        %v3762 = vld [vmem:[#allocation3 + $0x468] sm:$0x1]
        %v3763 = vsel %vm368, 0, %v3762
        %3764 = vst [vmem:[#allocation3 + $0x468] sm:$0x1] %v3763
        %v3765 = vld [vmem:[#allocation3 + $0x470] sm:$0x1]
        %v3766 = vsel %vm368, 0, %v3765
        %3767 = vst [vmem:[#allocation3 + $0x470] sm:$0x1] %v3766
        %v3768 = vld [vmem:[#allocation3 + $0x478] sm:$0x1]
        %v3769 = vsel %vm368, 0, %v3768
        %3770 = vst [vmem:[#allocation3 + $0x478] sm:$0x1] %v3769
        %v3771 = vld [vmem:[#allocation3] sm:$0x80]
        %v3772 = vsel %vm803, 0, %v3771
        %3773 = vst [vmem:[#allocation3] sm:$0x80] %v3772
        %v3774 = vld [vmem:[#allocation3 + $0x8] sm:$0x80]
        %v3775 = vsel %vm803, 0, %v3774
        %3776 = vst [vmem:[#allocation3 + $0x8] sm:$0x80] %v3775
        %v3777 = vld [vmem:[#allocation3 + $0x10] sm:$0x80]
        %v3778 = vsel %vm803, 0, %v3777
        %3779 = vst [vmem:[#allocation3 + $0x10] sm:$0x80] %v3778
        %v3780 = vld [vmem:[#allocation3 + $0x18] sm:$0x80]
        %v3781 = vsel %vm803, 0, %v3780
        %3782 = vst [vmem:[#allocation3 + $0x18] sm:$0x80] %v3781
        %v3783 = vld [vmem:[#allocation3 + $0x20] sm:$0x80]
        %v3784 = vsel %vm803, 0, %v3783
        %3785 = vst [vmem:[#allocation3 + $0x20] sm:$0x80] %v3784
        %v3786 = vld [vmem:[#allocation3 + $0x28] sm:$0x80]
        %v3787 = vsel %vm803, 0, %v3786
        %3788 = vst [vmem:[#allocation3 + $0x28] sm:$0x80] %v3787
        %v3789 = vld [vmem:[#allocation3 + $0x30] sm:$0x80]
        %v3790 = vsel %vm803, 0, %v3789
        %3791 = vst [vmem:[#allocation3 + $0x30] sm:$0x80] %v3790
        %v3792 = vld [vmem:[#allocation3 + $0x38] sm:$0x80]
        %v3793 = vsel %vm803, 0, %v3792
        %3794 = vst [vmem:[#allocation3 + $0x38] sm:$0x80] %v3793
        %v3795 = vld [vmem:[#allocation3 + $0x40] sm:$0x80]
        %v3796 = vsel %vm803, 0, %v3795
        %3797 = vst [vmem:[#allocation3 + $0x40] sm:$0x80] %v3796
        %v3798 = vld [vmem:[#allocation3 + $0x48] sm:$0x80]
        %v3799 = vsel %vm803, 0, %v3798
        %3800 = vst [vmem:[#allocation3 + $0x48] sm:$0x80] %v3799
        %v3801 = vld [vmem:[#allocation3 + $0x50] sm:$0x80]
        %v3802 = vsel %vm803, 0, %v3801
        %3803 = vst [vmem:[#allocation3 + $0x50] sm:$0x80] %v3802
        %v3804 = vld [vmem:[#allocation3 + $0x58] sm:$0x80]
        %v3805 = vsel %vm803, 0, %v3804
        %3806 = vst [vmem:[#allocation3 + $0x58] sm:$0x80] %v3805
        %v3807 = vld [vmem:[#allocation3 + $0x60] sm:$0x80]
        %v3808 = vsel %vm803, 0, %v3807
        %3809 = vst [vmem:[#allocation3 + $0x60] sm:$0x80] %v3808
        %v3810 = vld [vmem:[#allocation3 + $0x68] sm:$0x80]
        %v3811 = vsel %vm803, 0, %v3810
        %3812 = vst [vmem:[#allocation3 + $0x68] sm:$0x80] %v3811
        %v3813 = vld [vmem:[#allocation3 + $0x70] sm:$0x80]
        %v3814 = vsel %vm803, 0, %v3813
        %3815 = vst [vmem:[#allocation3 + $0x70] sm:$0x80] %v3814
        %v3816 = vld [vmem:[#allocation3 + $0x78] sm:$0x80]
        %v3817 = vsel %vm803, 0, %v3816
        %3818 = vst [vmem:[#allocation3 + $0x78] sm:$0x80] %v3817
        %v3819 = vld [vmem:[#allocation3 + $0x80] sm:$0x80]
        %v3820 = vsel %vm803, 0, %v3819
        %3821 = vst [vmem:[#allocation3 + $0x80] sm:$0x80] %v3820
        %v3822 = vld [vmem:[#allocation3 + $0x88] sm:$0x80]
        %v3823 = vsel %vm803, 0, %v3822
        %3824 = vst [vmem:[#allocation3 + $0x88] sm:$0x80] %v3823
        %v3825 = vld [vmem:[#allocation3 + $0x90] sm:$0x80]
        %v3826 = vsel %vm803, 0, %v3825
        %3827 = vst [vmem:[#allocation3 + $0x90] sm:$0x80] %v3826
        %v3828 = vld [vmem:[#allocation3 + $0x98] sm:$0x80]
        %v3829 = vsel %vm803, 0, %v3828
        %3830 = vst [vmem:[#allocation3 + $0x98] sm:$0x80] %v3829
        %v3831 = vld [vmem:[#allocation3 + $0xa0] sm:$0x80]
        %v3832 = vsel %vm803, 0, %v3831
        %3833 = vst [vmem:[#allocation3 + $0xa0] sm:$0x80] %v3832
        %v3834 = vld [vmem:[#allocation3 + $0xa8] sm:$0x80]
        %v3835 = vsel %vm803, 0, %v3834
        %3836 = vst [vmem:[#allocation3 + $0xa8] sm:$0x80] %v3835
        %v3837 = vld [vmem:[#allocation3 + $0xb0] sm:$0x80]
        %v3838 = vsel %vm803, 0, %v3837
        %3839 = vst [vmem:[#allocation3 + $0xb0] sm:$0x80] %v3838
        %v3840 = vld [vmem:[#allocation3 + $0xb8] sm:$0x80]
        %v3841 = vsel %vm803, 0, %v3840
        %3842 = vst [vmem:[#allocation3 + $0xb8] sm:$0x80] %v3841
        %v3843 = vld [vmem:[#allocation3 + $0xc0] sm:$0x80]
        %v3844 = vsel %vm803, 0, %v3843
        %3845 = vst [vmem:[#allocation3 + $0xc0] sm:$0x80] %v3844
        %v3846 = vld [vmem:[#allocation3 + $0xc8] sm:$0x80]
        %v3847 = vsel %vm803, 0, %v3846
        %3848 = vst [vmem:[#allocation3 + $0xc8] sm:$0x80] %v3847
        %v3849 = vld [vmem:[#allocation3 + $0xd0] sm:$0x80]
        %v3850 = vsel %vm803, 0, %v3849
        %3851 = vst [vmem:[#allocation3 + $0xd0] sm:$0x80] %v3850
        %v3852 = vld [vmem:[#allocation3 + $0xd8] sm:$0x80]
        %v3853 = vsel %vm803, 0, %v3852
        %3854 = vst [vmem:[#allocation3 + $0xd8] sm:$0x80] %v3853
        %v3855 = vld [vmem:[#allocation3 + $0xe0] sm:$0x80]
        %v3856 = vsel %vm803, 0, %v3855
        %3857 = vst [vmem:[#allocation3 + $0xe0] sm:$0x80] %v3856
        %v3858 = vld [vmem:[#allocation3 + $0xe8] sm:$0x80]
        %v3859 = vsel %vm803, 0, %v3858
        %3860 = vst [vmem:[#allocation3 + $0xe8] sm:$0x80] %v3859
        %v3861 = vld [vmem:[#allocation3 + $0xf0] sm:$0x80]
        %v3862 = vsel %vm803, 0, %v3861
        %3863 = vst [vmem:[#allocation3 + $0xf0] sm:$0x80] %v3862
        %v3864 = vld [vmem:[#allocation3 + $0xf8] sm:$0x80]
        %v3865 = vsel %vm803, 0, %v3864
        %3866 = vst [vmem:[#allocation3 + $0xf8] sm:$0x80] %v3865
        %v3867 = vld [vmem:[#allocation3 + $0x100] sm:$0x80]
        %v3868 = vsel %vm803, 0, %v3867
        %3869 = vst [vmem:[#allocation3 + $0x100] sm:$0x80] %v3868
        %v3870 = vld [vmem:[#allocation3 + $0x108] sm:$0x80]
        %v3871 = vsel %vm803, 0, %v3870
        %3872 = vst [vmem:[#allocation3 + $0x108] sm:$0x80] %v3871
        %v3873 = vld [vmem:[#allocation3 + $0x110] sm:$0x80]
        %v3874 = vsel %vm803, 0, %v3873
        %3875 = vst [vmem:[#allocation3 + $0x110] sm:$0x80] %v3874
        %v3876 = vld [vmem:[#allocation3 + $0x118] sm:$0x80]
        %v3877 = vsel %vm803, 0, %v3876
        %3878 = vst [vmem:[#allocation3 + $0x118] sm:$0x80] %v3877
        %v3879 = vld [vmem:[#allocation3 + $0x120] sm:$0x80]
        %v3880 = vsel %vm803, 0, %v3879
        %3881 = vst [vmem:[#allocation3 + $0x120] sm:$0x80] %v3880
        %v3882 = vld [vmem:[#allocation3 + $0x128] sm:$0x80]
        %v3883 = vsel %vm803, 0, %v3882
        %3884 = vst [vmem:[#allocation3 + $0x128] sm:$0x80] %v3883
        %v3885 = vld [vmem:[#allocation3 + $0x130] sm:$0x80]
        %v3886 = vsel %vm803, 0, %v3885
        %3887 = vst [vmem:[#allocation3 + $0x130] sm:$0x80] %v3886
        %v3888 = vld [vmem:[#allocation3 + $0x138] sm:$0x80]
        %v3889 = vsel %vm803, 0, %v3888
        %3890 = vst [vmem:[#allocation3 + $0x138] sm:$0x80] %v3889
        %v3891 = vld [vmem:[#allocation3 + $0x140] sm:$0x80]
        %v3892 = vsel %vm803, 0, %v3891
        %3893 = vst [vmem:[#allocation3 + $0x140] sm:$0x80] %v3892
        %v3894 = vld [vmem:[#allocation3 + $0x148] sm:$0x80]
        %v3895 = vsel %vm803, 0, %v3894
        %3896 = vst [vmem:[#allocation3 + $0x148] sm:$0x80] %v3895
        %v3897 = vld [vmem:[#allocation3 + $0x150] sm:$0x80]
        %v3898 = vsel %vm803, 0, %v3897
        %3899 = vst [vmem:[#allocation3 + $0x150] sm:$0x80] %v3898
        %v3900 = vld [vmem:[#allocation3 + $0x158] sm:$0x80]
        %v3901 = vsel %vm803, 0, %v3900
        %3902 = vst [vmem:[#allocation3 + $0x158] sm:$0x80] %v3901
        %v3903 = vld [vmem:[#allocation3 + $0x160] sm:$0x80]
        %v3904 = vsel %vm803, 0, %v3903
        %3905 = vst [vmem:[#allocation3 + $0x160] sm:$0x80] %v3904
        %v3906 = vld [vmem:[#allocation3 + $0x168] sm:$0x80]
        %v3907 = vsel %vm803, 0, %v3906
        %3908 = vst [vmem:[#allocation3 + $0x168] sm:$0x80] %v3907
        %v3909 = vld [vmem:[#allocation3 + $0x170] sm:$0x80]
        %v3910 = vsel %vm803, 0, %v3909
        %3911 = vst [vmem:[#allocation3 + $0x170] sm:$0x80] %v3910
        %v3912 = vld [vmem:[#allocation3 + $0x178] sm:$0x80]
        %v3913 = vsel %vm803, 0, %v3912
        %3914 = vst [vmem:[#allocation3 + $0x178] sm:$0x80] %v3913
        %v3915 = vld [vmem:[#allocation3 + $0x180] sm:$0x80]
        %v3916 = vsel %vm803, 0, %v3915
        %3917 = vst [vmem:[#allocation3 + $0x180] sm:$0x80] %v3916
        %v3918 = vld [vmem:[#allocation3 + $0x188] sm:$0x80]
        %v3919 = vsel %vm803, 0, %v3918
        %3920 = vst [vmem:[#allocation3 + $0x188] sm:$0x80] %v3919
        %v3921 = vld [vmem:[#allocation3 + $0x190] sm:$0x80]
        %v3922 = vsel %vm803, 0, %v3921
        %3923 = vst [vmem:[#allocation3 + $0x190] sm:$0x80] %v3922
        %v3924 = vld [vmem:[#allocation3 + $0x198] sm:$0x80]
        %v3925 = vsel %vm803, 0, %v3924
        %3926 = vst [vmem:[#allocation3 + $0x198] sm:$0x80] %v3925
        %v3927 = vld [vmem:[#allocation3 + $0x1a0] sm:$0x80]
        %v3928 = vsel %vm803, 0, %v3927
        %3929 = vst [vmem:[#allocation3 + $0x1a0] sm:$0x80] %v3928
        %v3930 = vld [vmem:[#allocation3 + $0x1a8] sm:$0x80]
        %v3931 = vsel %vm803, 0, %v3930
        %3932 = vst [vmem:[#allocation3 + $0x1a8] sm:$0x80] %v3931
        %v3933 = vld [vmem:[#allocation3 + $0x1b0] sm:$0x80]
        %v3934 = vsel %vm803, 0, %v3933
        %3935 = vst [vmem:[#allocation3 + $0x1b0] sm:$0x80] %v3934
        %v3936 = vld [vmem:[#allocation3 + $0x1b8] sm:$0x80]
        %v3937 = vsel %vm803, 0, %v3936
        %3938 = vst [vmem:[#allocation3 + $0x1b8] sm:$0x80] %v3937
        %v3939 = vld [vmem:[#allocation3 + $0x1c0] sm:$0x80]
        %v3940 = vsel %vm803, 0, %v3939
        %3941 = vst [vmem:[#allocation3 + $0x1c0] sm:$0x80] %v3940
        %v3942 = vld [vmem:[#allocation3 + $0x1c8] sm:$0x80]
        %v3943 = vsel %vm803, 0, %v3942
        %3944 = vst [vmem:[#allocation3 + $0x1c8] sm:$0x80] %v3943
        %v3945 = vld [vmem:[#allocation3 + $0x1d0] sm:$0x80]
        %v3946 = vsel %vm803, 0, %v3945
        %3947 = vst [vmem:[#allocation3 + $0x1d0] sm:$0x80] %v3946
        %v3948 = vld [vmem:[#allocation3 + $0x1d8] sm:$0x80]
        %v3949 = vsel %vm803, 0, %v3948
        %3950 = vst [vmem:[#allocation3 + $0x1d8] sm:$0x80] %v3949
        %v3951 = vld [vmem:[#allocation3 + $0x1e0] sm:$0x80]
        %v3952 = vsel %vm803, 0, %v3951
        %3953 = vst [vmem:[#allocation3 + $0x1e0] sm:$0x80] %v3952
        %v3954 = vld [vmem:[#allocation3 + $0x1e8] sm:$0x80]
        %v3955 = vsel %vm803, 0, %v3954
        %3956 = vst [vmem:[#allocation3 + $0x1e8] sm:$0x80] %v3955
        %v3957 = vld [vmem:[#allocation3 + $0x1f0] sm:$0x80]
        %v3958 = vsel %vm803, 0, %v3957
        %3959 = vst [vmem:[#allocation3 + $0x1f0] sm:$0x80] %v3958
        %v3960 = vld [vmem:[#allocation3 + $0x1f8] sm:$0x80]
        %v3961 = vsel %vm803, 0, %v3960
        %3962 = vst [vmem:[#allocation3 + $0x1f8] sm:$0x80] %v3961
        %v3963 = vld [vmem:[#allocation3 + $0x200] sm:$0x80]
        %v3964 = vsel %vm803, 0, %v3963
        %3965 = vst [vmem:[#allocation3 + $0x200] sm:$0x80] %v3964
        %v3966 = vld [vmem:[#allocation3 + $0x208] sm:$0x80]
        %v3967 = vsel %vm803, 0, %v3966
        %3968 = vst [vmem:[#allocation3 + $0x208] sm:$0x80] %v3967
        %v3969 = vld [vmem:[#allocation3 + $0x210] sm:$0x80]
        %v3970 = vsel %vm803, 0, %v3969
        %3971 = vst [vmem:[#allocation3 + $0x210] sm:$0x80] %v3970
        %v3972 = vld [vmem:[#allocation3 + $0x218] sm:$0x80]
        %v3973 = vsel %vm803, 0, %v3972
        %3974 = vst [vmem:[#allocation3 + $0x218] sm:$0x80] %v3973
        %v3975 = vld [vmem:[#allocation3 + $0x220] sm:$0x80]
        %v3976 = vsel %vm803, 0, %v3975
        %3977 = vst [vmem:[#allocation3 + $0x220] sm:$0x80] %v3976
        %v3978 = vld [vmem:[#allocation3 + $0x228] sm:$0x80]
        %v3979 = vsel %vm803, 0, %v3978
        %3980 = vst [vmem:[#allocation3 + $0x228] sm:$0x80] %v3979
        %v3981 = vld [vmem:[#allocation3 + $0x230] sm:$0x80]
        %v3982 = vsel %vm803, 0, %v3981
        %3983 = vst [vmem:[#allocation3 + $0x230] sm:$0x80] %v3982
        %v3984 = vld [vmem:[#allocation3 + $0x238] sm:$0x80]
        %v3985 = vsel %vm803, 0, %v3984
        %3986 = vst [vmem:[#allocation3 + $0x238] sm:$0x80] %v3985
        %v3987 = vld [vmem:[#allocation3 + $0x240] sm:$0x80]
        %v3988 = vsel %vm803, 0, %v3987
        %3989 = vst [vmem:[#allocation3 + $0x240] sm:$0x80] %v3988
        %v3990 = vld [vmem:[#allocation3 + $0x248] sm:$0x80]
        %v3991 = vsel %vm803, 0, %v3990
        %3992 = vst [vmem:[#allocation3 + $0x248] sm:$0x80] %v3991
        %v3993 = vld [vmem:[#allocation3 + $0x250] sm:$0x80]
        %v3994 = vsel %vm803, 0, %v3993
        %3995 = vst [vmem:[#allocation3 + $0x250] sm:$0x80] %v3994
        %v3996 = vld [vmem:[#allocation3 + $0x258] sm:$0x80]
        %v3997 = vsel %vm803, 0, %v3996
        %3998 = vst [vmem:[#allocation3 + $0x258] sm:$0x80] %v3997
        %v3999 = vld [vmem:[#allocation3 + $0x260] sm:$0x80]
        %v4000 = vsel %vm803, 0, %v3999
        %4001 = vst [vmem:[#allocation3 + $0x260] sm:$0x80] %v4000
        %v4002 = vld [vmem:[#allocation3 + $0x268] sm:$0x80]
        %v4003 = vsel %vm803, 0, %v4002
        %4004 = vst [vmem:[#allocation3 + $0x268] sm:$0x80] %v4003
        %v4005 = vld [vmem:[#allocation3 + $0x270] sm:$0x80]
        %v4006 = vsel %vm803, 0, %v4005
        %4007 = vst [vmem:[#allocation3 + $0x270] sm:$0x80] %v4006
        %v4008 = vld [vmem:[#allocation3 + $0x278] sm:$0x80]
        %v4009 = vsel %vm803, 0, %v4008
        %4010 = vst [vmem:[#allocation3 + $0x278] sm:$0x80] %v4009
        %v4011 = vld [vmem:[#allocation3 + $0x280] sm:$0x80]
        %v4012 = vsel %vm803, 0, %v4011
        %4013 = vst [vmem:[#allocation3 + $0x280] sm:$0x80] %v4012
        %v4014 = vld [vmem:[#allocation3 + $0x288] sm:$0x80]
        %v4015 = vsel %vm803, 0, %v4014
        %4016 = vst [vmem:[#allocation3 + $0x288] sm:$0x80] %v4015
        %v4017 = vld [vmem:[#allocation3 + $0x290] sm:$0x80]
        %v4018 = vsel %vm803, 0, %v4017
        %4019 = vst [vmem:[#allocation3 + $0x290] sm:$0x80] %v4018
        %v4020 = vld [vmem:[#allocation3 + $0x298] sm:$0x80]
        %v4021 = vsel %vm803, 0, %v4020
        %4022 = vst [vmem:[#allocation3 + $0x298] sm:$0x80] %v4021
        %v4023 = vld [vmem:[#allocation3 + $0x2a0] sm:$0x80]
        %v4024 = vsel %vm803, 0, %v4023
        %4025 = vst [vmem:[#allocation3 + $0x2a0] sm:$0x80] %v4024
        %v4026 = vld [vmem:[#allocation3 + $0x2a8] sm:$0x80]
        %v4027 = vsel %vm803, 0, %v4026
        %4028 = vst [vmem:[#allocation3 + $0x2a8] sm:$0x80] %v4027
        %v4029 = vld [vmem:[#allocation3 + $0x2b0] sm:$0x80]
        %v4030 = vsel %vm803, 0, %v4029
        %4031 = vst [vmem:[#allocation3 + $0x2b0] sm:$0x80] %v4030
        %v4032 = vld [vmem:[#allocation3 + $0x2b8] sm:$0x80]
        %v4033 = vsel %vm803, 0, %v4032
        %4034 = vst [vmem:[#allocation3 + $0x2b8] sm:$0x80] %v4033
        %v4035 = vld [vmem:[#allocation3 + $0x2c0] sm:$0x80]
        %v4036 = vsel %vm803, 0, %v4035
        %4037 = vst [vmem:[#allocation3 + $0x2c0] sm:$0x80] %v4036
        %v4038 = vld [vmem:[#allocation3 + $0x2c8] sm:$0x80]
        %v4039 = vsel %vm803, 0, %v4038
        %4040 = vst [vmem:[#allocation3 + $0x2c8] sm:$0x80] %v4039
        %v4041 = vld [vmem:[#allocation3 + $0x2d0] sm:$0x80]
        %v4042 = vsel %vm803, 0, %v4041
        %4043 = vst [vmem:[#allocation3 + $0x2d0] sm:$0x80] %v4042
        %v4044 = vld [vmem:[#allocation3 + $0x2d8] sm:$0x80]
        %v4045 = vsel %vm803, 0, %v4044
        %4046 = vst [vmem:[#allocation3 + $0x2d8] sm:$0x80] %v4045
        %v4047 = vld [vmem:[#allocation3 + $0x2e0] sm:$0x80]
        %v4048 = vsel %vm803, 0, %v4047
        %4049 = vst [vmem:[#allocation3 + $0x2e0] sm:$0x80] %v4048
        %v4050 = vld [vmem:[#allocation3 + $0x2e8] sm:$0x80]
        %v4051 = vsel %vm803, 0, %v4050
        %4052 = vst [vmem:[#allocation3 + $0x2e8] sm:$0x80] %v4051
        %v4053 = vld [vmem:[#allocation3 + $0x2f0] sm:$0x80]
        %v4054 = vsel %vm803, 0, %v4053
        %4055 = vst [vmem:[#allocation3 + $0x2f0] sm:$0x80] %v4054
        %v4056 = vld [vmem:[#allocation3 + $0x2f8] sm:$0x80]
        %v4057 = vsel %vm803, 0, %v4056
        %4058 = vst [vmem:[#allocation3 + $0x2f8] sm:$0x80] %v4057
        %v4059 = vld [vmem:[#allocation3 + $0x300] sm:$0x80]
        %v4060 = vsel %vm803, 0, %v4059
        %4061 = vst [vmem:[#allocation3 + $0x300] sm:$0x80] %v4060
        %v4062 = vld [vmem:[#allocation3 + $0x308] sm:$0x80]
        %v4063 = vsel %vm803, 0, %v4062
        %4064 = vst [vmem:[#allocation3 + $0x308] sm:$0x80] %v4063
        %v4065 = vld [vmem:[#allocation3 + $0x310] sm:$0x80]
        %v4066 = vsel %vm803, 0, %v4065
        %4067 = vst [vmem:[#allocation3 + $0x310] sm:$0x80] %v4066
        %v4068 = vld [vmem:[#allocation3 + $0x318] sm:$0x80]
        %v4069 = vsel %vm803, 0, %v4068
        %4070 = vst [vmem:[#allocation3 + $0x318] sm:$0x80] %v4069
        %v4071 = vld [vmem:[#allocation3 + $0x320] sm:$0x80]
        %v4072 = vsel %vm803, 0, %v4071
        %4073 = vst [vmem:[#allocation3 + $0x320] sm:$0x80] %v4072
        %v4074 = vld [vmem:[#allocation3 + $0x328] sm:$0x80]
        %v4075 = vsel %vm803, 0, %v4074
        %4076 = vst [vmem:[#allocation3 + $0x328] sm:$0x80] %v4075
        %v4077 = vld [vmem:[#allocation3 + $0x330] sm:$0x80]
        %v4078 = vsel %vm803, 0, %v4077
        %4079 = vst [vmem:[#allocation3 + $0x330] sm:$0x80] %v4078
        %v4080 = vld [vmem:[#allocation3 + $0x338] sm:$0x80]
        %v4081 = vsel %vm803, 0, %v4080
        %4082 = vst [vmem:[#allocation3 + $0x338] sm:$0x80] %v4081
        %v4083 = vld [vmem:[#allocation3 + $0x340] sm:$0x80]
        %v4084 = vsel %vm803, 0, %v4083
        %4085 = vst [vmem:[#allocation3 + $0x340] sm:$0x80] %v4084
        %v4086 = vld [vmem:[#allocation3 + $0x348] sm:$0x80]
        %v4087 = vsel %vm803, 0, %v4086
        %4088 = vst [vmem:[#allocation3 + $0x348] sm:$0x80] %v4087
        %v4089 = vld [vmem:[#allocation3 + $0x350] sm:$0x80]
        %v4090 = vsel %vm803, 0, %v4089
        %4091 = vst [vmem:[#allocation3 + $0x350] sm:$0x80] %v4090
        %v4092 = vld [vmem:[#allocation3 + $0x358] sm:$0x80]
        %v4093 = vsel %vm803, 0, %v4092
        %4094 = vst [vmem:[#allocation3 + $0x358] sm:$0x80] %v4093
        %v4095 = vld [vmem:[#allocation3 + $0x360] sm:$0x80]
        %v4096 = vsel %vm803, 0, %v4095
        %4097 = vst [vmem:[#allocation3 + $0x360] sm:$0x80] %v4096
        %v4098 = vld [vmem:[#allocation3 + $0x368] sm:$0x80]
        %v4099 = vsel %vm803, 0, %v4098
        %4100 = vst [vmem:[#allocation3 + $0x368] sm:$0x80] %v4099
        %v4101 = vld [vmem:[#allocation3 + $0x370] sm:$0x80]
        %v4102 = vsel %vm803, 0, %v4101
        %4103 = vst [vmem:[#allocation3 + $0x370] sm:$0x80] %v4102
        %v4104 = vld [vmem:[#allocation3 + $0x378] sm:$0x80]
        %v4105 = vsel %vm803, 0, %v4104
        %4106 = vst [vmem:[#allocation3 + $0x378] sm:$0x80] %v4105
        %v4107 = vld [vmem:[#allocation3 + $0x380] sm:$0x80]
        %v4108 = vsel %vm803, 0, %v4107
        %4109 = vst [vmem:[#allocation3 + $0x380] sm:$0x80] %v4108
        %v4110 = vld [vmem:[#allocation3 + $0x388] sm:$0x80]
        %v4111 = vsel %vm803, 0, %v4110
        %4112 = vst [vmem:[#allocation3 + $0x388] sm:$0x80] %v4111
        %v4113 = vld [vmem:[#allocation3 + $0x390] sm:$0x80]
        %v4114 = vsel %vm803, 0, %v4113
        %4115 = vst [vmem:[#allocation3 + $0x390] sm:$0x80] %v4114
        %v4116 = vld [vmem:[#allocation3 + $0x398] sm:$0x80]
        %v4117 = vsel %vm803, 0, %v4116
        %4118 = vst [vmem:[#allocation3 + $0x398] sm:$0x80] %v4117
        %v4119 = vld [vmem:[#allocation3 + $0x3a0] sm:$0x80]
        %v4120 = vsel %vm803, 0, %v4119
        %4121 = vst [vmem:[#allocation3 + $0x3a0] sm:$0x80] %v4120
        %v4122 = vld [vmem:[#allocation3 + $0x3a8] sm:$0x80]
        %v4123 = vsel %vm803, 0, %v4122
        %4124 = vst [vmem:[#allocation3 + $0x3a8] sm:$0x80] %v4123
        %v4125 = vld [vmem:[#allocation3 + $0x3b0] sm:$0x80]
        %v4126 = vsel %vm803, 0, %v4125
        %4127 = vst [vmem:[#allocation3 + $0x3b0] sm:$0x80] %v4126
        %v4128 = vld [vmem:[#allocation3 + $0x3b8] sm:$0x80]
        %v4129 = vsel %vm803, 0, %v4128
        %4130 = vst [vmem:[#allocation3 + $0x3b8] sm:$0x80] %v4129
        %v4131 = vld [vmem:[#allocation3 + $0x3c0] sm:$0x80]
        %v4132 = vsel %vm803, 0, %v4131
        %4133 = vst [vmem:[#allocation3 + $0x3c0] sm:$0x80] %v4132
        %v4134 = vld [vmem:[#allocation3 + $0x3c8] sm:$0x80]
        %v4135 = vsel %vm803, 0, %v4134
        %4136 = vst [vmem:[#allocation3 + $0x3c8] sm:$0x80] %v4135
        %v4137 = vld [vmem:[#allocation3 + $0x3d0] sm:$0x80]
        %v4138 = vsel %vm803, 0, %v4137
        %4139 = vst [vmem:[#allocation3 + $0x3d0] sm:$0x80] %v4138
        %v4140 = vld [vmem:[#allocation3 + $0x3d8] sm:$0x80]
        %v4141 = vsel %vm803, 0, %v4140
        %4142 = vst [vmem:[#allocation3 + $0x3d8] sm:$0x80] %v4141
        %v4143 = vld [vmem:[#allocation3 + $0x3e0] sm:$0x80]
        %v4144 = vsel %vm803, 0, %v4143
        %4145 = vst [vmem:[#allocation3 + $0x3e0] sm:$0x80] %v4144
        %v4146 = vld [vmem:[#allocation3 + $0x3e8] sm:$0x80]
        %v4147 = vsel %vm803, 0, %v4146
        %4148 = vst [vmem:[#allocation3 + $0x3e8] sm:$0x80] %v4147
        %v4149 = vld [vmem:[#allocation3 + $0x3f0] sm:$0x80]
        %v4150 = vsel %vm803, 0, %v4149
        %4151 = vst [vmem:[#allocation3 + $0x3f0] sm:$0x80] %v4150
        %v4152 = vld [vmem:[#allocation3 + $0x3f8] sm:$0x80]
        %v4153 = vsel %vm803, 0, %v4152
        %4154 = vst [vmem:[#allocation3 + $0x3f8] sm:$0x80] %v4153
        %v4155 = vld [vmem:[#allocation3 + $0x400] sm:$0x80]
        %v4156 = vsel %vm803, 0, %v4155
        %4157 = vst [vmem:[#allocation3 + $0x400] sm:$0x80] %v4156
        %v4158 = vld [vmem:[#allocation3 + $0x408] sm:$0x80]
        %v4159 = vsel %vm803, 0, %v4158
        %4160 = vst [vmem:[#allocation3 + $0x408] sm:$0x80] %v4159
        %v4161 = vld [vmem:[#allocation3 + $0x410] sm:$0x80]
        %v4162 = vsel %vm803, 0, %v4161
        %4163 = vst [vmem:[#allocation3 + $0x410] sm:$0x80] %v4162
        %v4164 = vld [vmem:[#allocation3 + $0x418] sm:$0x80]
        %v4165 = vsel %vm803, 0, %v4164
        %4166 = vst [vmem:[#allocation3 + $0x418] sm:$0x80] %v4165
        %v4167 = vld [vmem:[#allocation3 + $0x420] sm:$0x80]
        %v4168 = vsel %vm803, 0, %v4167
        %4169 = vst [vmem:[#allocation3 + $0x420] sm:$0x80] %v4168
        %v4170 = vld [vmem:[#allocation3 + $0x428] sm:$0x80]
        %v4171 = vsel %vm803, 0, %v4170
        %4172 = vst [vmem:[#allocation3 + $0x428] sm:$0x80] %v4171
        %v4173 = vld [vmem:[#allocation3 + $0x430] sm:$0x80]
        %v4174 = vsel %vm803, 0, %v4173
        %4175 = vst [vmem:[#allocation3 + $0x430] sm:$0x80] %v4174
        %v4176 = vld [vmem:[#allocation3 + $0x438] sm:$0x80]
        %v4177 = vsel %vm803, 0, %v4176
        %4178 = vst [vmem:[#allocation3 + $0x438] sm:$0x80] %v4177
        %v4179 = vld [vmem:[#allocation3 + $0x440] sm:$0x80]
        %v4180 = vsel %vm803, 0, %v4179
        %4181 = vst [vmem:[#allocation3 + $0x440] sm:$0x80] %v4180
        %v4182 = vld [vmem:[#allocation3 + $0x448] sm:$0x80]
        %v4183 = vsel %vm803, 0, %v4182
        %4184 = vst [vmem:[#allocation3 + $0x448] sm:$0x80] %v4183
        %v4185 = vld [vmem:[#allocation3 + $0x450] sm:$0x80]
        %v4186 = vsel %vm803, 0, %v4185
        %4187 = vst [vmem:[#allocation3 + $0x450] sm:$0x80] %v4186
        %v4188 = vld [vmem:[#allocation3 + $0x458] sm:$0x80]
        %v4189 = vsel %vm803, 0, %v4188
        %4190 = vst [vmem:[#allocation3 + $0x458] sm:$0x80] %v4189
        %v4191 = vld [vmem:[#allocation3 + $0x460] sm:$0x80]
        %v4192 = vsel %vm803, 0, %v4191
        %4193 = vst [vmem:[#allocation3 + $0x460] sm:$0x80] %v4192
        %v4194 = vld [vmem:[#allocation3 + $0x468] sm:$0x80]
        %v4195 = vsel %vm803, 0, %v4194
        %4196 = vst [vmem:[#allocation3 + $0x468] sm:$0x80] %v4195
        %v4197 = vld [vmem:[#allocation3 + $0x470] sm:$0x80]
        %v4198 = vsel %vm803, 0, %v4197
        %4199 = vst [vmem:[#allocation3 + $0x470] sm:$0x80] %v4198
        %v4200 = vld [vmem:[#allocation3 + $0x478] sm:$0x80]
        %v4201 = vsel %vm803, 0, %v4200
        %4202 = vst [vmem:[#allocation3 + $0x478] sm:$0x80] %v4201
        %v4203 = vpack.c.bf16 %v3289, %v3288
        %v4204 = vpack.c.bf16 %v3291, %v3290
        %v4205 = vpack.c.bf16 %v3293, %v3292
        %v4206 = vpack.c.bf16 %v3295, %v3294
        %v4207 = vpack.c.bf16 %v3297, %v3296
        %v4208 = vpack.c.bf16 %v3299, %v3298
        %v4209 = vpack.c.bf16 %v3301, %v3300
        %v4210 = vpack.c.bf16 %v3303, %v3302
        %v4211 = vpack.c.bf16 %v3305, %v3304
        %v4212 = vpack.c.bf16 %v3307, %v3306
        %v4213 = vpack.c.bf16 %v3309, %v3308
        %v4214 = vpack.c.bf16 %v3311, %v3310
        %v4215 = vpack.c.bf16 %v3313, %v3312
        %v4216 = vpack.c.bf16 %v3315, %v3314
        %v4217 = vpack.c.bf16 %v3317, %v3316
        %v4218 = vpack.c.bf16 %v3319, %v3318
        %v4220 = vshrl.u32 %v4203, 16
        %v4222 = vrot.slane %v4220, 7
        %v4223 = vshll.u32 %v4203, 16
        %v4225 = vor.u32 %v4222, %v4223
        %v4227 = vshrl.u32 %v4204, 16
        %v4229 = vrot.slane %v4227, 7
        %v4230 = vshll.u32 %v4204, 16
        %v4232 = vor.u32 %v4229, %v4230
        %v4234 = vshrl.u32 %v4205, 16
        %v4236 = vrot.slane %v4234, 7
        %v4237 = vshll.u32 %v4205, 16
        %v4239 = vor.u32 %v4236, %v4237
        %v4241 = vshrl.u32 %v4206, 16
        %v4243 = vrot.slane %v4241, 7
        %v4244 = vshll.u32 %v4206, 16
        %v4246 = vor.u32 %v4243, %v4244
        %v4248 = vshrl.u32 %v4207, 16
        %v4250 = vrot.slane %v4248, 7
        %v4251 = vshll.u32 %v4207, 16
        %v4253 = vor.u32 %v4250, %v4251
        %v4255 = vshrl.u32 %v4208, 16
        %v4257 = vrot.slane %v4255, 7
        %v4258 = vshll.u32 %v4208, 16
        %v4260 = vor.u32 %v4257, %v4258
        %v4262 = vshrl.u32 %v4209, 16
        %v4264 = vrot.slane %v4262, 7
        %v4265 = vshll.u32 %v4209, 16
        %v4267 = vor.u32 %v4264, %v4265
        %v4269 = vshrl.u32 %v4210, 16
        %v4271 = vrot.slane %v4269, 7
        %v4272 = vshll.u32 %v4210, 16
        %v4274 = vor.u32 %v4271, %v4272
        %v4276 = vshrl.u32 %v4211, 16
        %v4278 = vrot.slane %v4276, 7
        %v4279 = vshll.u32 %v4211, 16
        %v4281 = vor.u32 %v4278, %v4279
        %v4283 = vshrl.u32 %v4212, 16
        %v4285 = vrot.slane %v4283, 7
        %v4286 = vshll.u32 %v4212, 16
        %v4288 = vor.u32 %v4285, %v4286
        %v4290 = vshrl.u32 %v4213, 16
        %v4292 = vrot.slane %v4290, 7
        %v4293 = vshll.u32 %v4213, 16
        %v4295 = vor.u32 %v4292, %v4293
        %v4297 = vshrl.u32 %v4214, 16
        %v4299 = vrot.slane %v4297, 7
        %v4300 = vshll.u32 %v4214, 16
        %v4302 = vor.u32 %v4299, %v4300
        %v4304 = vshrl.u32 %v4215, 16
        %v4306 = vrot.slane %v4304, 7
        %v4307 = vshll.u32 %v4215, 16
        %v4309 = vor.u32 %v4306, %v4307
        %v4311 = vshrl.u32 %v4216, 16
        %v4313 = vrot.slane %v4311, 7
        %v4314 = vshll.u32 %v4216, 16
        %v4316 = vor.u32 %v4313, %v4314
        %v4318 = vshrl.u32 %v4217, 16
        %v4320 = vrot.slane %v4318, 7
        %v4321 = vshll.u32 %v4217, 16
        %v4323 = vor.u32 %v4320, %v4321
        %s4339 = scalar_lea.vmem [#allocation3], 72
        %v4340 = vld [vmem:[%s4339] sm:$0xff]
        %v4341 = vsel %vm1375, %v4225, %v4340
        %4342 = vst [vmem:[%s4339] sm:$0xff] %v4341
        %v4343 = vld [vmem:[%s4339 + $0x48] sm:$0xff]
        %v4344 = vsel %vm1375, %v4232, %v4343
        %4345 = vst [vmem:[%s4339 + $0x48] sm:$0xff] %v4344
        %v4346 = vld [vmem:[%s4339 + $0x90] sm:$0xff]
        %v4347 = vsel %vm1375, %v4239, %v4346
        %4348 = vst [vmem:[%s4339 + $0x90] sm:$0xff] %v4347
        %v4349 = vld [vmem:[%s4339 + $0xd8] sm:$0xff]
        %v4350 = vsel %vm1375, %v4246, %v4349
        %4351 = vst [vmem:[%s4339 + $0xd8] sm:$0xff] %v4350
        %v4352 = vld [vmem:[%s4339 + $0x120] sm:$0xff]
        %v4353 = vsel %vm1375, %v4253, %v4352
        %4354 = vst [vmem:[%s4339 + $0x120] sm:$0xff] %v4353
        %v4355 = vld [vmem:[%s4339 + $0x168] sm:$0xff]
        %v4356 = vsel %vm1375, %v4260, %v4355
        %4357 = vst [vmem:[%s4339 + $0x168] sm:$0xff] %v4356
        %v4358 = vld [vmem:[%s4339 + $0x1b0] sm:$0xff]
        %v4359 = vsel %vm1375, %v4267, %v4358
        %4360 = vst [vmem:[%s4339 + $0x1b0] sm:$0xff] %v4359
        %v4361 = vld [vmem:[%s4339 + $0x1f8] sm:$0xff]
        %v4362 = vsel %vm1375, %v4274, %v4361
        %4363 = vst [vmem:[%s4339 + $0x1f8] sm:$0xff] %v4362
        %v4364 = vld [vmem:[%s4339 + $0x240] sm:$0xff]
        %v4365 = vsel %vm1375, %v4281, %v4364
        %4366 = vst [vmem:[%s4339 + $0x240] sm:$0xff] %v4365
        %v4367 = vld [vmem:[%s4339 + $0x288] sm:$0xff]
        %v4368 = vsel %vm1375, %v4288, %v4367
        %4369 = vst [vmem:[%s4339 + $0x288] sm:$0xff] %v4368
        %v4370 = vld [vmem:[%s4339 + $0x2d0] sm:$0xff]
        %v4371 = vsel %vm1375, %v4295, %v4370
        %4372 = vst [vmem:[%s4339 + $0x2d0] sm:$0xff] %v4371
        %v4373 = vld [vmem:[%s4339 + $0x318] sm:$0xff]
        %v4374 = vsel %vm1375, %v4302, %v4373
        %4375 = vst [vmem:[%s4339 + $0x318] sm:$0xff] %v4374
        %v4376 = vld [vmem:[%s4339 + $0x360] sm:$0xff]
        %v4377 = vsel %vm1375, %v4309, %v4376
        %4378 = vst [vmem:[%s4339 + $0x360] sm:$0xff] %v4377
        %v4379 = vld [vmem:[%s4339 + $0x3a8] sm:$0xff]
        %v4380 = vsel %vm1375, %v4316, %v4379
        %4381 = vst [vmem:[%s4339 + $0x3a8] sm:$0xff] %v4380
        %v4382 = vld [vmem:[%s4339 + $0x3f0] sm:$0xff]
        %v4383 = vsel %vm1375, %v4323, %v4382
        %4384 = vst [vmem:[%s4339 + $0x3f0] sm:$0xff] %v4383
        %4385 = vst [vmem:[%s4339 + $0x8] sm:$0xff] %v4203
        %4386 = vst [vmem:[%s4339 + $0x50] sm:$0xff] %v4204
        %4387 = vst [vmem:[%s4339 + $0x98] sm:$0xff] %v4205
        %4388 = vst [vmem:[%s4339 + $0xe0] sm:$0xff] %v4206
        %4389 = vst [vmem:[%s4339 + $0x128] sm:$0xff] %v4207
        %4390 = vst [vmem:[%s4339 + $0x170] sm:$0xff] %v4208
        %4391 = vst [vmem:[%s4339 + $0x1b8] sm:$0xff] %v4209
        %4392 = vst [vmem:[%s4339 + $0x200] sm:$0xff] %v4210
        %4393 = vst [vmem:[%s4339 + $0x248] sm:$0xff] %v4211
        %4394 = vst [vmem:[%s4339 + $0x290] sm:$0xff] %v4212
        %4395 = vst [vmem:[%s4339 + $0x2d8] sm:$0xff] %v4213
        %4396 = vst [vmem:[%s4339 + $0x320] sm:$0xff] %v4214
        %4397 = vst [vmem:[%s4339 + $0x368] sm:$0xff] %v4215
        %4398 = vst [vmem:[%s4339 + $0x3b0] sm:$0xff] %v4216
        %4399 = vst [vmem:[%s4339 + $0x3f8] sm:$0xff] %v4217
        %v4400 = vrot.slane %v4223, 1
        %v4401 = vor.u32 %v4220, %v4400
        %v4402 = vrot.slane %v4230, 1
        %v4403 = vor.u32 %v4227, %v4402
        %v4404 = vrot.slane %v4237, 1
        %v4405 = vor.u32 %v4234, %v4404
        %v4406 = vrot.slane %v4244, 1
        %v4407 = vor.u32 %v4241, %v4406
        %v4408 = vrot.slane %v4251, 1
        %v4409 = vor.u32 %v4248, %v4408
        %v4410 = vrot.slane %v4258, 1
        %v4411 = vor.u32 %v4255, %v4410
        %v4412 = vrot.slane %v4265, 1
        %v4413 = vor.u32 %v4262, %v4412
        %v4414 = vrot.slane %v4272, 1
        %v4415 = vor.u32 %v4269, %v4414
        %v4416 = vrot.slane %v4279, 1
        %v4417 = vor.u32 %v4276, %v4416
        %v4418 = vrot.slane %v4286, 1
        %v4419 = vor.u32 %v4283, %v4418
        %v4420 = vrot.slane %v4293, 1
        %v4421 = vor.u32 %v4290, %v4420
        %v4422 = vrot.slane %v4300, 1
        %v4423 = vor.u32 %v4297, %v4422
        %v4424 = vrot.slane %v4307, 1
        %v4425 = vor.u32 %v4304, %v4424
        %v4426 = vrot.slane %v4314, 1
        %v4427 = vor.u32 %v4311, %v4426
        %v4428 = vrot.slane %v4321, 1
        %v4429 = vor.u32 %v4318, %v4428
        %v4445 = vld [vmem:[%s4339 + $0x10] sm:$0xff]
        %v4446 = vsel %vm1482, %v4401, %v4445
        %4447 = vst [vmem:[%s4339 + $0x10] sm:$0xff] %v4446
        %v4448 = vld [vmem:[%s4339 + $0x58] sm:$0xff]
        %v4449 = vsel %vm1482, %v4403, %v4448
        %4450 = vst [vmem:[%s4339 + $0x58] sm:$0xff] %v4449
        %v4451 = vld [vmem:[%s4339 + $0xa0] sm:$0xff]
        %v4452 = vsel %vm1482, %v4405, %v4451
        %4453 = vst [vmem:[%s4339 + $0xa0] sm:$0xff] %v4452
        %v4454 = vld [vmem:[%s4339 + $0xe8] sm:$0xff]
        %v4455 = vsel %vm1482, %v4407, %v4454
        %4456 = vst [vmem:[%s4339 + $0xe8] sm:$0xff] %v4455
        %v4457 = vld [vmem:[%s4339 + $0x130] sm:$0xff]
        %v4458 = vsel %vm1482, %v4409, %v4457
        %4459 = vst [vmem:[%s4339 + $0x130] sm:$0xff] %v4458
        %v4460 = vld [vmem:[%s4339 + $0x178] sm:$0xff]
        %v4461 = vsel %vm1482, %v4411, %v4460
        %4462 = vst [vmem:[%s4339 + $0x178] sm:$0xff] %v4461
        %v4463 = vld [vmem:[%s4339 + $0x1c0] sm:$0xff]
        %v4464 = vsel %vm1482, %v4413, %v4463
        %4465 = vst [vmem:[%s4339 + $0x1c0] sm:$0xff] %v4464
        %v4466 = vld [vmem:[%s4339 + $0x208] sm:$0xff]
        %v4467 = vsel %vm1482, %v4415, %v4466
        %4468 = vst [vmem:[%s4339 + $0x208] sm:$0xff] %v4467
        %v4469 = vld [vmem:[%s4339 + $0x250] sm:$0xff]
        %v4470 = vsel %vm1482, %v4417, %v4469
        %4471 = vst [vmem:[%s4339 + $0x250] sm:$0xff] %v4470
        %v4472 = vld [vmem:[%s4339 + $0x298] sm:$0xff]
        %v4473 = vsel %vm1482, %v4419, %v4472
        %4474 = vst [vmem:[%s4339 + $0x298] sm:$0xff] %v4473
        %v4475 = vld [vmem:[%s4339 + $0x2e0] sm:$0xff]
        %v4476 = vsel %vm1482, %v4421, %v4475
        %4477 = vst [vmem:[%s4339 + $0x2e0] sm:$0xff] %v4476
        %v4478 = vld [vmem:[%s4339 + $0x328] sm:$0xff]
        %v4479 = vsel %vm1482, %v4423, %v4478
        %4480 = vst [vmem:[%s4339 + $0x328] sm:$0xff] %v4479
        %v4481 = vld [vmem:[%s4339 + $0x370] sm:$0xff]
        %v4482 = vsel %vm1482, %v4425, %v4481
        %4483 = vst [vmem:[%s4339 + $0x370] sm:$0xff] %v4482
        %v4484 = vld [vmem:[%s4339 + $0x3b8] sm:$0xff]
        %v4485 = vsel %vm1482, %v4427, %v4484
        %4486 = vst [vmem:[%s4339 + $0x3b8] sm:$0xff] %v4485
        %v4487 = vld [vmem:[%s4339 + $0x400] sm:$0xff]
        %v4488 = vsel %vm1482, %v4429, %v4487
        %4489 = vst [vmem:[%s4339 + $0x400] sm:$0xff] %v4488
        %v4491 = vshrl.u32 %v4218, 16
        %v4493 = vrot.slane %v4491, 7
        %v4494 = vshll.u32 %v4218, 16
        %v4496 = vor.u32 %v4493, %v4494
        %v4498 = vld [vmem:[#allocation3 + $0x18] sm:$0xff]
        %v4499 = vsel %vm1375, %v4225, %v4498
        %4500 = vst [vmem:[#allocation3 + $0x18] sm:$0xff] %v4499
        %v4501 = vld [vmem:[#allocation3 + $0x60] sm:$0xff]
        %v4502 = vsel %vm1375, %v4232, %v4501
        %4503 = vst [vmem:[#allocation3 + $0x60] sm:$0xff] %v4502
        %v4504 = vld [vmem:[#allocation3 + $0xa8] sm:$0xff]
        %v4505 = vsel %vm1375, %v4239, %v4504
        %4506 = vst [vmem:[#allocation3 + $0xa8] sm:$0xff] %v4505
        %v4507 = vld [vmem:[#allocation3 + $0xf0] sm:$0xff]
        %v4508 = vsel %vm1375, %v4246, %v4507
        %4509 = vst [vmem:[#allocation3 + $0xf0] sm:$0xff] %v4508
        %v4510 = vld [vmem:[#allocation3 + $0x138] sm:$0xff]
        %v4511 = vsel %vm1375, %v4253, %v4510
        %4512 = vst [vmem:[#allocation3 + $0x138] sm:$0xff] %v4511
        %v4513 = vld [vmem:[#allocation3 + $0x180] sm:$0xff]
        %v4514 = vsel %vm1375, %v4260, %v4513
        %4515 = vst [vmem:[#allocation3 + $0x180] sm:$0xff] %v4514
        %v4516 = vld [vmem:[#allocation3 + $0x1c8] sm:$0xff]
        %v4517 = vsel %vm1375, %v4267, %v4516
        %4518 = vst [vmem:[#allocation3 + $0x1c8] sm:$0xff] %v4517
        %v4519 = vld [vmem:[#allocation3 + $0x210] sm:$0xff]
        %v4520 = vsel %vm1375, %v4274, %v4519
        %4521 = vst [vmem:[#allocation3 + $0x210] sm:$0xff] %v4520
        %v4522 = vld [vmem:[#allocation3 + $0x258] sm:$0xff]
        %v4523 = vsel %vm1375, %v4281, %v4522
        %4524 = vst [vmem:[#allocation3 + $0x258] sm:$0xff] %v4523
        %v4525 = vld [vmem:[#allocation3 + $0x2a0] sm:$0xff]
        %v4526 = vsel %vm1375, %v4288, %v4525
        %4527 = vst [vmem:[#allocation3 + $0x2a0] sm:$0xff] %v4526
        %v4528 = vld [vmem:[#allocation3 + $0x2e8] sm:$0xff]
        %v4529 = vsel %vm1375, %v4295, %v4528
        %4530 = vst [vmem:[#allocation3 + $0x2e8] sm:$0xff] %v4529
        %v4531 = vld [vmem:[#allocation3 + $0x330] sm:$0xff]
        %v4532 = vsel %vm1375, %v4302, %v4531
        %4533 = vst [vmem:[#allocation3 + $0x330] sm:$0xff] %v4532
        %v4534 = vld [vmem:[#allocation3 + $0x378] sm:$0xff]
        %v4535 = vsel %vm1375, %v4309, %v4534
        %4536 = vst [vmem:[#allocation3 + $0x378] sm:$0xff] %v4535
        %v4537 = vld [vmem:[#allocation3 + $0x3c0] sm:$0xff]
        %v4538 = vsel %vm1375, %v4316, %v4537
        %4539 = vst [vmem:[#allocation3 + $0x3c0] sm:$0xff] %v4538
        %v4540 = vld [vmem:[#allocation3 + $0x408] sm:$0xff]
        %v4541 = vsel %vm1375, %v4323, %v4540
        %4542 = vst [vmem:[#allocation3 + $0x408] sm:$0xff] %v4541
        %v4543 = vld [vmem:[#allocation3 + $0x450] sm:$0xff]
        %v4544 = vsel %vm1375, %v4496, %v4543
        %4545 = vst [vmem:[#allocation3 + $0x450] sm:$0xff] %v4544
        %4546 = vst [vmem:[#allocation3 + $0x20] sm:$0xff] %v4203
        %4547 = vst [vmem:[#allocation3 + $0x68] sm:$0xff] %v4204
        %4548 = vst [vmem:[#allocation3 + $0xb0] sm:$0xff] %v4205
        %4549 = vst [vmem:[#allocation3 + $0xf8] sm:$0xff] %v4206
        %4550 = vst [vmem:[#allocation3 + $0x140] sm:$0xff] %v4207
        %4551 = vst [vmem:[#allocation3 + $0x188] sm:$0xff] %v4208
        %4552 = vst [vmem:[#allocation3 + $0x1d0] sm:$0xff] %v4209
        %4553 = vst [vmem:[#allocation3 + $0x218] sm:$0xff] %v4210
        %4554 = vst [vmem:[#allocation3 + $0x260] sm:$0xff] %v4211
        %4555 = vst [vmem:[#allocation3 + $0x2a8] sm:$0xff] %v4212
        %4556 = vst [vmem:[#allocation3 + $0x2f0] sm:$0xff] %v4213
        %4557 = vst [vmem:[#allocation3 + $0x338] sm:$0xff] %v4214
        %4558 = vst [vmem:[#allocation3 + $0x380] sm:$0xff] %v4215
        %4559 = vst [vmem:[#allocation3 + $0x3c8] sm:$0xff] %v4216
        %4560 = vst [vmem:[#allocation3 + $0x410] sm:$0xff] %v4217
        %4561 = vst [vmem:[#allocation3 + $0x458] sm:$0xff] %v4218
        %v4562 = vrot.slane %v4494, 1
        %v4563 = vor.u32 %v4491, %v4562
        %v4565 = vld [vmem:[#allocation3 + $0x28] sm:$0xff]
        %v4566 = vsel %vm1482, %v4401, %v4565
        %4567 = vst [vmem:[#allocation3 + $0x28] sm:$0xff] %v4566
        %v4568 = vld [vmem:[#allocation3 + $0x70] sm:$0xff]
        %v4569 = vsel %vm1482, %v4403, %v4568
        %4570 = vst [vmem:[#allocation3 + $0x70] sm:$0xff] %v4569
        %v4571 = vld [vmem:[#allocation3 + $0xb8] sm:$0xff]
        %v4572 = vsel %vm1482, %v4405, %v4571
        %4573 = vst [vmem:[#allocation3 + $0xb8] sm:$0xff] %v4572
        %v4574 = vld [vmem:[#allocation3 + $0x100] sm:$0xff]
        %v4575 = vsel %vm1482, %v4407, %v4574
        %4576 = vst [vmem:[#allocation3 + $0x100] sm:$0xff] %v4575
        %v4577 = vld [vmem:[#allocation3 + $0x148] sm:$0xff]
        %v4578 = vsel %vm1482, %v4409, %v4577
        %4579 = vst [vmem:[#allocation3 + $0x148] sm:$0xff] %v4578
        %v4580 = vld [vmem:[#allocation3 + $0x190] sm:$0xff]
        %v4581 = vsel %vm1482, %v4411, %v4580
        %4582 = vst [vmem:[#allocation3 + $0x190] sm:$0xff] %v4581
        %v4583 = vld [vmem:[#allocation3 + $0x1d8] sm:$0xff]
        %v4584 = vsel %vm1482, %v4413, %v4583
        %4585 = vst [vmem:[#allocation3 + $0x1d8] sm:$0xff] %v4584
        %v4586 = vld [vmem:[#allocation3 + $0x220] sm:$0xff]
        %v4587 = vsel %vm1482, %v4415, %v4586
        %4588 = vst [vmem:[#allocation3 + $0x220] sm:$0xff] %v4587
        %v4589 = vld [vmem:[#allocation3 + $0x268] sm:$0xff]
        %v4590 = vsel %vm1482, %v4417, %v4589
        %4591 = vst [vmem:[#allocation3 + $0x268] sm:$0xff] %v4590
        %v4592 = vld [vmem:[#allocation3 + $0x2b0] sm:$0xff]
        %v4593 = vsel %vm1482, %v4419, %v4592
        %4594 = vst [vmem:[#allocation3 + $0x2b0] sm:$0xff] %v4593
        %v4595 = vld [vmem:[#allocation3 + $0x2f8] sm:$0xff]
        %v4596 = vsel %vm1482, %v4421, %v4595
        %4597 = vst [vmem:[#allocation3 + $0x2f8] sm:$0xff] %v4596
        %v4598 = vld [vmem:[#allocation3 + $0x340] sm:$0xff]
        %v4599 = vsel %vm1482, %v4423, %v4598
        %4600 = vst [vmem:[#allocation3 + $0x340] sm:$0xff] %v4599
        %v4601 = vld [vmem:[#allocation3 + $0x388] sm:$0xff]
        %v4602 = vsel %vm1482, %v4425, %v4601
        %4603 = vst [vmem:[#allocation3 + $0x388] sm:$0xff] %v4602
        %v4604 = vld [vmem:[#allocation3 + $0x3d0] sm:$0xff]
        %v4605 = vsel %vm1482, %v4427, %v4604
        %4606 = vst [vmem:[#allocation3 + $0x3d0] sm:$0xff] %v4605
        %v4607 = vld [vmem:[#allocation3 + $0x418] sm:$0xff]
        %v4608 = vsel %vm1482, %v4429, %v4607
        %4609 = vst [vmem:[#allocation3 + $0x418] sm:$0xff] %v4608
        %v4610 = vld [vmem:[#allocation3 + $0x460] sm:$0xff]
        %v4611 = vsel %vm1482, %v4563, %v4610
        %4612 = vst [vmem:[#allocation3 + $0x460] sm:$0xff] %v4611
        %v4613 = vld [vmem:[#allocation3 + $0x30] sm:$0xff]
        %v4614 = vsel %vm1375, %v4232, %v4613
        %4615 = vst [vmem:[#allocation3 + $0x30] sm:$0xff] %v4614
        %v4616 = vld [vmem:[#allocation3 + $0x78] sm:$0xff]
        %v4617 = vsel %vm1375, %v4239, %v4616
        %4618 = vst [vmem:[#allocation3 + $0x78] sm:$0xff] %v4617
        %v4619 = vld [vmem:[#allocation3 + $0xc0] sm:$0xff]
        %v4620 = vsel %vm1375, %v4246, %v4619
        %4621 = vst [vmem:[#allocation3 + $0xc0] sm:$0xff] %v4620
        %v4622 = vld [vmem:[#allocation3 + $0x108] sm:$0xff]
        %v4623 = vsel %vm1375, %v4253, %v4622
        %4624 = vst [vmem:[#allocation3 + $0x108] sm:$0xff] %v4623
        %v4625 = vld [vmem:[#allocation3 + $0x150] sm:$0xff]
        %v4626 = vsel %vm1375, %v4260, %v4625
        %4627 = vst [vmem:[#allocation3 + $0x150] sm:$0xff] %v4626
        %v4628 = vld [vmem:[#allocation3 + $0x198] sm:$0xff]
        %v4629 = vsel %vm1375, %v4267, %v4628
        %4630 = vst [vmem:[#allocation3 + $0x198] sm:$0xff] %v4629
        %v4631 = vld [vmem:[#allocation3 + $0x1e0] sm:$0xff]
        %v4632 = vsel %vm1375, %v4274, %v4631
        %4633 = vst [vmem:[#allocation3 + $0x1e0] sm:$0xff] %v4632
        %v4634 = vld [vmem:[#allocation3 + $0x228] sm:$0xff]
        %v4635 = vsel %vm1375, %v4281, %v4634
        %4636 = vst [vmem:[#allocation3 + $0x228] sm:$0xff] %v4635
        %v4637 = vld [vmem:[#allocation3 + $0x270] sm:$0xff]
        %v4638 = vsel %vm1375, %v4288, %v4637
        %4639 = vst [vmem:[#allocation3 + $0x270] sm:$0xff] %v4638
        %v4640 = vld [vmem:[#allocation3 + $0x2b8] sm:$0xff]
        %v4641 = vsel %vm1375, %v4295, %v4640
        %4642 = vst [vmem:[#allocation3 + $0x2b8] sm:$0xff] %v4641
        %v4643 = vld [vmem:[#allocation3 + $0x300] sm:$0xff]
        %v4644 = vsel %vm1375, %v4302, %v4643
        %4645 = vst [vmem:[#allocation3 + $0x300] sm:$0xff] %v4644
        %v4646 = vld [vmem:[#allocation3 + $0x348] sm:$0xff]
        %v4647 = vsel %vm1375, %v4309, %v4646
        %4648 = vst [vmem:[#allocation3 + $0x348] sm:$0xff] %v4647
        %v4649 = vld [vmem:[#allocation3 + $0x390] sm:$0xff]
        %v4650 = vsel %vm1375, %v4316, %v4649
        %4651 = vst [vmem:[#allocation3 + $0x390] sm:$0xff] %v4650
        %v4652 = vld [vmem:[#allocation3 + $0x3d8] sm:$0xff]
        %v4653 = vsel %vm1375, %v4323, %v4652
        %4654 = vst [vmem:[#allocation3 + $0x3d8] sm:$0xff] %v4653
        %v4655 = vld [vmem:[#allocation3 + $0x420] sm:$0xff]
        %v4656 = vsel %vm1375, %v4496, %v4655
        %4657 = vst [vmem:[#allocation3 + $0x420] sm:$0xff] %v4656
        %4658 = vst [vmem:[#allocation3 + $0x38] sm:$0xff] %v4204
        %4659 = vst [vmem:[#allocation3 + $0x80] sm:$0xff] %v4205
        %4660 = vst [vmem:[#allocation3 + $0xc8] sm:$0xff] %v4206
        %4661 = vst [vmem:[#allocation3 + $0x110] sm:$0xff] %v4207
        %4662 = vst [vmem:[#allocation3 + $0x158] sm:$0xff] %v4208
        %4663 = vst [vmem:[#allocation3 + $0x1a0] sm:$0xff] %v4209
        %4664 = vst [vmem:[#allocation3 + $0x1e8] sm:$0xff] %v4210
        %4665 = vst [vmem:[#allocation3 + $0x230] sm:$0xff] %v4211
        %4666 = vst [vmem:[#allocation3 + $0x278] sm:$0xff] %v4212
        %4667 = vst [vmem:[#allocation3 + $0x2c0] sm:$0xff] %v4213
        %4668 = vst [vmem:[#allocation3 + $0x308] sm:$0xff] %v4214
        %4669 = vst [vmem:[#allocation3 + $0x350] sm:$0xff] %v4215
        %4670 = vst [vmem:[#allocation3 + $0x398] sm:$0xff] %v4216
        %4671 = vst [vmem:[#allocation3 + $0x3e0] sm:$0xff] %v4217
        %4672 = vst [vmem:[#allocation3 + $0x428] sm:$0xff] %v4218
        %v4673 = vld [vmem:[#allocation3 + $0x40] sm:$0xff]
        %v4674 = vsel %vm1482, %v4403, %v4673
        %4675 = vst [vmem:[#allocation3 + $0x40] sm:$0xff] %v4674
        %v4676 = vld [vmem:[#allocation3 + $0x88] sm:$0xff]
        %v4677 = vsel %vm1482, %v4405, %v4676
        %4678 = vst [vmem:[#allocation3 + $0x88] sm:$0xff] %v4677
        %v4679 = vld [vmem:[#allocation3 + $0xd0] sm:$0xff]
        %v4680 = vsel %vm1482, %v4407, %v4679
        %4681 = vst [vmem:[#allocation3 + $0xd0] sm:$0xff] %v4680
        %v4682 = vld [vmem:[#allocation3 + $0x118] sm:$0xff]
        %v4683 = vsel %vm1482, %v4409, %v4682
        %4684 = vst [vmem:[#allocation3 + $0x118] sm:$0xff] %v4683
        %v4685 = vld [vmem:[#allocation3 + $0x160] sm:$0xff]
        %v4686 = vsel %vm1482, %v4411, %v4685
        %4687 = vst [vmem:[#allocation3 + $0x160] sm:$0xff] %v4686
        %v4688 = vld [vmem:[#allocation3 + $0x1a8] sm:$0xff]
        %v4689 = vsel %vm1482, %v4413, %v4688
        %4690 = vst [vmem:[#allocation3 + $0x1a8] sm:$0xff] %v4689
        %v4691 = vld [vmem:[#allocation3 + $0x1f0] sm:$0xff]
        %v4692 = vsel %vm1482, %v4415, %v4691
        %4693 = vst [vmem:[#allocation3 + $0x1f0] sm:$0xff] %v4692
        %v4694 = vld [vmem:[#allocation3 + $0x238] sm:$0xff]
        %v4695 = vsel %vm1482, %v4417, %v4694
        %4696 = vst [vmem:[#allocation3 + $0x238] sm:$0xff] %v4695
        %v4697 = vld [vmem:[#allocation3 + $0x280] sm:$0xff]
        %v4698 = vsel %vm1482, %v4419, %v4697
        %4699 = vst [vmem:[#allocation3 + $0x280] sm:$0xff] %v4698
        %v4700 = vld [vmem:[#allocation3 + $0x2c8] sm:$0xff]
        %v4701 = vsel %vm1482, %v4421, %v4700
        %4702 = vst [vmem:[#allocation3 + $0x2c8] sm:$0xff] %v4701
        %v4703 = vld [vmem:[#allocation3 + $0x310] sm:$0xff]
        %v4704 = vsel %vm1482, %v4423, %v4703
        %4705 = vst [vmem:[#allocation3 + $0x310] sm:$0xff] %v4704
        %v4706 = vld [vmem:[#allocation3 + $0x358] sm:$0xff]
        %v4707 = vsel %vm1482, %v4425, %v4706
        %4708 = vst [vmem:[#allocation3 + $0x358] sm:$0xff] %v4707
        %v4709 = vld [vmem:[#allocation3 + $0x3a0] sm:$0xff]
        %v4710 = vsel %vm1482, %v4427, %v4709
        %4711 = vst [vmem:[#allocation3 + $0x3a0] sm:$0xff] %v4710
        %v4712 = vld [vmem:[#allocation3 + $0x3e8] sm:$0xff]
        %v4713 = vsel %vm1482, %v4429, %v4712
        %4714 = vst [vmem:[#allocation3 + $0x3e8] sm:$0xff] %v4713
        %v4715 = vld [vmem:[#allocation3 + $0x430] sm:$0xff]
        %v4716 = vsel %vm1482, %v4563, %v4715
        %4717 = vst [vmem:[#allocation3 + $0x430] sm:$0xff] %v4716
        %v4718 = vld [vmem:[#allocation3] sm:$0xff]
        %v4719 = vld [vmem:[#allocation3 + $0x8] sm:$0xff]
        %v4720 = vld [vmem:[#allocation3 + $0x10] sm:$0xff]
        %v4721 = vld [vmem:[#allocation3 + $0x18] sm:$0xff]
        %v4722 = vld [vmem:[#allocation3 + $0x20] sm:$0xff]
        %v4723 = vld [vmem:[#allocation3 + $0x28] sm:$0xff]
        %v4724 = vld [vmem:[#allocation3 + $0x30] sm:$0xff]
        %v4725 = vld [vmem:[#allocation3 + $0x38] sm:$0xff]
        %v4726 = vld [vmem:[#allocation3 + $0x40] sm:$0xff]
        %v4727 = vld [vmem:[#allocation3 + $0x48] sm:$0xff]
        %v4728 = vld [vmem:[#allocation3 + $0x50] sm:$0xff]
        %v4729 = vld [vmem:[#allocation3 + $0x58] sm:$0xff]
        %v4730 = vld [vmem:[#allocation3 + $0x60] sm:$0xff]
        %v4731 = vld [vmem:[#allocation3 + $0x68] sm:$0xff]
        %v4732 = vld [vmem:[#allocation3 + $0x70] sm:$0xff]
        %v4733 = vld [vmem:[#allocation3 + $0x78] sm:$0xff]
        %v4734 = vld [vmem:[#allocation3 + $0x80] sm:$0xff]
        %v4735 = vld [vmem:[#allocation3 + $0x88] sm:$0xff]
        %v4736 = vld [vmem:[#allocation3 + $0x90] sm:$0xff]
        %v4737 = vld [vmem:[#allocation3 + $0x98] sm:$0xff]
        %v4738 = vld [vmem:[#allocation3 + $0xa0] sm:$0xff]
        %v4739 = vld [vmem:[#allocation3 + $0xa8] sm:$0xff]
        %v4740 = vld [vmem:[#allocation3 + $0xb0] sm:$0xff]
        %v4741 = vld [vmem:[#allocation3 + $0xb8] sm:$0xff]
        %v4742 = vld [vmem:[#allocation3 + $0xc0] sm:$0xff]
        %v4743 = vld [vmem:[#allocation3 + $0xc8] sm:$0xff]
        %v4744 = vld [vmem:[#allocation3 + $0xd0] sm:$0xff]
        %v4745 = vld [vmem:[#allocation3 + $0xd8] sm:$0xff]
        %v4746 = vld [vmem:[#allocation3 + $0xe0] sm:$0xff]
        %v4747 = vld [vmem:[#allocation3 + $0xe8] sm:$0xff]
        %v4748 = vld [vmem:[#allocation3 + $0xf0] sm:$0xff]
        %v4749 = vld [vmem:[#allocation3 + $0xf8] sm:$0xff]
        %v4750 = vld [vmem:[#allocation3 + $0x100] sm:$0xff]
        %v4751 = vld [vmem:[#allocation3 + $0x108] sm:$0xff]
        %v4752 = vld [vmem:[#allocation3 + $0x110] sm:$0xff]
        %v4753 = vld [vmem:[#allocation3 + $0x118] sm:$0xff]
        %v4754 = vld [vmem:[#allocation3 + $0x120] sm:$0xff]
        %v4755 = vld [vmem:[#allocation3 + $0x128] sm:$0xff]
        %v4756 = vld [vmem:[#allocation3 + $0x130] sm:$0xff]
        %v4757 = vld [vmem:[#allocation3 + $0x138] sm:$0xff]
        %v4758 = vld [vmem:[#allocation3 + $0x140] sm:$0xff]
        %v4759 = vld [vmem:[#allocation3 + $0x148] sm:$0xff]
        %v4760 = vld [vmem:[#allocation3 + $0x150] sm:$0xff]
        %v4761 = vld [vmem:[#allocation3 + $0x158] sm:$0xff]
        %v4762 = vld [vmem:[#allocation3 + $0x160] sm:$0xff]
        %v4763 = vld [vmem:[#allocation3 + $0x168] sm:$0xff]
        %v4764 = vld [vmem:[#allocation3 + $0x170] sm:$0xff]
        %v4765 = vld [vmem:[#allocation3 + $0x178] sm:$0xff]
        %v4766 = vld [vmem:[#allocation3 + $0x180] sm:$0xff]
        %v4767 = vld [vmem:[#allocation3 + $0x188] sm:$0xff]
        %v4768 = vld [vmem:[#allocation3 + $0x190] sm:$0xff]
        %v4769 = vld [vmem:[#allocation3 + $0x198] sm:$0xff]
        %v4770 = vld [vmem:[#allocation3 + $0x1a0] sm:$0xff]
        %v4771 = vld [vmem:[#allocation3 + $0x1a8] sm:$0xff]
        %v4772 = vld [vmem:[#allocation3 + $0x1b0] sm:$0xff]
        %v4773 = vld [vmem:[#allocation3 + $0x1b8] sm:$0xff]
        %v4774 = vld [vmem:[#allocation3 + $0x1c0] sm:$0xff]
        %v4775 = vld [vmem:[#allocation3 + $0x1c8] sm:$0xff]
        %v4776 = vld [vmem:[#allocation3 + $0x1d0] sm:$0xff]
        %v4777 = vld [vmem:[#allocation3 + $0x1d8] sm:$0xff]
        %v4778 = vld [vmem:[#allocation3 + $0x1e0] sm:$0xff]
        %v4779 = vld [vmem:[#allocation3 + $0x1e8] sm:$0xff]
        %v4780 = vld [vmem:[#allocation3 + $0x1f0] sm:$0xff]
        %v4781 = vld [vmem:[#allocation3 + $0x1f8] sm:$0xff]
        %v4782 = vld [vmem:[#allocation3 + $0x200] sm:$0xff]
        %v4783 = vld [vmem:[#allocation3 + $0x208] sm:$0xff]
        %v4784 = vld [vmem:[#allocation3 + $0x210] sm:$0xff]
        %v4785 = vld [vmem:[#allocation3 + $0x218] sm:$0xff]
        %v4786 = vld [vmem:[#allocation3 + $0x220] sm:$0xff]
        %v4787 = vld [vmem:[#allocation3 + $0x228] sm:$0xff]
        %v4788 = vld [vmem:[#allocation3 + $0x230] sm:$0xff]
        %v4789 = vld [vmem:[#allocation3 + $0x238] sm:$0xff]
        %v4790 = vld [vmem:[#allocation3 + $0x240] sm:$0xff]
        %v4791 = vld [vmem:[#allocation3 + $0x248] sm:$0xff]
        %v4792 = vld [vmem:[#allocation3 + $0x250] sm:$0xff]
        %v4793 = vld [vmem:[#allocation3 + $0x258] sm:$0xff]
        %v4794 = vld [vmem:[#allocation3 + $0x260] sm:$0xff]
        %v4795 = vld [vmem:[#allocation3 + $0x268] sm:$0xff]
        %v4796 = vld [vmem:[#allocation3 + $0x270] sm:$0xff]
        %v4797 = vld [vmem:[#allocation3 + $0x278] sm:$0xff]
        %v4798 = vld [vmem:[#allocation3 + $0x280] sm:$0xff]
        %v4799 = vld [vmem:[#allocation3 + $0x288] sm:$0xff]
        %v4800 = vld [vmem:[#allocation3 + $0x290] sm:$0xff]
        %v4801 = vld [vmem:[#allocation3 + $0x298] sm:$0xff]
        %v4802 = vld [vmem:[#allocation3 + $0x2a0] sm:$0xff]
        %v4803 = vld [vmem:[#allocation3 + $0x2a8] sm:$0xff]
        %v4804 = vld [vmem:[#allocation3 + $0x2b0] sm:$0xff]
        %v4805 = vld [vmem:[#allocation3 + $0x2b8] sm:$0xff]
        %v4806 = vld [vmem:[#allocation3 + $0x2c0] sm:$0xff]
        %v4807 = vld [vmem:[#allocation3 + $0x2c8] sm:$0xff]
        %v4808 = vld [vmem:[#allocation3 + $0x2d0] sm:$0xff]
        %v4809 = vld [vmem:[#allocation3 + $0x2d8] sm:$0xff]
        %v4810 = vld [vmem:[#allocation3 + $0x2e0] sm:$0xff]
        %v4811 = vld [vmem:[#allocation3 + $0x2e8] sm:$0xff]
        %v4812 = vld [vmem:[#allocation3 + $0x2f0] sm:$0xff]
        %v4813 = vld [vmem:[#allocation3 + $0x2f8] sm:$0xff]
        %v4814 = vld [vmem:[#allocation3 + $0x300] sm:$0xff]
        %v4815 = vld [vmem:[#allocation3 + $0x308] sm:$0xff]
        %v4816 = vld [vmem:[#allocation3 + $0x310] sm:$0xff]
        %v4817 = vld [vmem:[#allocation3 + $0x318] sm:$0xff]
        %v4818 = vld [vmem:[#allocation3 + $0x320] sm:$0xff]
        %v4819 = vld [vmem:[#allocation3 + $0x328] sm:$0xff]
        %v4820 = vld [vmem:[#allocation3 + $0x330] sm:$0xff]
        %v4821 = vld [vmem:[#allocation3 + $0x338] sm:$0xff]
        %v4822 = vld [vmem:[#allocation3 + $0x340] sm:$0xff]
        %v4823 = vld [vmem:[#allocation3 + $0x348] sm:$0xff]
        %v4824 = vld [vmem:[#allocation3 + $0x350] sm:$0xff]
        %v4825 = vld [vmem:[#allocation3 + $0x358] sm:$0xff]
        %v4826 = vld [vmem:[#allocation3 + $0x360] sm:$0xff]
        %v4827 = vld [vmem:[#allocation3 + $0x368] sm:$0xff]
        %v4828 = vld [vmem:[#allocation3 + $0x370] sm:$0xff]
        %v4829 = vld [vmem:[#allocation3 + $0x378] sm:$0xff]
        %v4830 = vld [vmem:[#allocation3 + $0x380] sm:$0xff]
        %v4831 = vld [vmem:[#allocation3 + $0x388] sm:$0xff]
        %v4832 = vld [vmem:[#allocation3 + $0x390] sm:$0xff]
        %v4833 = vld [vmem:[#allocation3 + $0x398] sm:$0xff]
        %v4834 = vld [vmem:[#allocation3 + $0x3a0] sm:$0xff]
        %v4835 = vld [vmem:[#allocation3 + $0x3a8] sm:$0xff]
        %v4836 = vld [vmem:[#allocation3 + $0x3b0] sm:$0xff]
        %v4837 = vld [vmem:[#allocation3 + $0x3b8] sm:$0xff]
        %v4838 = vld [vmem:[#allocation3 + $0x3c0] sm:$0xff]
        %v4839 = vld [vmem:[#allocation3 + $0x3c8] sm:$0xff]
        %v4840 = vld [vmem:[#allocation3 + $0x3d0] sm:$0xff]
        %v4841 = vld [vmem:[#allocation3 + $0x3d8] sm:$0xff]
        %v4842 = vld [vmem:[#allocation3 + $0x3e0] sm:$0xff]
        %v4843 = vld [vmem:[#allocation3 + $0x3e8] sm:$0xff]
        %v4844 = vld [vmem:[#allocation3 + $0x3f0] sm:$0xff]
        %v4845 = vld [vmem:[#allocation3 + $0x3f8] sm:$0xff]
        %v4846 = vld [vmem:[#allocation3 + $0x400] sm:$0xff]
        %v4847 = vld [vmem:[#allocation3 + $0x408] sm:$0xff]
        %v4848 = vld [vmem:[#allocation3 + $0x410] sm:$0xff]
        %v4849 = vld [vmem:[#allocation3 + $0x418] sm:$0xff]
        %v4850 = vld [vmem:[#allocation3 + $0x420] sm:$0xff]
        %v4851 = vld [vmem:[#allocation3 + $0x428] sm:$0xff]
        %v4852 = vld [vmem:[#allocation3 + $0x430] sm:$0xff]
        %v4853 = vld [vmem:[#allocation3 + $0x438] sm:$0xff]
        %v4854 = vld [vmem:[#allocation3 + $0x440] sm:$0xff]
        %v4855 = vld [vmem:[#allocation3 + $0x448] sm:$0xff]
        %v4856 = vld [vmem:[#allocation3 + $0x450] sm:$0xff]
        %v4857 = vld [vmem:[#allocation3 + $0x458] sm:$0xff]
        %v4858 = vld [vmem:[#allocation3 + $0x460] sm:$0xff]
        %v4859 = vld [vmem:[#allocation3 + $0x468] sm:$0xff]
        %v4860 = vld [vmem:[#allocation3 + $0x470] sm:$0xff]
        %v4861 = vld [vmem:[#allocation3 + $0x478] sm:$0xff]
        %v4862 = vld [vmem:[#allocation9] sm:$0xf]
        %v4863 = vld [vmem:[#allocation9 + $0x4] sm:$0xf]
        %v4864 = vld [vmem:[#allocation9 + $0x8] sm:$0xf]
        %v4865 = vld [vmem:[#allocation9 + $0xc] sm:$0xf]
        %v4866 = vld [vmem:[#allocation9 + $0x10] sm:$0xf]
        %v4867 = vld [vmem:[#allocation9 + $0x14] sm:$0xf]
        %v4868 = vld [vmem:[#allocation9 + $0x18] sm:$0xf]
        %v4869 = vld [vmem:[#allocation9 + $0x1c] sm:$0xf]
        %v4870 = vld [vmem:[#allocation9 + $0x20] sm:$0xf]
        %v4871 = vld [vmem:[#allocation9 + $0x24] sm:$0xf]
        %v4872 = vld [vmem:[#allocation9 + $0x28] sm:$0xf]
        %v4873 = vld [vmem:[#allocation9 + $0x2c] sm:$0xf]
        %v4874 = vld [vmem:[#allocation9 + $0x30] sm:$0xf]
        %v4875 = vld [vmem:[#allocation9 + $0x34] sm:$0xf]
        %v4876 = vld [vmem:[#allocation9 + $0x38] sm:$0xf]
        %v4877 = vld [vmem:[#allocation9 + $0x3c] sm:$0xf]
        %v4878 = vld [vmem:[#allocation9 + $0x40] sm:$0xf]
        %v4879 = vld [vmem:[#allocation9 + $0x44] sm:$0xf]
        %v4880 = vld [vmem:[#allocation9 + $0x48] sm:$0xf]
        %v4881 = vld [vmem:[#allocation9 + $0x4c] sm:$0xf]
        %v4882 = vld [vmem:[#allocation9 + $0x50] sm:$0xf]
        %v4883 = vld [vmem:[#allocation9 + $0x54] sm:$0xf]
        %v4884 = vld [vmem:[#allocation9 + $0x58] sm:$0xf]
        %v4885 = vld [vmem:[#allocation9 + $0x5c] sm:$0xf]
        %v4886 = vld [vmem:[#allocation9 + $0x60] sm:$0xf]
        %v4887 = vld [vmem:[#allocation9 + $0x64] sm:$0xf]
        %v4888 = vld [vmem:[#allocation9 + $0x68] sm:$0xf]
        %v4889 = vld [vmem:[#allocation9 + $0x6c] sm:$0xf]
        %v4890 = vld [vmem:[#allocation9 + $0x70] sm:$0xf]
        %v4891 = vld [vmem:[#allocation9 + $0x74] sm:$0xf]
        %v4892 = vld [vmem:[#allocation9 + $0x78] sm:$0xf]
        %v4893 = vld [vmem:[#allocation9 + $0x7c] sm:$0xf]
        %v4894 = vld [vmem:[#allocation9 + $0x80] sm:$0xf]
        %v4895 = vld [vmem:[#allocation9 + $0x84] sm:$0xf]
        %v4896 = vld [vmem:[#allocation9 + $0x88] sm:$0xf]
        %v4897 = vld [vmem:[#allocation9 + $0x8c] sm:$0xf]
        %v4898 = vld [vmem:[#allocation9 + $0x90] sm:$0xf]
        %v4899 = vld [vmem:[#allocation9 + $0x94] sm:$0xf]
        %v4900 = vld [vmem:[#allocation9 + $0x98] sm:$0xf]
        %v4901 = vld [vmem:[#allocation9 + $0x9c] sm:$0xf]
        %v4902 = vld [vmem:[#allocation9 + $0xa0] sm:$0xf]
        %v4903 = vld [vmem:[#allocation9 + $0xa4] sm:$0xf]
        %v4904 = vld [vmem:[#allocation9 + $0xa8] sm:$0xf]
        %v4905 = vld [vmem:[#allocation9 + $0xac] sm:$0xf]
        %v4906 = vld [vmem:[#allocation9 + $0xb0] sm:$0xf]
        %v4907 = vld [vmem:[#allocation9 + $0xb4] sm:$0xf]
        %v4908 = vld [vmem:[#allocation9 + $0xb8] sm:$0xf]
        %v4909 = vld [vmem:[#allocation9 + $0xbc] sm:$0xf]
        %v4910 = vld [vmem:[#allocation9 + $0xc0] sm:$0xf]
        %v4911 = vld [vmem:[#allocation9 + $0xc4] sm:$0xf]
        %v4912 = vld [vmem:[#allocation9 + $0xc8] sm:$0xf]
        %v4913 = vld [vmem:[#allocation9 + $0xcc] sm:$0xf]
        %v4914 = vld [vmem:[#allocation9 + $0xd0] sm:$0xf]
        %v4915 = vld [vmem:[#allocation9 + $0xd4] sm:$0xf]
        %v4916 = vld [vmem:[#allocation9 + $0xd8] sm:$0xf]
        %v4917 = vld [vmem:[#allocation9 + $0xdc] sm:$0xf]
        %v4918 = vld [vmem:[#allocation9 + $0xe0] sm:$0xf]
        %v4919 = vld [vmem:[#allocation9 + $0xe4] sm:$0xf]
        %v4920 = vld [vmem:[#allocation9 + $0xe8] sm:$0xf]
        %v4921 = vld [vmem:[#allocation9 + $0xec] sm:$0xf]
        %v4922 = vld [vmem:[#allocation9 + $0xf0] sm:$0xf]
        %v4923 = vld [vmem:[#allocation9 + $0xf4] sm:$0xf]
        %v4924 = vld [vmem:[#allocation9 + $0xf8] sm:$0xf]
        %v4925 = vld [vmem:[#allocation9 + $0xfc] sm:$0xf]
        %v4926 = vld [vmem:[#allocation9 + $0x100] sm:$0xf]
        %v4927 = vld [vmem:[#allocation9 + $0x104] sm:$0xf]
        %v4928 = vld [vmem:[#allocation9 + $0x108] sm:$0xf]
        %v4929 = vld [vmem:[#allocation9 + $0x10c] sm:$0xf]
        %v4930 = vld [vmem:[#allocation9 + $0x110] sm:$0xf]
        %v4931 = vld [vmem:[#allocation9 + $0x114] sm:$0xf]
        %v4932 = vld [vmem:[#allocation9 + $0x118] sm:$0xf]
        %v4933 = vld [vmem:[#allocation9 + $0x11c] sm:$0xf]
        %v4934 = vld [vmem:[#allocation9 + $0x120] sm:$0xf]
        %v4935 = vld [vmem:[#allocation9 + $0x124] sm:$0xf]
        %v4936 = vld [vmem:[#allocation9 + $0x128] sm:$0xf]
        %v4937 = vld [vmem:[#allocation9 + $0x12c] sm:$0xf]
        %v4938 = vld [vmem:[#allocation9 + $0x130] sm:$0xf]
        %v4939 = vld [vmem:[#allocation9 + $0x134] sm:$0xf]
        %v4940 = vld [vmem:[#allocation9 + $0x138] sm:$0xf]
        %v4941 = vld [vmem:[#allocation9 + $0x13c] sm:$0xf]
        %v4942 = vld [vmem:[#allocation9 + $0x140] sm:$0xf]
        %v4943 = vld [vmem:[#allocation9 + $0x144] sm:$0xf]
        %v4944 = vld [vmem:[#allocation9 + $0x148] sm:$0xf]
        %v4945 = vld [vmem:[#allocation9 + $0x14c] sm:$0xf]
        %v4946 = vld [vmem:[#allocation9 + $0x150] sm:$0xf]
        %v4947 = vld [vmem:[#allocation9 + $0x154] sm:$0xf]
        %v4948 = vld [vmem:[#allocation9 + $0x158] sm:$0xf]
        %v4949 = vld [vmem:[#allocation9 + $0x15c] sm:$0xf]
        %v4950 = vld [vmem:[#allocation9 + $0x160] sm:$0xf]
        %v4951 = vld [vmem:[#allocation9 + $0x164] sm:$0xf]
        %v4952 = vld [vmem:[#allocation9 + $0x168] sm:$0xf]
        %v4953 = vld [vmem:[#allocation9 + $0x16c] sm:$0xf]
        %v4954 = vld [vmem:[#allocation9 + $0x170] sm:$0xf]
        %v4955 = vld [vmem:[#allocation9 + $0x174] sm:$0xf]
        %v4956 = vld [vmem:[#allocation9 + $0x178] sm:$0xf]
        %v4957 = vld [vmem:[#allocation9 + $0x17c] sm:$0xf]
        %v4958 = vld [vmem:[#allocation9 + $0x180] sm:$0xf]
        %v4959 = vld [vmem:[#allocation9 + $0x184] sm:$0xf]
        %v4960 = vld [vmem:[#allocation9 + $0x188] sm:$0xf]
        %v4961 = vld [vmem:[#allocation9 + $0x18c] sm:$0xf]
        %v4962 = vld [vmem:[#allocation9 + $0x190] sm:$0xf]
        %v4963 = vld [vmem:[#allocation9 + $0x194] sm:$0xf]
        %v4964 = vld [vmem:[#allocation9 + $0x198] sm:$0xf]
        %v4965 = vld [vmem:[#allocation9 + $0x19c] sm:$0xf]
        %v4966 = vld [vmem:[#allocation9 + $0x1a0] sm:$0xf]
        %v4967 = vld [vmem:[#allocation9 + $0x1a4] sm:$0xf]
        %v4968 = vld [vmem:[#allocation9 + $0x1a8] sm:$0xf]
        %v4969 = vld [vmem:[#allocation9 + $0x1ac] sm:$0xf]
        %v4970 = vld [vmem:[#allocation9 + $0x1b0] sm:$0xf]
        %v4971 = vld [vmem:[#allocation9 + $0x1b4] sm:$0xf]
        %v4972 = vld [vmem:[#allocation9 + $0x1b8] sm:$0xf]
        %v4973 = vld [vmem:[#allocation9 + $0x1bc] sm:$0xf]
        %v4974 = vld [vmem:[#allocation9 + $0x1c0] sm:$0xf]
        %v4975 = vld [vmem:[#allocation9 + $0x1c4] sm:$0xf]
        %v4976 = vld [vmem:[#allocation9 + $0x1c8] sm:$0xf]
        %v4977 = vld [vmem:[#allocation9 + $0x1cc] sm:$0xf]
        %v4978 = vld [vmem:[#allocation9 + $0x1d0] sm:$0xf]
        %v4979 = vld [vmem:[#allocation9 + $0x1d4] sm:$0xf]
        %v4980 = vld [vmem:[#allocation9 + $0x1d8] sm:$0xf]
        %v4981 = vld [vmem:[#allocation9 + $0x1dc] sm:$0xf]
        %v4982 = vld [vmem:[#allocation9 + $0x1e0] sm:$0xf]
        %v4983 = vld [vmem:[#allocation9 + $0x1e4] sm:$0xf]
        %v4984 = vld [vmem:[#allocation9 + $0x1e8] sm:$0xf]
        %v4985 = vld [vmem:[#allocation9 + $0x1ec] sm:$0xf]
        %v4986 = vld [vmem:[#allocation9 + $0x1f0] sm:$0xf]
        %v4987 = vld [vmem:[#allocation9 + $0x1f4] sm:$0xf]
        %v4988 = vld [vmem:[#allocation9 + $0x1f8] sm:$0xf]
        %v4989 = vld [vmem:[#allocation9 + $0x1fc] sm:$0xf]
        %v4990 = vld [vmem:[#allocation9 + $0x200] sm:$0xf]
        %v4991 = vld [vmem:[#allocation9 + $0x204] sm:$0xf]
        %v4992 = vld [vmem:[#allocation9 + $0x208] sm:$0xf]
        %v4993 = vld [vmem:[#allocation9 + $0x20c] sm:$0xf]
        %v4994 = vld [vmem:[#allocation9 + $0x210] sm:$0xf]
        %v4995 = vld [vmem:[#allocation9 + $0x214] sm:$0xf]
        %v4996 = vld [vmem:[#allocation9 + $0x218] sm:$0xf]
        %v4997 = vld [vmem:[#allocation9 + $0x21c] sm:$0xf]
        %v4998 = vld [vmem:[#allocation9 + $0x220] sm:$0xf]
        %v4999 = vld [vmem:[#allocation9 + $0x224] sm:$0xf]
        %v5000 = vld [vmem:[#allocation9 + $0x228] sm:$0xf]
        %v5001 = vld [vmem:[#allocation9 + $0x22c] sm:$0xf]
        %v5002 = vld [vmem:[#allocation9 + $0x230] sm:$0xf]
        %v5003 = vld [vmem:[#allocation9 + $0x234] sm:$0xf]
        %v5004 = vld [vmem:[#allocation9 + $0x238] sm:$0xf]
        %v5005 = vld [vmem:[#allocation9 + $0x23c] sm:$0xf]
        %v5006 = vld [vmem:[%s4] sm:$0x1]
        %v5008 = vlaneseq
        %v5009 = vshrl.u32 %v5008, 7
        %v5010 = vsub.s32 0, %v5009
        %v5011 = vrot.slane %v5006, %v5010
        %v5157 = vunpack.c.l.b16 %v4862
        %v5158 = vunpack.c.l.b16 %v4863
        %v5159 = vunpack.c.l.b16 %v4864
        %v5160 = vunpack.c.l.b16 %v4865
        %v5161 = vunpack.c.l.b16 %v4866
        %v5162 = vunpack.c.l.b16 %v4867
        %v5163 = vunpack.c.l.b16 %v4868
        %v5164 = vunpack.c.l.b16 %v4869
        %v5165 = vunpack.c.l.b16 %v4870
        %v5166 = vunpack.c.l.b16 %v4871
        %v5167 = vunpack.c.l.b16 %v4872
        %v5168 = vunpack.c.l.b16 %v4873
        %v5169 = vunpack.c.l.b16 %v4874
        %v5170 = vunpack.c.l.b16 %v4875
        %v5171 = vunpack.c.l.b16 %v4876
        %v5172 = vunpack.c.l.b16 %v4877
        %v5173 = vunpack.c.l.b16 %v4878
        %v5174 = vunpack.c.l.b16 %v4879
        %v5175 = vunpack.c.l.b16 %v4880
        %v5176 = vunpack.c.l.b16 %v4881
        %v5177 = vunpack.c.l.b16 %v4882
        %v5178 = vunpack.c.l.b16 %v4883
        %v5179 = vunpack.c.l.b16 %v4884
        %v5180 = vunpack.c.l.b16 %v4885
        %v5181 = vunpack.c.l.b16 %v4886
        %v5182 = vunpack.c.l.b16 %v4887
        %v5183 = vunpack.c.l.b16 %v4888
        %v5184 = vunpack.c.l.b16 %v4889
        %v5185 = vunpack.c.l.b16 %v4890
        %v5186 = vunpack.c.l.b16 %v4891
        %v5187 = vunpack.c.l.b16 %v4892
        %v5188 = vunpack.c.l.b16 %v4893
        %v5189 = vunpack.c.l.b16 %v4894
        %v5190 = vunpack.c.l.b16 %v4895
        %v5191 = vunpack.c.l.b16 %v4896
        %v5192 = vunpack.c.l.b16 %v4897
        %v5193 = vunpack.c.l.b16 %v4898
        %v5194 = vunpack.c.l.b16 %v4899
        %v5195 = vunpack.c.l.b16 %v4900
        %v5196 = vunpack.c.l.b16 %v4901
        %v5197 = vunpack.c.l.b16 %v4902
        %v5198 = vunpack.c.l.b16 %v4903
        %v5199 = vunpack.c.l.b16 %v4904
        %v5200 = vunpack.c.l.b16 %v4905
        %v5201 = vunpack.c.l.b16 %v4906
        %v5202 = vunpack.c.l.b16 %v4907
        %v5203 = vunpack.c.l.b16 %v4908
        %v5204 = vunpack.c.l.b16 %v4909
        %v5205 = vunpack.c.l.b16 %v4910
        %v5206 = vunpack.c.l.b16 %v4911
        %v5207 = vunpack.c.l.b16 %v4912
        %v5208 = vunpack.c.l.b16 %v4913
        %v5209 = vunpack.c.l.b16 %v4914
        %v5210 = vunpack.c.l.b16 %v4915
        %v5211 = vunpack.c.l.b16 %v4916
        %v5212 = vunpack.c.l.b16 %v4917
        %v5213 = vunpack.c.l.b16 %v4918
        %v5214 = vunpack.c.l.b16 %v4919
        %v5215 = vunpack.c.l.b16 %v4920
        %v5216 = vunpack.c.l.b16 %v4921
        %v5217 = vunpack.c.l.b16 %v4922
        %v5218 = vunpack.c.l.b16 %v4923
        %v5219 = vunpack.c.l.b16 %v4924
        %v5220 = vunpack.c.l.b16 %v4925
        %v5221 = vunpack.c.l.b16 %v4926
        %v5222 = vunpack.c.l.b16 %v4927
        %v5223 = vunpack.c.l.b16 %v4928
        %v5224 = vunpack.c.l.b16 %v4929
        %v5225 = vunpack.c.l.b16 %v4930
        %v5226 = vunpack.c.l.b16 %v4931
        %v5227 = vunpack.c.l.b16 %v4932
        %v5228 = vunpack.c.l.b16 %v4933
        %v5229 = vunpack.c.l.b16 %v4934
        %v5230 = vunpack.c.l.b16 %v4935
        %v5231 = vunpack.c.l.b16 %v4936
        %v5232 = vunpack.c.l.b16 %v4937
        %v5233 = vunpack.c.l.b16 %v4938
        %v5234 = vunpack.c.l.b16 %v4939
        %v5235 = vunpack.c.l.b16 %v4940
        %v5236 = vunpack.c.l.b16 %v4941
        %v5237 = vunpack.c.l.b16 %v4942
        %v5238 = vunpack.c.l.b16 %v4943
        %v5239 = vunpack.c.l.b16 %v4944
        %v5240 = vunpack.c.l.b16 %v4945
        %v5241 = vunpack.c.l.b16 %v4946
        %v5242 = vunpack.c.l.b16 %v4947
        %v5243 = vunpack.c.l.b16 %v4948
        %v5244 = vunpack.c.l.b16 %v4949
        %v5245 = vunpack.c.l.b16 %v4950
        %v5246 = vunpack.c.l.b16 %v4951
        %v5247 = vunpack.c.l.b16 %v4952
        %v5248 = vunpack.c.l.b16 %v4953
        %v5249 = vunpack.c.l.b16 %v4954
        %v5250 = vunpack.c.l.b16 %v4955
        %v5251 = vunpack.c.l.b16 %v4956
        %v5252 = vunpack.c.l.b16 %v4957
        %v5253 = vunpack.c.l.b16 %v4958
        %v5254 = vunpack.c.l.b16 %v4959
        %v5255 = vunpack.c.l.b16 %v4960
        %v5256 = vunpack.c.l.b16 %v4961
        %v5257 = vunpack.c.l.b16 %v4962
        %v5258 = vunpack.c.l.b16 %v4963
        %v5259 = vunpack.c.l.b16 %v4964
        %v5260 = vunpack.c.l.b16 %v4965
        %v5261 = vunpack.c.l.b16 %v4966
        %v5262 = vunpack.c.l.b16 %v4967
        %v5263 = vunpack.c.l.b16 %v4968
        %v5264 = vunpack.c.l.b16 %v4969
        %v5265 = vunpack.c.l.b16 %v4970
        %v5266 = vunpack.c.l.b16 %v4971
        %v5267 = vunpack.c.l.b16 %v4972
        %v5268 = vunpack.c.l.b16 %v4973
        %v5269 = vunpack.c.l.b16 %v4974
        %v5270 = vunpack.c.l.b16 %v4975
        %v5271 = vunpack.c.l.b16 %v4976
        %v5272 = vunpack.c.l.b16 %v4977
        %v5273 = vunpack.c.l.b16 %v4978
        %v5274 = vunpack.c.l.b16 %v4979
        %v5275 = vunpack.c.l.b16 %v4980
        %v5276 = vunpack.c.l.b16 %v4981
        %v5277 = vunpack.c.l.b16 %v4982
        %v5278 = vunpack.c.l.b16 %v4983
        %v5279 = vunpack.c.l.b16 %v4984
        %v5280 = vunpack.c.l.b16 %v4985
        %v5281 = vunpack.c.l.b16 %v4986
        %v5282 = vunpack.c.l.b16 %v4987
        %v5283 = vunpack.c.l.b16 %v4988
        %v5284 = vunpack.c.l.b16 %v4989
        %v5285 = vunpack.c.l.b16 %v4990
        %v5286 = vunpack.c.l.b16 %v4991
        %v5287 = vunpack.c.l.b16 %v4992
        %v5288 = vunpack.c.l.b16 %v4993
        %v5289 = vunpack.c.l.b16 %v4994
        %v5290 = vunpack.c.l.b16 %v4995
        %v5291 = vunpack.c.l.b16 %v4996
        %v5292 = vunpack.c.l.b16 %v4997
        %v5293 = vunpack.c.l.b16 %v4998
        %v5294 = vunpack.c.l.b16 %v4999
        %v5295 = vunpack.c.l.b16 %v5000
        %v5296 = vunpack.c.l.b16 %v5001
        %v5297 = vunpack.c.l.b16 %v5002
        %v5298 = vunpack.c.l.b16 %v5003
        %v5299 = vunpack.c.l.b16 %v5004
        %v5300 = vunpack.c.l.b16 %v5005
        %v5301 = vpack.c.b16 %v5158, %v5157
        %v5302 = vpack.c.b16 %v5160, %v5159
        %v5303 = vpack.c.b16 %v5162, %v5161
        %v5304 = vpack.c.b16 %v5164, %v5163
        %v5305 = vpack.c.b16 %v5166, %v5165
        %v5306 = vpack.c.b16 %v5168, %v5167
        %v5307 = vpack.c.b16 %v5170, %v5169
        %v5308 = vpack.c.b16 %v5172, %v5171
        %v5309 = vpack.c.b16 %v5174, %v5173
        %v5310 = vpack.c.b16 %v5176, %v5175
        %v5311 = vpack.c.b16 %v5178, %v5177
        %v5312 = vpack.c.b16 %v5180, %v5179
        %v5313 = vpack.c.b16 %v5182, %v5181
        %v5314 = vpack.c.b16 %v5184, %v5183
        %v5315 = vpack.c.b16 %v5186, %v5185
        %v5316 = vpack.c.b16 %v5188, %v5187
        %v5317 = vpack.c.b16 %v5190, %v5189
        %v5318 = vpack.c.b16 %v5192, %v5191
        %v5319 = vpack.c.b16 %v5194, %v5193
        %v5320 = vpack.c.b16 %v5196, %v5195
        %v5321 = vpack.c.b16 %v5198, %v5197
        %v5322 = vpack.c.b16 %v5200, %v5199
        %v5323 = vpack.c.b16 %v5202, %v5201
        %v5324 = vpack.c.b16 %v5204, %v5203
        %v5325 = vpack.c.b16 %v5206, %v5205
        %v5326 = vpack.c.b16 %v5208, %v5207
        %v5327 = vpack.c.b16 %v5210, %v5209
        %v5328 = vpack.c.b16 %v5212, %v5211
        %v5329 = vpack.c.b16 %v5214, %v5213
        %v5330 = vpack.c.b16 %v5216, %v5215
        %v5331 = vpack.c.b16 %v5218, %v5217
        %v5332 = vpack.c.b16 %v5220, %v5219
        %v5333 = vpack.c.b16 %v5222, %v5221
        %v5334 = vpack.c.b16 %v5224, %v5223
        %v5335 = vpack.c.b16 %v5226, %v5225
        %v5336 = vpack.c.b16 %v5228, %v5227
        %v5337 = vpack.c.b16 %v5230, %v5229
        %v5338 = vpack.c.b16 %v5232, %v5231
        %v5339 = vpack.c.b16 %v5234, %v5233
        %v5340 = vpack.c.b16 %v5236, %v5235
        %v5341 = vpack.c.b16 %v5238, %v5237
        %v5342 = vpack.c.b16 %v5240, %v5239
        %v5343 = vpack.c.b16 %v5242, %v5241
        %v5344 = vpack.c.b16 %v5244, %v5243
        %v5345 = vpack.c.b16 %v5246, %v5245
        %v5346 = vpack.c.b16 %v5248, %v5247
        %v5347 = vpack.c.b16 %v5250, %v5249
        %v5348 = vpack.c.b16 %v5252, %v5251
        %v5349 = vpack.c.b16 %v5254, %v5253
        %v5350 = vpack.c.b16 %v5256, %v5255
        %v5351 = vpack.c.b16 %v5258, %v5257
        %v5352 = vpack.c.b16 %v5260, %v5259
        %v5353 = vpack.c.b16 %v5262, %v5261
        %v5354 = vpack.c.b16 %v5264, %v5263
        %v5355 = vpack.c.b16 %v5266, %v5265
        %v5356 = vpack.c.b16 %v5268, %v5267
        %v5357 = vpack.c.b16 %v5270, %v5269
        %v5358 = vpack.c.b16 %v5272, %v5271
        %v5359 = vpack.c.b16 %v5274, %v5273
        %v5360 = vpack.c.b16 %v5276, %v5275
        %v5361 = vpack.c.b16 %v5278, %v5277
        %v5362 = vpack.c.b16 %v5280, %v5279
        %v5363 = vpack.c.b16 %v5282, %v5281
        %v5364 = vpack.c.b16 %v5284, %v5283
        %v5365 = vpack.c.b16 %v5286, %v5285
        %v5366 = vpack.c.b16 %v5288, %v5287
        %v5367 = vpack.c.b16 %v5290, %v5289
        %v5368 = vpack.c.b16 %v5292, %v5291
        %v5369 = vpack.c.b16 %v5294, %v5293
        %v5370 = vpack.c.b16 %v5296, %v5295
        %v5371 = vpack.c.b16 %v5298, %v5297
        %v5372 = vpack.c.b16 %v5300, %v5299
        %5445 = vmatprep.subr.bf16.mxu0 0
        %5446 = vmatpush1.bf16.msra.mxu0 %v5301
        %5447 = vmatprep.subr.bf16.mxu0 0
        %5448 = vmatpush1.bf16.msra.mxu0 %v5302
        %5449 = vmatprep.subr.bf16.mxu0 0
        %5450 = vmatpush1.bf16.msra.mxu0 %v5303
        %5451 = vmatprep.subr.bf16.mxu0 0
        %5452 = vmatpush1.bf16.msra.mxu0 %v5304
        %5453 = vmatprep.subr.bf16.mxu0 0
        %5454 = vmatpush1.bf16.msra.mxu0 %v5305
        %5455 = vmatprep.subr.bf16.mxu0 0
        %5456 = vmatpush1.bf16.msra.mxu0 %v5306
        %5457 = vmatprep.subr.bf16.mxu0 0
        %5458 = vmatpush1.bf16.msra.mxu0 %v5307
        %5459 = vmatprep.subr.bf16.mxu0 0
        %5460 = vmatpush1.bf16.msra.mxu0 %v5308
        %5461 = vmatprep.subr.bf16.mxu0 0
        %5462 = vmatpush1.bf16.msra.mxu0 %v5309
        %5463 = vmatprep.subr.bf16.mxu0 0
        %5464 = vmatpush1.bf16.msra.mxu0 %v5310
        %5465 = vmatprep.subr.bf16.mxu0 0
        %5466 = vmatpush1.bf16.msra.mxu0 %v5311
        %5467 = vmatprep.subr.bf16.mxu0 0
        %5468 = vmatpush1.bf16.msra.mxu0 %v5312
        %5469 = vmatprep.subr.bf16.mxu0 0
        %5470 = vmatpush1.bf16.msra.mxu0 %v5313
        %5471 = vmatprep.subr.bf16.mxu0 0
        %5472 = vmatpush1.bf16.msra.mxu0 %v5314
        %5473 = vmatprep.subr.bf16.mxu0 0
        %5474 = vmatpush1.bf16.msra.mxu0 %v5315
        %5475 = vmatprep.subr.bf16.mxu0 0
        %5476 = vmatpush1.bf16.msra.mxu0 %v5316
        %5477 = vmatprep.mubr.bf16.mxu0 %v4719
        %5478 = vmatmul.mubr.bf16.gmra.mrb[0].mxu0 %v4718
        %v5479 = vpop.f32.mrb[0].mxu0
        %v5480 = vadd.f32 %v5011, %v5479
        %v5481 = vpop.f32.mrb[0].mxu0
        %v5482 = vpop.f32.mrb[0].mxu0
        %v5483 = vadd.f32 %v5011, %v5482
        %v5484 = vpop.f32.mrb[0].mxu0
        %5485 = vmatprep.mubr.bf16.mxu0 %v4728
        %5486 = vmatmul.mubr.bf16.gmra.mrb[0].mxu0 %v4727
        %v5487 = vpop.f32.mrb[0].mxu0
        %v5488 = vadd.f32 %v5011, %v5487
        %v5489 = vpop.f32.mrb[0].mxu0
        %v5490 = vpop.f32.mrb[0].mxu0
        %v5491 = vadd.f32 %v5011, %v5490
        %v5492 = vpop.f32.mrb[0].mxu0
        %5493 = vmatprep.mubr.bf16.mxu0 %v4737
        %5494 = vmatmul.mubr.bf16.gmra.mrb[0].mxu0 %v4736
        %v5495 = vpop.f32.mrb[0].mxu0
        %v5496 = vadd.f32 %v5011, %v5495
        %v5497 = vpop.f32.mrb[0].mxu0
        %v5498 = vpop.f32.mrb[0].mxu0
        %v5499 = vadd.f32 %v5011, %v5498
        %v5500 = vpop.f32.mrb[0].mxu0
        %5501 = vmatprep.mubr.bf16.mxu0 %v4746
        %5502 = vmatmul.mubr.bf16.gmra.mrb[0].mxu0 %v4745
        %v5503 = vpop.f32.mrb[0].mxu0
        %v5504 = vadd.f32 %v5011, %v5503
        %v5505 = vpop.f32.mrb[0].mxu0
        %v5506 = vpop.f32.mrb[0].mxu0
        %v5507 = vadd.f32 %v5011, %v5506
        %v5508 = vpop.f32.mrb[0].mxu0
        %5509 = vmatprep.mubr.bf16.mxu0 %v4755
        %5510 = vmatmul.mubr.bf16.gmra.mrb[0].mxu0 %v4754
        %v5511 = vpop.f32.mrb[0].mxu0
        %v5512 = vadd.f32 %v5011, %v5511
        %v5513 = vpop.f32.mrb[0].mxu0
        %v5514 = vpop.f32.mrb[0].mxu0
        %v5515 = vadd.f32 %v5011, %v5514
        %v5516 = vpop.f32.mrb[0].mxu0
        %5517 = vmatprep.mubr.bf16.mxu0 %v4764
        %5518 = vmatmul.mubr.bf16.gmra.mrb[0].mxu0 %v4763
        %v5519 = vpop.f32.mrb[0].mxu0
        %v5520 = vadd.f32 %v5011, %v5519
        %v5521 = vpop.f32.mrb[0].mxu0
        %v5522 = vpop.f32.mrb[0].mxu0
        %v5523 = vadd.f32 %v5011, %v5522
        %v5524 = vpop.f32.mrb[0].mxu0
        %5525 = vmatprep.mubr.bf16.mxu0 %v4773
        %5526 = vmatmul.mubr.bf16.gmra.mrb[0].mxu0 %v4772
        %v5527 = vpop.f32.mrb[0].mxu0
        %v5528 = vadd.f32 %v5011, %v5527
        %v5529 = vpop.f32.mrb[0].mxu0
        %v5530 = vpop.f32.mrb[0].mxu0
        %v5531 = vadd.f32 %v5011, %v5530
        %v5532 = vpop.f32.mrb[0].mxu0
        %5533 = vmatprep.mubr.bf16.mxu0 %v4782
        %5534 = vmatmul.mubr.bf16.gmra.mrb[0].mxu0 %v4781
        %v5535 = vpop.f32.mrb[0].mxu0
        %v5536 = vadd.f32 %v5011, %v5535
        %v5537 = vpop.f32.mrb[0].mxu0
        %v5538 = vpop.f32.mrb[0].mxu0
        %v5539 = vadd.f32 %v5011, %v5538
        %v5540 = vpop.f32.mrb[0].mxu0
        %5541 = vmatprep.mubr.bf16.mxu0 %v4791
        %5542 = vmatmul.mubr.bf16.gmra.mrb[0].mxu0 %v4790
        %v5543 = vpop.f32.mrb[0].mxu0
        %v5544 = vadd.f32 %v5011, %v5543
        %v5545 = vpop.f32.mrb[0].mxu0
        %v5546 = vpop.f32.mrb[0].mxu0
        %v5547 = vadd.f32 %v5011, %v5546
        %v5548 = vpop.f32.mrb[0].mxu0
        %5549 = vmatprep.mubr.bf16.mxu0 %v4800
        %5550 = vmatmul.mubr.bf16.gmra.mrb[0].mxu0 %v4799
        %v5551 = vpop.f32.mrb[0].mxu0
        %v5552 = vadd.f32 %v5011, %v5551
        %v5553 = vpop.f32.mrb[0].mxu0
        %v5554 = vpop.f32.mrb[0].mxu0
        %v5555 = vadd.f32 %v5011, %v5554
        %v5556 = vpop.f32.mrb[0].mxu0
        %5557 = vmatprep.mubr.bf16.mxu0 %v4809
        %5558 = vmatmul.mubr.bf16.gmra.mrb[0].mxu0 %v4808
        %v5559 = vpop.f32.mrb[0].mxu0
        %v5560 = vadd.f32 %v5011, %v5559
        %v5561 = vpop.f32.mrb[0].mxu0
        %v5562 = vpop.f32.mrb[0].mxu0
        %v5563 = vadd.f32 %v5011, %v5562
        %v5564 = vpop.f32.mrb[0].mxu0
        %5565 = vmatprep.mubr.bf16.mxu0 %v4818
        %5566 = vmatmul.mubr.bf16.gmra.mrb[0].mxu0 %v4817
        %v5567 = vpop.f32.mrb[0].mxu0
        %v5568 = vadd.f32 %v5011, %v5567
        %v5569 = vpop.f32.mrb[0].mxu0
        %v5570 = vpop.f32.mrb[0].mxu0
        %v5571 = vadd.f32 %v5011, %v5570
        %v5572 = vpop.f32.mrb[0].mxu0
        %5573 = vmatprep.mubr.bf16.mxu0 %v4827
        %5574 = vmatmul.mubr.bf16.gmra.mrb[0].mxu0 %v4826
        %v5575 = vpop.f32.mrb[0].mxu0
        %v5576 = vadd.f32 %v5011, %v5575
        %v5577 = vpop.f32.mrb[0].mxu0
        %v5578 = vpop.f32.mrb[0].mxu0
        %v5579 = vadd.f32 %v5011, %v5578
        %v5580 = vpop.f32.mrb[0].mxu0
        %5581 = vmatprep.mubr.bf16.mxu0 %v4836
        %5582 = vmatmul.mubr.bf16.gmra.mrb[0].mxu0 %v4835
        %v5583 = vpop.f32.mrb[0].mxu0
        %v5584 = vadd.f32 %v5011, %v5583
        %v5585 = vpop.f32.mrb[0].mxu0
        %v5586 = vpop.f32.mrb[0].mxu0
        %v5587 = vadd.f32 %v5011, %v5586
        %v5588 = vpop.f32.mrb[0].mxu0
        %5589 = vmatprep.mubr.bf16.mxu0 %v4845
        %5590 = vmatmul.mubr.bf16.gmra.mrb[0].mxu0 %v4844
        %v5591 = vpop.f32.mrb[0].mxu0
        %v5592 = vadd.f32 %v5011, %v5591
        %v5593 = vpop.f32.mrb[0].mxu0
        %v5594 = vpop.f32.mrb[0].mxu0
        %v5595 = vadd.f32 %v5011, %v5594
        %v5596 = vpop.f32.mrb[0].mxu0
        %5597 = vmatprep.mubr.bf16.mxu0 %v4854
        %5598 = vmatmul.mubr.bf16.gmra.mrb[0].mxu0 %v4853
        %v5599 = vpop.f32.mrb[0].mxu0
        %v5600 = vadd.f32 %v5011, %v5599
        %v5601 = vpop.f32.mrb[0].mxu0
        %v5602 = vpop.f32.mrb[0].mxu0
        %v5603 = vadd.f32 %v5011, %v5602
        %v5604 = vpop.f32.mrb[0].mxu0
        %5605 = vdwg.mxu0
        %5606 = vmatprep.subr.bf16.mxu0 0
        %5607 = vmatpush1.bf16.msra.mxu0 %v5317
        %5608 = vmatprep.subr.bf16.mxu0 0
        %5609 = vmatpush1.bf16.msra.mxu0 %v5318
        %5610 = vmatprep.subr.bf16.mxu0 0
        %5611 = vmatpush1.bf16.msra.mxu0 %v5319
        %5612 = vmatprep.subr.bf16.mxu0 0
        %5613 = vmatpush1.bf16.msra.mxu0 %v5320
        %5614 = vmatprep.subr.bf16.mxu0 0
        %5615 = vmatpush1.bf16.msra.mxu0 %v5321
        %5616 = vmatprep.subr.bf16.mxu0 0
        %5617 = vmatpush1.bf16.msra.mxu0 %v5322
        %5618 = vmatprep.subr.bf16.mxu0 0
        %5619 = vmatpush1.bf16.msra.mxu0 %v5323
        %5620 = vmatprep.subr.bf16.mxu0 0
        %5621 = vmatpush1.bf16.msra.mxu0 %v5324
        %5622 = vmatprep.subr.bf16.mxu0 0
        %5623 = vmatpush1.bf16.msra.mxu0 %v5325
        %5624 = vmatprep.subr.bf16.mxu0 0
        %5625 = vmatpush1.bf16.msra.mxu0 %v5326
        %5626 = vmatprep.subr.bf16.mxu0 0
        %5627 = vmatpush1.bf16.msra.mxu0 %v5327
        %5628 = vmatprep.subr.bf16.mxu0 0
        %5629 = vmatpush1.bf16.msra.mxu0 %v5328
        %5630 = vmatprep.subr.bf16.mxu0 0
        %5631 = vmatpush1.bf16.msra.mxu0 %v5329
        %5632 = vmatprep.subr.bf16.mxu0 0
        %5633 = vmatpush1.bf16.msra.mxu0 %v5330
        %5634 = vmatprep.subr.bf16.mxu0 0
        %5635 = vmatpush1.bf16.msra.mxu0 %v5331
        %5636 = vmatprep.subr.bf16.mxu0 0
        %5637 = vmatpush1.bf16.msra.mxu0 %v5332
        %5638 = vmatprep.mubr.bf16.mxu0 %v4721
        %5639 = vmatmul.mubr.bf16.gmra.mrb[0].mxu0 %v4720
        %v5640 = vpop.f32.mrb[0].mxu0
        %v5641 = vadd.f32 %v5480, %v5640
        %v5642 = vpop.f32.mrb[0].mxu0
        %v5643 = vpop.f32.mrb[0].mxu0
        %v5644 = vadd.f32 %v5483, %v5643
        %v5645 = vpop.f32.mrb[0].mxu0
        %5646 = vmatprep.mubr.bf16.mxu0 %v4730
        %5647 = vmatmul.mubr.bf16.gmra.mrb[0].mxu0 %v4729
        %v5648 = vpop.f32.mrb[0].mxu0
        %v5649 = vadd.f32 %v5488, %v5648
        %v5650 = vpop.f32.mrb[0].mxu0
        %v5651 = vpop.f32.mrb[0].mxu0
        %v5652 = vadd.f32 %v5491, %v5651
        %v5653 = vpop.f32.mrb[0].mxu0
        %5654 = vmatprep.mubr.bf16.mxu0 %v4739
        %5655 = vmatmul.mubr.bf16.gmra.mrb[0].mxu0 %v4738
        %v5656 = vpop.f32.mrb[0].mxu0
        %v5657 = vadd.f32 %v5496, %v5656
        %v5658 = vpop.f32.mrb[0].mxu0
        %v5659 = vpop.f32.mrb[0].mxu0
        %v5660 = vadd.f32 %v5499, %v5659
        %v5661 = vpop.f32.mrb[0].mxu0
        %5662 = vmatprep.mubr.bf16.mxu0 %v4748
        %5663 = vmatmul.mubr.bf16.gmra.mrb[0].mxu0 %v4747
        %v5664 = vpop.f32.mrb[0].mxu0
        %v5665 = vadd.f32 %v5504, %v5664
        %v5666 = vpop.f32.mrb[0].mxu0
        %v5667 = vpop.f32.mrb[0].mxu0
        %v5668 = vadd.f32 %v5507, %v5667
        %v5669 = vpop.f32.mrb[0].mxu0
        %5670 = vmatprep.mubr.bf16.mxu0 %v4757
        %5671 = vmatmul.mubr.bf16.gmra.mrb[0].mxu0 %v4756
        %v5672 = vpop.f32.mrb[0].mxu0
        %v5673 = vadd.f32 %v5512, %v5672
        %v5674 = vpop.f32.mrb[0].mxu0
        %v5675 = vpop.f32.mrb[0].mxu0
        %v5676 = vadd.f32 %v5515, %v5675
        %v5677 = vpop.f32.mrb[0].mxu0
        %5678 = vmatprep.mubr.bf16.mxu0 %v4766
        %5679 = vmatmul.mubr.bf16.gmra.mrb[0].mxu0 %v4765
        %v5680 = vpop.f32.mrb[0].mxu0
        %v5681 = vadd.f32 %v5520, %v5680
        %v5682 = vpop.f32.mrb[0].mxu0
        %v5683 = vpop.f32.mrb[0].mxu0
        %v5684 = vadd.f32 %v5523, %v5683
        %v5685 = vpop.f32.mrb[0].mxu0
        %5686 = vmatprep.mubr.bf16.mxu0 %v4775
        %5687 = vmatmul.mubr.bf16.gmra.mrb[0].mxu0 %v4774
        %v5688 = vpop.f32.mrb[0].mxu0
        %v5689 = vadd.f32 %v5528, %v5688
        %v5690 = vpop.f32.mrb[0].mxu0
        %v5691 = vpop.f32.mrb[0].mxu0
        %v5692 = vadd.f32 %v5531, %v5691
        %v5693 = vpop.f32.mrb[0].mxu0
        %5694 = vmatprep.mubr.bf16.mxu0 %v4784
        %5695 = vmatmul.mubr.bf16.gmra.mrb[0].mxu0 %v4783
        %v5696 = vpop.f32.mrb[0].mxu0
        %v5697 = vadd.f32 %v5536, %v5696
        %v5698 = vpop.f32.mrb[0].mxu0
        %v5699 = vpop.f32.mrb[0].mxu0
        %v5700 = vadd.f32 %v5539, %v5699
        %v5701 = vpop.f32.mrb[0].mxu0
        %5702 = vmatprep.mubr.bf16.mxu0 %v4793
        %5703 = vmatmul.mubr.bf16.gmra.mrb[0].mxu0 %v4792
        %v5704 = vpop.f32.mrb[0].mxu0
        %v5705 = vadd.f32 %v5544, %v5704
        %v5706 = vpop.f32.mrb[0].mxu0
        %v5707 = vpop.f32.mrb[0].mxu0
        %v5708 = vadd.f32 %v5547, %v5707
        %v5709 = vpop.f32.mrb[0].mxu0
        %5710 = vmatprep.mubr.bf16.mxu0 %v4802
        %5711 = vmatmul.mubr.bf16.gmra.mrb[0].mxu0 %v4801
        %v5712 = vpop.f32.mrb[0].mxu0
        %v5713 = vadd.f32 %v5552, %v5712
        %v5714 = vpop.f32.mrb[0].mxu0
        %v5715 = vpop.f32.mrb[0].mxu0
        %v5716 = vadd.f32 %v5555, %v5715
        %v5717 = vpop.f32.mrb[0].mxu0
        %5718 = vmatprep.mubr.bf16.mxu0 %v4811
        %5719 = vmatmul.mubr.bf16.gmra.mrb[0].mxu0 %v4810
        %v5720 = vpop.f32.mrb[0].mxu0
        %v5721 = vadd.f32 %v5560, %v5720
        %v5722 = vpop.f32.mrb[0].mxu0
        %v5723 = vpop.f32.mrb[0].mxu0
        %v5724 = vadd.f32 %v5563, %v5723
        %v5725 = vpop.f32.mrb[0].mxu0
        %5726 = vmatprep.mubr.bf16.mxu0 %v4820
        %5727 = vmatmul.mubr.bf16.gmra.mrb[0].mxu0 %v4819
        %v5728 = vpop.f32.mrb[0].mxu0
        %v5729 = vadd.f32 %v5568, %v5728
        %v5730 = vpop.f32.mrb[0].mxu0
        %v5731 = vpop.f32.mrb[0].mxu0
        %v5732 = vadd.f32 %v5571, %v5731
        %v5733 = vpop.f32.mrb[0].mxu0
        %5734 = vmatprep.mubr.bf16.mxu0 %v4829
        %5735 = vmatmul.mubr.bf16.gmra.mrb[0].mxu0 %v4828
        %v5736 = vpop.f32.mrb[0].mxu0
        %v5737 = vadd.f32 %v5576, %v5736
        %v5738 = vpop.f32.mrb[0].mxu0
        %v5739 = vpop.f32.mrb[0].mxu0
        %v5740 = vadd.f32 %v5579, %v5739
        %v5741 = vpop.f32.mrb[0].mxu0
        %5742 = vmatprep.mubr.bf16.mxu0 %v4838
        %5743 = vmatmul.mubr.bf16.gmra.mrb[0].mxu0 %v4837
        %v5744 = vpop.f32.mrb[0].mxu0
        %v5745 = vadd.f32 %v5584, %v5744
        %v5746 = vpop.f32.mrb[0].mxu0
        %v5747 = vpop.f32.mrb[0].mxu0
        %v5748 = vadd.f32 %v5587, %v5747
        %v5749 = vpop.f32.mrb[0].mxu0
        %5750 = vmatprep.mubr.bf16.mxu0 %v4847
        %5751 = vmatmul.mubr.bf16.gmra.mrb[0].mxu0 %v4846
        %v5752 = vpop.f32.mrb[0].mxu0
        %v5753 = vadd.f32 %v5592, %v5752
        %v5754 = vpop.f32.mrb[0].mxu0
        %v5755 = vpop.f32.mrb[0].mxu0
        %v5756 = vadd.f32 %v5595, %v5755
        %v5757 = vpop.f32.mrb[0].mxu0
        %5758 = vmatprep.mubr.bf16.mxu0 %v4856
        %5759 = vmatmul.mubr.bf16.gmra.mrb[0].mxu0 %v4855
        %v5760 = vpop.f32.mrb[0].mxu0
        %v5761 = vadd.f32 %v5600, %v5760
        %v5762 = vpop.f32.mrb[0].mxu0
        %v5763 = vpop.f32.mrb[0].mxu0
        %v5764 = vadd.f32 %v5603, %v5763
        %v5765 = vpop.f32.mrb[0].mxu0
        %5766 = vdwg.mxu0
        %5767 = vmatprep.subr.bf16.mxu0 0
        %5768 = vmatpush1.bf16.msra.mxu0 %v5333
        %5769 = vmatprep.subr.bf16.mxu0 0
        %5770 = vmatpush1.bf16.msra.mxu0 %v5334
        %5771 = vmatprep.subr.bf16.mxu0 0
        %5772 = vmatpush1.bf16.msra.mxu0 %v5335
        %5773 = vmatprep.subr.bf16.mxu0 0
        %5774 = vmatpush1.bf16.msra.mxu0 %v5336
        %5775 = vmatprep.subr.bf16.mxu0 0
        %5776 = vmatpush1.bf16.msra.mxu0 %v5337
        %5777 = vmatprep.subr.bf16.mxu0 0
        %5778 = vmatpush1.bf16.msra.mxu0 %v5338
        %5779 = vmatprep.subr.bf16.mxu0 0
        %5780 = vmatpush1.bf16.msra.mxu0 %v5339
        %5781 = vmatprep.subr.bf16.mxu0 0
        %5782 = vmatpush1.bf16.msra.mxu0 %v5340
        %5783 = vmatprep.subr.bf16.mxu0 0
        %5784 = vmatpush1.bf16.msra.mxu0 %v5341
        %5785 = vmatprep.subr.bf16.mxu0 0
        %5786 = vmatpush1.bf16.msra.mxu0 %v5342
        %5787 = vmatprep.subr.bf16.mxu0 0
        %5788 = vmatpush1.bf16.msra.mxu0 %v5343
        %5789 = vmatprep.subr.bf16.mxu0 0
        %5790 = vmatpush1.bf16.msra.mxu0 %v5344
        %5791 = vmatprep.subr.bf16.mxu0 0
        %5792 = vmatpush1.bf16.msra.mxu0 %v5345
        %5793 = vmatprep.subr.bf16.mxu0 0
        %5794 = vmatpush1.bf16.msra.mxu0 %v5346
        %5795 = vmatprep.subr.bf16.mxu0 0
        %5796 = vmatpush1.bf16.msra.mxu0 %v5347
        %5797 = vmatprep.subr.bf16.mxu0 0
        %5798 = vmatpush1.bf16.msra.mxu0 %v5348
        %5799 = vmatprep.mubr.bf16.mxu0 %v4723
        %5800 = vmatmul.mubr.bf16.gmra.mrb[0].mxu0 %v4722
        %v5801 = vpop.f32.mrb[0].mxu0
        %v5802 = vadd.f32 %v5641, %v5801
        %v5803 = vpop.f32.mrb[0].mxu0
        %v5804 = vpop.f32.mrb[0].mxu0
        %v5805 = vadd.f32 %v5644, %v5804
        %v5806 = vpop.f32.mrb[0].mxu0
        %5807 = vmatprep.mubr.bf16.mxu0 %v4732
        %5808 = vmatmul.mubr.bf16.gmra.mrb[0].mxu0 %v4731
        %v5809 = vpop.f32.mrb[0].mxu0
        %v5810 = vadd.f32 %v5649, %v5809
        %v5811 = vpop.f32.mrb[0].mxu0
        %v5812 = vpop.f32.mrb[0].mxu0
        %v5813 = vadd.f32 %v5652, %v5812
        %v5814 = vpop.f32.mrb[0].mxu0
        %5815 = vmatprep.mubr.bf16.mxu0 %v4741
        %5816 = vmatmul.mubr.bf16.gmra.mrb[0].mxu0 %v4740
        %v5817 = vpop.f32.mrb[0].mxu0
        %v5818 = vadd.f32 %v5657, %v5817
        %v5819 = vpop.f32.mrb[0].mxu0
        %v5820 = vpop.f32.mrb[0].mxu0
        %v5821 = vadd.f32 %v5660, %v5820
        %v5822 = vpop.f32.mrb[0].mxu0
        %5823 = vmatprep.mubr.bf16.mxu0 %v4750
        %5824 = vmatmul.mubr.bf16.gmra.mrb[0].mxu0 %v4749
        %v5825 = vpop.f32.mrb[0].mxu0
        %v5826 = vadd.f32 %v5665, %v5825
        %v5827 = vpop.f32.mrb[0].mxu0
        %v5828 = vpop.f32.mrb[0].mxu0
        %v5829 = vadd.f32 %v5668, %v5828
        %v5830 = vpop.f32.mrb[0].mxu0
        %5831 = vmatprep.mubr.bf16.mxu0 %v4759
        %5832 = vmatmul.mubr.bf16.gmra.mrb[0].mxu0 %v4758
        %v5833 = vpop.f32.mrb[0].mxu0
        %v5834 = vadd.f32 %v5673, %v5833
        %v5835 = vpop.f32.mrb[0].mxu0
        %v5836 = vpop.f32.mrb[0].mxu0
        %v5837 = vadd.f32 %v5676, %v5836
        %v5838 = vpop.f32.mrb[0].mxu0
        %5839 = vmatprep.mubr.bf16.mxu0 %v4768
        %5840 = vmatmul.mubr.bf16.gmra.mrb[0].mxu0 %v4767
        %v5841 = vpop.f32.mrb[0].mxu0
        %v5842 = vadd.f32 %v5681, %v5841
        %v5843 = vpop.f32.mrb[0].mxu0
        %v5844 = vpop.f32.mrb[0].mxu0
        %v5845 = vadd.f32 %v5684, %v5844
        %v5846 = vpop.f32.mrb[0].mxu0
        %5847 = vmatprep.mubr.bf16.mxu0 %v4777
        %5848 = vmatmul.mubr.bf16.gmra.mrb[0].mxu0 %v4776
        %v5849 = vpop.f32.mrb[0].mxu0
        %v5850 = vadd.f32 %v5689, %v5849
        %v5851 = vpop.f32.mrb[0].mxu0
        %v5852 = vpop.f32.mrb[0].mxu0
        %v5853 = vadd.f32 %v5692, %v5852
        %v5854 = vpop.f32.mrb[0].mxu0
        %5855 = vmatprep.mubr.bf16.mxu0 %v4786
        %5856 = vmatmul.mubr.bf16.gmra.mrb[0].mxu0 %v4785
        %v5857 = vpop.f32.mrb[0].mxu0
        %v5858 = vadd.f32 %v5697, %v5857
        %v5859 = vpop.f32.mrb[0].mxu0
        %v5860 = vpop.f32.mrb[0].mxu0
        %v5861 = vadd.f32 %v5700, %v5860
        %v5862 = vpop.f32.mrb[0].mxu0
        %5863 = vmatprep.mubr.bf16.mxu0 %v4795
        %5864 = vmatmul.mubr.bf16.gmra.mrb[0].mxu0 %v4794
        %v5865 = vpop.f32.mrb[0].mxu0
        %v5866 = vadd.f32 %v5705, %v5865
        %v5867 = vpop.f32.mrb[0].mxu0
        %v5868 = vpop.f32.mrb[0].mxu0
        %v5869 = vadd.f32 %v5708, %v5868
        %v5870 = vpop.f32.mrb[0].mxu0
        %5871 = vmatprep.mubr.bf16.mxu0 %v4804
        %5872 = vmatmul.mubr.bf16.gmra.mrb[0].mxu0 %v4803
        %v5873 = vpop.f32.mrb[0].mxu0
        %v5874 = vadd.f32 %v5713, %v5873
        %v5875 = vpop.f32.mrb[0].mxu0
        %v5876 = vpop.f32.mrb[0].mxu0
        %v5877 = vadd.f32 %v5716, %v5876
        %v5878 = vpop.f32.mrb[0].mxu0
        %5879 = vmatprep.mubr.bf16.mxu0 %v4813
        %5880 = vmatmul.mubr.bf16.gmra.mrb[0].mxu0 %v4812
        %v5881 = vpop.f32.mrb[0].mxu0
        %v5882 = vadd.f32 %v5721, %v5881
        %v5883 = vpop.f32.mrb[0].mxu0
        %v5884 = vpop.f32.mrb[0].mxu0
        %v5885 = vadd.f32 %v5724, %v5884
        %v5886 = vpop.f32.mrb[0].mxu0
        %5887 = vmatprep.mubr.bf16.mxu0 %v4822
        %5888 = vmatmul.mubr.bf16.gmra.mrb[0].mxu0 %v4821
        %v5889 = vpop.f32.mrb[0].mxu0
        %v5890 = vadd.f32 %v5729, %v5889
        %v5891 = vpop.f32.mrb[0].mxu0
        %v5892 = vpop.f32.mrb[0].mxu0
        %v5893 = vadd.f32 %v5732, %v5892
        %v5894 = vpop.f32.mrb[0].mxu0
        %5895 = vmatprep.mubr.bf16.mxu0 %v4831
        %5896 = vmatmul.mubr.bf16.gmra.mrb[0].mxu0 %v4830
        %v5897 = vpop.f32.mrb[0].mxu0
        %v5898 = vadd.f32 %v5737, %v5897
        %v5899 = vpop.f32.mrb[0].mxu0
        %v5900 = vpop.f32.mrb[0].mxu0
        %v5901 = vadd.f32 %v5740, %v5900
        %v5902 = vpop.f32.mrb[0].mxu0
        %5903 = vmatprep.mubr.bf16.mxu0 %v4840
        %5904 = vmatmul.mubr.bf16.gmra.mrb[0].mxu0 %v4839
        %v5905 = vpop.f32.mrb[0].mxu0
        %v5906 = vadd.f32 %v5745, %v5905
        %v5907 = vpop.f32.mrb[0].mxu0
        %v5908 = vpop.f32.mrb[0].mxu0
        %v5909 = vadd.f32 %v5748, %v5908
        %v5910 = vpop.f32.mrb[0].mxu0
        %5911 = vmatprep.mubr.bf16.mxu0 %v4849
        %5912 = vmatmul.mubr.bf16.gmra.mrb[0].mxu0 %v4848
        %v5913 = vpop.f32.mrb[0].mxu0
        %v5914 = vadd.f32 %v5753, %v5913
        %v5915 = vpop.f32.mrb[0].mxu0
        %v5916 = vpop.f32.mrb[0].mxu0
        %v5917 = vadd.f32 %v5756, %v5916
        %v5918 = vpop.f32.mrb[0].mxu0
        %5919 = vmatprep.mubr.bf16.mxu0 %v4858
        %5920 = vmatmul.mubr.bf16.gmra.mrb[0].mxu0 %v4857
        %v5921 = vpop.f32.mrb[0].mxu0
        %v5922 = vadd.f32 %v5761, %v5921
        %v5923 = vpop.f32.mrb[0].mxu0
        %v5924 = vpop.f32.mrb[0].mxu0
        %v5925 = vadd.f32 %v5764, %v5924
        %v5926 = vpop.f32.mrb[0].mxu0
        %5927 = vdwg.mxu0
        %5928 = vmatprep.subr.bf16.mxu0 0
        %5929 = vmatpush1.bf16.msra.mxu0 %v5349
        %5930 = vmatprep.subr.bf16.mxu0 0
        %5931 = vmatpush1.bf16.msra.mxu0 %v5350
        %5932 = vmatprep.subr.bf16.mxu0 0
        %5933 = vmatpush1.bf16.msra.mxu0 %v5351
        %5934 = vmatprep.subr.bf16.mxu0 0
        %5935 = vmatpush1.bf16.msra.mxu0 %v5352
        %5936 = vmatprep.subr.bf16.mxu0 0
        %5937 = vmatpush1.bf16.msra.mxu0 %v5353
        %5938 = vmatprep.subr.bf16.mxu0 0
        %5939 = vmatpush1.bf16.msra.mxu0 %v5354
        %5940 = vmatprep.subr.bf16.mxu0 0
        %5941 = vmatpush1.bf16.msra.mxu0 %v5355
        %5942 = vmatprep.subr.bf16.mxu0 0
        %5943 = vmatpush1.bf16.msra.mxu0 %v5356
        %5944 = vmatprep.subr.bf16.mxu0 0
        %5945 = vmatpush1.bf16.msra.mxu0 %v5357
        %5946 = vmatprep.subr.bf16.mxu0 0
        %5947 = vmatpush1.bf16.msra.mxu0 %v5358
        %5948 = vmatprep.subr.bf16.mxu0 0
        %5949 = vmatpush1.bf16.msra.mxu0 %v5359
        %5950 = vmatprep.subr.bf16.mxu0 0
        %5951 = vmatpush1.bf16.msra.mxu0 %v5360
        %5952 = vmatprep.subr.bf16.mxu0 0
        %5953 = vmatpush1.bf16.msra.mxu0 %v5361
        %5954 = vmatprep.subr.bf16.mxu0 0
        %5955 = vmatpush1.bf16.msra.mxu0 %v5362
        %5956 = vmatprep.subr.bf16.mxu0 0
        %5957 = vmatpush1.bf16.msra.mxu0 %v5363
        %5958 = vmatprep.subr.bf16.mxu0 0
        %5959 = vmatpush1.bf16.msra.mxu0 %v5364
        %5960 = vmatprep.mubr.bf16.mxu0 %v4725
        %5961 = vmatmul.mubr.bf16.gmra.mrb[0].mxu0 %v4724
        %v5962 = vpop.f32.mrb[0].mxu0
        %v5963 = vadd.f32 %v5802, %v5962
        %v5964 = vpop.f32.mrb[0].mxu0
        %v5965 = vpop.f32.mrb[0].mxu0
        %v5966 = vadd.f32 %v5805, %v5965
        %v5967 = vpop.f32.mrb[0].mxu0
        %5968 = vmatprep.mubr.bf16.mxu0 %v4734
        %5969 = vmatmul.mubr.bf16.gmra.mrb[0].mxu0 %v4733
        %v5970 = vpop.f32.mrb[0].mxu0
        %v5971 = vadd.f32 %v5810, %v5970
        %v5972 = vpop.f32.mrb[0].mxu0
        %v5973 = vpop.f32.mrb[0].mxu0
        %v5974 = vadd.f32 %v5813, %v5973
        %v5975 = vpop.f32.mrb[0].mxu0
        %5976 = vmatprep.mubr.bf16.mxu0 %v4743
        %5977 = vmatmul.mubr.bf16.gmra.mrb[0].mxu0 %v4742
        %v5978 = vpop.f32.mrb[0].mxu0
        %v5979 = vadd.f32 %v5818, %v5978
        %v5980 = vpop.f32.mrb[0].mxu0
        %v5981 = vpop.f32.mrb[0].mxu0
        %v5982 = vadd.f32 %v5821, %v5981
        %v5983 = vpop.f32.mrb[0].mxu0
        %5984 = vmatprep.mubr.bf16.mxu0 %v4752
        %5985 = vmatmul.mubr.bf16.gmra.mrb[0].mxu0 %v4751
        %v5986 = vpop.f32.mrb[0].mxu0
        %v5987 = vadd.f32 %v5826, %v5986
        %v5988 = vpop.f32.mrb[0].mxu0
        %v5989 = vpop.f32.mrb[0].mxu0
        %v5990 = vadd.f32 %v5829, %v5989
        %v5991 = vpop.f32.mrb[0].mxu0
        %5992 = vmatprep.mubr.bf16.mxu0 %v4761
        %5993 = vmatmul.mubr.bf16.gmra.mrb[0].mxu0 %v4760
        %v5994 = vpop.f32.mrb[0].mxu0
        %v5995 = vadd.f32 %v5834, %v5994
        %v5996 = vpop.f32.mrb[0].mxu0
        %v5997 = vpop.f32.mrb[0].mxu0
        %v5998 = vadd.f32 %v5837, %v5997
        %v5999 = vpop.f32.mrb[0].mxu0
        %6000 = vmatprep.mubr.bf16.mxu0 %v4770
        %6001 = vmatmul.mubr.bf16.gmra.mrb[0].mxu0 %v4769
        %v6002 = vpop.f32.mrb[0].mxu0
        %v6003 = vadd.f32 %v5842, %v6002
        %v6004 = vpop.f32.mrb[0].mxu0
        %v6005 = vpop.f32.mrb[0].mxu0
        %v6006 = vadd.f32 %v5845, %v6005
        %v6007 = vpop.f32.mrb[0].mxu0
        %6008 = vmatprep.mubr.bf16.mxu0 %v4779
        %6009 = vmatmul.mubr.bf16.gmra.mrb[0].mxu0 %v4778
        %v6010 = vpop.f32.mrb[0].mxu0
        %v6011 = vadd.f32 %v5850, %v6010
        %v6012 = vpop.f32.mrb[0].mxu0
        %v6013 = vpop.f32.mrb[0].mxu0
        %v6014 = vadd.f32 %v5853, %v6013
        %v6015 = vpop.f32.mrb[0].mxu0
        %6016 = vmatprep.mubr.bf16.mxu0 %v4788
        %6017 = vmatmul.mubr.bf16.gmra.mrb[0].mxu0 %v4787
        %v6018 = vpop.f32.mrb[0].mxu0
        %v6019 = vadd.f32 %v5858, %v6018
        %v6020 = vpop.f32.mrb[0].mxu0
        %v6021 = vpop.f32.mrb[0].mxu0
        %v6022 = vadd.f32 %v5861, %v6021
        %v6023 = vpop.f32.mrb[0].mxu0
        %6024 = vmatprep.mubr.bf16.mxu0 %v4797
        %6025 = vmatmul.mubr.bf16.gmra.mrb[0].mxu0 %v4796
        %v6026 = vpop.f32.mrb[0].mxu0
        %v6027 = vadd.f32 %v5866, %v6026
        %v6028 = vpop.f32.mrb[0].mxu0
        %v6029 = vpop.f32.mrb[0].mxu0
        %v6030 = vadd.f32 %v5869, %v6029
        %v6031 = vpop.f32.mrb[0].mxu0
        %6032 = vmatprep.mubr.bf16.mxu0 %v4806
        %6033 = vmatmul.mubr.bf16.gmra.mrb[0].mxu0 %v4805
        %v6034 = vpop.f32.mrb[0].mxu0
        %v6035 = vadd.f32 %v5874, %v6034
        %v6036 = vpop.f32.mrb[0].mxu0
        %v6037 = vpop.f32.mrb[0].mxu0
        %v6038 = vadd.f32 %v5877, %v6037
        %v6039 = vpop.f32.mrb[0].mxu0
        %6040 = vmatprep.mubr.bf16.mxu0 %v4815
        %6041 = vmatmul.mubr.bf16.gmra.mrb[0].mxu0 %v4814
        %v6042 = vpop.f32.mrb[0].mxu0
        %v6043 = vadd.f32 %v5882, %v6042
        %v6044 = vpop.f32.mrb[0].mxu0
        %v6045 = vpop.f32.mrb[0].mxu0
        %v6046 = vadd.f32 %v5885, %v6045
        %v6047 = vpop.f32.mrb[0].mxu0
        %6048 = vmatprep.mubr.bf16.mxu0 %v4824
        %6049 = vmatmul.mubr.bf16.gmra.mrb[0].mxu0 %v4823
        %v6050 = vpop.f32.mrb[0].mxu0
        %v6051 = vadd.f32 %v5890, %v6050
        %v6052 = vpop.f32.mrb[0].mxu0
        %v6053 = vpop.f32.mrb[0].mxu0
        %v6054 = vadd.f32 %v5893, %v6053
        %v6055 = vpop.f32.mrb[0].mxu0
        %6056 = vmatprep.mubr.bf16.mxu0 %v4833
        %6057 = vmatmul.mubr.bf16.gmra.mrb[0].mxu0 %v4832
        %v6058 = vpop.f32.mrb[0].mxu0
        %v6059 = vadd.f32 %v5898, %v6058
        %v6060 = vpop.f32.mrb[0].mxu0
        %v6061 = vpop.f32.mrb[0].mxu0
        %v6062 = vadd.f32 %v5901, %v6061
        %v6063 = vpop.f32.mrb[0].mxu0
        %6064 = vmatprep.mubr.bf16.mxu0 %v4842
        %6065 = vmatmul.mubr.bf16.gmra.mrb[0].mxu0 %v4841
        %v6066 = vpop.f32.mrb[0].mxu0
        %v6067 = vadd.f32 %v5906, %v6066
        %v6068 = vpop.f32.mrb[0].mxu0
        %v6069 = vpop.f32.mrb[0].mxu0
        %v6070 = vadd.f32 %v5909, %v6069
        %v6071 = vpop.f32.mrb[0].mxu0
        %6072 = vmatprep.mubr.bf16.mxu0 %v4851
        %6073 = vmatmul.mubr.bf16.gmra.mrb[0].mxu0 %v4850
        %v6074 = vpop.f32.mrb[0].mxu0
        %v6075 = vadd.f32 %v5914, %v6074
        %v6076 = vpop.f32.mrb[0].mxu0
        %v6077 = vpop.f32.mrb[0].mxu0
        %v6078 = vadd.f32 %v5917, %v6077
        %v6079 = vpop.f32.mrb[0].mxu0
        %6080 = vmatprep.mubr.bf16.mxu0 %v4860
        %6081 = vmatmul.mubr.bf16.gmra.mrb[0].mxu0 %v4859
        %v6082 = vpop.f32.mrb[0].mxu0
        %v6083 = vadd.f32 %v5922, %v6082
        %v6084 = vpop.f32.mrb[0].mxu0
        %v6085 = vpop.f32.mrb[0].mxu0
        %v6086 = vadd.f32 %v5925, %v6085
        %v6087 = vpop.f32.mrb[0].mxu0
        %6088 = vdwg.mxu0
        %6089 = vmatprep.subr.bf16.mxu0 0
        %6090 = vmatpush1.bf16.msra.mxu0 %v5365
        %6091 = vmatprep.subr.bf16.mxu0 0
        %6092 = vmatpush1.bf16.msra.mxu0 %v5366
        %6093 = vmatprep.subr.bf16.mxu0 0
        %6094 = vmatpush1.bf16.msra.mxu0 %v5367
        %6095 = vmatprep.subr.bf16.mxu0 0
        %6096 = vmatpush1.bf16.msra.mxu0 %v5368
        %6097 = vmatprep.subr.bf16.mxu0 0
        %6098 = vmatpush1.bf16.msra.mxu0 %v5369
        %6099 = vmatprep.subr.bf16.mxu0 0
        %6100 = vmatpush1.bf16.msra.mxu0 %v5370
        %6101 = vmatprep.subr.bf16.mxu0 0
        %6102 = vmatpush1.bf16.msra.mxu0 %v5371
        %6103 = vmatprep.subr.bf16.mxu0 0
        %6104 = vmatpush1.bf16.msra.mxu0 %v5372
        %6105 = vmatprep.subr.bf16.mxu0 0
        %6106 = vmatpush1.bf16.msra.mxu0 0
        %6107 = vmatprep.subr.bf16.mxu0 0
        %6108 = vmatpush1.bf16.msra.mxu0 0
        %6109 = vmatprep.subr.bf16.mxu0 0
        %6110 = vmatpush1.bf16.msra.mxu0 0
        %6111 = vmatprep.subr.bf16.mxu0 0
        %6112 = vmatpush1.bf16.msra.mxu0 0
        %6113 = vmatprep.subr.bf16.mxu0 0
        %6114 = vmatpush1.bf16.msra.mxu0 0
        %6115 = vmatprep.subr.bf16.mxu0 0
        %6116 = vmatpush1.bf16.msra.mxu0 0
        %6117 = vmatprep.subr.bf16.mxu0 0
        %6118 = vmatpush1.bf16.msra.mxu0 0
        %6119 = vmatprep.subr.bf16.mxu0 0
        %6120 = vmatpush1.bf16.msra.mxu0 0
        %6121 = vmatprep.mubr.bf16.mxu0 0
        %6122 = vmatmul.mubr.bf16.gmra.mrb[0].mxu0 %v4726
        %v6123 = vpop.f32.mrb[0].mxu0
        %v6124 = vadd.f32 %v5963, %v6123
        %v6125 = vpop.f32.mrb[0].mxu0
        %v6126 = vpop.f32.mrb[0].mxu0
        %v6127 = vadd.f32 %v5966, %v6126
        %v6128 = vpop.f32.mrb[0].mxu0
        %6129 = vmatprep.mubr.bf16.mxu0 0
        %6130 = vmatmul.mubr.bf16.gmra.mrb[0].mxu0 %v4735
        %v6131 = vpop.f32.mrb[0].mxu0
        %v6132 = vadd.f32 %v5971, %v6131
        %v6133 = vpop.f32.mrb[0].mxu0
        %v6134 = vpop.f32.mrb[0].mxu0
        %v6135 = vadd.f32 %v5974, %v6134
        %v6136 = vpop.f32.mrb[0].mxu0
        %6137 = vmatprep.mubr.bf16.mxu0 0
        %6138 = vmatmul.mubr.bf16.gmra.mrb[0].mxu0 %v4744
        %v6139 = vpop.f32.mrb[0].mxu0
        %v6140 = vadd.f32 %v5979, %v6139
        %v6141 = vpop.f32.mrb[0].mxu0
        %v6142 = vpop.f32.mrb[0].mxu0
        %v6143 = vadd.f32 %v5982, %v6142
        %v6144 = vpop.f32.mrb[0].mxu0
        %6145 = vmatprep.mubr.bf16.mxu0 0
        %6146 = vmatmul.mubr.bf16.gmra.mrb[0].mxu0 %v4753
        %v6147 = vpop.f32.mrb[0].mxu0
        %v6148 = vadd.f32 %v5987, %v6147
        %v6149 = vpop.f32.mrb[0].mxu0
        %v6150 = vpop.f32.mrb[0].mxu0
        %v6151 = vadd.f32 %v5990, %v6150
        %v6152 = vpop.f32.mrb[0].mxu0
        %6153 = vmatprep.mubr.bf16.mxu0 0
        %6154 = vmatmul.mubr.bf16.gmra.mrb[0].mxu0 %v4762
        %v6155 = vpop.f32.mrb[0].mxu0
        %v6156 = vadd.f32 %v5995, %v6155
        %v6157 = vpop.f32.mrb[0].mxu0
        %v6158 = vpop.f32.mrb[0].mxu0
        %v6159 = vadd.f32 %v5998, %v6158
        %v6160 = vpop.f32.mrb[0].mxu0
        %6161 = vmatprep.mubr.bf16.mxu0 0
        %6162 = vmatmul.mubr.bf16.gmra.mrb[0].mxu0 %v4771
        %v6163 = vpop.f32.mrb[0].mxu0
        %v6164 = vadd.f32 %v6003, %v6163
        %v6165 = vpop.f32.mrb[0].mxu0
        %v6166 = vpop.f32.mrb[0].mxu0
        %v6167 = vadd.f32 %v6006, %v6166
        %v6168 = vpop.f32.mrb[0].mxu0
        %6169 = vmatprep.mubr.bf16.mxu0 0
        %6170 = vmatmul.mubr.bf16.gmra.mrb[0].mxu0 %v4780
        %v6171 = vpop.f32.mrb[0].mxu0
        %v6172 = vadd.f32 %v6011, %v6171
        %v6173 = vpop.f32.mrb[0].mxu0
        %v6174 = vpop.f32.mrb[0].mxu0
        %v6175 = vadd.f32 %v6014, %v6174
        %v6176 = vpop.f32.mrb[0].mxu0
        %6177 = vmatprep.mubr.bf16.mxu0 0
        %6178 = vmatmul.mubr.bf16.gmra.mrb[0].mxu0 %v4789
        %v6179 = vpop.f32.mrb[0].mxu0
        %v6180 = vadd.f32 %v6019, %v6179
        %v6181 = vpop.f32.mrb[0].mxu0
        %v6182 = vpop.f32.mrb[0].mxu0
        %v6183 = vadd.f32 %v6022, %v6182
        %v6184 = vpop.f32.mrb[0].mxu0
        %6185 = vmatprep.mubr.bf16.mxu0 0
        %6186 = vmatmul.mubr.bf16.gmra.mrb[0].mxu0 %v4798
        %v6187 = vpop.f32.mrb[0].mxu0
        %v6188 = vadd.f32 %v6027, %v6187
        %v6189 = vpop.f32.mrb[0].mxu0
        %v6190 = vpop.f32.mrb[0].mxu0
        %v6191 = vadd.f32 %v6030, %v6190
        %v6192 = vpop.f32.mrb[0].mxu0
        %6193 = vmatprep.mubr.bf16.mxu0 0
        %6194 = vmatmul.mubr.bf16.gmra.mrb[0].mxu0 %v4807
        %v6195 = vpop.f32.mrb[0].mxu0
        %v6196 = vadd.f32 %v6035, %v6195
        %v6197 = vpop.f32.mrb[0].mxu0
        %v6198 = vpop.f32.mrb[0].mxu0
        %v6199 = vadd.f32 %v6038, %v6198
        %v6200 = vpop.f32.mrb[0].mxu0
        %6201 = vmatprep.mubr.bf16.mxu0 0
        %6202 = vmatmul.mubr.bf16.gmra.mrb[0].mxu0 %v4816
        %v6203 = vpop.f32.mrb[0].mxu0
        %v6204 = vadd.f32 %v6043, %v6203
        %v6205 = vpop.f32.mrb[0].mxu0
        %v6206 = vpop.f32.mrb[0].mxu0
        %v6207 = vadd.f32 %v6046, %v6206
        %v6208 = vpop.f32.mrb[0].mxu0
        %6209 = vmatprep.mubr.bf16.mxu0 0
        %6210 = vmatmul.mubr.bf16.gmra.mrb[0].mxu0 %v4825
        %v6211 = vpop.f32.mrb[0].mxu0
        %v6212 = vadd.f32 %v6051, %v6211
        %v6213 = vpop.f32.mrb[0].mxu0
        %v6214 = vpop.f32.mrb[0].mxu0
        %v6215 = vadd.f32 %v6054, %v6214
        %v6216 = vpop.f32.mrb[0].mxu0
        %6217 = vmatprep.mubr.bf16.mxu0 0
        %6218 = vmatmul.mubr.bf16.gmra.mrb[0].mxu0 %v4834
        %v6219 = vpop.f32.mrb[0].mxu0
        %v6220 = vadd.f32 %v6059, %v6219
        %v6221 = vpop.f32.mrb[0].mxu0
        %v6222 = vpop.f32.mrb[0].mxu0
        %v6223 = vadd.f32 %v6062, %v6222
        %v6224 = vpop.f32.mrb[0].mxu0
        %6225 = vmatprep.mubr.bf16.mxu0 0
        %6226 = vmatmul.mubr.bf16.gmra.mrb[0].mxu0 %v4843
        %v6227 = vpop.f32.mrb[0].mxu0
        %v6228 = vadd.f32 %v6067, %v6227
        %v6229 = vpop.f32.mrb[0].mxu0
        %v6230 = vpop.f32.mrb[0].mxu0
        %v6231 = vadd.f32 %v6070, %v6230
        %v6232 = vpop.f32.mrb[0].mxu0
        %6233 = vmatprep.mubr.bf16.mxu0 0
        %6234 = vmatmul.mubr.bf16.gmra.mrb[0].mxu0 %v4852
        %v6235 = vpop.f32.mrb[0].mxu0
        %v6236 = vadd.f32 %v6075, %v6235
        %v6237 = vpop.f32.mrb[0].mxu0
        %v6238 = vpop.f32.mrb[0].mxu0
        %v6239 = vadd.f32 %v6078, %v6238
        %v6240 = vpop.f32.mrb[0].mxu0
        %6241 = vmatprep.mubr.bf16.mxu0 0
        %6242 = vmatmul.mubr.bf16.gmra.mrb[0].mxu0 %v4861
        %v6243 = vpop.f32.mrb[0].mxu0
        %v6244 = vadd.f32 %v6083, %v6243
        %v6245 = vpop.f32.mrb[0].mxu0
        %v6246 = vpop.f32.mrb[0].mxu0
        %v6247 = vadd.f32 %v6086, %v6246
        %v6248 = vpop.f32.mrb[0].mxu0
        %6249 = vdwg.mxu0
        %v6250 = vld [vmem:[#allocation10] sm:$0xf]
        %v6251 = vld [vmem:[#allocation10 + $0x4] sm:$0xf]
        %v6252 = vld [vmem:[#allocation10 + $0x8] sm:$0xf]
        %v6253 = vld [vmem:[#allocation10 + $0xc] sm:$0xf]
        %v6254 = vld [vmem:[#allocation10 + $0x10] sm:$0xf]
        %v6255 = vld [vmem:[#allocation10 + $0x14] sm:$0xf]
        %v6256 = vld [vmem:[#allocation10 + $0x18] sm:$0xf]
        %v6257 = vld [vmem:[#allocation10 + $0x1c] sm:$0xf]
        %v6258 = vld [vmem:[#allocation10 + $0x20] sm:$0xf]
        %v6259 = vld [vmem:[#allocation10 + $0x24] sm:$0xf]
        %v6260 = vld [vmem:[#allocation10 + $0x28] sm:$0xf]
        %v6261 = vld [vmem:[#allocation10 + $0x2c] sm:$0xf]
        %v6262 = vld [vmem:[#allocation10 + $0x30] sm:$0xf]
        %v6263 = vld [vmem:[#allocation10 + $0x34] sm:$0xf]
        %v6264 = vld [vmem:[#allocation10 + $0x38] sm:$0xf]
        %v6265 = vld [vmem:[#allocation10 + $0x3c] sm:$0xf]
        %v6282 = vunpack.c.l.b16 %v6250
        %v6283 = vunpack.c.l.b16 %v6251
        %v6284 = vunpack.c.l.b16 %v6252
        %v6285 = vunpack.c.l.b16 %v6253
        %v6286 = vunpack.c.l.b16 %v6254
        %v6287 = vunpack.c.l.b16 %v6255
        %v6288 = vunpack.c.l.b16 %v6256
        %v6289 = vunpack.c.l.b16 %v6257
        %v6290 = vunpack.c.l.b16 %v6258
        %v6291 = vunpack.c.l.b16 %v6259
        %v6292 = vunpack.c.l.b16 %v6260
        %v6293 = vunpack.c.l.b16 %v6261
        %v6294 = vunpack.c.l.b16 %v6262
        %v6295 = vunpack.c.l.b16 %v6263
        %v6296 = vunpack.c.l.b16 %v6264
        %v6297 = vunpack.c.l.b16 %v6265
        %v6298 = vpack.c.b16 %v6283, %v6282
        %v6299 = vpack.c.b16 %v6285, %v6284
        %v6300 = vpack.c.b16 %v6287, %v6286
        %v6301 = vpack.c.b16 %v6289, %v6288
        %v6302 = vpack.c.b16 %v6291, %v6290
        %v6303 = vpack.c.b16 %v6293, %v6292
        %v6304 = vpack.c.b16 %v6295, %v6294
        %v6305 = vpack.c.b16 %v6297, %v6296
        %6314 = vmatprep.subr.bf16.mxu0 0
        %6315 = vmatpush1.bf16.msra.mxu0 %v6298
        %6316 = vmatprep.subr.bf16.mxu0 0
        %6317 = vmatpush1.bf16.msra.mxu0 %v6299
        %6318 = vmatprep.subr.bf16.mxu0 0
        %6319 = vmatpush1.bf16.msra.mxu0 %v6300
        %6320 = vmatprep.subr.bf16.mxu0 0
        %6321 = vmatpush1.bf16.msra.mxu0 %v6301
        %6322 = vmatprep.subr.bf16.mxu0 0
        %6323 = vmatpush1.bf16.msra.mxu0 %v6302
        %6324 = vmatprep.subr.bf16.mxu0 0
        %6325 = vmatpush1.bf16.msra.mxu0 %v6303
        %6326 = vmatprep.subr.bf16.mxu0 0
        %6327 = vmatpush1.bf16.msra.mxu0 %v6304
        %6328 = vmatprep.subr.bf16.mxu0 0
        %6329 = vmatpush1.bf16.msra.mxu0 %v6305
        %6330 = vmatprep.subr.bf16.mxu0 0
        %6331 = vmatpush1.bf16.msra.mxu0 0
        %6332 = vmatprep.subr.bf16.mxu0 0
        %6333 = vmatpush1.bf16.msra.mxu0 0
        %6334 = vmatprep.subr.bf16.mxu0 0
        %6335 = vmatpush1.bf16.msra.mxu0 0
        %6336 = vmatprep.subr.bf16.mxu0 0
        %6337 = vmatpush1.bf16.msra.mxu0 0
        %6338 = vmatprep.subr.bf16.mxu0 0
        %6339 = vmatpush1.bf16.msra.mxu0 0
        %6340 = vmatprep.subr.bf16.mxu0 0
        %6341 = vmatpush1.bf16.msra.mxu0 0
        %6342 = vmatprep.subr.bf16.mxu0 0
        %6343 = vmatpush1.bf16.msra.mxu0 0
        %6344 = vmatprep.subr.bf16.mxu0 0
        %6345 = vmatpush1.bf16.msra.mxu0 0
        %6346 = vmatprep.mubr.bf16.mxu0 0
        %6347 = vmatmul.mubr.bf16.gmra.mrb[0].mxu0 %v1236
        %v6348 = vpop.f32.mrb[0].mxu0
        %v6349 = vadd.f32 0.0, %v6348
        %v6350 = vpop.f32.mrb[0].mxu0
        %v6351 = vpop.f32.mrb[0].mxu0
        %v6352 = vadd.f32 0.0, %v6351
        %v6353 = vpop.f32.mrb[0].mxu0
        %6354 = vmatprep.mubr.bf16.mxu0 0
        %6355 = vmatmul.mubr.bf16.gmra.mrb[0].mxu0 %v1237
        %v6356 = vpop.f32.mrb[0].mxu0
        %v6357 = vadd.f32 0.0, %v6356
        %v6358 = vpop.f32.mrb[0].mxu0
        %v6359 = vpop.f32.mrb[0].mxu0
        %v6360 = vadd.f32 0.0, %v6359
        %v6361 = vpop.f32.mrb[0].mxu0
        %6362 = vmatprep.mubr.bf16.mxu0 0
        %6363 = vmatmul.mubr.bf16.gmra.mrb[0].mxu0 %v1238
        %v6364 = vpop.f32.mrb[0].mxu0
        %v6365 = vadd.f32 0.0, %v6364
        %v6366 = vpop.f32.mrb[0].mxu0
        %v6367 = vpop.f32.mrb[0].mxu0
        %v6368 = vadd.f32 0.0, %v6367
        %v6369 = vpop.f32.mrb[0].mxu0
        %6370 = vmatprep.mubr.bf16.mxu0 0
        %6371 = vmatmul.mubr.bf16.gmra.mrb[0].mxu0 %v1239
        %v6372 = vpop.f32.mrb[0].mxu0
        %v6373 = vadd.f32 0.0, %v6372
        %v6374 = vpop.f32.mrb[0].mxu0
        %v6375 = vpop.f32.mrb[0].mxu0
        %v6376 = vadd.f32 0.0, %v6375
        %v6377 = vpop.f32.mrb[0].mxu0
        %6378 = vmatprep.mubr.bf16.mxu0 0
        %6379 = vmatmul.mubr.bf16.gmra.mrb[0].mxu0 %v1240
        %v6380 = vpop.f32.mrb[0].mxu0
        %v6381 = vadd.f32 0.0, %v6380
        %v6382 = vpop.f32.mrb[0].mxu0
        %v6383 = vpop.f32.mrb[0].mxu0
        %v6384 = vadd.f32 0.0, %v6383
        %v6385 = vpop.f32.mrb[0].mxu0
        %6386 = vmatprep.mubr.bf16.mxu0 0
        %6387 = vmatmul.mubr.bf16.gmra.mrb[0].mxu0 %v1241
        %v6388 = vpop.f32.mrb[0].mxu0
        %v6389 = vadd.f32 0.0, %v6388
        %v6390 = vpop.f32.mrb[0].mxu0
        %v6391 = vpop.f32.mrb[0].mxu0
        %v6392 = vadd.f32 0.0, %v6391
        %v6393 = vpop.f32.mrb[0].mxu0
        %6394 = vmatprep.mubr.bf16.mxu0 0
        %6395 = vmatmul.mubr.bf16.gmra.mrb[0].mxu0 %v1242
        %v6396 = vpop.f32.mrb[0].mxu0
        %v6397 = vadd.f32 0.0, %v6396
        %v6398 = vpop.f32.mrb[0].mxu0
        %v6399 = vpop.f32.mrb[0].mxu0
        %v6400 = vadd.f32 0.0, %v6399
        %v6401 = vpop.f32.mrb[0].mxu0
        %6402 = vmatprep.mubr.bf16.mxu0 0
        %6403 = vmatmul.mubr.bf16.gmra.mrb[0].mxu0 %v1243
        %v6404 = vpop.f32.mrb[0].mxu0
        %v6405 = vadd.f32 0.0, %v6404
        %v6406 = vpop.f32.mrb[0].mxu0
        %v6407 = vpop.f32.mrb[0].mxu0
        %v6408 = vadd.f32 0.0, %v6407
        %v6409 = vpop.f32.mrb[0].mxu0
        %6410 = vmatprep.mubr.bf16.mxu0 0
        %6411 = vmatmul.mubr.bf16.gmra.mrb[0].mxu0 %v1244
        %v6412 = vpop.f32.mrb[0].mxu0
        %v6413 = vadd.f32 0.0, %v6412
        %v6414 = vpop.f32.mrb[0].mxu0
        %v6415 = vpop.f32.mrb[0].mxu0
        %v6416 = vadd.f32 0.0, %v6415
        %v6417 = vpop.f32.mrb[0].mxu0
        %6418 = vmatprep.mubr.bf16.mxu0 0
        %6419 = vmatmul.mubr.bf16.gmra.mrb[0].mxu0 %v1245
        %v6420 = vpop.f32.mrb[0].mxu0
        %v6421 = vadd.f32 0.0, %v6420
        %v6422 = vpop.f32.mrb[0].mxu0
        %v6423 = vpop.f32.mrb[0].mxu0
        %v6424 = vadd.f32 0.0, %v6423
        %v6425 = vpop.f32.mrb[0].mxu0
        %6426 = vmatprep.mubr.bf16.mxu0 0
        %6427 = vmatmul.mubr.bf16.gmra.mrb[0].mxu0 %v1246
        %v6428 = vpop.f32.mrb[0].mxu0
        %v6429 = vadd.f32 0.0, %v6428
        %v6430 = vpop.f32.mrb[0].mxu0
        %v6431 = vpop.f32.mrb[0].mxu0
        %v6432 = vadd.f32 0.0, %v6431
        %v6433 = vpop.f32.mrb[0].mxu0
        %6434 = vmatprep.mubr.bf16.mxu0 0
        %6435 = vmatmul.mubr.bf16.gmra.mrb[0].mxu0 %v1247
        %v6436 = vpop.f32.mrb[0].mxu0
        %v6437 = vadd.f32 0.0, %v6436
        %v6438 = vpop.f32.mrb[0].mxu0
        %v6439 = vpop.f32.mrb[0].mxu0
        %v6440 = vadd.f32 0.0, %v6439
        %v6441 = vpop.f32.mrb[0].mxu0
        %6442 = vmatprep.mubr.bf16.mxu0 0
        %6443 = vmatmul.mubr.bf16.gmra.mrb[0].mxu0 %v1248
        %v6444 = vpop.f32.mrb[0].mxu0
        %v6445 = vadd.f32 0.0, %v6444
        %v6446 = vpop.f32.mrb[0].mxu0
        %v6447 = vpop.f32.mrb[0].mxu0
        %v6448 = vadd.f32 0.0, %v6447
        %v6449 = vpop.f32.mrb[0].mxu0
        %6450 = vmatprep.mubr.bf16.mxu0 0
        %6451 = vmatmul.mubr.bf16.gmra.mrb[0].mxu0 %v1249
        %v6452 = vpop.f32.mrb[0].mxu0
        %v6453 = vadd.f32 0.0, %v6452
        %v6454 = vpop.f32.mrb[0].mxu0
        %v6455 = vpop.f32.mrb[0].mxu0
        %v6456 = vadd.f32 0.0, %v6455
        %v6457 = vpop.f32.mrb[0].mxu0
        %6458 = vmatprep.mubr.bf16.mxu0 0
        %6459 = vmatmul.mubr.bf16.gmra.mrb[0].mxu0 %v1250
        %v6460 = vpop.f32.mrb[0].mxu0
        %v6461 = vadd.f32 0.0, %v6460
        %v6462 = vpop.f32.mrb[0].mxu0
        %v6463 = vpop.f32.mrb[0].mxu0
        %v6464 = vadd.f32 0.0, %v6463
        %v6465 = vpop.f32.mrb[0].mxu0
        %6466 = vmatprep.mubr.bf16.mxu0 0
        %6467 = vmatmul.mubr.bf16.gmra.mrb[0].mxu0 %v1251
        %v6468 = vpop.f32.mrb[0].mxu0
        %v6469 = vadd.f32 0.0, %v6468
        %v6470 = vpop.f32.mrb[0].mxu0
        %v6471 = vpop.f32.mrb[0].mxu0
        %v6472 = vadd.f32 0.0, %v6471
        %v6473 = vpop.f32.mrb[0].mxu0
        %6474 = vdwg.mxu0
        %v6475 = vadd.f32 %v6124, %v6349
        %v6476 = vadd.f32 %v6127, %v6352
        %v6477 = vadd.f32 %v6132, %v6357
        %v6478 = vadd.f32 %v6135, %v6360
        %v6479 = vadd.f32 %v6140, %v6365
        %v6480 = vadd.f32 %v6143, %v6368
        %v6481 = vadd.f32 %v6148, %v6373
        %v6482 = vadd.f32 %v6151, %v6376
        %v6483 = vadd.f32 %v6156, %v6381
        %v6484 = vadd.f32 %v6159, %v6384
        %v6485 = vadd.f32 %v6164, %v6389
        %v6486 = vadd.f32 %v6167, %v6392
        %v6487 = vadd.f32 %v6172, %v6397
        %v6488 = vadd.f32 %v6175, %v6400
        %v6489 = vadd.f32 %v6180, %v6405
        %v6490 = vadd.f32 %v6183, %v6408
        %v6491 = vadd.f32 %v6188, %v6413
        %v6492 = vadd.f32 %v6191, %v6416
        %v6493 = vadd.f32 %v6196, %v6421
        %v6494 = vadd.f32 %v6199, %v6424
        %v6495 = vadd.f32 %v6204, %v6429
        %v6496 = vadd.f32 %v6207, %v6432
        %v6497 = vadd.f32 %v6212, %v6437
        %v6498 = vadd.f32 %v6215, %v6440
        %v6499 = vadd.f32 %v6220, %v6445
        %v6500 = vadd.f32 %v6223, %v6448
        %v6501 = vadd.f32 %v6228, %v6453
        %v6502 = vadd.f32 %v6231, %v6456
        %v6503 = vadd.f32 %v6236, %v6461
        %v6504 = vadd.f32 %v6239, %v6464
        %v6505 = vadd.f32 %v6244, %v6469
        %v6506 = vadd.f32 %v6247, %v6472
        %v6507 = vmax.f32 %v6475, 0.0
        %v6508 = vmax.f32 %v6476, 0.0
        %v6509 = vmax.f32 %v6477, 0.0
        %v6510 = vmax.f32 %v6478, 0.0
        %v6511 = vmax.f32 %v6479, 0.0
        %v6512 = vmax.f32 %v6480, 0.0
        %v6513 = vmax.f32 %v6481, 0.0
        %v6514 = vmax.f32 %v6482, 0.0
        %v6515 = vmax.f32 %v6483, 0.0
        %v6516 = vmax.f32 %v6484, 0.0
        %v6517 = vmax.f32 %v6485, 0.0
        %v6518 = vmax.f32 %v6486, 0.0
        %v6519 = vmax.f32 %v6487, 0.0
        %v6520 = vmax.f32 %v6488, 0.0
        %v6521 = vmax.f32 %v6489, 0.0
        %v6522 = vmax.f32 %v6490, 0.0
        %v6523 = vmax.f32 %v6491, 0.0
        %v6524 = vmax.f32 %v6492, 0.0
        %v6525 = vmax.f32 %v6493, 0.0
        %v6526 = vmax.f32 %v6494, 0.0
        %v6527 = vmax.f32 %v6495, 0.0
        %v6528 = vmax.f32 %v6496, 0.0
        %v6529 = vmax.f32 %v6497, 0.0
        %v6530 = vmax.f32 %v6498, 0.0
        %v6531 = vmax.f32 %v6499, 0.0
        %v6532 = vmax.f32 %v6500, 0.0
        %v6533 = vmax.f32 %v6501, 0.0
        %v6534 = vmax.f32 %v6502, 0.0
        %v6535 = vmax.f32 %v6503, 0.0
        %v6536 = vmax.f32 %v6504, 0.0
        %v6537 = vmax.f32 %v6505, 0.0
        %v6538 = vmax.f32 %v6506, 0.0
        %6539 = vst [vmem:[%s313] sm:$0xff] %v6507
        %6540 = vst [vmem:[%s313 + $0x8] sm:$0xff] %v6508
        %6541 = vst [vmem:[%s313 + $0x10] sm:$0xff] %v6509
        %6542 = vst [vmem:[%s313 + $0x18] sm:$0xff] %v6510
        %6543 = vst [vmem:[%s313 + $0x20] sm:$0xff] %v6511
        %6544 = vst [vmem:[%s313 + $0x28] sm:$0xff] %v6512
        %6545 = vst [vmem:[%s313 + $0x30] sm:$0xff] %v6513
        %6546 = vst [vmem:[%s313 + $0x38] sm:$0xff] %v6514
        %6547 = vst [vmem:[%s313 + $0x40] sm:$0xff] %v6515
        %6548 = vst [vmem:[%s313 + $0x48] sm:$0xff] %v6516
        %6549 = vst [vmem:[%s313 + $0x50] sm:$0xff] %v6517
        %6550 = vst [vmem:[%s313 + $0x58] sm:$0xff] %v6518
        %6551 = vst [vmem:[%s313 + $0x60] sm:$0xff] %v6519
        %6552 = vst [vmem:[%s313 + $0x68] sm:$0xff] %v6520
        %6553 = vst [vmem:[%s313 + $0x70] sm:$0xff] %v6521
        %6554 = vst [vmem:[%s313 + $0x78] sm:$0xff] %v6522
        %6555 = vst [vmem:[%s313 + $0x80] sm:$0xff] %v6523
        %6556 = vst [vmem:[%s313 + $0x88] sm:$0xff] %v6524
        %6557 = vst [vmem:[%s313 + $0x90] sm:$0xff] %v6525
        %6558 = vst [vmem:[%s313 + $0x98] sm:$0xff] %v6526
        %6559 = vst [vmem:[%s313 + $0xa0] sm:$0xff] %v6527
        %6560 = vst [vmem:[%s313 + $0xa8] sm:$0xff] %v6528
        %6561 = vst [vmem:[%s313 + $0xb0] sm:$0xff] %v6529
        %6562 = vst [vmem:[%s313 + $0xb8] sm:$0xff] %v6530
        %6563 = vst [vmem:[%s313 + $0xc0] sm:$0xff] %v6531
        %6564 = vst [vmem:[%s313 + $0xc8] sm:$0xff] %v6532
        %6565 = vst [vmem:[%s313 + $0xd0] sm:$0xff] %v6533
        %6566 = vst [vmem:[%s313 + $0xd8] sm:$0xff] %v6534
        %6567 = vst [vmem:[%s313 + $0xe0] sm:$0xff] %v6535
        %6568 = vst [vmem:[%s313 + $0xe8] sm:$0xff] %v6536
        %6569 = vst [vmem:[%s313 + $0xf0] sm:$0xff] %v6537
        %6570 = vst [vmem:[%s313 + $0xf8] sm:$0xff] %v6538
        %s6571 = sand.u32 %s164, 1
        %s6572 = scalar_lea.sflag [#allocation6], %s6571
        %s6573 = sand.u32 %s164, 1
        %s6574 = smul.addr %s6573, 256
        %s6575 = scalar_lea.vmem [#allocation12], %s6574
        // Predicated region
        $region61: #{tpu_custom_call.1} parent=43 // pred_check
          %p6576 = pneg %p174
        $region62: #{tpu_custom_call.1} parent=43 // pred_check_branch
          %6578 = sbr.rel (%p6576) target = $region64
        $region63: #{tpu_custom_call.1} parent=43 // pred_region
          %s6580 = ssub.s32 4096, 4096
          %6581 = vsyncadd %s6572, %s6580
          %s6582 = smul.addr %s25, 32
          %s6583 = smul.addr %s6582, 128
          %s6584 = scalar_lea.hbm %s6, %s6583
          %s6585 = sshll.u32 %s6575, 4
          %s6586 = int_to_ptr.vmem [resolvable:$true] %s6585
          %6591 = dma.vmem_to_hbm [thread:$0]  %s6586, 4096, %s6584, %s6572, 128, 128, 8
        $region64: #{tpu_custom_call.1} parent=43 // pred_fallthru
          _
      $region44: #{tpu_custom_call.1} parent=5 // pred_fallthru
        _
      %p6592 = scmp.le.s32.totalorder 2, %s20
      // Predicated region
      $region65: #{tpu_custom_call.1} parent=5 // pred_check
        %p6593 = pneg %p6592
      $region66: #{tpu_custom_call.1} parent=5 // pred_check_branch
        %6595 = sbr.rel (%p6593) target = $region68
      $region67: #{tpu_custom_call.1} parent=5 // pred_region
        %s6596 = ssub.s32 %s20, 2
        // Predicated region
        $region69: #{tpu_custom_call.1} parent=67 // pred_check
          %p6597 = pneg %p180
        $region70: #{tpu_custom_call.1} parent=67 // pred_check_branch
          %6599 = sbr.rel (%p6597) target = $region72
        $region71: #{tpu_custom_call.1} parent=67 // pred_region
          %s6600 = sand.u32 %s165, 1
          %s6601 = scalar_lea.sflag [#allocation6], %s6600
          %s6602 = sand.u32 %s165, 1
          %s6603 = smul.addr %s6602, 256
          %s6604 = scalar_lea.vmem [#allocation12], %s6603
          %6605 = dma.done %s6601, 4096
        $region72: #{tpu_custom_call.1} parent=67 // pred_fallthru
          _
      $region68: #{tpu_custom_call.1} parent=5 // pred_fallthru
        _
    $region6: #{tpu_custom_call.1} parent=1 // loop_footer
      %s24 = sadd.s32 1, %s20
    $region7: #{tpu_custom_call.1} parent=1 // loop_footer_branch
      %19 = sbr.rel target = $region3
    $region8: #{tpu_custom_call.1} parent=1 // loop_exit
      _
    %6606 = vsyncpa [#allocation5], 1
    %s6607 = scalar_lea.sflag [#allocation5], 1
    %6608 = vsyncpa %s6607, 1
    %6609 = vsyncpa [#allocation8], 1
    %6610 = vsyncpa [#allocation11], 1
    %6611 = vsyncpa [#allocation6], 1
    %s6612 = scalar_lea.sflag [#allocation6], 1
    %6613 = vsyncpa %s6612, 1

</llo_original>
